<compile_context>
chip_gen: v7x
topology: tpu7x:2x2x1
jax: 0.10.0
libtpu: 0.0.40
codegen_flags: <defaults>
</compile_context>

<pallas_src>
import functools

import numpy as np
import jax
import jax.numpy as jnp
from jax.experimental import pallas as pl
from jax.experimental.pallas import tpu as pltpu

NEG_SLOPE = 0.2       # LeakyReLU(0.2)
PIXNORM_EPS = 1e-8    # PixelwiseNorm epsilon

# 3x3 kernel taps, row-major: o = 3*(dy+1) + (dx+1)
_OFFSETS = tuple((dy, dx) for dy in (-1, 0, 1) for dx in (-1, 0, 1))


# ----------------------------- in-kernel helpers -----------------------------

def _conv3x3_flat(x, w_ref, b_ref, masks_ref, W2):
    """3x3 / stride 1 / pad 1 conv on a flat (Cin, S) activation, S = H2*W2.

    9 accumulated K=Cin MXU dots on lane-rolled copies of x (pltpu.roll, jnp.roll
    semantics); out-of-image taps are zeroed by per-offset lane masks.
      w_ref: (9, Cout, Cin)   b_ref: (Cout, 1)   masks_ref: (9, 1, S)
    Returns (Cout, S) float32.
    """
    S = x.shape[-1]
    acc = None
    for o, (dy, dx) in enumerate(_OFFSETS):
        off = dy * W2 + dx                       # flat-index offset of this tap
        if off == 0:
            xs = x
        else:
            # xs[:, p] = x[:, (p + off) mod S]; wrapped lanes are masked below.
            xs = pltpu.roll(x, shift=(-off) % S, axis=1)
        if not (dy == 0 and dx == 0):
            xs = xs * masks_ref[o]               # (1, S) 0/1 border mask, lane-wise
        t = jnp.dot(w_ref[o], xs, preferred_element_type=jnp.float32)
        acc = t if acc is None else acc + t
    return acc + b_ref[...]


def _pixnorm_lrelu(h):
    """PixelwiseNorm over channels (sublane axis) then LeakyReLU(0.2).

    Matches x / (||x||_2 + eps); the divide runs on the EUP via the approximate
    reciprocal (error ~1e-3, well inside the 2e-2 check tolerance).
    """
    norm = jnp.sqrt(jnp.sum(h * h, axis=0, keepdims=True))            # (1, S)
    h = h * pl.reciprocal(norm + PIXNORM_EPS, approx=True)
    return jnp.maximum(h, NEG_SLOPE * h)                              # LReLU(0.2)


# ----------------------------- fused kernels -----------------------------

def _lerp_kernel(alpha_ref, xup_ref, masks_ref, w1_ref, b1_ref, w2_ref, b2_ref,
                 rgb0w_ref, rgb0b_ref, rgb1w_ref, rgb1b_ref, o_ref, *, W2):
    """Whole lerp_forward for one batch element, fully VMEM/vreg resident."""
    alpha = alpha_ref[0]
    x_up = xup_ref[...]                                                # (Cin, S)

    h = _pixnorm_lrelu(_conv3x3_flat(x_up, w1_ref, b1_ref, masks_ref, W2))
    h = _pixnorm_lrelu(_conv3x3_flat(h, w2_ref, b2_ref, masks_ref, W2))

    # to_rgb[0]/to_rgb[1] 1x1 convs fused with the lerp: scale the tiny weight
    # matrices by the lerp factors so no full-frame lerp is needed.
    w_rgb0 = (1.0 - alpha) * rgb0w_ref[...]                            # (3, Cin)
    w_rgb1 = alpha * rgb1w_ref[...]                                    # (3, Cout)
    b_rgb = (1.0 - alpha) * rgb0b_ref[...] + alpha * rgb1b_ref[...]    # (3, 1)
    out = (jnp.dot(w_rgb0, x_up, preferred_element_type=jnp.float32)
           + jnp.dot(w_rgb1, h, preferred_element_type=jnp.float32) + b_rgb)
    o_ref[...] = out.astype(o_ref.dtype)                               # lane-dense


def _intermediate_kernel(xup_ref, masks_ref, w1_ref, b1_ref, w2_ref, b2_ref,
                         o_ref, *, W2):
    """self.net(upsample(x)) only (no to_rgb, no lerp) for one batch element."""
    h = _pixnorm_lrelu(_conv3x3_flat(xup_ref[...], w1_ref, b1_ref, masks_ref, W2))
    h = _pixnorm_lrelu(_conv3x3_flat(h, w2_ref, b2_ref, masks_ref, W2))
    o_ref[...] = h.astype(o_ref.dtype)


# ----------------------------- wrapper-side packing -----------------------------

def _conv_masks(H2, W2):
    """(9, 1, H2*W2) 0/1 masks zeroing out-of-image taps for each 3x3 offset."""
    row = np.arange(H2)[:, None]
    col = np.arange(W2)[None, :]
    m = np.zeros((9, 1, H2 * W2), np.float32)
    for o, (dy, dx) in enumerate(_OFFSETS):
        ok = ((row + dy >= 0) & (row + dy < H2) &
              (col + dx >= 0) & (col + dx < W2))
        m[o, 0] = ok.reshape(-1).astype(np.float32)
    return jnp.asarray(m)      # trace-time constant (shapes are static under jit)


def _prep_common(x, p):
    """Upsample to flat (N, Cin, S) + pack conv weights as per-tap (9, Co, Ci)."""
    N, Cin, H, W = x.shape
    H2, W2, S = 2 * H, 2 * W, 4 * H * W
    Cout = p["conv2_w"].shape[3]
    x_up = jnp.repeat(jnp.repeat(x, 2, axis=2), 2, axis=3).reshape(N, Cin, S)
    w1 = jnp.transpose(p["conv1_w"], (0, 1, 3, 2)).reshape(9, Cin, Cin)
    b1 = p["conv1_b"].reshape(Cin, 1)
    w2 = jnp.transpose(p["conv2_w"], (0, 1, 3, 2)).reshape(9, Cout, Cin)
    b2 = p["conv2_b"].reshape(Cout, 1)
    return x_up, _conv_masks(H2, W2), w1, b1, w2, b2, (N, Cin, Cout, H2, W2, S)


def _full_spec(a):
    nd = a.ndim
    return pl.BlockSpec(a.shape, lambda n: (0,) * nd)   # grid-constant block


# ----------------------------- module forwards -----------------------------

def lerp_forward(x, p, alpha):
    """x: (N, in_channels, H, W) NCHW.  Returns (N, 3, 2H, 2W) NCHW."""
    x_up, masks, w1, b1, w2, b2, (N, Cin, Cout, H2, W2, S) = _prep_common(x, p)
    rgb0w = jnp.transpose(p["rgb0_w"])                   # (3, Cin)
    rgb0b = p["rgb0_b"].reshape(3, 1)
    rgb1w = jnp.transpose(p["rgb1_w"])                   # (3, Cout)
    rgb1b = p["rgb1_b"].reshape(3, 1)
    alpha_arr = jnp.asarray(alpha, jnp.float32).reshape(1)   # SMEM scalar

    out = pl.pallas_call(
        functools.partial(_lerp_kernel, W2=W2),
        out_shape=jax.ShapeDtypeStruct((N, 3, S), jnp.float32),
        grid=(N,),
        in_specs=[
            pl.BlockSpec(memory_space=pltpu.MemorySpace.SMEM),      # alpha
            pl.BlockSpec((None, Cin, S), lambda n: (n, 0, 0)),      # x_up (flat)
            _full_spec(masks), _full_spec(w1), _full_spec(b1),
            _full_spec(w2), _full_spec(b2),
            _full_spec(rgb0w), _full_spec(rgb0b),
            _full_spec(rgb1w), _full_spec(rgb1b),
        ],
        out_specs=pl.BlockSpec((None, 3, S), lambda n: (n, 0, 0)),  # lane-dense
        compiler_params=pltpu.CompilerParams(dimension_semantics=("parallel",)),
    )(alpha_arr, x_up, masks, w1, b1, w2, b2, rgb0w, rgb0b, rgb1w, rgb1b)

    return out.reshape(N, 3, H2, W2)                     # free NCHW reshape


def rgb_forward(x, p):
    # rgb_forward == lerp_forward with alpha = 1 (the x_up branch weight is zero).
    return lerp_forward(x, p, jnp.float32(1.0))


def intermediate_forward(x, p):
    """x: (N, in_channels, H, W) NCHW.  Returns (N, out_channels, 2H, 2W) NCHW."""
    x_up, masks, w1, b1, w2, b2, (N, Cin, Cout, H2, W2, S) = _prep_common(x, p)
    out = pl.pallas_call(
        functools.partial(_intermediate_kernel, W2=W2),
        out_shape=jax.ShapeDtypeStruct((N, Cout, S), jnp.float32),
        grid=(N,),
        in_specs=[
            pl.BlockSpec((None, Cin, S), lambda n: (n, 0, 0)),
            _full_spec(masks), _full_spec(w1), _full_spec(b1),
            _full_spec(w2), _full_spec(b2),
        ],
        out_specs=pl.BlockSpec((None, Cout, S), lambda n: (n, 0, 0)),
        compiler_params=pltpu.CompilerParams(dimension_semantics=("parallel",)),
    )(x_up, masks, w1, b1, w2, b2)
    return out.reshape(N, Cout, H2, W2)


# ----------------------------- pure-JAX reference -----------------------------

def _ref_lerp_forward(x, p, alpha):
    def upsample(t):
        return jnp.repeat(jnp.repeat(t, 2, axis=2), 2, axis=3)

    def conv3x3(t, w_hwio, b):
        w = jnp.transpose(w_hwio, (3, 2, 0, 1))                 # -> OIHW
        y = jax.lax.conv_general_dilated(
            t, w, window_strides=(1, 1), padding=[(1, 1), (1, 1)],
            dimension_numbers=("NCHW", "OIHW", "NCHW"))
        return y + b[None, :, None, None]

    def conv1x1(t, w_io, b):
        w = jnp.transpose(w_io)[:, :, None, None]               # -> (Cout, Cin, 1, 1)
        y = jax.lax.conv_general_dilated(
            t, w, window_strides=(1, 1), padding=[(0, 0), (0, 0)],
            dimension_numbers=("NCHW", "OIHW", "NCHW"))
        return y + b[None, :, None, None]

    def pixnorm(t):  # x / (||x||_2 over channel dim + eps)  (matches PyTorch module)
        return t / (jnp.sqrt(jnp.sum(t * t, axis=1, keepdims=True)) + PIXNORM_EPS)

    def lrelu(t):
        return jnp.where(t >= 0, t, NEG_SLOPE * t)

    x_up = upsample(x)
    h = lrelu(pixnorm(conv3x3(x_up, p["conv1_w"], p["conv1_b"])))
    h = lrelu(pixnorm(conv3x3(h, p["conv2_w"], p["conv2_b"])))
    x_conv = conv1x1(h, p["rgb1_w"], p["rgb1_b"])
    x_rgb = conv1x1(x_up, p["rgb0_w"], p["rgb0_b"])
    return (1.0 - alpha) * x_rgb + alpha * x_conv


# ----------------------------- main -----------------------------

if __name__ == "__main__":
    in_channels, out_channels = 4, 8
    N, H, W = 2, 16, 16
    alpha = 0.5  # module default is 0.0 (set via set_alpha); 0.5 exercises both paths

    key = jax.random.PRNGKey(0)
    ks = jax.random.split(key, 9)
    p = {
        "conv1_w": 0.1 * jax.random.normal(ks[0], (3, 3, in_channels, in_channels), jnp.float32),
        "conv1_b": 0.1 * jax.random.normal(ks[1], (in_channels,), jnp.float32),
        "conv2_w": 0.1 * jax.random.normal(ks[2], (3, 3, in_channels, out_channels), jnp.float32),
        "conv2_b": 0.1 * jax.random.normal(ks[3], (out_channels,), jnp.float32),
        "rgb0_w": 0.1 * jax.random.normal(ks[4], (in_channels, 3), jnp.float32),   # to_rgb[0]
        "rgb0_b": 0.1 * jax.random.normal(ks[5], (3,), jnp.float32),
        "rgb1_w": 0.1 * jax.random.normal(ks[6], (out_channels, 3), jnp.float32),  # to_rgb[1]
        "rgb1_b": 0.1 * jax.random.normal(ks[7], (3,), jnp.float32),
    }
    x = jax.random.normal(ks[8], (N, in_channels, H, W), jnp.float32)  # NCHW input

    fwd = jax.jit(lerp_forward)
    out = jax.block_until_ready(fwd(x, p, jnp.float32(alpha)))
    assert out.shape == (N, 3, 2 * H, 2 * W), out.shape

    ref = jax.block_until_ready(_ref_lerp_forward(x, p, alpha))
    np.testing.assert_allclose(np.asarray(out), np.asarray(ref), rtol=2e-2, atol=2e-2)

    mid = jax.block_until_ready(jax.jit(intermediate_forward)(x, p))
    assert mid.shape == (N, out_channels, 2 * H, 2 * W), mid.shape

    print("KERNEL_OK")
</pallas_src>

<mosaic_0001>
module attributes {stable_mosaic.version = 11 : i64} {
  func.func @_lerp_kernel(%arg0: i32, %arg1: memref<1xf32, #tpu.memory_space<smem>>, %arg2: memref<1x4x1024xf32, #tpu.memory_space<vmem>>, %arg3: memref<9x1x1024xf32, #tpu.memory_space<vmem>>, %arg4: memref<9x4x4xf32, #tpu.memory_space<vmem>>, %arg5: memref<4x1xf32, #tpu.memory_space<vmem>>, %arg6: memref<9x8x4xf32, #tpu.memory_space<vmem>>, %arg7: memref<8x1xf32, #tpu.memory_space<vmem>>, %arg8: memref<3x4xf32, #tpu.memory_space<vmem>>, %arg9: memref<3x1xf32, #tpu.memory_space<vmem>>, %arg10: memref<3x8xf32, #tpu.memory_space<vmem>>, %arg11: memref<3x1xf32, #tpu.memory_space<vmem>>, %arg12: memref<1x3x1024xf32, #tpu.memory_space<vmem>>) attributes {dimension_semantics = [#tpu.dimension_semantics<parallel>], iteration_bounds = array<i64: 2>, scalar_prefetch = 0 : i64, scratch_operands = 0 : i64, tpu.core_type = #tpu.core_type<tc>, window_params = [{transform_indices = @transform_0, window_bounds = array<i64: 1>}, {transform_indices = @transform_1, window_bounds = array<i64: 1, 4, 1024>}, {pipeline_mode = #tpu.pipeline_mode<synchronous>, transform_indices = @transform_2, window_bounds = array<i64: 9, 1, 1024>}, {pipeline_mode = #tpu.pipeline_mode<synchronous>, transform_indices = @transform_3, window_bounds = array<i64: 9, 4, 4>}, {pipeline_mode = #tpu.pipeline_mode<synchronous>, transform_indices = @transform_4, window_bounds = array<i64: 4, 1>}, {pipeline_mode = #tpu.pipeline_mode<synchronous>, transform_indices = @transform_5, window_bounds = array<i64: 9, 8, 4>}, {pipeline_mode = #tpu.pipeline_mode<synchronous>, transform_indices = @transform_6, window_bounds = array<i64: 8, 1>}, {pipeline_mode = #tpu.pipeline_mode<synchronous>, transform_indices = @transform_7, window_bounds = array<i64: 3, 4>}, {pipeline_mode = #tpu.pipeline_mode<synchronous>, transform_indices = @transform_8, window_bounds = array<i64: 3, 1>}, {pipeline_mode = #tpu.pipeline_mode<synchronous>, transform_indices = @transform_9, window_bounds = array<i64: 3, 8>}, {pipeline_mode = #tpu.pipeline_mode<synchronous>, transform_indices = @transform_10, window_bounds = array<i64: 3, 1>}, {transform_indices = @transform_11, window_bounds = array<i64: 1, 3, 1024>}]} {
    %c0 = arith.constant 0 : index
    %0 = memref.load %arg1[%c0] : memref<1xf32, #tpu.memory_space<smem>>
    %c0_0 = arith.constant 0 : index
    %c0_1 = arith.constant 0 : index
    %c0_2 = arith.constant 0 : index
    %1 = vector.load %arg2[%c0_0, %c0_1, %c0_2] : memref<1x4x1024xf32, #tpu.memory_space<vmem>>, vector<1x4x1024xf32>
    %2 = vector.shape_cast %1 : vector<1x4x1024xf32> to vector<4x1024xf32>
    %c33_i32 = arith.constant 33 : i32
    %3 = tpu.dynamic_rotate %2 by %c33_i32 dim 1 : vector<4x1024xf32>, i32 -> vector<4x1024xf32>
    %c0_3 = arith.constant 0 : index
    %c0_4 = arith.constant 0 : index
    %c0_5 = arith.constant 0 : index
    %4 = vector.load %arg3[%c0_3, %c0_4, %c0_5] : memref<9x1x1024xf32, #tpu.memory_space<vmem>>, vector<1x1x1024xf32>
    %5 = vector.shape_cast %4 : vector<1x1x1024xf32> to vector<1x1024xf32>
    %6 = vector.broadcast %5 : vector<1x1024xf32> to vector<4x1024xf32>
    %7 = arith.mulf %3, %6 : vector<4x1024xf32>
    %c0_6 = arith.constant 0 : index
    %c0_7 = arith.constant 0 : index
    %c0_8 = arith.constant 0 : index
    %8 = vector.load %arg4[%c0_6, %c0_7, %c0_8] : memref<9x4x4xf32, #tpu.memory_space<vmem>>, vector<1x4x4xf32>
    %9 = vector.shape_cast %8 : vector<1x4x4xf32> to vector<4x4xf32>
    %cst = arith.constant dense<0.000000e+00> : vector<4x1024xf32>
    %10 = tpu.matmul %9, %7, %cst {dimension_numbers = #tpu.dot_dimension_numbers<[1], [0], [0], [1], [0, 0, 1, 1], [], []>} : vector<4x4xf32>, vector<4x1024xf32>, vector<4x1024xf32> -> vector<4x1024xf32>
    %c32_i32 = arith.constant 32 : i32
    %11 = tpu.dynamic_rotate %2 by %c32_i32 dim 1 : vector<4x1024xf32>, i32 -> vector<4x1024xf32>
    %c1 = arith.constant 1 : index
    %c0_9 = arith.constant 0 : index
    %c0_10 = arith.constant 0 : index
    %12 = vector.load %arg3[%c1, %c0_9, %c0_10] : memref<9x1x1024xf32, #tpu.memory_space<vmem>>, vector<1x1x1024xf32>
    %13 = vector.shape_cast %12 : vector<1x1x1024xf32> to vector<1x1024xf32>
    %14 = vector.broadcast %13 : vector<1x1024xf32> to vector<4x1024xf32>
    %15 = arith.mulf %11, %14 : vector<4x1024xf32>
    %c1_11 = arith.constant 1 : index
    %c0_12 = arith.constant 0 : index
    %c0_13 = arith.constant 0 : index
    %16 = vector.load %arg4[%c1_11, %c0_12, %c0_13] : memref<9x4x4xf32, #tpu.memory_space<vmem>>, vector<1x4x4xf32>
    %17 = vector.shape_cast %16 : vector<1x4x4xf32> to vector<4x4xf32>
    %cst_14 = arith.constant dense<0.000000e+00> : vector<4x1024xf32>
    %18 = tpu.matmul %17, %15, %cst_14 {dimension_numbers = #tpu.dot_dimension_numbers<[1], [0], [0], [1], [0, 0, 1, 1], [], []>} : vector<4x4xf32>, vector<4x1024xf32>, vector<4x1024xf32> -> vector<4x1024xf32>
    %19 = arith.addf %10, %18 : vector<4x1024xf32>
    %c31_i32 = arith.constant 31 : i32
    %20 = tpu.dynamic_rotate %2 by %c31_i32 dim 1 : vector<4x1024xf32>, i32 -> vector<4x1024xf32>
    %c2 = arith.constant 2 : index
    %c0_15 = arith.constant 0 : index
    %c0_16 = arith.constant 0 : index
    %21 = vector.load %arg3[%c2, %c0_15, %c0_16] : memref<9x1x1024xf32, #tpu.memory_space<vmem>>, vector<1x1x1024xf32>
    %22 = vector.shape_cast %21 : vector<1x1x1024xf32> to vector<1x1024xf32>
    %23 = vector.broadcast %22 : vector<1x1024xf32> to vector<4x1024xf32>
    %24 = arith.mulf %20, %23 : vector<4x1024xf32>
    %c2_17 = arith.constant 2 : index
    %c0_18 = arith.constant 0 : index
    %c0_19 = arith.constant 0 : index
    %25 = vector.load %arg4[%c2_17, %c0_18, %c0_19] : memref<9x4x4xf32, #tpu.memory_space<vmem>>, vector<1x4x4xf32>
    %26 = vector.shape_cast %25 : vector<1x4x4xf32> to vector<4x4xf32>
    %cst_20 = arith.constant dense<0.000000e+00> : vector<4x1024xf32>
    %27 = tpu.matmul %26, %24, %cst_20 {dimension_numbers = #tpu.dot_dimension_numbers<[1], [0], [0], [1], [0, 0, 1, 1], [], []>} : vector<4x4xf32>, vector<4x1024xf32>, vector<4x1024xf32> -> vector<4x1024xf32>
    %28 = arith.addf %19, %27 : vector<4x1024xf32>
    %c1_i32 = arith.constant 1 : i32
    %29 = tpu.dynamic_rotate %2 by %c1_i32 dim 1 : vector<4x1024xf32>, i32 -> vector<4x1024xf32>
    %c3 = arith.constant 3 : index
    %c0_21 = arith.constant 0 : index
    %c0_22 = arith.constant 0 : index
    %30 = vector.load %arg3[%c3, %c0_21, %c0_22] : memref<9x1x1024xf32, #tpu.memory_space<vmem>>, vector<1x1x1024xf32>
    %31 = vector.shape_cast %30 : vector<1x1x1024xf32> to vector<1x1024xf32>
    %32 = vector.broadcast %31 : vector<1x1024xf32> to vector<4x1024xf32>
    %33 = arith.mulf %29, %32 : vector<4x1024xf32>
    %c3_23 = arith.constant 3 : index
    %c0_24 = arith.constant 0 : index
    %c0_25 = arith.constant 0 : index
    %34 = vector.load %arg4[%c3_23, %c0_24, %c0_25] : memref<9x4x4xf32, #tpu.memory_space<vmem>>, vector<1x4x4xf32>
    %35 = vector.shape_cast %34 : vector<1x4x4xf32> to vector<4x4xf32>
    %cst_26 = arith.constant dense<0.000000e+00> : vector<4x1024xf32>
    %36 = tpu.matmul %35, %33, %cst_26 {dimension_numbers = #tpu.dot_dimension_numbers<[1], [0], [0], [1], [0, 0, 1, 1], [], []>} : vector<4x4xf32>, vector<4x1024xf32>, vector<4x1024xf32> -> vector<4x1024xf32>
    %37 = arith.addf %28, %36 : vector<4x1024xf32>
    %c4 = arith.constant 4 : index
    %c0_27 = arith.constant 0 : index
    %c0_28 = arith.constant 0 : index
    %38 = vector.load %arg4[%c4, %c0_27, %c0_28] : memref<9x4x4xf32, #tpu.memory_space<vmem>>, vector<1x4x4xf32>
    %39 = vector.shape_cast %38 : vector<1x4x4xf32> to vector<4x4xf32>
    %cst_29 = arith.constant dense<0.000000e+00> : vector<4x1024xf32>
    %40 = tpu.matmul %39, %2, %cst_29 {dimension_numbers = #tpu.dot_dimension_numbers<[1], [0], [0], [1], [0, 0, 1, 1], [], []>} : vector<4x4xf32>, vector<4x1024xf32>, vector<4x1024xf32> -> vector<4x1024xf32>
    %41 = arith.addf %37, %40 : vector<4x1024xf32>
    %c1023_i32 = arith.constant 1023 : i32
    %42 = tpu.dynamic_rotate %2 by %c1023_i32 dim 1 : vector<4x1024xf32>, i32 -> vector<4x1024xf32>
    %c5 = arith.constant 5 : index
    %c0_30 = arith.constant 0 : index
    %c0_31 = arith.constant 0 : index
    %43 = vector.load %arg3[%c5, %c0_30, %c0_31] : memref<9x1x1024xf32, #tpu.memory_space<vmem>>, vector<1x1x1024xf32>
    %44 = vector.shape_cast %43 : vector<1x1x1024xf32> to vector<1x1024xf32>
    %45 = vector.broadcast %44 : vector<1x1024xf32> to vector<4x1024xf32>
    %46 = arith.mulf %42, %45 : vector<4x1024xf32>
    %c5_32 = arith.constant 5 : index
    %c0_33 = arith.constant 0 : index
    %c0_34 = arith.constant 0 : index
    %47 = vector.load %arg4[%c5_32, %c0_33, %c0_34] : memref<9x4x4xf32, #tpu.memory_space<vmem>>, vector<1x4x4xf32>
    %48 = vector.shape_cast %47 : vector<1x4x4xf32> to vector<4x4xf32>
    %cst_35 = arith.constant dense<0.000000e+00> : vector<4x1024xf32>
    %49 = tpu.matmul %48, %46, %cst_35 {dimension_numbers = #tpu.dot_dimension_numbers<[1], [0], [0], [1], [0, 0, 1, 1], [], []>} : vector<4x4xf32>, vector<4x1024xf32>, vector<4x1024xf32> -> vector<4x1024xf32>
    %50 = arith.addf %41, %49 : vector<4x1024xf32>
    %c993_i32 = arith.constant 993 : i32
    %51 = tpu.dynamic_rotate %2 by %c993_i32 dim 1 : vector<4x1024xf32>, i32 -> vector<4x1024xf32>
    %c6 = arith.constant 6 : index
    %c0_36 = arith.constant 0 : index
    %c0_37 = arith.constant 0 : index
    %52 = vector.load %arg3[%c6, %c0_36, %c0_37] : memref<9x1x1024xf32, #tpu.memory_space<vmem>>, vector<1x1x1024xf32>
    %53 = vector.shape_cast %52 : vector<1x1x1024xf32> to vector<1x1024xf32>
    %54 = vector.broadcast %53 : vector<1x1024xf32> to vector<4x1024xf32>
    %55 = arith.mulf %51, %54 : vector<4x1024xf32>
    %c6_38 = arith.constant 6 : index
    %c0_39 = arith.constant 0 : index
    %c0_40 = arith.constant 0 : index
    %56 = vector.load %arg4[%c6_38, %c0_39, %c0_40] : memref<9x4x4xf32, #tpu.memory_space<vmem>>, vector<1x4x4xf32>
    %57 = vector.shape_cast %56 : vector<1x4x4xf32> to vector<4x4xf32>
    %cst_41 = arith.constant dense<0.000000e+00> : vector<4x1024xf32>
    %58 = tpu.matmul %57, %55, %cst_41 {dimension_numbers = #tpu.dot_dimension_numbers<[1], [0], [0], [1], [0, 0, 1, 1], [], []>} : vector<4x4xf32>, vector<4x1024xf32>, vector<4x1024xf32> -> vector<4x1024xf32>
    %59 = arith.addf %50, %58 : vector<4x1024xf32>
    %c992_i32 = arith.constant 992 : i32
    %60 = tpu.dynamic_rotate %2 by %c992_i32 dim 1 : vector<4x1024xf32>, i32 -> vector<4x1024xf32>
    %c7 = arith.constant 7 : index
    %c0_42 = arith.constant 0 : index
    %c0_43 = arith.constant 0 : index
    %61 = vector.load %arg3[%c7, %c0_42, %c0_43] : memref<9x1x1024xf32, #tpu.memory_space<vmem>>, vector<1x1x1024xf32>
    %62 = vector.shape_cast %61 : vector<1x1x1024xf32> to vector<1x1024xf32>
    %63 = vector.broadcast %62 : vector<1x1024xf32> to vector<4x1024xf32>
    %64 = arith.mulf %60, %63 : vector<4x1024xf32>
    %c7_44 = arith.constant 7 : index
    %c0_45 = arith.constant 0 : index
    %c0_46 = arith.constant 0 : index
    %65 = vector.load %arg4[%c7_44, %c0_45, %c0_46] : memref<9x4x4xf32, #tpu.memory_space<vmem>>, vector<1x4x4xf32>
    %66 = vector.shape_cast %65 : vector<1x4x4xf32> to vector<4x4xf32>
    %cst_47 = arith.constant dense<0.000000e+00> : vector<4x1024xf32>
    %67 = tpu.matmul %66, %64, %cst_47 {dimension_numbers = #tpu.dot_dimension_numbers<[1], [0], [0], [1], [0, 0, 1, 1], [], []>} : vector<4x4xf32>, vector<4x1024xf32>, vector<4x1024xf32> -> vector<4x1024xf32>
    %68 = arith.addf %59, %67 : vector<4x1024xf32>
    %c991_i32 = arith.constant 991 : i32
    %69 = tpu.dynamic_rotate %2 by %c991_i32 dim 1 : vector<4x1024xf32>, i32 -> vector<4x1024xf32>
    %c8 = arith.constant 8 : index
    %c0_48 = arith.constant 0 : index
    %c0_49 = arith.constant 0 : index
    %70 = vector.load %arg3[%c8, %c0_48, %c0_49] : memref<9x1x1024xf32, #tpu.memory_space<vmem>>, vector<1x1x1024xf32>
    %71 = vector.shape_cast %70 : vector<1x1x1024xf32> to vector<1x1024xf32>
    %72 = vector.broadcast %71 : vector<1x1024xf32> to vector<4x1024xf32>
    %73 = arith.mulf %69, %72 : vector<4x1024xf32>
    %c8_50 = arith.constant 8 : index
    %c0_51 = arith.constant 0 : index
    %c0_52 = arith.constant 0 : index
    %74 = vector.load %arg4[%c8_50, %c0_51, %c0_52] : memref<9x4x4xf32, #tpu.memory_space<vmem>>, vector<1x4x4xf32>
    %75 = vector.shape_cast %74 : vector<1x4x4xf32> to vector<4x4xf32>
    %cst_53 = arith.constant dense<0.000000e+00> : vector<4x1024xf32>
    %76 = tpu.matmul %75, %73, %cst_53 {dimension_numbers = #tpu.dot_dimension_numbers<[1], [0], [0], [1], [0, 0, 1, 1], [], []>} : vector<4x4xf32>, vector<4x1024xf32>, vector<4x1024xf32> -> vector<4x1024xf32>
    %77 = arith.addf %68, %76 : vector<4x1024xf32>
    %c0_54 = arith.constant 0 : index
    %c0_55 = arith.constant 0 : index
    %78 = vector.load %arg5[%c0_54, %c0_55] : memref<4x1xf32, #tpu.memory_space<vmem>>, vector<4x1xf32>
    %79 = vector.broadcast %78 : vector<4x1xf32> to vector<4x1024xf32>
    %80 = arith.addf %77, %79 : vector<4x1024xf32>
    %81 = arith.mulf %80, %80 : vector<4x1024xf32>
    %cst_56 = arith.constant dense<0.000000e+00> : vector<1024xf32>
    %82 = vector.multi_reduction <add>, %81, %cst_56 [0] : vector<4x1024xf32> to vector<1024xf32>
    %83 = vector.shape_cast %82 : vector<1024xf32> to vector<1x1024xf32>
    %84 = math.sqrt %83 : vector<1x1024xf32>
    %cst_57 = arith.constant 9.99999993E-9 : f32
    %85 = vector.broadcast %cst_57 : f32 to vector<1x1024xf32>
    %86 = arith.addf %84, %85 : vector<1x1024xf32>
    %87 = tpu.reciprocal %86 {approx = true} : vector<1x1024xf32> -> vector<1x1024xf32>
    %88 = vector.broadcast %87 : vector<1x1024xf32> to vector<4x1024xf32>
    %89 = arith.mulf %80, %88 : vector<4x1024xf32>
    %cst_58 = arith.constant 2.000000e-01 : f32
    %90 = vector.broadcast %cst_58 : f32 to vector<4x1024xf32>
    %91 = arith.mulf %90, %89 : vector<4x1024xf32>
    %92 = arith.maximumf %89, %91 : vector<4x1024xf32>
    %c33_i32_59 = arith.constant 33 : i32
    %93 = tpu.dynamic_rotate %92 by %c33_i32_59 dim 1 : vector<4x1024xf32>, i32 -> vector<4x1024xf32>
    %c0_60 = arith.constant 0 : index
    %c0_61 = arith.constant 0 : index
    %c0_62 = arith.constant 0 : index
    %94 = vector.load %arg3[%c0_60, %c0_61, %c0_62] : memref<9x1x1024xf32, #tpu.memory_space<vmem>>, vector<1x1x1024xf32>
    %95 = vector.shape_cast %94 : vector<1x1x1024xf32> to vector<1x1024xf32>
    %96 = vector.broadcast %95 : vector<1x1024xf32> to vector<4x1024xf32>
    %97 = arith.mulf %93, %96 : vector<4x1024xf32>
    %c0_63 = arith.constant 0 : index
    %c0_64 = arith.constant 0 : index
    %c0_65 = arith.constant 0 : index
    %98 = vector.load %arg6[%c0_63, %c0_64, %c0_65] : memref<9x8x4xf32, #tpu.memory_space<vmem>>, vector<1x8x4xf32>
    %99 = vector.shape_cast %98 : vector<1x8x4xf32> to vector<8x4xf32>
    %cst_66 = arith.constant dense<0.000000e+00> : vector<8x1024xf32>
    %100 = tpu.matmul %99, %97, %cst_66 {dimension_numbers = #tpu.dot_dimension_numbers<[1], [0], [0], [1], [0, 0, 1, 1], [], []>} : vector<8x4xf32>, vector<4x1024xf32>, vector<8x1024xf32> -> vector<8x1024xf32>
    %c32_i32_67 = arith.constant 32 : i32
    %101 = tpu.dynamic_rotate %92 by %c32_i32_67 dim 1 : vector<4x1024xf32>, i32 -> vector<4x1024xf32>
    %c1_68 = arith.constant 1 : index
    %c0_69 = arith.constant 0 : index
    %c0_70 = arith.constant 0 : index
    %102 = vector.load %arg3[%c1_68, %c0_69, %c0_70] : memref<9x1x1024xf32, #tpu.memory_space<vmem>>, vector<1x1x1024xf32>
    %103 = vector.shape_cast %102 : vector<1x1x1024xf32> to vector<1x1024xf32>
    %104 = vector.broadcast %103 : vector<1x1024xf32> to vector<4x1024xf32>
    %105 = arith.mulf %101, %104 : vector<4x1024xf32>
    %c1_71 = arith.constant 1 : index
    %c0_72 = arith.constant 0 : index
    %c0_73 = arith.constant 0 : index
    %106 = vector.load %arg6[%c1_71, %c0_72, %c0_73] : memref<9x8x4xf32, #tpu.memory_space<vmem>>, vector<1x8x4xf32>
    %107 = vector.shape_cast %106 : vector<1x8x4xf32> to vector<8x4xf32>
    %cst_74 = arith.constant dense<0.000000e+00> : vector<8x1024xf32>
    %108 = tpu.matmul %107, %105, %cst_74 {dimension_numbers = #tpu.dot_dimension_numbers<[1], [0], [0], [1], [0, 0, 1, 1], [], []>} : vector<8x4xf32>, vector<4x1024xf32>, vector<8x1024xf32> -> vector<8x1024xf32>
    %109 = arith.addf %100, %108 : vector<8x1024xf32>
    %c31_i32_75 = arith.constant 31 : i32
    %110 = tpu.dynamic_rotate %92 by %c31_i32_75 dim 1 : vector<4x1024xf32>, i32 -> vector<4x1024xf32>
    %c2_76 = arith.constant 2 : index
    %c0_77 = arith.constant 0 : index
    %c0_78 = arith.constant 0 : index
    %111 = vector.load %arg3[%c2_76, %c0_77, %c0_78] : memref<9x1x1024xf32, #tpu.memory_space<vmem>>, vector<1x1x1024xf32>
    %112 = vector.shape_cast %111 : vector<1x1x1024xf32> to vector<1x1024xf32>
    %113 = vector.broadcast %112 : vector<1x1024xf32> to vector<4x1024xf32>
    %114 = arith.mulf %110, %113 : vector<4x1024xf32>
    %c2_79 = arith.constant 2 : index
    %c0_80 = arith.constant 0 : index
    %c0_81 = arith.constant 0 : index
    %115 = vector.load %arg6[%c2_79, %c0_80, %c0_81] : memref<9x8x4xf32, #tpu.memory_space<vmem>>, vector<1x8x4xf32>
    %116 = vector.shape_cast %115 : vector<1x8x4xf32> to vector<8x4xf32>
    %cst_82 = arith.constant dense<0.000000e+00> : vector<8x1024xf32>
    %117 = tpu.matmul %116, %114, %cst_82 {dimension_numbers = #tpu.dot_dimension_numbers<[1], [0], [0], [1], [0, 0, 1, 1], [], []>} : vector<8x4xf32>, vector<4x1024xf32>, vector<8x1024xf32> -> vector<8x1024xf32>
    %118 = arith.addf %109, %117 : vector<8x1024xf32>
    %c1_i32_83 = arith.constant 1 : i32
    %119 = tpu.dynamic_rotate %92 by %c1_i32_83 dim 1 : vector<4x1024xf32>, i32 -> vector<4x1024xf32>
    %c3_84 = arith.constant 3 : index
    %c0_85 = arith.constant 0 : index
    %c0_86 = arith.constant 0 : index
    %120 = vector.load %arg3[%c3_84, %c0_85, %c0_86] : memref<9x1x1024xf32, #tpu.memory_space<vmem>>, vector<1x1x1024xf32>
    %121 = vector.shape_cast %120 : vector<1x1x1024xf32> to vector<1x1024xf32>
    %122 = vector.broadcast %121 : vector<1x1024xf32> to vector<4x1024xf32>
    %123 = arith.mulf %119, %122 : vector<4x1024xf32>
    %c3_87 = arith.constant 3 : index
    %c0_88 = arith.constant 0 : index
    %c0_89 = arith.constant 0 : index
    %124 = vector.load %arg6[%c3_87, %c0_88, %c0_89] : memref<9x8x4xf32, #tpu.memory_space<vmem>>, vector<1x8x4xf32>
    %125 = vector.shape_cast %124 : vector<1x8x4xf32> to vector<8x4xf32>
    %cst_90 = arith.constant dense<0.000000e+00> : vector<8x1024xf32>
    %126 = tpu.matmul %125, %123, %cst_90 {dimension_numbers = #tpu.dot_dimension_numbers<[1], [0], [0], [1], [0, 0, 1, 1], [], []>} : vector<8x4xf32>, vector<4x1024xf32>, vector<8x1024xf32> -> vector<8x1024xf32>
    %127 = arith.addf %118, %126 : vector<8x1024xf32>
    %c4_91 = arith.constant 4 : index
    %c0_92 = arith.constant 0 : index
    %c0_93 = arith.constant 0 : index
    %128 = vector.load %arg6[%c4_91, %c0_92, %c0_93] : memref<9x8x4xf32, #tpu.memory_space<vmem>>, vector<1x8x4xf32>
    %129 = vector.shape_cast %128 : vector<1x8x4xf32> to vector<8x4xf32>
    %cst_94 = arith.constant dense<0.000000e+00> : vector<8x1024xf32>
    %130 = tpu.matmul %129, %92, %cst_94 {dimension_numbers = #tpu.dot_dimension_numbers<[1], [0], [0], [1], [0, 0, 1, 1], [], []>} : vector<8x4xf32>, vector<4x1024xf32>, vector<8x1024xf32> -> vector<8x1024xf32>
    %131 = arith.addf %127, %130 : vector<8x1024xf32>
    %c1023_i32_95 = arith.constant 1023 : i32
    %132 = tpu.dynamic_rotate %92 by %c1023_i32_95 dim 1 : vector<4x1024xf32>, i32 -> vector<4x1024xf32>
    %c5_96 = arith.constant 5 : index
    %c0_97 = arith.constant 0 : index
    %c0_98 = arith.constant 0 : index
    %133 = vector.load %arg3[%c5_96, %c0_97, %c0_98] : memref<9x1x1024xf32, #tpu.memory_space<vmem>>, vector<1x1x1024xf32>
    %134 = vector.shape_cast %133 : vector<1x1x1024xf32> to vector<1x1024xf32>
    %135 = vector.broadcast %134 : vector<1x1024xf32> to vector<4x1024xf32>
    %136 = arith.mulf %132, %135 : vector<4x1024xf32>
    %c5_99 = arith.constant 5 : index
    %c0_100 = arith.constant 0 : index
    %c0_101 = arith.constant 0 : index
    %137 = vector.load %arg6[%c5_99, %c0_100, %c0_101] : memref<9x8x4xf32, #tpu.memory_space<vmem>>, vector<1x8x4xf32>
    %138 = vector.shape_cast %137 : vector<1x8x4xf32> to vector<8x4xf32>
    %cst_102 = arith.constant dense<0.000000e+00> : vector<8x1024xf32>
    %139 = tpu.matmul %138, %136, %cst_102 {dimension_numbers = #tpu.dot_dimension_numbers<[1], [0], [0], [1], [0, 0, 1, 1], [], []>} : vector<8x4xf32>, vector<4x1024xf32>, vector<8x1024xf32> -> vector<8x1024xf32>
    %140 = arith.addf %131, %139 : vector<8x1024xf32>
    %c993_i32_103 = arith.constant 993 : i32
    %141 = tpu.dynamic_rotate %92 by %c993_i32_103 dim 1 : vector<4x1024xf32>, i32 -> vector<4x1024xf32>
    %c6_104 = arith.constant 6 : index
    %c0_105 = arith.constant 0 : index
    %c0_106 = arith.constant 0 : index
    %142 = vector.load %arg3[%c6_104, %c0_105, %c0_106] : memref<9x1x1024xf32, #tpu.memory_space<vmem>>, vector<1x1x1024xf32>
    %143 = vector.shape_cast %142 : vector<1x1x1024xf32> to vector<1x1024xf32>
    %144 = vector.broadcast %143 : vector<1x1024xf32> to vector<4x1024xf32>
    %145 = arith.mulf %141, %144 : vector<4x1024xf32>
    %c6_107 = arith.constant 6 : index
    %c0_108 = arith.constant 0 : index
    %c0_109 = arith.constant 0 : index
    %146 = vector.load %arg6[%c6_107, %c0_108, %c0_109] : memref<9x8x4xf32, #tpu.memory_space<vmem>>, vector<1x8x4xf32>
    %147 = vector.shape_cast %146 : vector<1x8x4xf32> to vector<8x4xf32>
    %cst_110 = arith.constant dense<0.000000e+00> : vector<8x1024xf32>
    %148 = tpu.matmul %147, %145, %cst_110 {dimension_numbers = #tpu.dot_dimension_numbers<[1], [0], [0], [1], [0, 0, 1, 1], [], []>} : vector<8x4xf32>, vector<4x1024xf32>, vector<8x1024xf32> -> vector<8x1024xf32>
    %149 = arith.addf %140, %148 : vector<8x1024xf32>
    %c992_i32_111 = arith.constant 992 : i32
    %150 = tpu.dynamic_rotate %92 by %c992_i32_111 dim 1 : vector<4x1024xf32>, i32 -> vector<4x1024xf32>
    %c7_112 = arith.constant 7 : index
    %c0_113 = arith.constant 0 : index
    %c0_114 = arith.constant 0 : index
    %151 = vector.load %arg3[%c7_112, %c0_113, %c0_114] : memref<9x1x1024xf32, #tpu.memory_space<vmem>>, vector<1x1x1024xf32>
    %152 = vector.shape_cast %151 : vector<1x1x1024xf32> to vector<1x1024xf32>
    %153 = vector.broadcast %152 : vector<1x1024xf32> to vector<4x1024xf32>
    %154 = arith.mulf %150, %153 : vector<4x1024xf32>
    %c7_115 = arith.constant 7 : index
    %c0_116 = arith.constant 0 : index
    %c0_117 = arith.constant 0 : index
    %155 = vector.load %arg6[%c7_115, %c0_116, %c0_117] : memref<9x8x4xf32, #tpu.memory_space<vmem>>, vector<1x8x4xf32>
    %156 = vector.shape_cast %155 : vector<1x8x4xf32> to vector<8x4xf32>
    %cst_118 = arith.constant dense<0.000000e+00> : vector<8x1024xf32>
    %157 = tpu.matmul %156, %154, %cst_118 {dimension_numbers = #tpu.dot_dimension_numbers<[1], [0], [0], [1], [0, 0, 1, 1], [], []>} : vector<8x4xf32>, vector<4x1024xf32>, vector<8x1024xf32> -> vector<8x1024xf32>
    %158 = arith.addf %149, %157 : vector<8x1024xf32>
    %c991_i32_119 = arith.constant 991 : i32
    %159 = tpu.dynamic_rotate %92 by %c991_i32_119 dim 1 : vector<4x1024xf32>, i32 -> vector<4x1024xf32>
    %c8_120 = arith.constant 8 : index
    %c0_121 = arith.constant 0 : index
    %c0_122 = arith.constant 0 : index
    %160 = vector.load %arg3[%c8_120, %c0_121, %c0_122] : memref<9x1x1024xf32, #tpu.memory_space<vmem>>, vector<1x1x1024xf32>
    %161 = vector.shape_cast %160 : vector<1x1x1024xf32> to vector<1x1024xf32>
    %162 = vector.broadcast %161 : vector<1x1024xf32> to vector<4x1024xf32>
    %163 = arith.mulf %159, %162 : vector<4x1024xf32>
    %c8_123 = arith.constant 8 : index
    %c0_124 = arith.constant 0 : index
    %c0_125 = arith.constant 0 : index
    %164 = vector.load %arg6[%c8_123, %c0_124, %c0_125] : memref<9x8x4xf32, #tpu.memory_space<vmem>>, vector<1x8x4xf32>
    %165 = vector.shape_cast %164 : vector<1x8x4xf32> to vector<8x4xf32>
    %cst_126 = arith.constant dense<0.000000e+00> : vector<8x1024xf32>
    %166 = tpu.matmul %165, %163, %cst_126 {dimension_numbers = #tpu.dot_dimension_numbers<[1], [0], [0], [1], [0, 0, 1, 1], [], []>} : vector<8x4xf32>, vector<4x1024xf32>, vector<8x1024xf32> -> vector<8x1024xf32>
    %167 = arith.addf %158, %166 : vector<8x1024xf32>
    %c0_127 = arith.constant 0 : index
    %c0_128 = arith.constant 0 : index
    %168 = vector.load %arg7[%c0_127, %c0_128] : memref<8x1xf32, #tpu.memory_space<vmem>>, vector<8x1xf32>
    %169 = vector.broadcast %168 : vector<8x1xf32> to vector<8x1024xf32>
    %170 = arith.addf %167, %169 : vector<8x1024xf32>
    %171 = arith.mulf %170, %170 : vector<8x1024xf32>
    %cst_129 = arith.constant dense<0.000000e+00> : vector<1024xf32>
    %172 = vector.multi_reduction <add>, %171, %cst_129 [0] : vector<8x1024xf32> to vector<1024xf32>
    %173 = vector.shape_cast %172 : vector<1024xf32> to vector<1x1024xf32>
    %174 = math.sqrt %173 : vector<1x1024xf32>
    %cst_130 = arith.constant 9.99999993E-9 : f32
    %175 = vector.broadcast %cst_130 : f32 to vector<1x1024xf32>
    %176 = arith.addf %174, %175 : vector<1x1024xf32>
    %177 = tpu.reciprocal %176 {approx = true} : vector<1x1024xf32> -> vector<1x1024xf32>
    %178 = vector.broadcast %177 : vector<1x1024xf32> to vector<8x1024xf32>
    %179 = arith.mulf %170, %178 : vector<8x1024xf32>
    %cst_131 = arith.constant 2.000000e-01 : f32
    %180 = vector.broadcast %cst_131 : f32 to vector<8x1024xf32>
    %181 = arith.mulf %180, %179 : vector<8x1024xf32>
    %182 = arith.maximumf %179, %181 : vector<8x1024xf32>
    %cst_132 = arith.constant 1.000000e+00 : f32
    %183 = arith.subf %cst_132, %0 : f32
    %c0_133 = arith.constant 0 : index
    %c0_134 = arith.constant 0 : index
    %184 = vector.load %arg8[%c0_133, %c0_134] : memref<3x4xf32, #tpu.memory_space<vmem>>, vector<3x4xf32>
    %185 = vector.broadcast %183 : f32 to vector<3x4xf32>
    %186 = arith.mulf %185, %184 : vector<3x4xf32>
    %c0_135 = arith.constant 0 : index
    %c0_136 = arith.constant 0 : index
    %187 = vector.load %arg10[%c0_135, %c0_136] : memref<3x8xf32, #tpu.memory_space<vmem>>, vector<3x8xf32>
    %188 = vector.broadcast %0 : f32 to vector<3x8xf32>
    %189 = arith.mulf %188, %187 : vector<3x8xf32>
    %cst_137 = arith.constant 1.000000e+00 : f32
    %190 = arith.subf %cst_137, %0 : f32
    %c0_138 = arith.constant 0 : index
    %c0_139 = arith.constant 0 : index
    %191 = vector.load %arg9[%c0_138, %c0_139] : memref<3x1xf32, #tpu.memory_space<vmem>>, vector<3x1xf32>
    %192 = vector.broadcast %190 : f32 to vector<3x1xf32>
    %193 = arith.mulf %192, %191 : vector<3x1xf32>
    %c0_140 = arith.constant 0 : index
    %c0_141 = arith.constant 0 : index
    %194 = vector.load %arg11[%c0_140, %c0_141] : memref<3x1xf32, #tpu.memory_space<vmem>>, vector<3x1xf32>
    %195 = vector.broadcast %0 : f32 to vector<3x1xf32>
    %196 = arith.mulf %195, %194 : vector<3x1xf32>
    %197 = arith.addf %193, %196 : vector<3x1xf32>
    %cst_142 = arith.constant dense<0.000000e+00> : vector<3x1024xf32>
    %198 = tpu.matmul %186, %2, %cst_142 {dimension_numbers = #tpu.dot_dimension_numbers<[1], [0], [0], [1], [0, 0, 1, 1], [], []>} : vector<3x4xf32>, vector<4x1024xf32>, vector<3x1024xf32> -> vector<3x1024xf32>
    %cst_143 = arith.constant dense<0.000000e+00> : vector<3x1024xf32>
    %199 = tpu.matmul %189, %182, %cst_143 {dimension_numbers = #tpu.dot_dimension_numbers<[1], [0], [0], [1], [0, 0, 1, 1], [], []>} : vector<3x8xf32>, vector<8x1024xf32>, vector<3x1024xf32> -> vector<3x1024xf32>
    %200 = arith.addf %198, %199 : vector<3x1024xf32>
    %201 = vector.broadcast %197 : vector<3x1xf32> to vector<3x1024xf32>
    %202 = arith.addf %200, %201 : vector<3x1024xf32>
    %c0_144 = arith.constant 0 : index
    %c0_145 = arith.constant 0 : index
    %c0_146 = arith.constant 0 : index
    %203 = vector.load %arg12[%c0_144, %c0_145, %c0_146] : memref<1x3x1024xf32, #tpu.memory_space<vmem>>, vector<1x3x1024xf32>
    %204 = vector.shape_cast %203 : vector<1x3x1024xf32> to vector<3x1024xf32>
    %205 = vector.shape_cast %202 : vector<3x1024xf32> to vector<1x3x1024xf32>
    tpu.vector_store %arg12[%c0_144, %c0_145, %c0_146], %205 {strides = array<i32>} : memref<1x3x1024xf32, #tpu.memory_space<vmem>>, vector<1x3x1024xf32>,
    return
  }
  func.func @transform_0(%arg0: i32) -> i32 {
    %c0_i32 = arith.constant 0 : i32
    %c0_i32_0 = arith.constant 0 : i32
    return %c0_i32 : i32
  }
  func.func @transform_1(%arg0: i32) -> (i32, i32, i32) {
    %c0_i32 = arith.constant 0 : i32
    %c0_i32_0 = arith.constant 0 : i32
    %c0_i32_1 = arith.constant 0 : i32
    return %arg0, %c0_i32, %c0_i32_0 : i32, i32, i32
  }
  func.func @transform_2(%arg0: i32) -> (i32, i32, i32) {
    %c0_i32 = arith.constant 0 : i32
    %c0_i32_0 = arith.constant 0 : i32
    %c0_i32_1 = arith.constant 0 : i32
    %c0_i32_2 = arith.constant 0 : i32
    return %c0_i32, %c0_i32_0, %c0_i32_1 : i32, i32, i32
  }
  func.func @transform_3(%arg0: i32) -> (i32, i32, i32) {
    %c0_i32 = arith.constant 0 : i32
    %c0_i32_0 = arith.constant 0 : i32
    %c0_i32_1 = arith.constant 0 : i32
    %c0_i32_2 = arith.constant 0 : i32
    return %c0_i32, %c0_i32_0, %c0_i32_1 : i32, i32, i32
  }
  func.func @transform_4(%arg0: i32) -> (i32, i32) {
    %c0_i32 = arith.constant 0 : i32
    %c0_i32_0 = arith.constant 0 : i32
    %c0_i32_1 = arith.constant 0 : i32
    return %c0_i32, %c0_i32_0 : i32, i32
  }
  func.func @transform_5(%arg0: i32) -> (i32, i32, i32) {
    %c0_i32 = arith.constant 0 : i32
    %c0_i32_0 = arith.constant 0 : i32
    %c0_i32_1 = arith.constant 0 : i32
    %c0_i32_2 = arith.constant 0 : i32
    return %c0_i32, %c0_i32_0, %c0_i32_1 : i32, i32, i32
  }
  func.func @transform_6(%arg0: i32) -> (i32, i32) {
    %c0_i32 = arith.constant 0 : i32
    %c0_i32_0 = arith.constant 0 : i32
    %c0_i32_1 = arith.constant 0 : i32
    return %c0_i32, %c0_i32_0 : i32, i32
  }
  func.func @transform_7(%arg0: i32) -> (i32, i32) {
    %c0_i32 = arith.constant 0 : i32
    %c0_i32_0 = arith.constant 0 : i32
    %c0_i32_1 = arith.constant 0 : i32
    return %c0_i32, %c0_i32_0 : i32, i32
  }
  func.func @transform_8(%arg0: i32) -> (i32, i32) {
    %c0_i32 = arith.constant 0 : i32
    %c0_i32_0 = arith.constant 0 : i32
    %c0_i32_1 = arith.constant 0 : i32
    return %c0_i32, %c0_i32_0 : i32, i32
  }
  func.func @transform_9(%arg0: i32) -> (i32, i32) {
    %c0_i32 = arith.constant 0 : i32
    %c0_i32_0 = arith.constant 0 : i32
    %c0_i32_1 = arith.constant 0 : i32
    return %c0_i32, %c0_i32_0 : i32, i32
  }
  func.func @transform_10(%arg0: i32) -> (i32, i32) {
    %c0_i32 = arith.constant 0 : i32
    %c0_i32_0 = arith.constant 0 : i32
    %c0_i32_1 = arith.constant 0 : i32
    return %c0_i32, %c0_i32_0 : i32, i32
  }
  func.func @transform_11(%arg0: i32) -> (i32, i32, i32) {
    %c0_i32 = arith.constant 0 : i32
    %c0_i32_0 = arith.constant 0 : i32
    %c0_i32_1 = arith.constant 0 : i32
    return %arg0, %c0_i32, %c0_i32_0 : i32, i32, i32
  }
}

</mosaic_0001>

<llo_original>
// kernel: lerp_forward.1
$region0: #{lerp_forward.1}
  #allocation0 [shape = 'u32[]', space=smem, size = 0x4, offset = 0x4, fixed_abs, tag = 'smem constant byte address 0x4 - core index']
  #allocation1 [shape = 'u32[144,128]{1,0:T(1,128)}', space=vmem, size = 0x12000, scoped, tag = 'internal scratch']
  #allocation2 [shape = 'f32[1]{0:T(128)S(6)}', space=smem, size = 0x200, scoped, tag = 'scoped memory for lerp_forward.1']
  %s0 = inlined_call_operand.<no memory space> [shape: f32[1], index: 0, kind: input, shape index: {}]
  %s1 = inlined_call_operand.vmem [shape: f32[2,4,1024], index: 1, kind: input, shape index: {}]
  %s2 = inlined_call_operand.vmem [shape: f32[9,1,1024], index: 2, kind: input, shape index: {}]
  %s3 = inlined_call_operand.vmem [shape: f32[9,4,4], index: 3, kind: input, shape index: {}]
  %s4 = inlined_call_operand.vmem [shape: f32[4,1], index: 4, kind: input, shape index: {}]
  %s5 = inlined_call_operand.vmem [shape: f32[9,8,4], index: 5, kind: input, shape index: {}]
  %s6 = inlined_call_operand.vmem [shape: f32[8,1], index: 6, kind: input, shape index: {}]
  %s7 = inlined_call_operand.vmem [shape: f32[3,4], index: 7, kind: input, shape index: {}]
  %s8 = inlined_call_operand.vmem [shape: f32[3,1], index: 8, kind: input, shape index: {}]
  %s9 = inlined_call_operand.vmem [shape: f32[3,8], index: 9, kind: input, shape index: {}]
  %s10 = inlined_call_operand.vmem [shape: f32[3,1], index: 10, kind: input, shape index: {}]
  %s11 = inlined_call_operand.vmem [shape: f32[2,3,1024], index: 11, kind: output, shape index: {}]
  %s12 = sld [smem:[#allocation0]]
  $region77: #{lerp_forward.1} parent=0
    _
  %s14 = ssub.s32 1, %s12
  %s15 = scalar_select 0, %s14, %s12
  %16 = sst [smem:[#allocation2]] %s0
  loop: start=0, step=1, limit=4
  $region2: #{lerp_forward.1} parent=0 // loop_pre_header
    _
  $region3: #{lerp_forward.1} parent=0 // loop_header
    %s18 = sphi 0, %s22
    %p19 = scmp.ge.s32.totalorder %s18, 4
    %s26 = sphi 0, %s26
    %s28 = sphi 0, %s26
    %s29 = sphi 0, %s28
    %s43 = sphi 0, %s29
    %s49 = sphi 0, %s51
    %s52 = sphi 0, %s49
    %s53 = sphi 0, %s52
    %s69 = sphi 0, %s53
    %s73 = sphi 0, %s73
    %s75 = sphi 0, %s73
    %s76 = sphi 0, %s75
    %s90 = sphi 0, %s76
    %s94 = sphi 0, %s94
    %s96 = sphi 0, %s94
    %s97 = sphi 0, %s96
    %s111 = sphi 0, %s97
    %s115 = sphi 0, %s115
    %s117 = sphi 0, %s115
    %s118 = sphi 0, %s117
    %s132 = sphi 0, %s118
    %s136 = sphi 0, %s136
    %s138 = sphi 0, %s136
    %s139 = sphi 0, %s138
    %s153 = sphi 0, %s139
    %s157 = sphi 0, %s157
    %s159 = sphi 0, %s157
    %s160 = sphi 0, %s159
    %s174 = sphi 0, %s160
    %s178 = sphi 0, %s178
    %s180 = sphi 0, %s178
    %s181 = sphi 0, %s180
    %s195 = sphi 0, %s181
    %s199 = sphi 0, %s199
    %s201 = sphi 0, %s199
    %s202 = sphi 0, %s201
    %s216 = sphi 0, %s202
    %s220 = sphi 0, %s220
    %s222 = sphi 0, %s220
    %s223 = sphi 0, %s222
    %s237 = sphi 0, %s223
    %s241 = sphi 0, %s241
    %s243 = sphi 0, %s241
    %s244 = sphi 0, %s243
    %s258 = sphi 0, %s244
    %s264 = sphi 0, %s266
    %s267 = sphi 0, %s264
    %s268 = sphi 0, %s267
    %s284 = sphi 0, %s268
  $region4: #{lerp_forward.1} parent=0 // loop_header_branch
    %21 = sbr.rel (%p19) target = $region8
  $region5: #{lerp_forward.1} parent=0 // loop_body
    %s23 = ssub.s32 %s18, 1
    %s24 = ssub.s32 %s18, 2
    %s25 = sadd.s32 %s18, 1
    %s27 = sadd.s32 %s26, 1
    %p30 = scmp.eq.s32.totalorder %s18, 1
    %p31 = scmp.ne.s32.totalorder %s26, %s28
    %p32 = scmp.eq.s32.totalorder %s18, 0
    %p33 = por %p31, %p32
    %p34 = scmp.ne.s32.totalorder %s26, %s28
    %p35 = scmp.eq.s32.totalorder %s23, 1
    %p36 = por %p34, %p35
    %p37 = scmp.ne.s32.totalorder %s28, %s29
    %p38 = scmp.eq.s32.totalorder %s23, 0
    %p39 = por %p37, %p38
    %p40 = scmp.ne.s32.totalorder %s28, %s29
    %p41 = scmp.eq.s32.totalorder %s24, 1
    %p42 = por %p40, %p41
    %p44 = scmp.ne.s32.totalorder %s29, %s43
    %p45 = scmp.eq.s32.totalorder %s24, 0
    %p46 = por %p44, %p45
    %s47 = ssub.s32 %s18, %s25
    %p48 = scmp.eq.s32.totalorder %s47, 0
    %s50 = sadd.s32 %s49, 1
    %s51 = scalar_select %p48, %s49, %s50
    %p54 = pneg %p48
    %p55 = scmp.eq.s32.totalorder %s18, 1
    %p56 = por %p54, %p55
    %p57 = scmp.ne.s32.totalorder %s49, %s52
    %p58 = scmp.eq.s32.totalorder %s18, 0
    %p59 = por %p57, %p58
    %p60 = scmp.ne.s32.totalorder %s49, %s52
    %p61 = scmp.eq.s32.totalorder %s23, 1
    %p62 = por %p60, %p61
    %p63 = scmp.ne.s32.totalorder %s52, %s53
    %p64 = scmp.eq.s32.totalorder %s23, 0
    %p65 = por %p63, %p64
    %p66 = scmp.ne.s32.totalorder %s52, %s53
    %p67 = scmp.eq.s32.totalorder %s24, 1
    %p68 = por %p66, %p67
    %p70 = scmp.ne.s32.totalorder %s53, %s69
    %p71 = scmp.eq.s32.totalorder %s24, 0
    %p72 = por %p70, %p71
    %s74 = sadd.s32 %s73, 1
    %p77 = scmp.eq.s32.totalorder %s18, 1
    %p78 = scmp.ne.s32.totalorder %s73, %s75
    %p79 = scmp.eq.s32.totalorder %s18, 0
    %p80 = por %p78, %p79
    %p81 = scmp.ne.s32.totalorder %s73, %s75
    %p82 = scmp.eq.s32.totalorder %s23, 1
    %p83 = por %p81, %p82
    %p84 = scmp.ne.s32.totalorder %s75, %s76
    %p85 = scmp.eq.s32.totalorder %s23, 0
    %p86 = por %p84, %p85
    %p87 = scmp.ne.s32.totalorder %s75, %s76
    %p88 = scmp.eq.s32.totalorder %s24, 1
    %p89 = por %p87, %p88
    %p91 = scmp.ne.s32.totalorder %s76, %s90
    %p92 = scmp.eq.s32.totalorder %s24, 0
    %p93 = por %p91, %p92
    %s95 = sadd.s32 %s94, 1
    %p98 = scmp.eq.s32.totalorder %s18, 1
    %p99 = scmp.ne.s32.totalorder %s94, %s96
    %p100 = scmp.eq.s32.totalorder %s18, 0
    %p101 = por %p99, %p100
    %p102 = scmp.ne.s32.totalorder %s94, %s96
    %p103 = scmp.eq.s32.totalorder %s23, 1
    %p104 = por %p102, %p103
    %p105 = scmp.ne.s32.totalorder %s96, %s97
    %p106 = scmp.eq.s32.totalorder %s23, 0
    %p107 = por %p105, %p106
    %p108 = scmp.ne.s32.totalorder %s96, %s97
    %p109 = scmp.eq.s32.totalorder %s24, 1
    %p110 = por %p108, %p109
    %p112 = scmp.ne.s32.totalorder %s97, %s111
    %p113 = scmp.eq.s32.totalorder %s24, 0
    %p114 = por %p112, %p113
    %s116 = sadd.s32 %s115, 1
    %p119 = scmp.eq.s32.totalorder %s18, 1
    %p120 = scmp.ne.s32.totalorder %s115, %s117
    %p121 = scmp.eq.s32.totalorder %s18, 0
    %p122 = por %p120, %p121
    %p123 = scmp.ne.s32.totalorder %s115, %s117
    %p124 = scmp.eq.s32.totalorder %s23, 1
    %p125 = por %p123, %p124
    %p126 = scmp.ne.s32.totalorder %s117, %s118
    %p127 = scmp.eq.s32.totalorder %s23, 0
    %p128 = por %p126, %p127
    %p129 = scmp.ne.s32.totalorder %s117, %s118
    %p130 = scmp.eq.s32.totalorder %s24, 1
    %p131 = por %p129, %p130
    %p133 = scmp.ne.s32.totalorder %s118, %s132
    %p134 = scmp.eq.s32.totalorder %s24, 0
    %p135 = por %p133, %p134
    %s137 = sadd.s32 %s136, 1
    %p140 = scmp.eq.s32.totalorder %s18, 1
    %p141 = scmp.ne.s32.totalorder %s136, %s138
    %p142 = scmp.eq.s32.totalorder %s18, 0
    %p143 = por %p141, %p142
    %p144 = scmp.ne.s32.totalorder %s136, %s138
    %p145 = scmp.eq.s32.totalorder %s23, 1
    %p146 = por %p144, %p145
    %p147 = scmp.ne.s32.totalorder %s138, %s139
    %p148 = scmp.eq.s32.totalorder %s23, 0
    %p149 = por %p147, %p148
    %p150 = scmp.ne.s32.totalorder %s138, %s139
    %p151 = scmp.eq.s32.totalorder %s24, 1
    %p152 = por %p150, %p151
    %p154 = scmp.ne.s32.totalorder %s139, %s153
    %p155 = scmp.eq.s32.totalorder %s24, 0
    %p156 = por %p154, %p155
    %s158 = sadd.s32 %s157, 1
    %p161 = scmp.eq.s32.totalorder %s18, 1
    %p162 = scmp.ne.s32.totalorder %s157, %s159
    %p163 = scmp.eq.s32.totalorder %s18, 0
    %p164 = por %p162, %p163
    %p165 = scmp.ne.s32.totalorder %s157, %s159
    %p166 = scmp.eq.s32.totalorder %s23, 1
    %p167 = por %p165, %p166
    %p168 = scmp.ne.s32.totalorder %s159, %s160
    %p169 = scmp.eq.s32.totalorder %s23, 0
    %p170 = por %p168, %p169
    %p171 = scmp.ne.s32.totalorder %s159, %s160
    %p172 = scmp.eq.s32.totalorder %s24, 1
    %p173 = por %p171, %p172
    %p175 = scmp.ne.s32.totalorder %s160, %s174
    %p176 = scmp.eq.s32.totalorder %s24, 0
    %p177 = por %p175, %p176
    %s179 = sadd.s32 %s178, 1
    %p182 = scmp.eq.s32.totalorder %s18, 1
    %p183 = scmp.ne.s32.totalorder %s178, %s180
    %p184 = scmp.eq.s32.totalorder %s18, 0
    %p185 = por %p183, %p184
    %p186 = scmp.ne.s32.totalorder %s178, %s180
    %p187 = scmp.eq.s32.totalorder %s23, 1
    %p188 = por %p186, %p187
    %p189 = scmp.ne.s32.totalorder %s180, %s181
    %p190 = scmp.eq.s32.totalorder %s23, 0
    %p191 = por %p189, %p190
    %p192 = scmp.ne.s32.totalorder %s180, %s181
    %p193 = scmp.eq.s32.totalorder %s24, 1
    %p194 = por %p192, %p193
    %p196 = scmp.ne.s32.totalorder %s181, %s195
    %p197 = scmp.eq.s32.totalorder %s24, 0
    %p198 = por %p196, %p197
    %s200 = sadd.s32 %s199, 1
    %p203 = scmp.eq.s32.totalorder %s18, 1
    %p204 = scmp.ne.s32.totalorder %s199, %s201
    %p205 = scmp.eq.s32.totalorder %s18, 0
    %p206 = por %p204, %p205
    %p207 = scmp.ne.s32.totalorder %s199, %s201
    %p208 = scmp.eq.s32.totalorder %s23, 1
    %p209 = por %p207, %p208
    %p210 = scmp.ne.s32.totalorder %s201, %s202
    %p211 = scmp.eq.s32.totalorder %s23, 0
    %p212 = por %p210, %p211
    %p213 = scmp.ne.s32.totalorder %s201, %s202
    %p214 = scmp.eq.s32.totalorder %s24, 1
    %p215 = por %p213, %p214
    %p217 = scmp.ne.s32.totalorder %s202, %s216
    %p218 = scmp.eq.s32.totalorder %s24, 0
    %p219 = por %p217, %p218
    %s221 = sadd.s32 %s220, 1
    %p224 = scmp.eq.s32.totalorder %s18, 1
    %p225 = scmp.ne.s32.totalorder %s220, %s222
    %p226 = scmp.eq.s32.totalorder %s18, 0
    %p227 = por %p225, %p226
    %p228 = scmp.ne.s32.totalorder %s220, %s222
    %p229 = scmp.eq.s32.totalorder %s23, 1
    %p230 = por %p228, %p229
    %p231 = scmp.ne.s32.totalorder %s222, %s223
    %p232 = scmp.eq.s32.totalorder %s23, 0
    %p233 = por %p231, %p232
    %p234 = scmp.ne.s32.totalorder %s222, %s223
    %p235 = scmp.eq.s32.totalorder %s24, 1
    %p236 = por %p234, %p235
    %p238 = scmp.ne.s32.totalorder %s223, %s237
    %p239 = scmp.eq.s32.totalorder %s24, 0
    %p240 = por %p238, %p239
    %s242 = sadd.s32 %s241, 1
    %p245 = scmp.eq.s32.totalorder %s18, 1
    %p246 = scmp.ne.s32.totalorder %s241, %s243
    %p247 = scmp.eq.s32.totalorder %s18, 0
    %p248 = por %p246, %p247
    %p249 = scmp.ne.s32.totalorder %s241, %s243
    %p250 = scmp.eq.s32.totalorder %s23, 1
    %p251 = por %p249, %p250
    %p252 = scmp.ne.s32.totalorder %s243, %s244
    %p253 = scmp.eq.s32.totalorder %s23, 0
    %p254 = por %p252, %p253
    %p255 = scmp.ne.s32.totalorder %s243, %s244
    %p256 = scmp.eq.s32.totalorder %s24, 1
    %p257 = por %p255, %p256
    %p259 = scmp.ne.s32.totalorder %s244, %s258
    %p260 = scmp.eq.s32.totalorder %s24, 0
    %p261 = por %p259, %p260
    %s262 = ssub.s32 %s18, %s25
    %p263 = scmp.eq.s32.totalorder %s262, 0
    %s265 = sadd.s32 %s264, 1
    %s266 = scalar_select %p263, %s264, %s265
    %p269 = pneg %p263
    %p270 = scmp.eq.s32.totalorder %s18, 1
    %p271 = por %p269, %p270
    %p272 = scmp.ne.s32.totalorder %s264, %s267
    %p273 = scmp.eq.s32.totalorder %s18, 0
    %p274 = por %p272, %p273
    %p275 = scmp.ne.s32.totalorder %s264, %s267
    %p276 = scmp.eq.s32.totalorder %s23, 1
    %p277 = por %p275, %p276
    %p278 = scmp.ne.s32.totalorder %s267, %s268
    %p279 = scmp.eq.s32.totalorder %s23, 0
    %p280 = por %p278, %p279
    %p281 = scmp.ne.s32.totalorder %s267, %s268
    %p282 = scmp.eq.s32.totalorder %s24, 1
    %p283 = por %p281, %p282
    %p285 = scmp.ne.s32.totalorder %s268, %s284
    %p286 = scmp.eq.s32.totalorder %s24, 0
    %p287 = por %p285, %p286
    %p288 = scmp.le.s32.totalorder 1, %s18
    %p289 = scmp.lt.s32.totalorder %s18, 3
    %p290 = pnand %p288, %p289
    %p291 = pneg %p290
    // Predicated region
    $region9: #{lerp_forward.1} parent=5 // pred_check
      _
    $region10: #{lerp_forward.1} parent=5 // pred_check_branch
      %293 = sbr.rel (%p290) target = $region12
    $region11: #{lerp_forward.1} parent=5 // pred_region
      %s294 = ssub.s32 %s18, 1
      // Predicated region
      $region13: #{lerp_forward.1} parent=11 // pred_check
        %p295 = pneg %p39
      $region14: #{lerp_forward.1} parent=11 // pred_check_branch
        %297 = sbr.rel (%p295) target = $region16
      $region15: #{lerp_forward.1} parent=11 // pred_region
        _
      $region16: #{lerp_forward.1} parent=11 // pred_fallthru
        _
      // Predicated region
      $region17: #{lerp_forward.1} parent=11 // pred_check
        %p298 = pneg %p86
      $region18: #{lerp_forward.1} parent=11 // pred_check_branch
        %300 = sbr.rel (%p298) target = $region20
      $region19: #{lerp_forward.1} parent=11 // pred_region
        _
      $region20: #{lerp_forward.1} parent=11 // pred_fallthru
        _
      // Predicated region
      $region21: #{lerp_forward.1} parent=11 // pred_check
        %p301 = pneg %p107
      $region22: #{lerp_forward.1} parent=11 // pred_check_branch
        %303 = sbr.rel (%p301) target = $region24
      $region23: #{lerp_forward.1} parent=11 // pred_region
        _
      $region24: #{lerp_forward.1} parent=11 // pred_fallthru
        _
      // Predicated region
      $region25: #{lerp_forward.1} parent=11 // pred_check
        %p304 = pneg %p128
      $region26: #{lerp_forward.1} parent=11 // pred_check_branch
        %306 = sbr.rel (%p304) target = $region28
      $region27: #{lerp_forward.1} parent=11 // pred_region
        _
      $region28: #{lerp_forward.1} parent=11 // pred_fallthru
        _
      // Predicated region
      $region29: #{lerp_forward.1} parent=11 // pred_check
        %p307 = pneg %p149
      $region30: #{lerp_forward.1} parent=11 // pred_check_branch
        %309 = sbr.rel (%p307) target = $region32
      $region31: #{lerp_forward.1} parent=11 // pred_region
        _
      $region32: #{lerp_forward.1} parent=11 // pred_fallthru
        _
      // Predicated region
      $region33: #{lerp_forward.1} parent=11 // pred_check
        %p310 = pneg %p170
      $region34: #{lerp_forward.1} parent=11 // pred_check_branch
        %312 = sbr.rel (%p310) target = $region36
      $region35: #{lerp_forward.1} parent=11 // pred_region
        _
      $region36: #{lerp_forward.1} parent=11 // pred_fallthru
        _
      // Predicated region
      $region37: #{lerp_forward.1} parent=11 // pred_check
        %p313 = pneg %p191
      $region38: #{lerp_forward.1} parent=11 // pred_check_branch
        %315 = sbr.rel (%p313) target = $region40
      $region39: #{lerp_forward.1} parent=11 // pred_region
        _
      $region40: #{lerp_forward.1} parent=11 // pred_fallthru
        _
      // Predicated region
      $region41: #{lerp_forward.1} parent=11 // pred_check
        %p316 = pneg %p212
      $region42: #{lerp_forward.1} parent=11 // pred_check_branch
        %318 = sbr.rel (%p316) target = $region44
      $region43: #{lerp_forward.1} parent=11 // pred_region
        _
      $region44: #{lerp_forward.1} parent=11 // pred_fallthru
        _
      // Predicated region
      $region45: #{lerp_forward.1} parent=11 // pred_check
        %p319 = pneg %p233
      $region46: #{lerp_forward.1} parent=11 // pred_check_branch
        %321 = sbr.rel (%p319) target = $region48
      $region47: #{lerp_forward.1} parent=11 // pred_region
        _
      $region48: #{lerp_forward.1} parent=11 // pred_fallthru
        _
      // Predicated region
      $region49: #{lerp_forward.1} parent=11 // pred_check
        %p322 = pneg %p254
      $region50: #{lerp_forward.1} parent=11 // pred_check_branch
        %324 = sbr.rel (%p322) target = $region52
      $region51: #{lerp_forward.1} parent=11 // pred_region
        _
      $region52: #{lerp_forward.1} parent=11 // pred_fallthru
        _
    $region12: #{lerp_forward.1} parent=5 // pred_fallthru
      _
    %p325 = scmp.lt.s32.totalorder %s18, 2
    // Predicated region
    $region53: #{lerp_forward.1} parent=5 // pred_check
      %p326 = pneg %p325
    $region54: #{lerp_forward.1} parent=5 // pred_check_branch
      %328 = sbr.rel (%p326) target = $region56
    $region55: #{lerp_forward.1} parent=5 // pred_region
      // Predicated region
      $region57: #{lerp_forward.1} parent=55 // pred_check
        %p329 = pneg %p59
      $region58: #{lerp_forward.1} parent=55 // pred_check_branch
        %331 = sbr.rel (%p329) target = $region60
      $region59: #{lerp_forward.1} parent=55 // pred_region
        %p332 = scmp.lt.s32.totalorder %s18, 1
        %s333 = scalar_select %p332, %s18, 1
        %s334 = smul.addr %s333, 8
        %s335 = smul.addr %s334, 4
        %s336 = scalar_lea.vmem %s1, %s335
      $region60: #{lerp_forward.1} parent=55 // pred_fallthru
        _
    $region56: #{lerp_forward.1} parent=5 // pred_fallthru
      _
    %p337 = scmp.le.s32.totalorder 1, %s18
    %p338 = scmp.lt.s32.totalorder %s18, 3
    %p339 = pnand %p337, %p338
    %p340 = pneg %p339
    // Predicated region
    $region61: #{lerp_forward.1} parent=5 // pred_check
      _
    $region62: #{lerp_forward.1} parent=5 // pred_check_branch
      %342 = sbr.rel (%p339) target = $region64
    $region63: #{lerp_forward.1} parent=5 // pred_region
      %s343 = ssub.s32 %s18, 1
      %p344 = pneg %p39
      %p345 = pneg %p36
      %p346 = scmp.lt.s32.totalorder %s23, 1
      %s347 = scalar_select %p346, %s23, 1
      %s348 = smul.addr %s347, 8
      %s349 = smul.addr %s348, 4
      %s350 = scalar_lea.vmem %s1, %s349
      %p351 = pneg %p65
      %p352 = pneg %p62
      %p353 = pneg %p86
      %p354 = pneg %p83
      %p355 = pneg %p107
      %p356 = pneg %p104
      %p357 = pneg %p128
      %p358 = pneg %p125
      %p359 = pneg %p149
      %p360 = pneg %p146
      %p361 = pneg %p170
      %p362 = pneg %p167
      %p363 = pneg %p191
      %p364 = pneg %p188
      %p365 = pneg %p212
      %p366 = pneg %p209
      %p367 = pneg %p233
      %p368 = pneg %p230
      %p369 = pneg %p254
      %p370 = pneg %p251
      %p371 = pneg %p280
      %p372 = pneg %p277
      %p373 = scmp.lt.s32.totalorder %s23, 1
      %s374 = scalar_select %p373, %s23, 1
      %s375 = smul.addr %s374, 8
      %s376 = smul.addr %s375, 4
      %s377 = scalar_lea.vmem %s11, %s376
      %p378 = scmp.lt.s32.totalorder %s23, 1
      %s379 = scalar_select %p378, %s23, 1
      %s380 = smul.addr %s379, 8
      %s381 = smul.addr %s380, 4
      %s382 = scalar_lea.vmem %s1, %s381
      %p383 = scmp.lt.s32.totalorder %s23, 1
      %s384 = scalar_select %p383, %s23, 1
      %s385 = smul.addr %s384, 8
      %s386 = smul.addr %s385, 4
      %s387 = scalar_lea.vmem %s11, %s386
      %s388 = sld [smem:[#allocation2]]
      %v389 = vld [vmem:[%s382] sm:$0xff]
      %v390 = vld [vmem:[%s382 + $0x8] sm:$0xff]
      %v391 = vld [vmem:[%s382 + $0x10] sm:$0xff]
      %v392 = vld [vmem:[%s382 + $0x18] sm:$0xff]
      %v397 = vcombine.high %v389, %v389
      %v398 = vcombine.high %v390, %v390
      %v399 = vcombine.high %v391, %v391
      %v400 = vcombine.high %v392, %v392
      %405 = vrot.lane.b32.xlu0 %v389, 33
      %v406 = vpop.permute.xlu0 %405
      %407 = vrot.lane.b32.xlu0 %v397, 33
      %v408 = vpop.permute.xlu0 %407
      %409 = vrot.lane.b32.xlu0 %v390, 33
      %v410 = vpop.permute.xlu0 %409
      %411 = vrot.lane.b32.xlu0 %v398, 33
      %v412 = vpop.permute.xlu0 %411
      %413 = vrot.lane.b32.xlu0 %v391, 33
      %v414 = vpop.permute.xlu0 %413
      %415 = vrot.lane.b32.xlu0 %v399, 33
      %v416 = vpop.permute.xlu0 %415
      %417 = vrot.lane.b32.xlu0 %v392, 33
      %v418 = vpop.permute.xlu0 %417
      %419 = vrot.lane.b32.xlu0 %v400, 33
      %v420 = vpop.permute.xlu0 %419
      %v421 = vlaneseq
      %v422 = vand.u32 %v421, 127
      %vm423 = vcmp.lt.s32.totalorder %v422, 33
      %v424 = vsel %vm423, %v418, %v420
      %v425 = vsel %vm423, %v416, %v418
      %v426 = vsel %vm423, %v414, %v416
      %v427 = vsel %vm423, %v412, %v414
      %v428 = vsel %vm423, %v410, %v412
      %v429 = vsel %vm423, %v408, %v410
      %v430 = vsel %vm423, %v406, %v408
      %v431 = vsel %vm423, %v420, %v406
      %v432 = vld [vmem:[%s2] sm:$0xff]
      %v434 = vlaneseq
      %v435 = vshrl.u32 %v434, 7
      %v436 = vsub.s32 0, %v435
      %v437 = vrot.slane %v432, %v436
      %v438 = vlaneseq
      %v439 = vshrl.u32 %v438, 7
      %v440 = vsub.s32 1, %v439
      %v441 = vrot.slane %v432, %v440
      %v442 = vlaneseq
      %v443 = vshrl.u32 %v442, 7
      %v444 = vsub.s32 2, %v443
      %v445 = vrot.slane %v432, %v444
      %v446 = vlaneseq
      %v447 = vshrl.u32 %v446, 7
      %v448 = vsub.s32 3, %v447
      %v449 = vrot.slane %v432, %v448
      %v450 = vlaneseq
      %v451 = vshrl.u32 %v450, 7
      %v452 = vsub.s32 4, %v451
      %v453 = vrot.slane %v432, %v452
      %v454 = vlaneseq
      %v455 = vshrl.u32 %v454, 7
      %v456 = vsub.s32 5, %v455
      %v457 = vrot.slane %v432, %v456
      %v458 = vlaneseq
      %v459 = vshrl.u32 %v458, 7
      %v460 = vsub.s32 6, %v459
      %v461 = vrot.slane %v432, %v460
      %v462 = vlaneseq
      %v463 = vshrl.u32 %v462, 7
      %v464 = vsub.s32 7, %v463
      %v465 = vrot.slane %v432, %v464
      %v474 = vmul.f32 %v431, %v437
      %v475 = vmul.f32 %v430, %v441
      %v476 = vmul.f32 %v429, %v445
      %v477 = vmul.f32 %v428, %v449
      %v478 = vmul.f32 %v427, %v453
      %v479 = vmul.f32 %v426, %v457
      %v480 = vmul.f32 %v425, %v461
      %v481 = vmul.f32 %v424, %v465
      %v482 = vld [vmem:[%s3] sm:$0xf]
      %483 = vrot.lane.b32.xlu0 %v389, 32
      %v484 = vpop.permute.xlu0 %483
      %485 = vrot.lane.b32.xlu0 %v397, 32
      %v486 = vpop.permute.xlu0 %485
      %487 = vrot.lane.b32.xlu0 %v390, 32
      %v488 = vpop.permute.xlu0 %487
      %489 = vrot.lane.b32.xlu0 %v398, 32
      %v490 = vpop.permute.xlu0 %489
      %491 = vrot.lane.b32.xlu0 %v391, 32
      %v492 = vpop.permute.xlu0 %491
      %493 = vrot.lane.b32.xlu0 %v399, 32
      %v494 = vpop.permute.xlu0 %493
      %495 = vrot.lane.b32.xlu0 %v392, 32
      %v496 = vpop.permute.xlu0 %495
      %497 = vrot.lane.b32.xlu0 %v400, 32
      %v498 = vpop.permute.xlu0 %497
      %vm499 = vcmp.lt.s32.totalorder %v422, 32
      %v500 = vsel %vm499, %v496, %v498
      %v501 = vsel %vm499, %v494, %v496
      %v502 = vsel %vm499, %v492, %v494
      %v503 = vsel %vm499, %v490, %v492
      %v504 = vsel %vm499, %v488, %v490
      %v505 = vsel %vm499, %v486, %v488
      %v506 = vsel %vm499, %v484, %v486
      %v507 = vsel %vm499, %v498, %v484
      %s508 = scalar_lea.vmem %s2, 8
      %v509 = vld [vmem:[%s508] sm:$0xff]
      %v511 = vlaneseq
      %v512 = vshrl.u32 %v511, 7
      %v513 = vsub.s32 0, %v512
      %v514 = vrot.slane %v509, %v513
      %v515 = vlaneseq
      %v516 = vshrl.u32 %v515, 7
      %v517 = vsub.s32 1, %v516
      %v518 = vrot.slane %v509, %v517
      %v519 = vlaneseq
      %v520 = vshrl.u32 %v519, 7
      %v521 = vsub.s32 2, %v520
      %v522 = vrot.slane %v509, %v521
      %v523 = vlaneseq
      %v524 = vshrl.u32 %v523, 7
      %v525 = vsub.s32 3, %v524
      %v526 = vrot.slane %v509, %v525
      %v527 = vlaneseq
      %v528 = vshrl.u32 %v527, 7
      %v529 = vsub.s32 4, %v528
      %v530 = vrot.slane %v509, %v529
      %v531 = vlaneseq
      %v532 = vshrl.u32 %v531, 7
      %v533 = vsub.s32 5, %v532
      %v534 = vrot.slane %v509, %v533
      %v535 = vlaneseq
      %v536 = vshrl.u32 %v535, 7
      %v537 = vsub.s32 6, %v536
      %v538 = vrot.slane %v509, %v537
      %v539 = vlaneseq
      %v540 = vshrl.u32 %v539, 7
      %v541 = vsub.s32 7, %v540
      %v542 = vrot.slane %v509, %v541
      %v551 = vmul.f32 %v507, %v514
      %v552 = vmul.f32 %v506, %v518
      %v553 = vmul.f32 %v505, %v522
      %v554 = vmul.f32 %v504, %v526
      %v555 = vmul.f32 %v503, %v530
      %v556 = vmul.f32 %v502, %v534
      %v557 = vmul.f32 %v501, %v538
      %v558 = vmul.f32 %v500, %v542
      %s559 = scalar_lea.vmem %s3, 4
      %v560 = vld [vmem:[%s559] sm:$0xf]
      %vm561 = vcmask 31744
      %v563 = vsel %vm561, %v560, 0
      %vm565 = vcmask 1043456
      %v567 = vsel %vm565, %v551, 0
      %v570 = vsel %vm565, %v552, 0
      %v573 = vsel %vm565, %v553, 0
      %v576 = vsel %vm565, %v554, 0
      %v579 = vsel %vm565, %v555, 0
      %v582 = vsel %vm565, %v556, 0
      %v585 = vsel %vm565, %v557, 0
      %v588 = vsel %vm565, %v558, 0
      %590 = vmatprep.subr.mxu0 %v570
      %591 = vmatpush1.msra.mxu0 %v567
      %592 = vmatprep.subr.mxu0 0.0
      %593 = vmatpush1.msra.mxu0 0.0
      %594 = vmatprep.subr.mxu0 0.0
      %595 = vmatpush1.msra.mxu0 0.0
      %596 = vmatprep.subr.mxu0 0.0
      %597 = vmatpush1.msra.mxu0 0.0
      %598 = vmatprep.subr.mxu0 0.0
      %599 = vmatpush1.msra.mxu0 0.0
      %600 = vmatprep.subr.mxu0 0.0
      %601 = vmatpush1.msra.mxu0 0.0
      %602 = vmatprep.subr.mxu0 0.0
      %603 = vmatpush1.msra.mxu0 0.0
      %604 = vmatprep.subr.mxu0 0.0
      %605 = vmatpush1.msra.mxu0 0.0
      %606 = vmatprep.subr.mxu0 0.0
      %607 = vmatpush1.msra.mxu0 0.0
      %608 = vmatprep.subr.mxu0 0.0
      %609 = vmatpush1.msra.mxu0 0.0
      %610 = vmatprep.subr.mxu0 0.0
      %611 = vmatpush1.msra.mxu0 0.0
      %612 = vmatprep.subr.mxu0 0.0
      %613 = vmatpush1.msra.mxu0 0.0
      %614 = vmatprep.subr.mxu0 0.0
      %615 = vmatpush1.msra.mxu0 0.0
      %616 = vmatprep.subr.mxu0 0.0
      %617 = vmatpush1.msra.mxu0 0.0
      %618 = vmatprep.subr.mxu0 0.0
      %619 = vmatpush1.msra.mxu0 0.0
      %620 = vmatprep.subr.mxu0 0.0
      %621 = vmatpush1.msra.mxu0 0.0
      %622 = vmatprep.subr.mxu0 0.0
      %623 = vmatpush1.msra.mxu0 0.0
      %624 = vmatprep.subr.mxu0 0.0
      %625 = vmatpush1.msra.mxu0 0.0
      %626 = vmatprep.subr.mxu0 0.0
      %627 = vmatpush1.msra.mxu0 0.0
      %628 = vmatprep.subr.mxu0 0.0
      %629 = vmatpush1.msra.mxu0 0.0
      %630 = vmatprep.subr.mxu0 0.0
      %631 = vmatpush1.msra.mxu0 0.0
      %632 = vmatprep.subr.mxu0 0.0
      %633 = vmatpush1.msra.mxu0 0.0
      %634 = vmatprep.subr.mxu0 0.0
      %635 = vmatpush1.msra.mxu0 0.0
      %636 = vmatprep.subr.mxu0 0.0
      %637 = vmatpush1.msra.mxu0 0.0
      %638 = vmatprep.subr.mxu0 0.0
      %639 = vmatpush1.msra.mxu0 0.0
      %640 = vmatprep.subr.mxu0 0.0
      %641 = vmatpush1.msra.mxu0 0.0
      %642 = vmatprep.subr.mxu0 0.0
      %643 = vmatpush1.msra.mxu0 0.0
      %644 = vmatprep.subr.mxu0 0.0
      %645 = vmatpush1.msra.mxu0 0.0
      %646 = vmatprep.subr.mxu0 0.0
      %647 = vmatpush1.msra.mxu0 0.0
      %648 = vmatprep.subr.mxu0 0.0
      %649 = vmatpush1.msra.mxu0 0.0
      %650 = vmatprep.subr.mxu0 0.0
      %651 = vmatpush1.msra.mxu0 0.0
      %652 = vmatprep.subr.mxu0 0.0
      %653 = vmatpush1.msra.mxu0 0.0
      %654 = vmatprep.mubr.f32.mxu0 0.0
      %655 = vmatmul.mubr.f32.gmra.mrb[0].mxu0 %v563
      %v656 = vpop.f32.mrb[0].mxu0
      %v657 = vadd.f32 0.0, %v656
      %v658 = vpop.f32.mrb[0].mxu0
      %v659 = vadd.f32 0.0, %v658
      %660 = vdwg.mxu0
      %661 = vmatprep.subr.mxu0 %v576
      %662 = vmatpush1.msra.mxu0 %v573
      %663 = vmatprep.subr.mxu0 0.0
      %664 = vmatpush1.msra.mxu0 0.0
      %665 = vmatprep.subr.mxu0 0.0
      %666 = vmatpush1.msra.mxu0 0.0
      %667 = vmatprep.subr.mxu0 0.0
      %668 = vmatpush1.msra.mxu0 0.0
      %669 = vmatprep.subr.mxu0 0.0
      %670 = vmatpush1.msra.mxu0 0.0
      %671 = vmatprep.subr.mxu0 0.0
      %672 = vmatpush1.msra.mxu0 0.0
      %673 = vmatprep.subr.mxu0 0.0
      %674 = vmatpush1.msra.mxu0 0.0
      %675 = vmatprep.subr.mxu0 0.0
      %676 = vmatpush1.msra.mxu0 0.0
      %677 = vmatprep.subr.mxu0 0.0
      %678 = vmatpush1.msra.mxu0 0.0
      %679 = vmatprep.subr.mxu0 0.0
      %680 = vmatpush1.msra.mxu0 0.0
      %681 = vmatprep.subr.mxu0 0.0
      %682 = vmatpush1.msra.mxu0 0.0
      %683 = vmatprep.subr.mxu0 0.0
      %684 = vmatpush1.msra.mxu0 0.0
      %685 = vmatprep.subr.mxu0 0.0
      %686 = vmatpush1.msra.mxu0 0.0
      %687 = vmatprep.subr.mxu0 0.0
      %688 = vmatpush1.msra.mxu0 0.0
      %689 = vmatprep.subr.mxu0 0.0
      %690 = vmatpush1.msra.mxu0 0.0
      %691 = vmatprep.subr.mxu0 0.0
      %692 = vmatpush1.msra.mxu0 0.0
      %693 = vmatprep.subr.mxu0 0.0
      %694 = vmatpush1.msra.mxu0 0.0
      %695 = vmatprep.subr.mxu0 0.0
      %696 = vmatpush1.msra.mxu0 0.0
      %697 = vmatprep.subr.mxu0 0.0
      %698 = vmatpush1.msra.mxu0 0.0
      %699 = vmatprep.subr.mxu0 0.0
      %700 = vmatpush1.msra.mxu0 0.0
      %701 = vmatprep.subr.mxu0 0.0
      %702 = vmatpush1.msra.mxu0 0.0
      %703 = vmatprep.subr.mxu0 0.0
      %704 = vmatpush1.msra.mxu0 0.0
      %705 = vmatprep.subr.mxu0 0.0
      %706 = vmatpush1.msra.mxu0 0.0
      %707 = vmatprep.subr.mxu0 0.0
      %708 = vmatpush1.msra.mxu0 0.0
      %709 = vmatprep.subr.mxu0 0.0
      %710 = vmatpush1.msra.mxu0 0.0
      %711 = vmatprep.subr.mxu0 0.0
      %712 = vmatpush1.msra.mxu0 0.0
      %713 = vmatprep.subr.mxu0 0.0
      %714 = vmatpush1.msra.mxu0 0.0
      %715 = vmatprep.subr.mxu0 0.0
      %716 = vmatpush1.msra.mxu0 0.0
      %717 = vmatprep.subr.mxu0 0.0
      %718 = vmatpush1.msra.mxu0 0.0
      %719 = vmatprep.subr.mxu0 0.0
      %720 = vmatpush1.msra.mxu0 0.0
      %721 = vmatprep.subr.mxu0 0.0
      %722 = vmatpush1.msra.mxu0 0.0
      %723 = vmatprep.subr.mxu0 0.0
      %724 = vmatpush1.msra.mxu0 0.0
      %725 = vmatprep.mubr.f32.mxu0 0.0
      %726 = vmatmul.mubr.f32.gmra.mrb[0].mxu0 %v563
      %v727 = vpop.f32.mrb[0].mxu0
      %v728 = vadd.f32 0.0, %v727
      %v729 = vpop.f32.mrb[0].mxu0
      %v730 = vadd.f32 0.0, %v729
      %731 = vdwg.mxu0
      %732 = vmatprep.subr.mxu0 %v582
      %733 = vmatpush1.msra.mxu0 %v579
      %734 = vmatprep.subr.mxu0 0.0
      %735 = vmatpush1.msra.mxu0 0.0
      %736 = vmatprep.subr.mxu0 0.0
      %737 = vmatpush1.msra.mxu0 0.0
      %738 = vmatprep.subr.mxu0 0.0
      %739 = vmatpush1.msra.mxu0 0.0
      %740 = vmatprep.subr.mxu0 0.0
      %741 = vmatpush1.msra.mxu0 0.0
      %742 = vmatprep.subr.mxu0 0.0
      %743 = vmatpush1.msra.mxu0 0.0
      %744 = vmatprep.subr.mxu0 0.0
      %745 = vmatpush1.msra.mxu0 0.0
      %746 = vmatprep.subr.mxu0 0.0
      %747 = vmatpush1.msra.mxu0 0.0
      %748 = vmatprep.subr.mxu0 0.0
      %749 = vmatpush1.msra.mxu0 0.0
      %750 = vmatprep.subr.mxu0 0.0
      %751 = vmatpush1.msra.mxu0 0.0
      %752 = vmatprep.subr.mxu0 0.0
      %753 = vmatpush1.msra.mxu0 0.0
      %754 = vmatprep.subr.mxu0 0.0
      %755 = vmatpush1.msra.mxu0 0.0
      %756 = vmatprep.subr.mxu0 0.0
      %757 = vmatpush1.msra.mxu0 0.0
      %758 = vmatprep.subr.mxu0 0.0
      %759 = vmatpush1.msra.mxu0 0.0
      %760 = vmatprep.subr.mxu0 0.0
      %761 = vmatpush1.msra.mxu0 0.0
      %762 = vmatprep.subr.mxu0 0.0
      %763 = vmatpush1.msra.mxu0 0.0
      %764 = vmatprep.subr.mxu0 0.0
      %765 = vmatpush1.msra.mxu0 0.0
      %766 = vmatprep.subr.mxu0 0.0
      %767 = vmatpush1.msra.mxu0 0.0
      %768 = vmatprep.subr.mxu0 0.0
      %769 = vmatpush1.msra.mxu0 0.0
      %770 = vmatprep.subr.mxu0 0.0
      %771 = vmatpush1.msra.mxu0 0.0
      %772 = vmatprep.subr.mxu0 0.0
      %773 = vmatpush1.msra.mxu0 0.0
      %774 = vmatprep.subr.mxu0 0.0
      %775 = vmatpush1.msra.mxu0 0.0
      %776 = vmatprep.subr.mxu0 0.0
      %777 = vmatpush1.msra.mxu0 0.0
      %778 = vmatprep.subr.mxu0 0.0
      %779 = vmatpush1.msra.mxu0 0.0
      %780 = vmatprep.subr.mxu0 0.0
      %781 = vmatpush1.msra.mxu0 0.0
      %782 = vmatprep.subr.mxu0 0.0
      %783 = vmatpush1.msra.mxu0 0.0
      %784 = vmatprep.subr.mxu0 0.0
      %785 = vmatpush1.msra.mxu0 0.0
      %786 = vmatprep.subr.mxu0 0.0
      %787 = vmatpush1.msra.mxu0 0.0
      %788 = vmatprep.subr.mxu0 0.0
      %789 = vmatpush1.msra.mxu0 0.0
      %790 = vmatprep.subr.mxu0 0.0
      %791 = vmatpush1.msra.mxu0 0.0
      %792 = vmatprep.subr.mxu0 0.0
      %793 = vmatpush1.msra.mxu0 0.0
      %794 = vmatprep.subr.mxu0 0.0
      %795 = vmatpush1.msra.mxu0 0.0
      %796 = vmatprep.mubr.f32.mxu0 0.0
      %797 = vmatmul.mubr.f32.gmra.mrb[0].mxu0 %v563
      %v798 = vpop.f32.mrb[0].mxu0
      %v799 = vadd.f32 0.0, %v798
      %v800 = vpop.f32.mrb[0].mxu0
      %v801 = vadd.f32 0.0, %v800
      %802 = vdwg.mxu0
      %803 = vmatprep.subr.mxu0 %v588
      %804 = vmatpush1.msra.mxu0 %v585
      %805 = vmatprep.subr.mxu0 0.0
      %806 = vmatpush1.msra.mxu0 0.0
      %807 = vmatprep.subr.mxu0 0.0
      %808 = vmatpush1.msra.mxu0 0.0
      %809 = vmatprep.subr.mxu0 0.0
      %810 = vmatpush1.msra.mxu0 0.0
      %811 = vmatprep.subr.mxu0 0.0
      %812 = vmatpush1.msra.mxu0 0.0
      %813 = vmatprep.subr.mxu0 0.0
      %814 = vmatpush1.msra.mxu0 0.0
      %815 = vmatprep.subr.mxu0 0.0
      %816 = vmatpush1.msra.mxu0 0.0
      %817 = vmatprep.subr.mxu0 0.0
      %818 = vmatpush1.msra.mxu0 0.0
      %819 = vmatprep.subr.mxu0 0.0
      %820 = vmatpush1.msra.mxu0 0.0
      %821 = vmatprep.subr.mxu0 0.0
      %822 = vmatpush1.msra.mxu0 0.0
      %823 = vmatprep.subr.mxu0 0.0
      %824 = vmatpush1.msra.mxu0 0.0
      %825 = vmatprep.subr.mxu0 0.0
      %826 = vmatpush1.msra.mxu0 0.0
      %827 = vmatprep.subr.mxu0 0.0
      %828 = vmatpush1.msra.mxu0 0.0
      %829 = vmatprep.subr.mxu0 0.0
      %830 = vmatpush1.msra.mxu0 0.0
      %831 = vmatprep.subr.mxu0 0.0
      %832 = vmatpush1.msra.mxu0 0.0
      %833 = vmatprep.subr.mxu0 0.0
      %834 = vmatpush1.msra.mxu0 0.0
      %835 = vmatprep.subr.mxu0 0.0
      %836 = vmatpush1.msra.mxu0 0.0
      %837 = vmatprep.subr.mxu0 0.0
      %838 = vmatpush1.msra.mxu0 0.0
      %839 = vmatprep.subr.mxu0 0.0
      %840 = vmatpush1.msra.mxu0 0.0
      %841 = vmatprep.subr.mxu0 0.0
      %842 = vmatpush1.msra.mxu0 0.0
      %843 = vmatprep.subr.mxu0 0.0
      %844 = vmatpush1.msra.mxu0 0.0
      %845 = vmatprep.subr.mxu0 0.0
      %846 = vmatpush1.msra.mxu0 0.0
      %847 = vmatprep.subr.mxu0 0.0
      %848 = vmatpush1.msra.mxu0 0.0
      %849 = vmatprep.subr.mxu0 0.0
      %850 = vmatpush1.msra.mxu0 0.0
      %851 = vmatprep.subr.mxu0 0.0
      %852 = vmatpush1.msra.mxu0 0.0
      %853 = vmatprep.subr.mxu0 0.0
      %854 = vmatpush1.msra.mxu0 0.0
      %855 = vmatprep.subr.mxu0 0.0
      %856 = vmatpush1.msra.mxu0 0.0
      %857 = vmatprep.subr.mxu0 0.0
      %858 = vmatpush1.msra.mxu0 0.0
      %859 = vmatprep.subr.mxu0 0.0
      %860 = vmatpush1.msra.mxu0 0.0
      %861 = vmatprep.subr.mxu0 0.0
      %862 = vmatpush1.msra.mxu0 0.0
      %863 = vmatprep.subr.mxu0 0.0
      %864 = vmatpush1.msra.mxu0 0.0
      %865 = vmatprep.subr.mxu0 0.0
      %866 = vmatpush1.msra.mxu0 0.0
      %867 = vmatprep.mubr.f32.mxu0 0.0
      %868 = vmatmul.mubr.f32.gmra.mrb[0].mxu0 %v563
      %v869 = vpop.f32.mrb[0].mxu0
      %v870 = vadd.f32 0.0, %v869
      %v871 = vpop.f32.mrb[0].mxu0
      %v872 = vadd.f32 0.0, %v871
      %873 = vdwg.mxu0
      %v875 = vsel %vm561, %v482, 0
      %v878 = vsel %vm565, %v474, 0
      %v881 = vsel %vm565, %v475, 0
      %v884 = vsel %vm565, %v476, 0
      %v887 = vsel %vm565, %v477, 0
      %v890 = vsel %vm565, %v478, 0
      %v893 = vsel %vm565, %v479, 0
      %v896 = vsel %vm565, %v480, 0
      %v899 = vsel %vm565, %v481, 0
      %901 = vmatprep.subr.mxu0 %v881
      %902 = vmatpush1.msra.mxu0 %v878
      %903 = vmatprep.subr.mxu0 0.0
      %904 = vmatpush1.msra.mxu0 0.0
      %905 = vmatprep.subr.mxu0 0.0
      %906 = vmatpush1.msra.mxu0 0.0
      %907 = vmatprep.subr.mxu0 0.0
      %908 = vmatpush1.msra.mxu0 0.0
      %909 = vmatprep.subr.mxu0 0.0
      %910 = vmatpush1.msra.mxu0 0.0
      %911 = vmatprep.subr.mxu0 0.0
      %912 = vmatpush1.msra.mxu0 0.0
      %913 = vmatprep.subr.mxu0 0.0
      %914 = vmatpush1.msra.mxu0 0.0
      %915 = vmatprep.subr.mxu0 0.0
      %916 = vmatpush1.msra.mxu0 0.0
      %917 = vmatprep.subr.mxu0 0.0
      %918 = vmatpush1.msra.mxu0 0.0
      %919 = vmatprep.subr.mxu0 0.0
      %920 = vmatpush1.msra.mxu0 0.0
      %921 = vmatprep.subr.mxu0 0.0
      %922 = vmatpush1.msra.mxu0 0.0
      %923 = vmatprep.subr.mxu0 0.0
      %924 = vmatpush1.msra.mxu0 0.0
      %925 = vmatprep.subr.mxu0 0.0
      %926 = vmatpush1.msra.mxu0 0.0
      %927 = vmatprep.subr.mxu0 0.0
      %928 = vmatpush1.msra.mxu0 0.0
      %929 = vmatprep.subr.mxu0 0.0
      %930 = vmatpush1.msra.mxu0 0.0
      %931 = vmatprep.subr.mxu0 0.0
      %932 = vmatpush1.msra.mxu0 0.0
      %933 = vmatprep.subr.mxu0 0.0
      %934 = vmatpush1.msra.mxu0 0.0
      %935 = vmatprep.subr.mxu0 0.0
      %936 = vmatpush1.msra.mxu0 0.0
      %937 = vmatprep.subr.mxu0 0.0
      %938 = vmatpush1.msra.mxu0 0.0
      %939 = vmatprep.subr.mxu0 0.0
      %940 = vmatpush1.msra.mxu0 0.0
      %941 = vmatprep.subr.mxu0 0.0
      %942 = vmatpush1.msra.mxu0 0.0
      %943 = vmatprep.subr.mxu0 0.0
      %944 = vmatpush1.msra.mxu0 0.0
      %945 = vmatprep.subr.mxu0 0.0
      %946 = vmatpush1.msra.mxu0 0.0
      %947 = vmatprep.subr.mxu0 0.0
      %948 = vmatpush1.msra.mxu0 0.0
      %949 = vmatprep.subr.mxu0 0.0
      %950 = vmatpush1.msra.mxu0 0.0
      %951 = vmatprep.subr.mxu0 0.0
      %952 = vmatpush1.msra.mxu0 0.0
      %953 = vmatprep.subr.mxu0 0.0
      %954 = vmatpush1.msra.mxu0 0.0
      %955 = vmatprep.subr.mxu0 0.0
      %956 = vmatpush1.msra.mxu0 0.0
      %957 = vmatprep.subr.mxu0 0.0
      %958 = vmatpush1.msra.mxu0 0.0
      %959 = vmatprep.subr.mxu0 0.0
      %960 = vmatpush1.msra.mxu0 0.0
      %961 = vmatprep.subr.mxu0 0.0
      %962 = vmatpush1.msra.mxu0 0.0
      %963 = vmatprep.subr.mxu0 0.0
      %964 = vmatpush1.msra.mxu0 0.0
      %965 = vmatprep.mubr.f32.mxu0 0.0
      %966 = vmatmul.mubr.f32.gmra.mrb[0].mxu0 %v875
      %v967 = vpop.f32.mrb[0].mxu0
      %v968 = vadd.f32 %v657, %v967
      %v969 = vpop.f32.mrb[0].mxu0
      %v970 = vadd.f32 %v659, %v969
      %971 = vdwg.mxu0
      %972 = vmatprep.subr.mxu0 %v887
      %973 = vmatpush1.msra.mxu0 %v884
      %974 = vmatprep.subr.mxu0 0.0
      %975 = vmatpush1.msra.mxu0 0.0
      %976 = vmatprep.subr.mxu0 0.0
      %977 = vmatpush1.msra.mxu0 0.0
      %978 = vmatprep.subr.mxu0 0.0
      %979 = vmatpush1.msra.mxu0 0.0
      %980 = vmatprep.subr.mxu0 0.0
      %981 = vmatpush1.msra.mxu0 0.0
      %982 = vmatprep.subr.mxu0 0.0
      %983 = vmatpush1.msra.mxu0 0.0
      %984 = vmatprep.subr.mxu0 0.0
      %985 = vmatpush1.msra.mxu0 0.0
      %986 = vmatprep.subr.mxu0 0.0
      %987 = vmatpush1.msra.mxu0 0.0
      %988 = vmatprep.subr.mxu0 0.0
      %989 = vmatpush1.msra.mxu0 0.0
      %990 = vmatprep.subr.mxu0 0.0
      %991 = vmatpush1.msra.mxu0 0.0
      %992 = vmatprep.subr.mxu0 0.0
      %993 = vmatpush1.msra.mxu0 0.0
      %994 = vmatprep.subr.mxu0 0.0
      %995 = vmatpush1.msra.mxu0 0.0
      %996 = vmatprep.subr.mxu0 0.0
      %997 = vmatpush1.msra.mxu0 0.0
      %998 = vmatprep.subr.mxu0 0.0
      %999 = vmatpush1.msra.mxu0 0.0
      %1000 = vmatprep.subr.mxu0 0.0
      %1001 = vmatpush1.msra.mxu0 0.0
      %1002 = vmatprep.subr.mxu0 0.0
      %1003 = vmatpush1.msra.mxu0 0.0
      %1004 = vmatprep.subr.mxu0 0.0
      %1005 = vmatpush1.msra.mxu0 0.0
      %1006 = vmatprep.subr.mxu0 0.0
      %1007 = vmatpush1.msra.mxu0 0.0
      %1008 = vmatprep.subr.mxu0 0.0
      %1009 = vmatpush1.msra.mxu0 0.0
      %1010 = vmatprep.subr.mxu0 0.0
      %1011 = vmatpush1.msra.mxu0 0.0
      %1012 = vmatprep.subr.mxu0 0.0
      %1013 = vmatpush1.msra.mxu0 0.0
      %1014 = vmatprep.subr.mxu0 0.0
      %1015 = vmatpush1.msra.mxu0 0.0
      %1016 = vmatprep.subr.mxu0 0.0
      %1017 = vmatpush1.msra.mxu0 0.0
      %1018 = vmatprep.subr.mxu0 0.0
      %1019 = vmatpush1.msra.mxu0 0.0
      %1020 = vmatprep.subr.mxu0 0.0
      %1021 = vmatpush1.msra.mxu0 0.0
      %1022 = vmatprep.subr.mxu0 0.0
      %1023 = vmatpush1.msra.mxu0 0.0
      %1024 = vmatprep.subr.mxu0 0.0
      %1025 = vmatpush1.msra.mxu0 0.0
      %1026 = vmatprep.subr.mxu0 0.0
      %1027 = vmatpush1.msra.mxu0 0.0
      %1028 = vmatprep.subr.mxu0 0.0
      %1029 = vmatpush1.msra.mxu0 0.0
      %1030 = vmatprep.subr.mxu0 0.0
      %1031 = vmatpush1.msra.mxu0 0.0
      %1032 = vmatprep.subr.mxu0 0.0
      %1033 = vmatpush1.msra.mxu0 0.0
      %1034 = vmatprep.subr.mxu0 0.0
      %1035 = vmatpush1.msra.mxu0 0.0
      %1036 = vmatprep.mubr.f32.mxu0 0.0
      %1037 = vmatmul.mubr.f32.gmra.mrb[0].mxu0 %v875
      %v1038 = vpop.f32.mrb[0].mxu0
      %v1039 = vadd.f32 %v728, %v1038
      %v1040 = vpop.f32.mrb[0].mxu0
      %v1041 = vadd.f32 %v730, %v1040
      %1042 = vdwg.mxu0
      %1043 = vmatprep.subr.mxu0 %v893
      %1044 = vmatpush1.msra.mxu0 %v890
      %1045 = vmatprep.subr.mxu0 0.0
      %1046 = vmatpush1.msra.mxu0 0.0
      %1047 = vmatprep.subr.mxu0 0.0
      %1048 = vmatpush1.msra.mxu0 0.0
      %1049 = vmatprep.subr.mxu0 0.0
      %1050 = vmatpush1.msra.mxu0 0.0
      %1051 = vmatprep.subr.mxu0 0.0
      %1052 = vmatpush1.msra.mxu0 0.0
      %1053 = vmatprep.subr.mxu0 0.0
      %1054 = vmatpush1.msra.mxu0 0.0
      %1055 = vmatprep.subr.mxu0 0.0
      %1056 = vmatpush1.msra.mxu0 0.0
      %1057 = vmatprep.subr.mxu0 0.0
      %1058 = vmatpush1.msra.mxu0 0.0
      %1059 = vmatprep.subr.mxu0 0.0
      %1060 = vmatpush1.msra.mxu0 0.0
      %1061 = vmatprep.subr.mxu0 0.0
      %1062 = vmatpush1.msra.mxu0 0.0
      %1063 = vmatprep.subr.mxu0 0.0
      %1064 = vmatpush1.msra.mxu0 0.0
      %1065 = vmatprep.subr.mxu0 0.0
      %1066 = vmatpush1.msra.mxu0 0.0
      %1067 = vmatprep.subr.mxu0 0.0
      %1068 = vmatpush1.msra.mxu0 0.0
      %1069 = vmatprep.subr.mxu0 0.0
      %1070 = vmatpush1.msra.mxu0 0.0
      %1071 = vmatprep.subr.mxu0 0.0
      %1072 = vmatpush1.msra.mxu0 0.0
      %1073 = vmatprep.subr.mxu0 0.0
      %1074 = vmatpush1.msra.mxu0 0.0
      %1075 = vmatprep.subr.mxu0 0.0
      %1076 = vmatpush1.msra.mxu0 0.0
      %1077 = vmatprep.subr.mxu0 0.0
      %1078 = vmatpush1.msra.mxu0 0.0
      %1079 = vmatprep.subr.mxu0 0.0
      %1080 = vmatpush1.msra.mxu0 0.0
      %1081 = vmatprep.subr.mxu0 0.0
      %1082 = vmatpush1.msra.mxu0 0.0
      %1083 = vmatprep.subr.mxu0 0.0
      %1084 = vmatpush1.msra.mxu0 0.0
      %1085 = vmatprep.subr.mxu0 0.0
      %1086 = vmatpush1.msra.mxu0 0.0
      %1087 = vmatprep.subr.mxu0 0.0
      %1088 = vmatpush1.msra.mxu0 0.0
      %1089 = vmatprep.subr.mxu0 0.0
      %1090 = vmatpush1.msra.mxu0 0.0
      %1091 = vmatprep.subr.mxu0 0.0
      %1092 = vmatpush1.msra.mxu0 0.0
      %1093 = vmatprep.subr.mxu0 0.0
      %1094 = vmatpush1.msra.mxu0 0.0
      %1095 = vmatprep.subr.mxu0 0.0
      %1096 = vmatpush1.msra.mxu0 0.0
      %1097 = vmatprep.subr.mxu0 0.0
      %1098 = vmatpush1.msra.mxu0 0.0
      %1099 = vmatprep.subr.mxu0 0.0
      %1100 = vmatpush1.msra.mxu0 0.0
      %1101 = vmatprep.subr.mxu0 0.0
      %1102 = vmatpush1.msra.mxu0 0.0
      %1103 = vmatprep.subr.mxu0 0.0
      %1104 = vmatpush1.msra.mxu0 0.0
      %1105 = vmatprep.subr.mxu0 0.0
      %1106 = vmatpush1.msra.mxu0 0.0
      %1107 = vmatprep.mubr.f32.mxu0 0.0
      %1108 = vmatmul.mubr.f32.gmra.mrb[0].mxu0 %v875
      %v1109 = vpop.f32.mrb[0].mxu0
      %v1110 = vadd.f32 %v799, %v1109
      %v1111 = vpop.f32.mrb[0].mxu0
      %v1112 = vadd.f32 %v801, %v1111
      %1113 = vdwg.mxu0
      %1114 = vmatprep.subr.mxu0 %v899
      %1115 = vmatpush1.msra.mxu0 %v896
      %1116 = vmatprep.subr.mxu0 0.0
      %1117 = vmatpush1.msra.mxu0 0.0
      %1118 = vmatprep.subr.mxu0 0.0
      %1119 = vmatpush1.msra.mxu0 0.0
      %1120 = vmatprep.subr.mxu0 0.0
      %1121 = vmatpush1.msra.mxu0 0.0
      %1122 = vmatprep.subr.mxu0 0.0
      %1123 = vmatpush1.msra.mxu0 0.0
      %1124 = vmatprep.subr.mxu0 0.0
      %1125 = vmatpush1.msra.mxu0 0.0
      %1126 = vmatprep.subr.mxu0 0.0
      %1127 = vmatpush1.msra.mxu0 0.0
      %1128 = vmatprep.subr.mxu0 0.0
      %1129 = vmatpush1.msra.mxu0 0.0
      %1130 = vmatprep.subr.mxu0 0.0
      %1131 = vmatpush1.msra.mxu0 0.0
      %1132 = vmatprep.subr.mxu0 0.0
      %1133 = vmatpush1.msra.mxu0 0.0
      %1134 = vmatprep.subr.mxu0 0.0
      %1135 = vmatpush1.msra.mxu0 0.0
      %1136 = vmatprep.subr.mxu0 0.0
      %1137 = vmatpush1.msra.mxu0 0.0
      %1138 = vmatprep.subr.mxu0 0.0
      %1139 = vmatpush1.msra.mxu0 0.0
      %1140 = vmatprep.subr.mxu0 0.0
      %1141 = vmatpush1.msra.mxu0 0.0
      %1142 = vmatprep.subr.mxu0 0.0
      %1143 = vmatpush1.msra.mxu0 0.0
      %1144 = vmatprep.subr.mxu0 0.0
      %1145 = vmatpush1.msra.mxu0 0.0
      %1146 = vmatprep.subr.mxu0 0.0
      %1147 = vmatpush1.msra.mxu0 0.0
      %1148 = vmatprep.subr.mxu0 0.0
      %1149 = vmatpush1.msra.mxu0 0.0
      %1150 = vmatprep.subr.mxu0 0.0
      %1151 = vmatpush1.msra.mxu0 0.0
      %1152 = vmatprep.subr.mxu0 0.0
      %1153 = vmatpush1.msra.mxu0 0.0
      %1154 = vmatprep.subr.mxu0 0.0
      %1155 = vmatpush1.msra.mxu0 0.0
      %1156 = vmatprep.subr.mxu0 0.0
      %1157 = vmatpush1.msra.mxu0 0.0
      %1158 = vmatprep.subr.mxu0 0.0
      %1159 = vmatpush1.msra.mxu0 0.0
      %1160 = vmatprep.subr.mxu0 0.0
      %1161 = vmatpush1.msra.mxu0 0.0
      %1162 = vmatprep.subr.mxu0 0.0
      %1163 = vmatpush1.msra.mxu0 0.0
      %1164 = vmatprep.subr.mxu0 0.0
      %1165 = vmatpush1.msra.mxu0 0.0
      %1166 = vmatprep.subr.mxu0 0.0
      %1167 = vmatpush1.msra.mxu0 0.0
      %1168 = vmatprep.subr.mxu0 0.0
      %1169 = vmatpush1.msra.mxu0 0.0
      %1170 = vmatprep.subr.mxu0 0.0
      %1171 = vmatpush1.msra.mxu0 0.0
      %1172 = vmatprep.subr.mxu0 0.0
      %1173 = vmatpush1.msra.mxu0 0.0
      %1174 = vmatprep.subr.mxu0 0.0
      %1175 = vmatpush1.msra.mxu0 0.0
      %1176 = vmatprep.subr.mxu0 0.0
      %1177 = vmatpush1.msra.mxu0 0.0
      %1178 = vmatprep.mubr.f32.mxu0 0.0
      %1179 = vmatmul.mubr.f32.gmra.mrb[0].mxu0 %v875
      %v1180 = vpop.f32.mrb[0].mxu0
      %v1181 = vadd.f32 %v870, %v1180
      %v1182 = vpop.f32.mrb[0].mxu0
      %v1183 = vadd.f32 %v872, %v1182
      %1184 = vdwg.mxu0
      %1185 = vrot.lane.b32.xlu0 %v389, 31
      %v1186 = vpop.permute.xlu0 %1185
      %1187 = vrot.lane.b32.xlu0 %v397, 31
      %v1188 = vpop.permute.xlu0 %1187
      %1189 = vrot.lane.b32.xlu0 %v390, 31
      %v1190 = vpop.permute.xlu0 %1189
      %1191 = vrot.lane.b32.xlu0 %v398, 31
      %v1192 = vpop.permute.xlu0 %1191
      %1193 = vrot.lane.b32.xlu0 %v391, 31
      %v1194 = vpop.permute.xlu0 %1193
      %1195 = vrot.lane.b32.xlu0 %v399, 31
      %v1196 = vpop.permute.xlu0 %1195
      %1197 = vrot.lane.b32.xlu0 %v392, 31
      %v1198 = vpop.permute.xlu0 %1197
      %1199 = vrot.lane.b32.xlu0 %v400, 31
      %v1200 = vpop.permute.xlu0 %1199
      %vm1201 = vcmp.lt.s32.totalorder %v422, 31
      %v1202 = vsel %vm1201, %v1198, %v1200
      %v1203 = vsel %vm1201, %v1196, %v1198
      %v1204 = vsel %vm1201, %v1194, %v1196
      %v1205 = vsel %vm1201, %v1192, %v1194
      %v1206 = vsel %vm1201, %v1190, %v1192
      %v1207 = vsel %vm1201, %v1188, %v1190
      %v1208 = vsel %vm1201, %v1186, %v1188
      %v1209 = vsel %vm1201, %v1200, %v1186
      %s1210 = scalar_lea.vmem %s2, 16
      %v1211 = vld [vmem:[%s1210] sm:$0xff]
      %v1213 = vlaneseq
      %v1214 = vshrl.u32 %v1213, 7
      %v1215 = vsub.s32 0, %v1214
      %v1216 = vrot.slane %v1211, %v1215
      %v1217 = vlaneseq
      %v1218 = vshrl.u32 %v1217, 7
      %v1219 = vsub.s32 1, %v1218
      %v1220 = vrot.slane %v1211, %v1219
      %v1221 = vlaneseq
      %v1222 = vshrl.u32 %v1221, 7
      %v1223 = vsub.s32 2, %v1222
      %v1224 = vrot.slane %v1211, %v1223
      %v1225 = vlaneseq
      %v1226 = vshrl.u32 %v1225, 7
      %v1227 = vsub.s32 3, %v1226
      %v1228 = vrot.slane %v1211, %v1227
      %v1229 = vlaneseq
      %v1230 = vshrl.u32 %v1229, 7
      %v1231 = vsub.s32 4, %v1230
      %v1232 = vrot.slane %v1211, %v1231
      %v1233 = vlaneseq
      %v1234 = vshrl.u32 %v1233, 7
      %v1235 = vsub.s32 5, %v1234
      %v1236 = vrot.slane %v1211, %v1235
      %v1237 = vlaneseq
      %v1238 = vshrl.u32 %v1237, 7
      %v1239 = vsub.s32 6, %v1238
      %v1240 = vrot.slane %v1211, %v1239
      %v1241 = vlaneseq
      %v1242 = vshrl.u32 %v1241, 7
      %v1243 = vsub.s32 7, %v1242
      %v1244 = vrot.slane %v1211, %v1243
      %v1253 = vmul.f32 %v1209, %v1216
      %v1254 = vmul.f32 %v1208, %v1220
      %v1255 = vmul.f32 %v1207, %v1224
      %v1256 = vmul.f32 %v1206, %v1228
      %v1257 = vmul.f32 %v1205, %v1232
      %v1258 = vmul.f32 %v1204, %v1236
      %v1259 = vmul.f32 %v1203, %v1240
      %v1260 = vmul.f32 %v1202, %v1244
      %s1261 = scalar_lea.vmem %s3, 8
      %v1262 = vld [vmem:[%s1261] sm:$0xf]
      %v1264 = vsel %vm561, %v1262, 0
      %v1267 = vsel %vm565, %v1253, 0
      %v1270 = vsel %vm565, %v1254, 0
      %v1273 = vsel %vm565, %v1255, 0
      %v1276 = vsel %vm565, %v1256, 0
      %v1279 = vsel %vm565, %v1257, 0
      %v1282 = vsel %vm565, %v1258, 0
      %v1285 = vsel %vm565, %v1259, 0
      %v1288 = vsel %vm565, %v1260, 0
      %1290 = vmatprep.subr.mxu0 %v1270
      %1291 = vmatpush1.msra.mxu0 %v1267
      %1292 = vmatprep.subr.mxu0 0.0
      %1293 = vmatpush1.msra.mxu0 0.0
      %1294 = vmatprep.subr.mxu0 0.0
      %1295 = vmatpush1.msra.mxu0 0.0
      %1296 = vmatprep.subr.mxu0 0.0
      %1297 = vmatpush1.msra.mxu0 0.0
      %1298 = vmatprep.subr.mxu0 0.0
      %1299 = vmatpush1.msra.mxu0 0.0
      %1300 = vmatprep.subr.mxu0 0.0
      %1301 = vmatpush1.msra.mxu0 0.0
      %1302 = vmatprep.subr.mxu0 0.0
      %1303 = vmatpush1.msra.mxu0 0.0
      %1304 = vmatprep.subr.mxu0 0.0
      %1305 = vmatpush1.msra.mxu0 0.0
      %1306 = vmatprep.subr.mxu0 0.0
      %1307 = vmatpush1.msra.mxu0 0.0
      %1308 = vmatprep.subr.mxu0 0.0
      %1309 = vmatpush1.msra.mxu0 0.0
      %1310 = vmatprep.subr.mxu0 0.0
      %1311 = vmatpush1.msra.mxu0 0.0
      %1312 = vmatprep.subr.mxu0 0.0
      %1313 = vmatpush1.msra.mxu0 0.0
      %1314 = vmatprep.subr.mxu0 0.0
      %1315 = vmatpush1.msra.mxu0 0.0
      %1316 = vmatprep.subr.mxu0 0.0
      %1317 = vmatpush1.msra.mxu0 0.0
      %1318 = vmatprep.subr.mxu0 0.0
      %1319 = vmatpush1.msra.mxu0 0.0
      %1320 = vmatprep.subr.mxu0 0.0
      %1321 = vmatpush1.msra.mxu0 0.0
      %1322 = vmatprep.subr.mxu0 0.0
      %1323 = vmatpush1.msra.mxu0 0.0
      %1324 = vmatprep.subr.mxu0 0.0
      %1325 = vmatpush1.msra.mxu0 0.0
      %1326 = vmatprep.subr.mxu0 0.0
      %1327 = vmatpush1.msra.mxu0 0.0
      %1328 = vmatprep.subr.mxu0 0.0
      %1329 = vmatpush1.msra.mxu0 0.0
      %1330 = vmatprep.subr.mxu0 0.0
      %1331 = vmatpush1.msra.mxu0 0.0
      %1332 = vmatprep.subr.mxu0 0.0
      %1333 = vmatpush1.msra.mxu0 0.0
      %1334 = vmatprep.subr.mxu0 0.0
      %1335 = vmatpush1.msra.mxu0 0.0
      %1336 = vmatprep.subr.mxu0 0.0
      %1337 = vmatpush1.msra.mxu0 0.0
      %1338 = vmatprep.subr.mxu0 0.0
      %1339 = vmatpush1.msra.mxu0 0.0
      %1340 = vmatprep.subr.mxu0 0.0
      %1341 = vmatpush1.msra.mxu0 0.0
      %1342 = vmatprep.subr.mxu0 0.0
      %1343 = vmatpush1.msra.mxu0 0.0
      %1344 = vmatprep.subr.mxu0 0.0
      %1345 = vmatpush1.msra.mxu0 0.0
      %1346 = vmatprep.subr.mxu0 0.0
      %1347 = vmatpush1.msra.mxu0 0.0
      %1348 = vmatprep.subr.mxu0 0.0
      %1349 = vmatpush1.msra.mxu0 0.0
      %1350 = vmatprep.subr.mxu0 0.0
      %1351 = vmatpush1.msra.mxu0 0.0
      %1352 = vmatprep.subr.mxu0 0.0
      %1353 = vmatpush1.msra.mxu0 0.0
      %1354 = vmatprep.mubr.f32.mxu0 0.0
      %1355 = vmatmul.mubr.f32.gmra.mrb[0].mxu0 %v1264
      %v1356 = vpop.f32.mrb[0].mxu0
      %v1357 = vadd.f32 0.0, %v1356
      %v1358 = vpop.f32.mrb[0].mxu0
      %v1359 = vadd.f32 0.0, %v1358
      %1360 = vdwg.mxu0
      %1361 = vmatprep.subr.mxu0 %v1276
      %1362 = vmatpush1.msra.mxu0 %v1273
      %1363 = vmatprep.subr.mxu0 0.0
      %1364 = vmatpush1.msra.mxu0 0.0
      %1365 = vmatprep.subr.mxu0 0.0
      %1366 = vmatpush1.msra.mxu0 0.0
      %1367 = vmatprep.subr.mxu0 0.0
      %1368 = vmatpush1.msra.mxu0 0.0
      %1369 = vmatprep.subr.mxu0 0.0
      %1370 = vmatpush1.msra.mxu0 0.0
      %1371 = vmatprep.subr.mxu0 0.0
      %1372 = vmatpush1.msra.mxu0 0.0
      %1373 = vmatprep.subr.mxu0 0.0
      %1374 = vmatpush1.msra.mxu0 0.0
      %1375 = vmatprep.subr.mxu0 0.0
      %1376 = vmatpush1.msra.mxu0 0.0
      %1377 = vmatprep.subr.mxu0 0.0
      %1378 = vmatpush1.msra.mxu0 0.0
      %1379 = vmatprep.subr.mxu0 0.0
      %1380 = vmatpush1.msra.mxu0 0.0
      %1381 = vmatprep.subr.mxu0 0.0
      %1382 = vmatpush1.msra.mxu0 0.0
      %1383 = vmatprep.subr.mxu0 0.0
      %1384 = vmatpush1.msra.mxu0 0.0
      %1385 = vmatprep.subr.mxu0 0.0
      %1386 = vmatpush1.msra.mxu0 0.0
      %1387 = vmatprep.subr.mxu0 0.0
      %1388 = vmatpush1.msra.mxu0 0.0
      %1389 = vmatprep.subr.mxu0 0.0
      %1390 = vmatpush1.msra.mxu0 0.0
      %1391 = vmatprep.subr.mxu0 0.0
      %1392 = vmatpush1.msra.mxu0 0.0
      %1393 = vmatprep.subr.mxu0 0.0
      %1394 = vmatpush1.msra.mxu0 0.0
      %1395 = vmatprep.subr.mxu0 0.0
      %1396 = vmatpush1.msra.mxu0 0.0
      %1397 = vmatprep.subr.mxu0 0.0
      %1398 = vmatpush1.msra.mxu0 0.0
      %1399 = vmatprep.subr.mxu0 0.0
      %1400 = vmatpush1.msra.mxu0 0.0
      %1401 = vmatprep.subr.mxu0 0.0
      %1402 = vmatpush1.msra.mxu0 0.0
      %1403 = vmatprep.subr.mxu0 0.0
      %1404 = vmatpush1.msra.mxu0 0.0
      %1405 = vmatprep.subr.mxu0 0.0
      %1406 = vmatpush1.msra.mxu0 0.0
      %1407 = vmatprep.subr.mxu0 0.0
      %1408 = vmatpush1.msra.mxu0 0.0
      %1409 = vmatprep.subr.mxu0 0.0
      %1410 = vmatpush1.msra.mxu0 0.0
      %1411 = vmatprep.subr.mxu0 0.0
      %1412 = vmatpush1.msra.mxu0 0.0
      %1413 = vmatprep.subr.mxu0 0.0
      %1414 = vmatpush1.msra.mxu0 0.0
      %1415 = vmatprep.subr.mxu0 0.0
      %1416 = vmatpush1.msra.mxu0 0.0
      %1417 = vmatprep.subr.mxu0 0.0
      %1418 = vmatpush1.msra.mxu0 0.0
      %1419 = vmatprep.subr.mxu0 0.0
      %1420 = vmatpush1.msra.mxu0 0.0
      %1421 = vmatprep.subr.mxu0 0.0
      %1422 = vmatpush1.msra.mxu0 0.0
      %1423 = vmatprep.subr.mxu0 0.0
      %1424 = vmatpush1.msra.mxu0 0.0
      %1425 = vmatprep.mubr.f32.mxu0 0.0
      %1426 = vmatmul.mubr.f32.gmra.mrb[0].mxu0 %v1264
      %v1427 = vpop.f32.mrb[0].mxu0
      %v1428 = vadd.f32 0.0, %v1427
      %v1429 = vpop.f32.mrb[0].mxu0
      %v1430 = vadd.f32 0.0, %v1429
      %1431 = vdwg.mxu0
      %1432 = vmatprep.subr.mxu0 %v1282
      %1433 = vmatpush1.msra.mxu0 %v1279
      %1434 = vmatprep.subr.mxu0 0.0
      %1435 = vmatpush1.msra.mxu0 0.0
      %1436 = vmatprep.subr.mxu0 0.0
      %1437 = vmatpush1.msra.mxu0 0.0
      %1438 = vmatprep.subr.mxu0 0.0
      %1439 = vmatpush1.msra.mxu0 0.0
      %1440 = vmatprep.subr.mxu0 0.0
      %1441 = vmatpush1.msra.mxu0 0.0
      %1442 = vmatprep.subr.mxu0 0.0
      %1443 = vmatpush1.msra.mxu0 0.0
      %1444 = vmatprep.subr.mxu0 0.0
      %1445 = vmatpush1.msra.mxu0 0.0
      %1446 = vmatprep.subr.mxu0 0.0
      %1447 = vmatpush1.msra.mxu0 0.0
      %1448 = vmatprep.subr.mxu0 0.0
      %1449 = vmatpush1.msra.mxu0 0.0
      %1450 = vmatprep.subr.mxu0 0.0
      %1451 = vmatpush1.msra.mxu0 0.0
      %1452 = vmatprep.subr.mxu0 0.0
      %1453 = vmatpush1.msra.mxu0 0.0
      %1454 = vmatprep.subr.mxu0 0.0
      %1455 = vmatpush1.msra.mxu0 0.0
      %1456 = vmatprep.subr.mxu0 0.0
      %1457 = vmatpush1.msra.mxu0 0.0
      %1458 = vmatprep.subr.mxu0 0.0
      %1459 = vmatpush1.msra.mxu0 0.0
      %1460 = vmatprep.subr.mxu0 0.0
      %1461 = vmatpush1.msra.mxu0 0.0
      %1462 = vmatprep.subr.mxu0 0.0
      %1463 = vmatpush1.msra.mxu0 0.0
      %1464 = vmatprep.subr.mxu0 0.0
      %1465 = vmatpush1.msra.mxu0 0.0
      %1466 = vmatprep.subr.mxu0 0.0
      %1467 = vmatpush1.msra.mxu0 0.0
      %1468 = vmatprep.subr.mxu0 0.0
      %1469 = vmatpush1.msra.mxu0 0.0
      %1470 = vmatprep.subr.mxu0 0.0
      %1471 = vmatpush1.msra.mxu0 0.0
      %1472 = vmatprep.subr.mxu0 0.0
      %1473 = vmatpush1.msra.mxu0 0.0
      %1474 = vmatprep.subr.mxu0 0.0
      %1475 = vmatpush1.msra.mxu0 0.0
      %1476 = vmatprep.subr.mxu0 0.0
      %1477 = vmatpush1.msra.mxu0 0.0
      %1478 = vmatprep.subr.mxu0 0.0
      %1479 = vmatpush1.msra.mxu0 0.0
      %1480 = vmatprep.subr.mxu0 0.0
      %1481 = vmatpush1.msra.mxu0 0.0
      %1482 = vmatprep.subr.mxu0 0.0
      %1483 = vmatpush1.msra.mxu0 0.0
      %1484 = vmatprep.subr.mxu0 0.0
      %1485 = vmatpush1.msra.mxu0 0.0
      %1486 = vmatprep.subr.mxu0 0.0
      %1487 = vmatpush1.msra.mxu0 0.0
      %1488 = vmatprep.subr.mxu0 0.0
      %1489 = vmatpush1.msra.mxu0 0.0
      %1490 = vmatprep.subr.mxu0 0.0
      %1491 = vmatpush1.msra.mxu0 0.0
      %1492 = vmatprep.subr.mxu0 0.0
      %1493 = vmatpush1.msra.mxu0 0.0
      %1494 = vmatprep.subr.mxu0 0.0
      %1495 = vmatpush1.msra.mxu0 0.0
      %1496 = vmatprep.mubr.f32.mxu0 0.0
      %1497 = vmatmul.mubr.f32.gmra.mrb[0].mxu0 %v1264
      %v1498 = vpop.f32.mrb[0].mxu0
      %v1499 = vadd.f32 0.0, %v1498
      %v1500 = vpop.f32.mrb[0].mxu0
      %v1501 = vadd.f32 0.0, %v1500
      %1502 = vdwg.mxu0
      %1503 = vmatprep.subr.mxu0 %v1288
      %1504 = vmatpush1.msra.mxu0 %v1285
      %1505 = vmatprep.subr.mxu0 0.0
      %1506 = vmatpush1.msra.mxu0 0.0
      %1507 = vmatprep.subr.mxu0 0.0
      %1508 = vmatpush1.msra.mxu0 0.0
      %1509 = vmatprep.subr.mxu0 0.0
      %1510 = vmatpush1.msra.mxu0 0.0
      %1511 = vmatprep.subr.mxu0 0.0
      %1512 = vmatpush1.msra.mxu0 0.0
      %1513 = vmatprep.subr.mxu0 0.0
      %1514 = vmatpush1.msra.mxu0 0.0
      %1515 = vmatprep.subr.mxu0 0.0
      %1516 = vmatpush1.msra.mxu0 0.0
      %1517 = vmatprep.subr.mxu0 0.0
      %1518 = vmatpush1.msra.mxu0 0.0
      %1519 = vmatprep.subr.mxu0 0.0
      %1520 = vmatpush1.msra.mxu0 0.0
      %1521 = vmatprep.subr.mxu0 0.0
      %1522 = vmatpush1.msra.mxu0 0.0
      %1523 = vmatprep.subr.mxu0 0.0
      %1524 = vmatpush1.msra.mxu0 0.0
      %1525 = vmatprep.subr.mxu0 0.0
      %1526 = vmatpush1.msra.mxu0 0.0
      %1527 = vmatprep.subr.mxu0 0.0
      %1528 = vmatpush1.msra.mxu0 0.0
      %1529 = vmatprep.subr.mxu0 0.0
      %1530 = vmatpush1.msra.mxu0 0.0
      %1531 = vmatprep.subr.mxu0 0.0
      %1532 = vmatpush1.msra.mxu0 0.0
      %1533 = vmatprep.subr.mxu0 0.0
      %1534 = vmatpush1.msra.mxu0 0.0
      %1535 = vmatprep.subr.mxu0 0.0
      %1536 = vmatpush1.msra.mxu0 0.0
      %1537 = vmatprep.subr.mxu0 0.0
      %1538 = vmatpush1.msra.mxu0 0.0
      %1539 = vmatprep.subr.mxu0 0.0
      %1540 = vmatpush1.msra.mxu0 0.0
      %1541 = vmatprep.subr.mxu0 0.0
      %1542 = vmatpush1.msra.mxu0 0.0
      %1543 = vmatprep.subr.mxu0 0.0
      %1544 = vmatpush1.msra.mxu0 0.0
      %1545 = vmatprep.subr.mxu0 0.0
      %1546 = vmatpush1.msra.mxu0 0.0
      %1547 = vmatprep.subr.mxu0 0.0
      %1548 = vmatpush1.msra.mxu0 0.0
      %1549 = vmatprep.subr.mxu0 0.0
      %1550 = vmatpush1.msra.mxu0 0.0
      %1551 = vmatprep.subr.mxu0 0.0
      %1552 = vmatpush1.msra.mxu0 0.0
      %1553 = vmatprep.subr.mxu0 0.0
      %1554 = vmatpush1.msra.mxu0 0.0
      %1555 = vmatprep.subr.mxu0 0.0
      %1556 = vmatpush1.msra.mxu0 0.0
      %1557 = vmatprep.subr.mxu0 0.0
      %1558 = vmatpush1.msra.mxu0 0.0
      %1559 = vmatprep.subr.mxu0 0.0
      %1560 = vmatpush1.msra.mxu0 0.0
      %1561 = vmatprep.subr.mxu0 0.0
      %1562 = vmatpush1.msra.mxu0 0.0
      %1563 = vmatprep.subr.mxu0 0.0
      %1564 = vmatpush1.msra.mxu0 0.0
      %1565 = vmatprep.subr.mxu0 0.0
      %1566 = vmatpush1.msra.mxu0 0.0
      %1567 = vmatprep.mubr.f32.mxu0 0.0
      %1568 = vmatmul.mubr.f32.gmra.mrb[0].mxu0 %v1264
      %v1569 = vpop.f32.mrb[0].mxu0
      %v1570 = vadd.f32 0.0, %v1569
      %v1571 = vpop.f32.mrb[0].mxu0
      %v1572 = vadd.f32 0.0, %v1571
      %1573 = vdwg.mxu0
      %v1574 = vadd.f32 %v968, %v1357
      %v1575 = vadd.f32 %v970, %v1359
      %v1576 = vadd.f32 %v1039, %v1428
      %v1577 = vadd.f32 %v1041, %v1430
      %v1578 = vadd.f32 %v1110, %v1499
      %v1579 = vadd.f32 %v1112, %v1501
      %v1580 = vadd.f32 %v1181, %v1570
      %v1581 = vadd.f32 %v1183, %v1572
      %1582 = vrot.lane.b32.xlu0 %v389, 1
      %v1583 = vpop.permute.xlu0 %1582
      %1584 = vrot.lane.b32.xlu0 %v397, 1
      %v1585 = vpop.permute.xlu0 %1584
      %1586 = vrot.lane.b32.xlu0 %v390, 1
      %v1587 = vpop.permute.xlu0 %1586
      %1588 = vrot.lane.b32.xlu0 %v398, 1
      %v1589 = vpop.permute.xlu0 %1588
      %1590 = vrot.lane.b32.xlu0 %v391, 1
      %v1591 = vpop.permute.xlu0 %1590
      %1592 = vrot.lane.b32.xlu0 %v399, 1
      %v1593 = vpop.permute.xlu0 %1592
      %1594 = vrot.lane.b32.xlu0 %v392, 1
      %v1595 = vpop.permute.xlu0 %1594
      %1596 = vrot.lane.b32.xlu0 %v400, 1
      %v1597 = vpop.permute.xlu0 %1596
      %vm1598 = vcmp.lt.s32.totalorder %v422, 1
      %v1599 = vsel %vm1598, %v1595, %v1597
      %v1600 = vsel %vm1598, %v1593, %v1595
      %v1601 = vsel %vm1598, %v1591, %v1593
      %v1602 = vsel %vm1598, %v1589, %v1591
      %v1603 = vsel %vm1598, %v1587, %v1589
      %v1604 = vsel %vm1598, %v1585, %v1587
      %v1605 = vsel %vm1598, %v1583, %v1585
      %v1606 = vsel %vm1598, %v1597, %v1583
      %s1607 = scalar_lea.vmem %s2, 24
      %v1608 = vld [vmem:[%s1607] sm:$0xff]
      %v1610 = vlaneseq
      %v1611 = vshrl.u32 %v1610, 7
      %v1612 = vsub.s32 0, %v1611
      %v1613 = vrot.slane %v1608, %v1612
      %v1614 = vlaneseq
      %v1615 = vshrl.u32 %v1614, 7
      %v1616 = vsub.s32 1, %v1615
      %v1617 = vrot.slane %v1608, %v1616
      %v1618 = vlaneseq
      %v1619 = vshrl.u32 %v1618, 7
      %v1620 = vsub.s32 2, %v1619
      %v1621 = vrot.slane %v1608, %v1620
      %v1622 = vlaneseq
      %v1623 = vshrl.u32 %v1622, 7
      %v1624 = vsub.s32 3, %v1623
      %v1625 = vrot.slane %v1608, %v1624
      %v1626 = vlaneseq
      %v1627 = vshrl.u32 %v1626, 7
      %v1628 = vsub.s32 4, %v1627
      %v1629 = vrot.slane %v1608, %v1628
      %v1630 = vlaneseq
      %v1631 = vshrl.u32 %v1630, 7
      %v1632 = vsub.s32 5, %v1631
      %v1633 = vrot.slane %v1608, %v1632
      %v1634 = vlaneseq
      %v1635 = vshrl.u32 %v1634, 7
      %v1636 = vsub.s32 6, %v1635
      %v1637 = vrot.slane %v1608, %v1636
      %v1638 = vlaneseq
      %v1639 = vshrl.u32 %v1638, 7
      %v1640 = vsub.s32 7, %v1639
      %v1641 = vrot.slane %v1608, %v1640
      %v1650 = vmul.f32 %v1606, %v1613
      %v1651 = vmul.f32 %v1605, %v1617
      %v1652 = vmul.f32 %v1604, %v1621
      %v1653 = vmul.f32 %v1603, %v1625
      %v1654 = vmul.f32 %v1602, %v1629
      %v1655 = vmul.f32 %v1601, %v1633
      %v1656 = vmul.f32 %v1600, %v1637
      %v1657 = vmul.f32 %v1599, %v1641
      %s1658 = scalar_lea.vmem %s3, 12
      %v1659 = vld [vmem:[%s1658] sm:$0xf]
      %v1661 = vsel %vm561, %v1659, 0
      %v1664 = vsel %vm565, %v1650, 0
      %v1667 = vsel %vm565, %v1651, 0
      %v1670 = vsel %vm565, %v1652, 0
      %v1673 = vsel %vm565, %v1653, 0
      %v1676 = vsel %vm565, %v1654, 0
      %v1679 = vsel %vm565, %v1655, 0
      %v1682 = vsel %vm565, %v1656, 0
      %v1685 = vsel %vm565, %v1657, 0
      %1687 = vmatprep.subr.mxu0 %v1667
      %1688 = vmatpush1.msra.mxu0 %v1664
      %1689 = vmatprep.subr.mxu0 0.0
      %1690 = vmatpush1.msra.mxu0 0.0
      %1691 = vmatprep.subr.mxu0 0.0
      %1692 = vmatpush1.msra.mxu0 0.0
      %1693 = vmatprep.subr.mxu0 0.0
      %1694 = vmatpush1.msra.mxu0 0.0
      %1695 = vmatprep.subr.mxu0 0.0
      %1696 = vmatpush1.msra.mxu0 0.0
      %1697 = vmatprep.subr.mxu0 0.0
      %1698 = vmatpush1.msra.mxu0 0.0
      %1699 = vmatprep.subr.mxu0 0.0
      %1700 = vmatpush1.msra.mxu0 0.0
      %1701 = vmatprep.subr.mxu0 0.0
      %1702 = vmatpush1.msra.mxu0 0.0
      %1703 = vmatprep.subr.mxu0 0.0
      %1704 = vmatpush1.msra.mxu0 0.0
      %1705 = vmatprep.subr.mxu0 0.0
      %1706 = vmatpush1.msra.mxu0 0.0
      %1707 = vmatprep.subr.mxu0 0.0
      %1708 = vmatpush1.msra.mxu0 0.0
      %1709 = vmatprep.subr.mxu0 0.0
      %1710 = vmatpush1.msra.mxu0 0.0
      %1711 = vmatprep.subr.mxu0 0.0
      %1712 = vmatpush1.msra.mxu0 0.0
      %1713 = vmatprep.subr.mxu0 0.0
      %1714 = vmatpush1.msra.mxu0 0.0
      %1715 = vmatprep.subr.mxu0 0.0
      %1716 = vmatpush1.msra.mxu0 0.0
      %1717 = vmatprep.subr.mxu0 0.0
      %1718 = vmatpush1.msra.mxu0 0.0
      %1719 = vmatprep.subr.mxu0 0.0
      %1720 = vmatpush1.msra.mxu0 0.0
      %1721 = vmatprep.subr.mxu0 0.0
      %1722 = vmatpush1.msra.mxu0 0.0
      %1723 = vmatprep.subr.mxu0 0.0
      %1724 = vmatpush1.msra.mxu0 0.0
      %1725 = vmatprep.subr.mxu0 0.0
      %1726 = vmatpush1.msra.mxu0 0.0
      %1727 = vmatprep.subr.mxu0 0.0
      %1728 = vmatpush1.msra.mxu0 0.0
      %1729 = vmatprep.subr.mxu0 0.0
      %1730 = vmatpush1.msra.mxu0 0.0
      %1731 = vmatprep.subr.mxu0 0.0
      %1732 = vmatpush1.msra.mxu0 0.0
      %1733 = vmatprep.subr.mxu0 0.0
      %1734 = vmatpush1.msra.mxu0 0.0
      %1735 = vmatprep.subr.mxu0 0.0
      %1736 = vmatpush1.msra.mxu0 0.0
      %1737 = vmatprep.subr.mxu0 0.0
      %1738 = vmatpush1.msra.mxu0 0.0
      %1739 = vmatprep.subr.mxu0 0.0
      %1740 = vmatpush1.msra.mxu0 0.0
      %1741 = vmatprep.subr.mxu0 0.0
      %1742 = vmatpush1.msra.mxu0 0.0
      %1743 = vmatprep.subr.mxu0 0.0
      %1744 = vmatpush1.msra.mxu0 0.0
      %1745 = vmatprep.subr.mxu0 0.0
      %1746 = vmatpush1.msra.mxu0 0.0
      %1747 = vmatprep.subr.mxu0 0.0
      %1748 = vmatpush1.msra.mxu0 0.0
      %1749 = vmatprep.subr.mxu0 0.0
      %1750 = vmatpush1.msra.mxu0 0.0
      %1751 = vmatprep.mubr.f32.mxu0 0.0
      %1752 = vmatmul.mubr.f32.gmra.mrb[0].mxu0 %v1661
      %v1753 = vpop.f32.mrb[0].mxu0
      %v1754 = vadd.f32 0.0, %v1753
      %v1755 = vpop.f32.mrb[0].mxu0
      %v1756 = vadd.f32 0.0, %v1755
      %1757 = vdwg.mxu0
      %1758 = vmatprep.subr.mxu0 %v1673
      %1759 = vmatpush1.msra.mxu0 %v1670
      %1760 = vmatprep.subr.mxu0 0.0
      %1761 = vmatpush1.msra.mxu0 0.0
      %1762 = vmatprep.subr.mxu0 0.0
      %1763 = vmatpush1.msra.mxu0 0.0
      %1764 = vmatprep.subr.mxu0 0.0
      %1765 = vmatpush1.msra.mxu0 0.0
      %1766 = vmatprep.subr.mxu0 0.0
      %1767 = vmatpush1.msra.mxu0 0.0
      %1768 = vmatprep.subr.mxu0 0.0
      %1769 = vmatpush1.msra.mxu0 0.0
      %1770 = vmatprep.subr.mxu0 0.0
      %1771 = vmatpush1.msra.mxu0 0.0
      %1772 = vmatprep.subr.mxu0 0.0
      %1773 = vmatpush1.msra.mxu0 0.0
      %1774 = vmatprep.subr.mxu0 0.0
      %1775 = vmatpush1.msra.mxu0 0.0
      %1776 = vmatprep.subr.mxu0 0.0
      %1777 = vmatpush1.msra.mxu0 0.0
      %1778 = vmatprep.subr.mxu0 0.0
      %1779 = vmatpush1.msra.mxu0 0.0
      %1780 = vmatprep.subr.mxu0 0.0
      %1781 = vmatpush1.msra.mxu0 0.0
      %1782 = vmatprep.subr.mxu0 0.0
      %1783 = vmatpush1.msra.mxu0 0.0
      %1784 = vmatprep.subr.mxu0 0.0
      %1785 = vmatpush1.msra.mxu0 0.0
      %1786 = vmatprep.subr.mxu0 0.0
      %1787 = vmatpush1.msra.mxu0 0.0
      %1788 = vmatprep.subr.mxu0 0.0
      %1789 = vmatpush1.msra.mxu0 0.0
      %1790 = vmatprep.subr.mxu0 0.0
      %1791 = vmatpush1.msra.mxu0 0.0
      %1792 = vmatprep.subr.mxu0 0.0
      %1793 = vmatpush1.msra.mxu0 0.0
      %1794 = vmatprep.subr.mxu0 0.0
      %1795 = vmatpush1.msra.mxu0 0.0
      %1796 = vmatprep.subr.mxu0 0.0
      %1797 = vmatpush1.msra.mxu0 0.0
      %1798 = vmatprep.subr.mxu0 0.0
      %1799 = vmatpush1.msra.mxu0 0.0
      %1800 = vmatprep.subr.mxu0 0.0
      %1801 = vmatpush1.msra.mxu0 0.0
      %1802 = vmatprep.subr.mxu0 0.0
      %1803 = vmatpush1.msra.mxu0 0.0
      %1804 = vmatprep.subr.mxu0 0.0
      %1805 = vmatpush1.msra.mxu0 0.0
      %1806 = vmatprep.subr.mxu0 0.0
      %1807 = vmatpush1.msra.mxu0 0.0
      %1808 = vmatprep.subr.mxu0 0.0
      %1809 = vmatpush1.msra.mxu0 0.0
      %1810 = vmatprep.subr.mxu0 0.0
      %1811 = vmatpush1.msra.mxu0 0.0
      %1812 = vmatprep.subr.mxu0 0.0
      %1813 = vmatpush1.msra.mxu0 0.0
      %1814 = vmatprep.subr.mxu0 0.0
      %1815 = vmatpush1.msra.mxu0 0.0
      %1816 = vmatprep.subr.mxu0 0.0
      %1817 = vmatpush1.msra.mxu0 0.0
      %1818 = vmatprep.subr.mxu0 0.0
      %1819 = vmatpush1.msra.mxu0 0.0
      %1820 = vmatprep.subr.mxu0 0.0
      %1821 = vmatpush1.msra.mxu0 0.0
      %1822 = vmatprep.mubr.f32.mxu0 0.0
      %1823 = vmatmul.mubr.f32.gmra.mrb[0].mxu0 %v1661
      %v1824 = vpop.f32.mrb[0].mxu0
      %v1825 = vadd.f32 0.0, %v1824
      %v1826 = vpop.f32.mrb[0].mxu0
      %v1827 = vadd.f32 0.0, %v1826
      %1828 = vdwg.mxu0
      %1829 = vmatprep.subr.mxu0 %v1679
      %1830 = vmatpush1.msra.mxu0 %v1676
      %1831 = vmatprep.subr.mxu0 0.0
      %1832 = vmatpush1.msra.mxu0 0.0
      %1833 = vmatprep.subr.mxu0 0.0
      %1834 = vmatpush1.msra.mxu0 0.0
      %1835 = vmatprep.subr.mxu0 0.0
      %1836 = vmatpush1.msra.mxu0 0.0
      %1837 = vmatprep.subr.mxu0 0.0
      %1838 = vmatpush1.msra.mxu0 0.0
      %1839 = vmatprep.subr.mxu0 0.0
      %1840 = vmatpush1.msra.mxu0 0.0
      %1841 = vmatprep.subr.mxu0 0.0
      %1842 = vmatpush1.msra.mxu0 0.0
      %1843 = vmatprep.subr.mxu0 0.0
      %1844 = vmatpush1.msra.mxu0 0.0
      %1845 = vmatprep.subr.mxu0 0.0
      %1846 = vmatpush1.msra.mxu0 0.0
      %1847 = vmatprep.subr.mxu0 0.0
      %1848 = vmatpush1.msra.mxu0 0.0
      %1849 = vmatprep.subr.mxu0 0.0
      %1850 = vmatpush1.msra.mxu0 0.0
      %1851 = vmatprep.subr.mxu0 0.0
      %1852 = vmatpush1.msra.mxu0 0.0
      %1853 = vmatprep.subr.mxu0 0.0
      %1854 = vmatpush1.msra.mxu0 0.0
      %1855 = vmatprep.subr.mxu0 0.0
      %1856 = vmatpush1.msra.mxu0 0.0
      %1857 = vmatprep.subr.mxu0 0.0
      %1858 = vmatpush1.msra.mxu0 0.0
      %1859 = vmatprep.subr.mxu0 0.0
      %1860 = vmatpush1.msra.mxu0 0.0
      %1861 = vmatprep.subr.mxu0 0.0
      %1862 = vmatpush1.msra.mxu0 0.0
      %1863 = vmatprep.subr.mxu0 0.0
      %1864 = vmatpush1.msra.mxu0 0.0
      %1865 = vmatprep.subr.mxu0 0.0
      %1866 = vmatpush1.msra.mxu0 0.0
      %1867 = vmatprep.subr.mxu0 0.0
      %1868 = vmatpush1.msra.mxu0 0.0
      %1869 = vmatprep.subr.mxu0 0.0
      %1870 = vmatpush1.msra.mxu0 0.0
      %1871 = vmatprep.subr.mxu0 0.0
      %1872 = vmatpush1.msra.mxu0 0.0
      %1873 = vmatprep.subr.mxu0 0.0
      %1874 = vmatpush1.msra.mxu0 0.0
      %1875 = vmatprep.subr.mxu0 0.0
      %1876 = vmatpush1.msra.mxu0 0.0
      %1877 = vmatprep.subr.mxu0 0.0
      %1878 = vmatpush1.msra.mxu0 0.0
      %1879 = vmatprep.subr.mxu0 0.0
      %1880 = vmatpush1.msra.mxu0 0.0
      %1881 = vmatprep.subr.mxu0 0.0
      %1882 = vmatpush1.msra.mxu0 0.0
      %1883 = vmatprep.subr.mxu0 0.0
      %1884 = vmatpush1.msra.mxu0 0.0
      %1885 = vmatprep.subr.mxu0 0.0
      %1886 = vmatpush1.msra.mxu0 0.0
      %1887 = vmatprep.subr.mxu0 0.0
      %1888 = vmatpush1.msra.mxu0 0.0
      %1889 = vmatprep.subr.mxu0 0.0
      %1890 = vmatpush1.msra.mxu0 0.0
      %1891 = vmatprep.subr.mxu0 0.0
      %1892 = vmatpush1.msra.mxu0 0.0
      %1893 = vmatprep.mubr.f32.mxu0 0.0
      %1894 = vmatmul.mubr.f32.gmra.mrb[0].mxu0 %v1661
      %v1895 = vpop.f32.mrb[0].mxu0
      %v1896 = vadd.f32 0.0, %v1895
      %v1897 = vpop.f32.mrb[0].mxu0
      %v1898 = vadd.f32 0.0, %v1897
      %1899 = vdwg.mxu0
      %1900 = vmatprep.subr.mxu0 %v1685
      %1901 = vmatpush1.msra.mxu0 %v1682
      %1902 = vmatprep.subr.mxu0 0.0
      %1903 = vmatpush1.msra.mxu0 0.0
      %1904 = vmatprep.subr.mxu0 0.0
      %1905 = vmatpush1.msra.mxu0 0.0
      %1906 = vmatprep.subr.mxu0 0.0
      %1907 = vmatpush1.msra.mxu0 0.0
      %1908 = vmatprep.subr.mxu0 0.0
      %1909 = vmatpush1.msra.mxu0 0.0
      %1910 = vmatprep.subr.mxu0 0.0
      %1911 = vmatpush1.msra.mxu0 0.0
      %1912 = vmatprep.subr.mxu0 0.0
      %1913 = vmatpush1.msra.mxu0 0.0
      %1914 = vmatprep.subr.mxu0 0.0
      %1915 = vmatpush1.msra.mxu0 0.0
      %1916 = vmatprep.subr.mxu0 0.0
      %1917 = vmatpush1.msra.mxu0 0.0
      %1918 = vmatprep.subr.mxu0 0.0
      %1919 = vmatpush1.msra.mxu0 0.0
      %1920 = vmatprep.subr.mxu0 0.0
      %1921 = vmatpush1.msra.mxu0 0.0
      %1922 = vmatprep.subr.mxu0 0.0
      %1923 = vmatpush1.msra.mxu0 0.0
      %1924 = vmatprep.subr.mxu0 0.0
      %1925 = vmatpush1.msra.mxu0 0.0
      %1926 = vmatprep.subr.mxu0 0.0
      %1927 = vmatpush1.msra.mxu0 0.0
      %1928 = vmatprep.subr.mxu0 0.0
      %1929 = vmatpush1.msra.mxu0 0.0
      %1930 = vmatprep.subr.mxu0 0.0
      %1931 = vmatpush1.msra.mxu0 0.0
      %1932 = vmatprep.subr.mxu0 0.0
      %1933 = vmatpush1.msra.mxu0 0.0
      %1934 = vmatprep.subr.mxu0 0.0
      %1935 = vmatpush1.msra.mxu0 0.0
      %1936 = vmatprep.subr.mxu0 0.0
      %1937 = vmatpush1.msra.mxu0 0.0
      %1938 = vmatprep.subr.mxu0 0.0
      %1939 = vmatpush1.msra.mxu0 0.0
      %1940 = vmatprep.subr.mxu0 0.0
      %1941 = vmatpush1.msra.mxu0 0.0
      %1942 = vmatprep.subr.mxu0 0.0
      %1943 = vmatpush1.msra.mxu0 0.0
      %1944 = vmatprep.subr.mxu0 0.0
      %1945 = vmatpush1.msra.mxu0 0.0
      %1946 = vmatprep.subr.mxu0 0.0
      %1947 = vmatpush1.msra.mxu0 0.0
      %1948 = vmatprep.subr.mxu0 0.0
      %1949 = vmatpush1.msra.mxu0 0.0
      %1950 = vmatprep.subr.mxu0 0.0
      %1951 = vmatpush1.msra.mxu0 0.0
      %1952 = vmatprep.subr.mxu0 0.0
      %1953 = vmatpush1.msra.mxu0 0.0
      %1954 = vmatprep.subr.mxu0 0.0
      %1955 = vmatpush1.msra.mxu0 0.0
      %1956 = vmatprep.subr.mxu0 0.0
      %1957 = vmatpush1.msra.mxu0 0.0
      %1958 = vmatprep.subr.mxu0 0.0
      %1959 = vmatpush1.msra.mxu0 0.0
      %1960 = vmatprep.subr.mxu0 0.0
      %1961 = vmatpush1.msra.mxu0 0.0
      %1962 = vmatprep.subr.mxu0 0.0
      %1963 = vmatpush1.msra.mxu0 0.0
      %1964 = vmatprep.mubr.f32.mxu0 0.0
      %1965 = vmatmul.mubr.f32.gmra.mrb[0].mxu0 %v1661
      %v1966 = vpop.f32.mrb[0].mxu0
      %v1967 = vadd.f32 0.0, %v1966
      %v1968 = vpop.f32.mrb[0].mxu0
      %v1969 = vadd.f32 0.0, %v1968
      %1970 = vdwg.mxu0
      %v1971 = vadd.f32 %v1574, %v1754
      %v1972 = vadd.f32 %v1575, %v1756
      %v1973 = vadd.f32 %v1576, %v1825
      %v1974 = vadd.f32 %v1577, %v1827
      %v1975 = vadd.f32 %v1578, %v1896
      %v1976 = vadd.f32 %v1579, %v1898
      %v1977 = vadd.f32 %v1580, %v1967
      %v1978 = vadd.f32 %v1581, %v1969
      %s1979 = scalar_lea.vmem %s3, 16
      %v1980 = vld [vmem:[%s1979] sm:$0xf]
      %v1982 = vsel %vm561, %v1980, 0
      %v1984 = vsel %vm565, %v389, 0
      %v1986 = vsel %vm565, %v397, 0
      %v1988 = vsel %vm565, %v390, 0
      %v1990 = vsel %vm565, %v398, 0
      %v1992 = vsel %vm565, %v391, 0
      %v1994 = vsel %vm565, %v399, 0
      %v1996 = vsel %vm565, %v392, 0
      %v1998 = vsel %vm565, %v400, 0
      %2000 = vmatprep.subr.mxu0 %v1986
      %2001 = vmatpush1.msra.mxu0 %v1984
      %2002 = vmatprep.subr.mxu0 0.0
      %2003 = vmatpush1.msra.mxu0 0.0
      %2004 = vmatprep.subr.mxu0 0.0
      %2005 = vmatpush1.msra.mxu0 0.0
      %2006 = vmatprep.subr.mxu0 0.0
      %2007 = vmatpush1.msra.mxu0 0.0
      %2008 = vmatprep.subr.mxu0 0.0
      %2009 = vmatpush1.msra.mxu0 0.0
      %2010 = vmatprep.subr.mxu0 0.0
      %2011 = vmatpush1.msra.mxu0 0.0
      %2012 = vmatprep.subr.mxu0 0.0
      %2013 = vmatpush1.msra.mxu0 0.0
      %2014 = vmatprep.subr.mxu0 0.0
      %2015 = vmatpush1.msra.mxu0 0.0
      %2016 = vmatprep.subr.mxu0 0.0
      %2017 = vmatpush1.msra.mxu0 0.0
      %2018 = vmatprep.subr.mxu0 0.0
      %2019 = vmatpush1.msra.mxu0 0.0
      %2020 = vmatprep.subr.mxu0 0.0
      %2021 = vmatpush1.msra.mxu0 0.0
      %2022 = vmatprep.subr.mxu0 0.0
      %2023 = vmatpush1.msra.mxu0 0.0
      %2024 = vmatprep.subr.mxu0 0.0
      %2025 = vmatpush1.msra.mxu0 0.0
      %2026 = vmatprep.subr.mxu0 0.0
      %2027 = vmatpush1.msra.mxu0 0.0
      %2028 = vmatprep.subr.mxu0 0.0
      %2029 = vmatpush1.msra.mxu0 0.0
      %2030 = vmatprep.subr.mxu0 0.0
      %2031 = vmatpush1.msra.mxu0 0.0
      %2032 = vmatprep.subr.mxu0 0.0
      %2033 = vmatpush1.msra.mxu0 0.0
      %2034 = vmatprep.subr.mxu0 0.0
      %2035 = vmatpush1.msra.mxu0 0.0
      %2036 = vmatprep.subr.mxu0 0.0
      %2037 = vmatpush1.msra.mxu0 0.0
      %2038 = vmatprep.subr.mxu0 0.0
      %2039 = vmatpush1.msra.mxu0 0.0
      %2040 = vmatprep.subr.mxu0 0.0
      %2041 = vmatpush1.msra.mxu0 0.0
      %2042 = vmatprep.subr.mxu0 0.0
      %2043 = vmatpush1.msra.mxu0 0.0
      %2044 = vmatprep.subr.mxu0 0.0
      %2045 = vmatpush1.msra.mxu0 0.0
      %2046 = vmatprep.subr.mxu0 0.0
      %2047 = vmatpush1.msra.mxu0 0.0
      %2048 = vmatprep.subr.mxu0 0.0
      %2049 = vmatpush1.msra.mxu0 0.0
      %2050 = vmatprep.subr.mxu0 0.0
      %2051 = vmatpush1.msra.mxu0 0.0
      %2052 = vmatprep.subr.mxu0 0.0
      %2053 = vmatpush1.msra.mxu0 0.0
      %2054 = vmatprep.subr.mxu0 0.0
      %2055 = vmatpush1.msra.mxu0 0.0
      %2056 = vmatprep.subr.mxu0 0.0
      %2057 = vmatpush1.msra.mxu0 0.0
      %2058 = vmatprep.subr.mxu0 0.0
      %2059 = vmatpush1.msra.mxu0 0.0
      %2060 = vmatprep.subr.mxu0 0.0
      %2061 = vmatpush1.msra.mxu0 0.0
      %2062 = vmatprep.subr.mxu0 0.0
      %2063 = vmatpush1.msra.mxu0 0.0
      %2064 = vmatprep.mubr.f32.mxu0 0.0
      %2065 = vmatmul.mubr.f32.gmra.mrb[0].mxu0 %v1982
      %v2066 = vpop.f32.mrb[0].mxu0
      %v2067 = vadd.f32 0.0, %v2066
      %v2068 = vpop.f32.mrb[0].mxu0
      %v2069 = vadd.f32 0.0, %v2068
      %2070 = vdwg.mxu0
      %2071 = vmatprep.subr.mxu0 %v1990
      %2072 = vmatpush1.msra.mxu0 %v1988
      %2073 = vmatprep.subr.mxu0 0.0
      %2074 = vmatpush1.msra.mxu0 0.0
      %2075 = vmatprep.subr.mxu0 0.0
      %2076 = vmatpush1.msra.mxu0 0.0
      %2077 = vmatprep.subr.mxu0 0.0
      %2078 = vmatpush1.msra.mxu0 0.0
      %2079 = vmatprep.subr.mxu0 0.0
      %2080 = vmatpush1.msra.mxu0 0.0
      %2081 = vmatprep.subr.mxu0 0.0
      %2082 = vmatpush1.msra.mxu0 0.0
      %2083 = vmatprep.subr.mxu0 0.0
      %2084 = vmatpush1.msra.mxu0 0.0
      %2085 = vmatprep.subr.mxu0 0.0
      %2086 = vmatpush1.msra.mxu0 0.0
      %2087 = vmatprep.subr.mxu0 0.0
      %2088 = vmatpush1.msra.mxu0 0.0
      %2089 = vmatprep.subr.mxu0 0.0
      %2090 = vmatpush1.msra.mxu0 0.0
      %2091 = vmatprep.subr.mxu0 0.0
      %2092 = vmatpush1.msra.mxu0 0.0
      %2093 = vmatprep.subr.mxu0 0.0
      %2094 = vmatpush1.msra.mxu0 0.0
      %2095 = vmatprep.subr.mxu0 0.0
      %2096 = vmatpush1.msra.mxu0 0.0
      %2097 = vmatprep.subr.mxu0 0.0
      %2098 = vmatpush1.msra.mxu0 0.0
      %2099 = vmatprep.subr.mxu0 0.0
      %2100 = vmatpush1.msra.mxu0 0.0
      %2101 = vmatprep.subr.mxu0 0.0
      %2102 = vmatpush1.msra.mxu0 0.0
      %2103 = vmatprep.subr.mxu0 0.0
      %2104 = vmatpush1.msra.mxu0 0.0
      %2105 = vmatprep.subr.mxu0 0.0
      %2106 = vmatpush1.msra.mxu0 0.0
      %2107 = vmatprep.subr.mxu0 0.0
      %2108 = vmatpush1.msra.mxu0 0.0
      %2109 = vmatprep.subr.mxu0 0.0
      %2110 = vmatpush1.msra.mxu0 0.0
      %2111 = vmatprep.subr.mxu0 0.0
      %2112 = vmatpush1.msra.mxu0 0.0
      %2113 = vmatprep.subr.mxu0 0.0
      %2114 = vmatpush1.msra.mxu0 0.0
      %2115 = vmatprep.subr.mxu0 0.0
      %2116 = vmatpush1.msra.mxu0 0.0
      %2117 = vmatprep.subr.mxu0 0.0
      %2118 = vmatpush1.msra.mxu0 0.0
      %2119 = vmatprep.subr.mxu0 0.0
      %2120 = vmatpush1.msra.mxu0 0.0
      %2121 = vmatprep.subr.mxu0 0.0
      %2122 = vmatpush1.msra.mxu0 0.0
      %2123 = vmatprep.subr.mxu0 0.0
      %2124 = vmatpush1.msra.mxu0 0.0
      %2125 = vmatprep.subr.mxu0 0.0
      %2126 = vmatpush1.msra.mxu0 0.0
      %2127 = vmatprep.subr.mxu0 0.0
      %2128 = vmatpush1.msra.mxu0 0.0
      %2129 = vmatprep.subr.mxu0 0.0
      %2130 = vmatpush1.msra.mxu0 0.0
      %2131 = vmatprep.subr.mxu0 0.0
      %2132 = vmatpush1.msra.mxu0 0.0
      %2133 = vmatprep.subr.mxu0 0.0
      %2134 = vmatpush1.msra.mxu0 0.0
      %2135 = vmatprep.mubr.f32.mxu0 0.0
      %2136 = vmatmul.mubr.f32.gmra.mrb[0].mxu0 %v1982
      %v2137 = vpop.f32.mrb[0].mxu0
      %v2138 = vadd.f32 0.0, %v2137
      %v2139 = vpop.f32.mrb[0].mxu0
      %v2140 = vadd.f32 0.0, %v2139
      %2141 = vdwg.mxu0
      %2142 = vmatprep.subr.mxu0 %v1994
      %2143 = vmatpush1.msra.mxu0 %v1992
      %2144 = vmatprep.subr.mxu0 0.0
      %2145 = vmatpush1.msra.mxu0 0.0
      %2146 = vmatprep.subr.mxu0 0.0
      %2147 = vmatpush1.msra.mxu0 0.0
      %2148 = vmatprep.subr.mxu0 0.0
      %2149 = vmatpush1.msra.mxu0 0.0
      %2150 = vmatprep.subr.mxu0 0.0
      %2151 = vmatpush1.msra.mxu0 0.0
      %2152 = vmatprep.subr.mxu0 0.0
      %2153 = vmatpush1.msra.mxu0 0.0
      %2154 = vmatprep.subr.mxu0 0.0
      %2155 = vmatpush1.msra.mxu0 0.0
      %2156 = vmatprep.subr.mxu0 0.0
      %2157 = vmatpush1.msra.mxu0 0.0
      %2158 = vmatprep.subr.mxu0 0.0
      %2159 = vmatpush1.msra.mxu0 0.0
      %2160 = vmatprep.subr.mxu0 0.0
      %2161 = vmatpush1.msra.mxu0 0.0
      %2162 = vmatprep.subr.mxu0 0.0
      %2163 = vmatpush1.msra.mxu0 0.0
      %2164 = vmatprep.subr.mxu0 0.0
      %2165 = vmatpush1.msra.mxu0 0.0
      %2166 = vmatprep.subr.mxu0 0.0
      %2167 = vmatpush1.msra.mxu0 0.0
      %2168 = vmatprep.subr.mxu0 0.0
      %2169 = vmatpush1.msra.mxu0 0.0
      %2170 = vmatprep.subr.mxu0 0.0
      %2171 = vmatpush1.msra.mxu0 0.0
      %2172 = vmatprep.subr.mxu0 0.0
      %2173 = vmatpush1.msra.mxu0 0.0
      %2174 = vmatprep.subr.mxu0 0.0
      %2175 = vmatpush1.msra.mxu0 0.0
      %2176 = vmatprep.subr.mxu0 0.0
      %2177 = vmatpush1.msra.mxu0 0.0
      %2178 = vmatprep.subr.mxu0 0.0
      %2179 = vmatpush1.msra.mxu0 0.0
      %2180 = vmatprep.subr.mxu0 0.0
      %2181 = vmatpush1.msra.mxu0 0.0
      %2182 = vmatprep.subr.mxu0 0.0
      %2183 = vmatpush1.msra.mxu0 0.0
      %2184 = vmatprep.subr.mxu0 0.0
      %2185 = vmatpush1.msra.mxu0 0.0
      %2186 = vmatprep.subr.mxu0 0.0
      %2187 = vmatpush1.msra.mxu0 0.0
      %2188 = vmatprep.subr.mxu0 0.0
      %2189 = vmatpush1.msra.mxu0 0.0
      %2190 = vmatprep.subr.mxu0 0.0
      %2191 = vmatpush1.msra.mxu0 0.0
      %2192 = vmatprep.subr.mxu0 0.0
      %2193 = vmatpush1.msra.mxu0 0.0
      %2194 = vmatprep.subr.mxu0 0.0
      %2195 = vmatpush1.msra.mxu0 0.0
      %2196 = vmatprep.subr.mxu0 0.0
      %2197 = vmatpush1.msra.mxu0 0.0
      %2198 = vmatprep.subr.mxu0 0.0
      %2199 = vmatpush1.msra.mxu0 0.0
      %2200 = vmatprep.subr.mxu0 0.0
      %2201 = vmatpush1.msra.mxu0 0.0
      %2202 = vmatprep.subr.mxu0 0.0
      %2203 = vmatpush1.msra.mxu0 0.0
      %2204 = vmatprep.subr.mxu0 0.0
      %2205 = vmatpush1.msra.mxu0 0.0
      %2206 = vmatprep.mubr.f32.mxu0 0.0
      %2207 = vmatmul.mubr.f32.gmra.mrb[0].mxu0 %v1982
      %v2208 = vpop.f32.mrb[0].mxu0
      %v2209 = vadd.f32 0.0, %v2208
      %v2210 = vpop.f32.mrb[0].mxu0
      %v2211 = vadd.f32 0.0, %v2210
      %2212 = vdwg.mxu0
      %2213 = vmatprep.subr.mxu0 %v1998
      %2214 = vmatpush1.msra.mxu0 %v1996
      %2215 = vmatprep.subr.mxu0 0.0
      %2216 = vmatpush1.msra.mxu0 0.0
      %2217 = vmatprep.subr.mxu0 0.0
      %2218 = vmatpush1.msra.mxu0 0.0
      %2219 = vmatprep.subr.mxu0 0.0
      %2220 = vmatpush1.msra.mxu0 0.0
      %2221 = vmatprep.subr.mxu0 0.0
      %2222 = vmatpush1.msra.mxu0 0.0
      %2223 = vmatprep.subr.mxu0 0.0
      %2224 = vmatpush1.msra.mxu0 0.0
      %2225 = vmatprep.subr.mxu0 0.0
      %2226 = vmatpush1.msra.mxu0 0.0
      %2227 = vmatprep.subr.mxu0 0.0
      %2228 = vmatpush1.msra.mxu0 0.0
      %2229 = vmatprep.subr.mxu0 0.0
      %2230 = vmatpush1.msra.mxu0 0.0
      %2231 = vmatprep.subr.mxu0 0.0
      %2232 = vmatpush1.msra.mxu0 0.0
      %2233 = vmatprep.subr.mxu0 0.0
      %2234 = vmatpush1.msra.mxu0 0.0
      %2235 = vmatprep.subr.mxu0 0.0
      %2236 = vmatpush1.msra.mxu0 0.0
      %2237 = vmatprep.subr.mxu0 0.0
      %2238 = vmatpush1.msra.mxu0 0.0
      %2239 = vmatprep.subr.mxu0 0.0
      %2240 = vmatpush1.msra.mxu0 0.0
      %2241 = vmatprep.subr.mxu0 0.0
      %2242 = vmatpush1.msra.mxu0 0.0
      %2243 = vmatprep.subr.mxu0 0.0
      %2244 = vmatpush1.msra.mxu0 0.0
      %2245 = vmatprep.subr.mxu0 0.0
      %2246 = vmatpush1.msra.mxu0 0.0
      %2247 = vmatprep.subr.mxu0 0.0
      %2248 = vmatpush1.msra.mxu0 0.0
      %2249 = vmatprep.subr.mxu0 0.0
      %2250 = vmatpush1.msra.mxu0 0.0
      %2251 = vmatprep.subr.mxu0 0.0
      %2252 = vmatpush1.msra.mxu0 0.0
      %2253 = vmatprep.subr.mxu0 0.0
      %2254 = vmatpush1.msra.mxu0 0.0
      %2255 = vmatprep.subr.mxu0 0.0
      %2256 = vmatpush1.msra.mxu0 0.0
      %2257 = vmatprep.subr.mxu0 0.0
      %2258 = vmatpush1.msra.mxu0 0.0
      %2259 = vmatprep.subr.mxu0 0.0
      %2260 = vmatpush1.msra.mxu0 0.0
      %2261 = vmatprep.subr.mxu0 0.0
      %2262 = vmatpush1.msra.mxu0 0.0
      %2263 = vmatprep.subr.mxu0 0.0
      %2264 = vmatpush1.msra.mxu0 0.0
      %2265 = vmatprep.subr.mxu0 0.0
      %2266 = vmatpush1.msra.mxu0 0.0
      %2267 = vmatprep.subr.mxu0 0.0
      %2268 = vmatpush1.msra.mxu0 0.0
      %2269 = vmatprep.subr.mxu0 0.0
      %2270 = vmatpush1.msra.mxu0 0.0
      %2271 = vmatprep.subr.mxu0 0.0
      %2272 = vmatpush1.msra.mxu0 0.0
      %2273 = vmatprep.subr.mxu0 0.0
      %2274 = vmatpush1.msra.mxu0 0.0
      %2275 = vmatprep.subr.mxu0 0.0
      %2276 = vmatpush1.msra.mxu0 0.0
      %2277 = vmatprep.mubr.f32.mxu0 0.0
      %2278 = vmatmul.mubr.f32.gmra.mrb[0].mxu0 %v1982
      %v2279 = vpop.f32.mrb[0].mxu0
      %v2280 = vadd.f32 0.0, %v2279
      %v2281 = vpop.f32.mrb[0].mxu0
      %v2282 = vadd.f32 0.0, %v2281
      %2283 = vdwg.mxu0
      %v2284 = vadd.f32 %v1971, %v2067
      %v2285 = vadd.f32 %v1972, %v2069
      %v2286 = vadd.f32 %v1973, %v2138
      %v2287 = vadd.f32 %v1974, %v2140
      %v2288 = vadd.f32 %v1975, %v2209
      %v2289 = vadd.f32 %v1976, %v2211
      %v2290 = vadd.f32 %v1977, %v2280
      %v2291 = vadd.f32 %v1978, %v2282
      %2292 = vrot.lane.b32.xlu0 %v389, 127
      %v2293 = vpop.permute.xlu0 %2292
      %2294 = vrot.lane.b32.xlu0 %v397, 127
      %v2295 = vpop.permute.xlu0 %2294
      %2296 = vrot.lane.b32.xlu0 %v390, 127
      %v2297 = vpop.permute.xlu0 %2296
      %2298 = vrot.lane.b32.xlu0 %v398, 127
      %v2299 = vpop.permute.xlu0 %2298
      %2300 = vrot.lane.b32.xlu0 %v391, 127
      %v2301 = vpop.permute.xlu0 %2300
      %2302 = vrot.lane.b32.xlu0 %v399, 127
      %v2303 = vpop.permute.xlu0 %2302
      %2304 = vrot.lane.b32.xlu0 %v392, 127
      %v2305 = vpop.permute.xlu0 %2304
      %2306 = vrot.lane.b32.xlu0 %v400, 127
      %v2307 = vpop.permute.xlu0 %2306
      %vm2308 = vcmp.lt.s32.totalorder %v422, 127
      %v2309 = vsel %vm2308, %v2305, %v2307
      %v2310 = vsel %vm2308, %v2303, %v2305
      %v2311 = vsel %vm2308, %v2301, %v2303
      %v2312 = vsel %vm2308, %v2299, %v2301
      %v2313 = vsel %vm2308, %v2297, %v2299
      %v2314 = vsel %vm2308, %v2295, %v2297
      %v2315 = vsel %vm2308, %v2293, %v2295
      %v2316 = vsel %vm2308, %v2307, %v2293
      %s2317 = scalar_lea.vmem %s2, 40
      %v2318 = vld [vmem:[%s2317] sm:$0xff]
      %v2320 = vlaneseq
      %v2321 = vshrl.u32 %v2320, 7
      %v2322 = vsub.s32 0, %v2321
      %v2323 = vrot.slane %v2318, %v2322
      %v2324 = vlaneseq
      %v2325 = vshrl.u32 %v2324, 7
      %v2326 = vsub.s32 1, %v2325
      %v2327 = vrot.slane %v2318, %v2326
      %v2328 = vlaneseq
      %v2329 = vshrl.u32 %v2328, 7
      %v2330 = vsub.s32 2, %v2329
      %v2331 = vrot.slane %v2318, %v2330
      %v2332 = vlaneseq
      %v2333 = vshrl.u32 %v2332, 7
      %v2334 = vsub.s32 3, %v2333
      %v2335 = vrot.slane %v2318, %v2334
      %v2336 = vlaneseq
      %v2337 = vshrl.u32 %v2336, 7
      %v2338 = vsub.s32 4, %v2337
      %v2339 = vrot.slane %v2318, %v2338
      %v2340 = vlaneseq
      %v2341 = vshrl.u32 %v2340, 7
      %v2342 = vsub.s32 5, %v2341
      %v2343 = vrot.slane %v2318, %v2342
      %v2344 = vlaneseq
      %v2345 = vshrl.u32 %v2344, 7
      %v2346 = vsub.s32 6, %v2345
      %v2347 = vrot.slane %v2318, %v2346
      %v2348 = vlaneseq
      %v2349 = vshrl.u32 %v2348, 7
      %v2350 = vsub.s32 7, %v2349
      %v2351 = vrot.slane %v2318, %v2350
      %v2360 = vmul.f32 %v2315, %v2323
      %v2361 = vmul.f32 %v2314, %v2327
      %v2362 = vmul.f32 %v2313, %v2331
      %v2363 = vmul.f32 %v2312, %v2335
      %v2364 = vmul.f32 %v2311, %v2339
      %v2365 = vmul.f32 %v2310, %v2343
      %v2366 = vmul.f32 %v2309, %v2347
      %v2367 = vmul.f32 %v2316, %v2351
      %s2368 = scalar_lea.vmem %s3, 20
      %v2369 = vld [vmem:[%s2368] sm:$0xf]
      %v2371 = vsel %vm561, %v2369, 0
      %v2374 = vsel %vm565, %v2360, 0
      %v2377 = vsel %vm565, %v2361, 0
      %v2380 = vsel %vm565, %v2362, 0
      %v2383 = vsel %vm565, %v2363, 0
      %v2386 = vsel %vm565, %v2364, 0
      %v2389 = vsel %vm565, %v2365, 0
      %v2392 = vsel %vm565, %v2366, 0
      %v2395 = vsel %vm565, %v2367, 0
      %2397 = vmatprep.subr.mxu0 %v2377
      %2398 = vmatpush1.msra.mxu0 %v2374
      %2399 = vmatprep.subr.mxu0 0.0
      %2400 = vmatpush1.msra.mxu0 0.0
      %2401 = vmatprep.subr.mxu0 0.0
      %2402 = vmatpush1.msra.mxu0 0.0
      %2403 = vmatprep.subr.mxu0 0.0
      %2404 = vmatpush1.msra.mxu0 0.0
      %2405 = vmatprep.subr.mxu0 0.0
      %2406 = vmatpush1.msra.mxu0 0.0
      %2407 = vmatprep.subr.mxu0 0.0
      %2408 = vmatpush1.msra.mxu0 0.0
      %2409 = vmatprep.subr.mxu0 0.0
      %2410 = vmatpush1.msra.mxu0 0.0
      %2411 = vmatprep.subr.mxu0 0.0
      %2412 = vmatpush1.msra.mxu0 0.0
      %2413 = vmatprep.subr.mxu0 0.0
      %2414 = vmatpush1.msra.mxu0 0.0
      %2415 = vmatprep.subr.mxu0 0.0
      %2416 = vmatpush1.msra.mxu0 0.0
      %2417 = vmatprep.subr.mxu0 0.0
      %2418 = vmatpush1.msra.mxu0 0.0
      %2419 = vmatprep.subr.mxu0 0.0
      %2420 = vmatpush1.msra.mxu0 0.0
      %2421 = vmatprep.subr.mxu0 0.0
      %2422 = vmatpush1.msra.mxu0 0.0
      %2423 = vmatprep.subr.mxu0 0.0
      %2424 = vmatpush1.msra.mxu0 0.0
      %2425 = vmatprep.subr.mxu0 0.0
      %2426 = vmatpush1.msra.mxu0 0.0
      %2427 = vmatprep.subr.mxu0 0.0
      %2428 = vmatpush1.msra.mxu0 0.0
      %2429 = vmatprep.subr.mxu0 0.0
      %2430 = vmatpush1.msra.mxu0 0.0
      %2431 = vmatprep.subr.mxu0 0.0
      %2432 = vmatpush1.msra.mxu0 0.0
      %2433 = vmatprep.subr.mxu0 0.0
      %2434 = vmatpush1.msra.mxu0 0.0
      %2435 = vmatprep.subr.mxu0 0.0
      %2436 = vmatpush1.msra.mxu0 0.0
      %2437 = vmatprep.subr.mxu0 0.0
      %2438 = vmatpush1.msra.mxu0 0.0
      %2439 = vmatprep.subr.mxu0 0.0
      %2440 = vmatpush1.msra.mxu0 0.0
      %2441 = vmatprep.subr.mxu0 0.0
      %2442 = vmatpush1.msra.mxu0 0.0
      %2443 = vmatprep.subr.mxu0 0.0
      %2444 = vmatpush1.msra.mxu0 0.0
      %2445 = vmatprep.subr.mxu0 0.0
      %2446 = vmatpush1.msra.mxu0 0.0
      %2447 = vmatprep.subr.mxu0 0.0
      %2448 = vmatpush1.msra.mxu0 0.0
      %2449 = vmatprep.subr.mxu0 0.0
      %2450 = vmatpush1.msra.mxu0 0.0
      %2451 = vmatprep.subr.mxu0 0.0
      %2452 = vmatpush1.msra.mxu0 0.0
      %2453 = vmatprep.subr.mxu0 0.0
      %2454 = vmatpush1.msra.mxu0 0.0
      %2455 = vmatprep.subr.mxu0 0.0
      %2456 = vmatpush1.msra.mxu0 0.0
      %2457 = vmatprep.subr.mxu0 0.0
      %2458 = vmatpush1.msra.mxu0 0.0
      %2459 = vmatprep.subr.mxu0 0.0
      %2460 = vmatpush1.msra.mxu0 0.0
      %2461 = vmatprep.mubr.f32.mxu0 0.0
      %2462 = vmatmul.mubr.f32.gmra.mrb[0].mxu0 %v2371
      %v2463 = vpop.f32.mrb[0].mxu0
      %v2464 = vadd.f32 0.0, %v2463
      %v2465 = vpop.f32.mrb[0].mxu0
      %v2466 = vadd.f32 0.0, %v2465
      %2467 = vdwg.mxu0
      %2468 = vmatprep.subr.mxu0 %v2383
      %2469 = vmatpush1.msra.mxu0 %v2380
      %2470 = vmatprep.subr.mxu0 0.0
      %2471 = vmatpush1.msra.mxu0 0.0
      %2472 = vmatprep.subr.mxu0 0.0
      %2473 = vmatpush1.msra.mxu0 0.0
      %2474 = vmatprep.subr.mxu0 0.0
      %2475 = vmatpush1.msra.mxu0 0.0
      %2476 = vmatprep.subr.mxu0 0.0
      %2477 = vmatpush1.msra.mxu0 0.0
      %2478 = vmatprep.subr.mxu0 0.0
      %2479 = vmatpush1.msra.mxu0 0.0
      %2480 = vmatprep.subr.mxu0 0.0
      %2481 = vmatpush1.msra.mxu0 0.0
      %2482 = vmatprep.subr.mxu0 0.0
      %2483 = vmatpush1.msra.mxu0 0.0
      %2484 = vmatprep.subr.mxu0 0.0
      %2485 = vmatpush1.msra.mxu0 0.0
      %2486 = vmatprep.subr.mxu0 0.0
      %2487 = vmatpush1.msra.mxu0 0.0
      %2488 = vmatprep.subr.mxu0 0.0
      %2489 = vmatpush1.msra.mxu0 0.0
      %2490 = vmatprep.subr.mxu0 0.0
      %2491 = vmatpush1.msra.mxu0 0.0
      %2492 = vmatprep.subr.mxu0 0.0
      %2493 = vmatpush1.msra.mxu0 0.0
      %2494 = vmatprep.subr.mxu0 0.0
      %2495 = vmatpush1.msra.mxu0 0.0
      %2496 = vmatprep.subr.mxu0 0.0
      %2497 = vmatpush1.msra.mxu0 0.0
      %2498 = vmatprep.subr.mxu0 0.0
      %2499 = vmatpush1.msra.mxu0 0.0
      %2500 = vmatprep.subr.mxu0 0.0
      %2501 = vmatpush1.msra.mxu0 0.0
      %2502 = vmatprep.subr.mxu0 0.0
      %2503 = vmatpush1.msra.mxu0 0.0
      %2504 = vmatprep.subr.mxu0 0.0
      %2505 = vmatpush1.msra.mxu0 0.0
      %2506 = vmatprep.subr.mxu0 0.0
      %2507 = vmatpush1.msra.mxu0 0.0
      %2508 = vmatprep.subr.mxu0 0.0
      %2509 = vmatpush1.msra.mxu0 0.0
      %2510 = vmatprep.subr.mxu0 0.0
      %2511 = vmatpush1.msra.mxu0 0.0
      %2512 = vmatprep.subr.mxu0 0.0
      %2513 = vmatpush1.msra.mxu0 0.0
      %2514 = vmatprep.subr.mxu0 0.0
      %2515 = vmatpush1.msra.mxu0 0.0
      %2516 = vmatprep.subr.mxu0 0.0
      %2517 = vmatpush1.msra.mxu0 0.0
      %2518 = vmatprep.subr.mxu0 0.0
      %2519 = vmatpush1.msra.mxu0 0.0
      %2520 = vmatprep.subr.mxu0 0.0
      %2521 = vmatpush1.msra.mxu0 0.0
      %2522 = vmatprep.subr.mxu0 0.0
      %2523 = vmatpush1.msra.mxu0 0.0
      %2524 = vmatprep.subr.mxu0 0.0
      %2525 = vmatpush1.msra.mxu0 0.0
      %2526 = vmatprep.subr.mxu0 0.0
      %2527 = vmatpush1.msra.mxu0 0.0
      %2528 = vmatprep.subr.mxu0 0.0
      %2529 = vmatpush1.msra.mxu0 0.0
      %2530 = vmatprep.subr.mxu0 0.0
      %2531 = vmatpush1.msra.mxu0 0.0
      %2532 = vmatprep.mubr.f32.mxu0 0.0
      %2533 = vmatmul.mubr.f32.gmra.mrb[0].mxu0 %v2371
      %v2534 = vpop.f32.mrb[0].mxu0
      %v2535 = vadd.f32 0.0, %v2534
      %v2536 = vpop.f32.mrb[0].mxu0
      %v2537 = vadd.f32 0.0, %v2536
      %2538 = vdwg.mxu0
      %2539 = vmatprep.subr.mxu0 %v2389
      %2540 = vmatpush1.msra.mxu0 %v2386
      %2541 = vmatprep.subr.mxu0 0.0
      %2542 = vmatpush1.msra.mxu0 0.0
      %2543 = vmatprep.subr.mxu0 0.0
      %2544 = vmatpush1.msra.mxu0 0.0
      %2545 = vmatprep.subr.mxu0 0.0
      %2546 = vmatpush1.msra.mxu0 0.0
      %2547 = vmatprep.subr.mxu0 0.0
      %2548 = vmatpush1.msra.mxu0 0.0
      %2549 = vmatprep.subr.mxu0 0.0
      %2550 = vmatpush1.msra.mxu0 0.0
      %2551 = vmatprep.subr.mxu0 0.0
      %2552 = vmatpush1.msra.mxu0 0.0
      %2553 = vmatprep.subr.mxu0 0.0
      %2554 = vmatpush1.msra.mxu0 0.0
      %2555 = vmatprep.subr.mxu0 0.0
      %2556 = vmatpush1.msra.mxu0 0.0
      %2557 = vmatprep.subr.mxu0 0.0
      %2558 = vmatpush1.msra.mxu0 0.0
      %2559 = vmatprep.subr.mxu0 0.0
      %2560 = vmatpush1.msra.mxu0 0.0
      %2561 = vmatprep.subr.mxu0 0.0
      %2562 = vmatpush1.msra.mxu0 0.0
      %2563 = vmatprep.subr.mxu0 0.0
      %2564 = vmatpush1.msra.mxu0 0.0
      %2565 = vmatprep.subr.mxu0 0.0
      %2566 = vmatpush1.msra.mxu0 0.0
      %2567 = vmatprep.subr.mxu0 0.0
      %2568 = vmatpush1.msra.mxu0 0.0
      %2569 = vmatprep.subr.mxu0 0.0
      %2570 = vmatpush1.msra.mxu0 0.0
      %2571 = vmatprep.subr.mxu0 0.0
      %2572 = vmatpush1.msra.mxu0 0.0
      %2573 = vmatprep.subr.mxu0 0.0
      %2574 = vmatpush1.msra.mxu0 0.0
      %2575 = vmatprep.subr.mxu0 0.0
      %2576 = vmatpush1.msra.mxu0 0.0
      %2577 = vmatprep.subr.mxu0 0.0
      %2578 = vmatpush1.msra.mxu0 0.0
      %2579 = vmatprep.subr.mxu0 0.0
      %2580 = vmatpush1.msra.mxu0 0.0
      %2581 = vmatprep.subr.mxu0 0.0
      %2582 = vmatpush1.msra.mxu0 0.0
      %2583 = vmatprep.subr.mxu0 0.0
      %2584 = vmatpush1.msra.mxu0 0.0
      %2585 = vmatprep.subr.mxu0 0.0
      %2586 = vmatpush1.msra.mxu0 0.0
      %2587 = vmatprep.subr.mxu0 0.0
      %2588 = vmatpush1.msra.mxu0 0.0
      %2589 = vmatprep.subr.mxu0 0.0
      %2590 = vmatpush1.msra.mxu0 0.0
      %2591 = vmatprep.subr.mxu0 0.0
      %2592 = vmatpush1.msra.mxu0 0.0
      %2593 = vmatprep.subr.mxu0 0.0
      %2594 = vmatpush1.msra.mxu0 0.0
      %2595 = vmatprep.subr.mxu0 0.0
      %2596 = vmatpush1.msra.mxu0 0.0
      %2597 = vmatprep.subr.mxu0 0.0
      %2598 = vmatpush1.msra.mxu0 0.0
      %2599 = vmatprep.subr.mxu0 0.0
      %2600 = vmatpush1.msra.mxu0 0.0
      %2601 = vmatprep.subr.mxu0 0.0
      %2602 = vmatpush1.msra.mxu0 0.0
      %2603 = vmatprep.mubr.f32.mxu0 0.0
      %2604 = vmatmul.mubr.f32.gmra.mrb[0].mxu0 %v2371
      %v2605 = vpop.f32.mrb[0].mxu0
      %v2606 = vadd.f32 0.0, %v2605
      %v2607 = vpop.f32.mrb[0].mxu0
      %v2608 = vadd.f32 0.0, %v2607
      %2609 = vdwg.mxu0
      %2610 = vmatprep.subr.mxu0 %v2395
      %2611 = vmatpush1.msra.mxu0 %v2392
      %2612 = vmatprep.subr.mxu0 0.0
      %2613 = vmatpush1.msra.mxu0 0.0
      %2614 = vmatprep.subr.mxu0 0.0
      %2615 = vmatpush1.msra.mxu0 0.0
      %2616 = vmatprep.subr.mxu0 0.0
      %2617 = vmatpush1.msra.mxu0 0.0
      %2618 = vmatprep.subr.mxu0 0.0
      %2619 = vmatpush1.msra.mxu0 0.0
      %2620 = vmatprep.subr.mxu0 0.0
      %2621 = vmatpush1.msra.mxu0 0.0
      %2622 = vmatprep.subr.mxu0 0.0
      %2623 = vmatpush1.msra.mxu0 0.0
      %2624 = vmatprep.subr.mxu0 0.0
      %2625 = vmatpush1.msra.mxu0 0.0
      %2626 = vmatprep.subr.mxu0 0.0
      %2627 = vmatpush1.msra.mxu0 0.0
      %2628 = vmatprep.subr.mxu0 0.0
      %2629 = vmatpush1.msra.mxu0 0.0
      %2630 = vmatprep.subr.mxu0 0.0
      %2631 = vmatpush1.msra.mxu0 0.0
      %2632 = vmatprep.subr.mxu0 0.0
      %2633 = vmatpush1.msra.mxu0 0.0
      %2634 = vmatprep.subr.mxu0 0.0
      %2635 = vmatpush1.msra.mxu0 0.0
      %2636 = vmatprep.subr.mxu0 0.0
      %2637 = vmatpush1.msra.mxu0 0.0
      %2638 = vmatprep.subr.mxu0 0.0
      %2639 = vmatpush1.msra.mxu0 0.0
      %2640 = vmatprep.subr.mxu0 0.0
      %2641 = vmatpush1.msra.mxu0 0.0
      %2642 = vmatprep.subr.mxu0 0.0
      %2643 = vmatpush1.msra.mxu0 0.0
      %2644 = vmatprep.subr.mxu0 0.0
      %2645 = vmatpush1.msra.mxu0 0.0
      %2646 = vmatprep.subr.mxu0 0.0
      %2647 = vmatpush1.msra.mxu0 0.0
      %2648 = vmatprep.subr.mxu0 0.0
      %2649 = vmatpush1.msra.mxu0 0.0
      %2650 = vmatprep.subr.mxu0 0.0
      %2651 = vmatpush1.msra.mxu0 0.0
      %2652 = vmatprep.subr.mxu0 0.0
      %2653 = vmatpush1.msra.mxu0 0.0
      %2654 = vmatprep.subr.mxu0 0.0
      %2655 = vmatpush1.msra.mxu0 0.0
      %2656 = vmatprep.subr.mxu0 0.0
      %2657 = vmatpush1.msra.mxu0 0.0
      %2658 = vmatprep.subr.mxu0 0.0
      %2659 = vmatpush1.msra.mxu0 0.0
      %2660 = vmatprep.subr.mxu0 0.0
      %2661 = vmatpush1.msra.mxu0 0.0
      %2662 = vmatprep.subr.mxu0 0.0
      %2663 = vmatpush1.msra.mxu0 0.0
      %2664 = vmatprep.subr.mxu0 0.0
      %2665 = vmatpush1.msra.mxu0 0.0
      %2666 = vmatprep.subr.mxu0 0.0
      %2667 = vmatpush1.msra.mxu0 0.0
      %2668 = vmatprep.subr.mxu0 0.0
      %2669 = vmatpush1.msra.mxu0 0.0
      %2670 = vmatprep.subr.mxu0 0.0
      %2671 = vmatpush1.msra.mxu0 0.0
      %2672 = vmatprep.subr.mxu0 0.0
      %2673 = vmatpush1.msra.mxu0 0.0
      %2674 = vmatprep.mubr.f32.mxu0 0.0
      %2675 = vmatmul.mubr.f32.gmra.mrb[0].mxu0 %v2371
      %v2676 = vpop.f32.mrb[0].mxu0
      %v2677 = vadd.f32 0.0, %v2676
      %v2678 = vpop.f32.mrb[0].mxu0
      %v2679 = vadd.f32 0.0, %v2678
      %2680 = vdwg.mxu0
      %v2681 = vadd.f32 %v2284, %v2464
      %v2682 = vadd.f32 %v2285, %v2466
      %v2683 = vadd.f32 %v2286, %v2535
      %v2684 = vadd.f32 %v2287, %v2537
      %v2685 = vadd.f32 %v2288, %v2606
      %v2686 = vadd.f32 %v2289, %v2608
      %v2687 = vadd.f32 %v2290, %v2677
      %v2688 = vadd.f32 %v2291, %v2679
      %2689 = vrot.lane.b32.xlu0 %v389, 97
      %v2690 = vpop.permute.xlu0 %2689
      %2691 = vrot.lane.b32.xlu0 %v397, 97
      %v2692 = vpop.permute.xlu0 %2691
      %2693 = vrot.lane.b32.xlu0 %v390, 97
      %v2694 = vpop.permute.xlu0 %2693
      %2695 = vrot.lane.b32.xlu0 %v398, 97
      %v2696 = vpop.permute.xlu0 %2695
      %2697 = vrot.lane.b32.xlu0 %v391, 97
      %v2698 = vpop.permute.xlu0 %2697
      %2699 = vrot.lane.b32.xlu0 %v399, 97
      %v2700 = vpop.permute.xlu0 %2699
      %2701 = vrot.lane.b32.xlu0 %v392, 97
      %v2702 = vpop.permute.xlu0 %2701
      %2703 = vrot.lane.b32.xlu0 %v400, 97
      %v2704 = vpop.permute.xlu0 %2703
      %vm2705 = vcmp.lt.s32.totalorder %v422, 97
      %v2706 = vsel %vm2705, %v2702, %v2704
      %v2707 = vsel %vm2705, %v2700, %v2702
      %v2708 = vsel %vm2705, %v2698, %v2700
      %v2709 = vsel %vm2705, %v2696, %v2698
      %v2710 = vsel %vm2705, %v2694, %v2696
      %v2711 = vsel %vm2705, %v2692, %v2694
      %v2712 = vsel %vm2705, %v2690, %v2692
      %v2713 = vsel %vm2705, %v2704, %v2690
      %s2714 = scalar_lea.vmem %s2, 48
      %v2715 = vld [vmem:[%s2714] sm:$0xff]
      %v2717 = vlaneseq
      %v2718 = vshrl.u32 %v2717, 7
      %v2719 = vsub.s32 0, %v2718
      %v2720 = vrot.slane %v2715, %v2719
      %v2721 = vlaneseq
      %v2722 = vshrl.u32 %v2721, 7
      %v2723 = vsub.s32 1, %v2722
      %v2724 = vrot.slane %v2715, %v2723
      %v2725 = vlaneseq
      %v2726 = vshrl.u32 %v2725, 7
      %v2727 = vsub.s32 2, %v2726
      %v2728 = vrot.slane %v2715, %v2727
      %v2729 = vlaneseq
      %v2730 = vshrl.u32 %v2729, 7
      %v2731 = vsub.s32 3, %v2730
      %v2732 = vrot.slane %v2715, %v2731
      %v2733 = vlaneseq
      %v2734 = vshrl.u32 %v2733, 7
      %v2735 = vsub.s32 4, %v2734
      %v2736 = vrot.slane %v2715, %v2735
      %v2737 = vlaneseq
      %v2738 = vshrl.u32 %v2737, 7
      %v2739 = vsub.s32 5, %v2738
      %v2740 = vrot.slane %v2715, %v2739
      %v2741 = vlaneseq
      %v2742 = vshrl.u32 %v2741, 7
      %v2743 = vsub.s32 6, %v2742
      %v2744 = vrot.slane %v2715, %v2743
      %v2745 = vlaneseq
      %v2746 = vshrl.u32 %v2745, 7
      %v2747 = vsub.s32 7, %v2746
      %v2748 = vrot.slane %v2715, %v2747
      %v2757 = vmul.f32 %v2712, %v2720
      %v2758 = vmul.f32 %v2711, %v2724
      %v2759 = vmul.f32 %v2710, %v2728
      %v2760 = vmul.f32 %v2709, %v2732
      %v2761 = vmul.f32 %v2708, %v2736
      %v2762 = vmul.f32 %v2707, %v2740
      %v2763 = vmul.f32 %v2706, %v2744
      %v2764 = vmul.f32 %v2713, %v2748
      %s2765 = scalar_lea.vmem %s3, 24
      %v2766 = vld [vmem:[%s2765] sm:$0xf]
      %v2768 = vsel %vm561, %v2766, 0
      %v2771 = vsel %vm565, %v2757, 0
      %v2774 = vsel %vm565, %v2758, 0
      %v2777 = vsel %vm565, %v2759, 0
      %v2780 = vsel %vm565, %v2760, 0
      %v2783 = vsel %vm565, %v2761, 0
      %v2786 = vsel %vm565, %v2762, 0
      %v2789 = vsel %vm565, %v2763, 0
      %v2792 = vsel %vm565, %v2764, 0
      %2794 = vmatprep.subr.mxu0 %v2774
      %2795 = vmatpush1.msra.mxu0 %v2771
      %2796 = vmatprep.subr.mxu0 0.0
      %2797 = vmatpush1.msra.mxu0 0.0
      %2798 = vmatprep.subr.mxu0 0.0
      %2799 = vmatpush1.msra.mxu0 0.0
      %2800 = vmatprep.subr.mxu0 0.0
      %2801 = vmatpush1.msra.mxu0 0.0
      %2802 = vmatprep.subr.mxu0 0.0
      %2803 = vmatpush1.msra.mxu0 0.0
      %2804 = vmatprep.subr.mxu0 0.0
      %2805 = vmatpush1.msra.mxu0 0.0
      %2806 = vmatprep.subr.mxu0 0.0
      %2807 = vmatpush1.msra.mxu0 0.0
      %2808 = vmatprep.subr.mxu0 0.0
      %2809 = vmatpush1.msra.mxu0 0.0
      %2810 = vmatprep.subr.mxu0 0.0
      %2811 = vmatpush1.msra.mxu0 0.0
      %2812 = vmatprep.subr.mxu0 0.0
      %2813 = vmatpush1.msra.mxu0 0.0
      %2814 = vmatprep.subr.mxu0 0.0
      %2815 = vmatpush1.msra.mxu0 0.0
      %2816 = vmatprep.subr.mxu0 0.0
      %2817 = vmatpush1.msra.mxu0 0.0
      %2818 = vmatprep.subr.mxu0 0.0
      %2819 = vmatpush1.msra.mxu0 0.0
      %2820 = vmatprep.subr.mxu0 0.0
      %2821 = vmatpush1.msra.mxu0 0.0
      %2822 = vmatprep.subr.mxu0 0.0
      %2823 = vmatpush1.msra.mxu0 0.0
      %2824 = vmatprep.subr.mxu0 0.0
      %2825 = vmatpush1.msra.mxu0 0.0
      %2826 = vmatprep.subr.mxu0 0.0
      %2827 = vmatpush1.msra.mxu0 0.0
      %2828 = vmatprep.subr.mxu0 0.0
      %2829 = vmatpush1.msra.mxu0 0.0
      %2830 = vmatprep.subr.mxu0 0.0
      %2831 = vmatpush1.msra.mxu0 0.0
      %2832 = vmatprep.subr.mxu0 0.0
      %2833 = vmatpush1.msra.mxu0 0.0
      %2834 = vmatprep.subr.mxu0 0.0
      %2835 = vmatpush1.msra.mxu0 0.0
      %2836 = vmatprep.subr.mxu0 0.0
      %2837 = vmatpush1.msra.mxu0 0.0
      %2838 = vmatprep.subr.mxu0 0.0
      %2839 = vmatpush1.msra.mxu0 0.0
      %2840 = vmatprep.subr.mxu0 0.0
      %2841 = vmatpush1.msra.mxu0 0.0
      %2842 = vmatprep.subr.mxu0 0.0
      %2843 = vmatpush1.msra.mxu0 0.0
      %2844 = vmatprep.subr.mxu0 0.0
      %2845 = vmatpush1.msra.mxu0 0.0
      %2846 = vmatprep.subr.mxu0 0.0
      %2847 = vmatpush1.msra.mxu0 0.0
      %2848 = vmatprep.subr.mxu0 0.0
      %2849 = vmatpush1.msra.mxu0 0.0
      %2850 = vmatprep.subr.mxu0 0.0
      %2851 = vmatpush1.msra.mxu0 0.0
      %2852 = vmatprep.subr.mxu0 0.0
      %2853 = vmatpush1.msra.mxu0 0.0
      %2854 = vmatprep.subr.mxu0 0.0
      %2855 = vmatpush1.msra.mxu0 0.0
      %2856 = vmatprep.subr.mxu0 0.0
      %2857 = vmatpush1.msra.mxu0 0.0
      %2858 = vmatprep.mubr.f32.mxu0 0.0
      %2859 = vmatmul.mubr.f32.gmra.mrb[0].mxu0 %v2768
      %v2860 = vpop.f32.mrb[0].mxu0
      %v2861 = vadd.f32 0.0, %v2860
      %v2862 = vpop.f32.mrb[0].mxu0
      %v2863 = vadd.f32 0.0, %v2862
      %2864 = vdwg.mxu0
      %2865 = vmatprep.subr.mxu0 %v2780
      %2866 = vmatpush1.msra.mxu0 %v2777
      %2867 = vmatprep.subr.mxu0 0.0
      %2868 = vmatpush1.msra.mxu0 0.0
      %2869 = vmatprep.subr.mxu0 0.0
      %2870 = vmatpush1.msra.mxu0 0.0
      %2871 = vmatprep.subr.mxu0 0.0
      %2872 = vmatpush1.msra.mxu0 0.0
      %2873 = vmatprep.subr.mxu0 0.0
      %2874 = vmatpush1.msra.mxu0 0.0
      %2875 = vmatprep.subr.mxu0 0.0
      %2876 = vmatpush1.msra.mxu0 0.0
      %2877 = vmatprep.subr.mxu0 0.0
      %2878 = vmatpush1.msra.mxu0 0.0
      %2879 = vmatprep.subr.mxu0 0.0
      %2880 = vmatpush1.msra.mxu0 0.0
      %2881 = vmatprep.subr.mxu0 0.0
      %2882 = vmatpush1.msra.mxu0 0.0
      %2883 = vmatprep.subr.mxu0 0.0
      %2884 = vmatpush1.msra.mxu0 0.0
      %2885 = vmatprep.subr.mxu0 0.0
      %2886 = vmatpush1.msra.mxu0 0.0
      %2887 = vmatprep.subr.mxu0 0.0
      %2888 = vmatpush1.msra.mxu0 0.0
      %2889 = vmatprep.subr.mxu0 0.0
      %2890 = vmatpush1.msra.mxu0 0.0
      %2891 = vmatprep.subr.mxu0 0.0
      %2892 = vmatpush1.msra.mxu0 0.0
      %2893 = vmatprep.subr.mxu0 0.0
      %2894 = vmatpush1.msra.mxu0 0.0
      %2895 = vmatprep.subr.mxu0 0.0
      %2896 = vmatpush1.msra.mxu0 0.0
      %2897 = vmatprep.subr.mxu0 0.0
      %2898 = vmatpush1.msra.mxu0 0.0
      %2899 = vmatprep.subr.mxu0 0.0
      %2900 = vmatpush1.msra.mxu0 0.0
      %2901 = vmatprep.subr.mxu0 0.0
      %2902 = vmatpush1.msra.mxu0 0.0
      %2903 = vmatprep.subr.mxu0 0.0
      %2904 = vmatpush1.msra.mxu0 0.0
      %2905 = vmatprep.subr.mxu0 0.0
      %2906 = vmatpush1.msra.mxu0 0.0
      %2907 = vmatprep.subr.mxu0 0.0
      %2908 = vmatpush1.msra.mxu0 0.0
      %2909 = vmatprep.subr.mxu0 0.0
      %2910 = vmatpush1.msra.mxu0 0.0
      %2911 = vmatprep.subr.mxu0 0.0
      %2912 = vmatpush1.msra.mxu0 0.0
      %2913 = vmatprep.subr.mxu0 0.0
      %2914 = vmatpush1.msra.mxu0 0.0
      %2915 = vmatprep.subr.mxu0 0.0
      %2916 = vmatpush1.msra.mxu0 0.0
      %2917 = vmatprep.subr.mxu0 0.0
      %2918 = vmatpush1.msra.mxu0 0.0
      %2919 = vmatprep.subr.mxu0 0.0
      %2920 = vmatpush1.msra.mxu0 0.0
      %2921 = vmatprep.subr.mxu0 0.0
      %2922 = vmatpush1.msra.mxu0 0.0
      %2923 = vmatprep.subr.mxu0 0.0
      %2924 = vmatpush1.msra.mxu0 0.0
      %2925 = vmatprep.subr.mxu0 0.0
      %2926 = vmatpush1.msra.mxu0 0.0
      %2927 = vmatprep.subr.mxu0 0.0
      %2928 = vmatpush1.msra.mxu0 0.0
      %2929 = vmatprep.mubr.f32.mxu0 0.0
      %2930 = vmatmul.mubr.f32.gmra.mrb[0].mxu0 %v2768
      %v2931 = vpop.f32.mrb[0].mxu0
      %v2932 = vadd.f32 0.0, %v2931
      %v2933 = vpop.f32.mrb[0].mxu0
      %v2934 = vadd.f32 0.0, %v2933
      %2935 = vdwg.mxu0
      %2936 = vmatprep.subr.mxu0 %v2786
      %2937 = vmatpush1.msra.mxu0 %v2783
      %2938 = vmatprep.subr.mxu0 0.0
      %2939 = vmatpush1.msra.mxu0 0.0
      %2940 = vmatprep.subr.mxu0 0.0
      %2941 = vmatpush1.msra.mxu0 0.0
      %2942 = vmatprep.subr.mxu0 0.0
      %2943 = vmatpush1.msra.mxu0 0.0
      %2944 = vmatprep.subr.mxu0 0.0
      %2945 = vmatpush1.msra.mxu0 0.0
      %2946 = vmatprep.subr.mxu0 0.0
      %2947 = vmatpush1.msra.mxu0 0.0
      %2948 = vmatprep.subr.mxu0 0.0
      %2949 = vmatpush1.msra.mxu0 0.0
      %2950 = vmatprep.subr.mxu0 0.0
      %2951 = vmatpush1.msra.mxu0 0.0
      %2952 = vmatprep.subr.mxu0 0.0
      %2953 = vmatpush1.msra.mxu0 0.0
      %2954 = vmatprep.subr.mxu0 0.0
      %2955 = vmatpush1.msra.mxu0 0.0
      %2956 = vmatprep.subr.mxu0 0.0
      %2957 = vmatpush1.msra.mxu0 0.0
      %2958 = vmatprep.subr.mxu0 0.0
      %2959 = vmatpush1.msra.mxu0 0.0
      %2960 = vmatprep.subr.mxu0 0.0
      %2961 = vmatpush1.msra.mxu0 0.0
      %2962 = vmatprep.subr.mxu0 0.0
      %2963 = vmatpush1.msra.mxu0 0.0
      %2964 = vmatprep.subr.mxu0 0.0
      %2965 = vmatpush1.msra.mxu0 0.0
      %2966 = vmatprep.subr.mxu0 0.0
      %2967 = vmatpush1.msra.mxu0 0.0
      %2968 = vmatprep.subr.mxu0 0.0
      %2969 = vmatpush1.msra.mxu0 0.0
      %2970 = vmatprep.subr.mxu0 0.0
      %2971 = vmatpush1.msra.mxu0 0.0
      %2972 = vmatprep.subr.mxu0 0.0
      %2973 = vmatpush1.msra.mxu0 0.0
      %2974 = vmatprep.subr.mxu0 0.0
      %2975 = vmatpush1.msra.mxu0 0.0
      %2976 = vmatprep.subr.mxu0 0.0
      %2977 = vmatpush1.msra.mxu0 0.0
      %2978 = vmatprep.subr.mxu0 0.0
      %2979 = vmatpush1.msra.mxu0 0.0
      %2980 = vmatprep.subr.mxu0 0.0
      %2981 = vmatpush1.msra.mxu0 0.0
      %2982 = vmatprep.subr.mxu0 0.0
      %2983 = vmatpush1.msra.mxu0 0.0
      %2984 = vmatprep.subr.mxu0 0.0
      %2985 = vmatpush1.msra.mxu0 0.0
      %2986 = vmatprep.subr.mxu0 0.0
      %2987 = vmatpush1.msra.mxu0 0.0
      %2988 = vmatprep.subr.mxu0 0.0
      %2989 = vmatpush1.msra.mxu0 0.0
      %2990 = vmatprep.subr.mxu0 0.0
      %2991 = vmatpush1.msra.mxu0 0.0
      %2992 = vmatprep.subr.mxu0 0.0
      %2993 = vmatpush1.msra.mxu0 0.0
      %2994 = vmatprep.subr.mxu0 0.0
      %2995 = vmatpush1.msra.mxu0 0.0
      %2996 = vmatprep.subr.mxu0 0.0
      %2997 = vmatpush1.msra.mxu0 0.0
      %2998 = vmatprep.subr.mxu0 0.0
      %2999 = vmatpush1.msra.mxu0 0.0
      %3000 = vmatprep.mubr.f32.mxu0 0.0
      %3001 = vmatmul.mubr.f32.gmra.mrb[0].mxu0 %v2768
      %v3002 = vpop.f32.mrb[0].mxu0
      %v3003 = vadd.f32 0.0, %v3002
      %v3004 = vpop.f32.mrb[0].mxu0
      %v3005 = vadd.f32 0.0, %v3004
      %3006 = vdwg.mxu0
      %3007 = vmatprep.subr.mxu0 %v2792
      %3008 = vmatpush1.msra.mxu0 %v2789
      %3009 = vmatprep.subr.mxu0 0.0
      %3010 = vmatpush1.msra.mxu0 0.0
      %3011 = vmatprep.subr.mxu0 0.0
      %3012 = vmatpush1.msra.mxu0 0.0
      %3013 = vmatprep.subr.mxu0 0.0
      %3014 = vmatpush1.msra.mxu0 0.0
      %3015 = vmatprep.subr.mxu0 0.0
      %3016 = vmatpush1.msra.mxu0 0.0
      %3017 = vmatprep.subr.mxu0 0.0
      %3018 = vmatpush1.msra.mxu0 0.0
      %3019 = vmatprep.subr.mxu0 0.0
      %3020 = vmatpush1.msra.mxu0 0.0
      %3021 = vmatprep.subr.mxu0 0.0
      %3022 = vmatpush1.msra.mxu0 0.0
      %3023 = vmatprep.subr.mxu0 0.0
      %3024 = vmatpush1.msra.mxu0 0.0
      %3025 = vmatprep.subr.mxu0 0.0
      %3026 = vmatpush1.msra.mxu0 0.0
      %3027 = vmatprep.subr.mxu0 0.0
      %3028 = vmatpush1.msra.mxu0 0.0
      %3029 = vmatprep.subr.mxu0 0.0
      %3030 = vmatpush1.msra.mxu0 0.0
      %3031 = vmatprep.subr.mxu0 0.0
      %3032 = vmatpush1.msra.mxu0 0.0
      %3033 = vmatprep.subr.mxu0 0.0
      %3034 = vmatpush1.msra.mxu0 0.0
      %3035 = vmatprep.subr.mxu0 0.0
      %3036 = vmatpush1.msra.mxu0 0.0
      %3037 = vmatprep.subr.mxu0 0.0
      %3038 = vmatpush1.msra.mxu0 0.0
      %3039 = vmatprep.subr.mxu0 0.0
      %3040 = vmatpush1.msra.mxu0 0.0
      %3041 = vmatprep.subr.mxu0 0.0
      %3042 = vmatpush1.msra.mxu0 0.0
      %3043 = vmatprep.subr.mxu0 0.0
      %3044 = vmatpush1.msra.mxu0 0.0
      %3045 = vmatprep.subr.mxu0 0.0
      %3046 = vmatpush1.msra.mxu0 0.0
      %3047 = vmatprep.subr.mxu0 0.0
      %3048 = vmatpush1.msra.mxu0 0.0
      %3049 = vmatprep.subr.mxu0 0.0
      %3050 = vmatpush1.msra.mxu0 0.0
      %3051 = vmatprep.subr.mxu0 0.0
      %3052 = vmatpush1.msra.mxu0 0.0
      %3053 = vmatprep.subr.mxu0 0.0
      %3054 = vmatpush1.msra.mxu0 0.0
      %3055 = vmatprep.subr.mxu0 0.0
      %3056 = vmatpush1.msra.mxu0 0.0
      %3057 = vmatprep.subr.mxu0 0.0
      %3058 = vmatpush1.msra.mxu0 0.0
      %3059 = vmatprep.subr.mxu0 0.0
      %3060 = vmatpush1.msra.mxu0 0.0
      %3061 = vmatprep.subr.mxu0 0.0
      %3062 = vmatpush1.msra.mxu0 0.0
      %3063 = vmatprep.subr.mxu0 0.0
      %3064 = vmatpush1.msra.mxu0 0.0
      %3065 = vmatprep.subr.mxu0 0.0
      %3066 = vmatpush1.msra.mxu0 0.0
      %3067 = vmatprep.subr.mxu0 0.0
      %3068 = vmatpush1.msra.mxu0 0.0
      %3069 = vmatprep.subr.mxu0 0.0
      %3070 = vmatpush1.msra.mxu0 0.0
      %3071 = vmatprep.mubr.f32.mxu0 0.0
      %3072 = vmatmul.mubr.f32.gmra.mrb[0].mxu0 %v2768
      %v3073 = vpop.f32.mrb[0].mxu0
      %v3074 = vadd.f32 0.0, %v3073
      %v3075 = vpop.f32.mrb[0].mxu0
      %v3076 = vadd.f32 0.0, %v3075
      %3077 = vdwg.mxu0
      %v3078 = vadd.f32 %v2681, %v2861
      %v3079 = vadd.f32 %v2682, %v2863
      %v3080 = vadd.f32 %v2683, %v2932
      %v3081 = vadd.f32 %v2684, %v2934
      %v3082 = vadd.f32 %v2685, %v3003
      %v3083 = vadd.f32 %v2686, %v3005
      %v3084 = vadd.f32 %v2687, %v3074
      %v3085 = vadd.f32 %v2688, %v3076
      %3086 = vrot.lane.b32.xlu0 %v389, 96
      %v3087 = vpop.permute.xlu0 %3086
      %3088 = vrot.lane.b32.xlu0 %v397, 96
      %v3089 = vpop.permute.xlu0 %3088
      %3090 = vrot.lane.b32.xlu0 %v390, 96
      %v3091 = vpop.permute.xlu0 %3090
      %3092 = vrot.lane.b32.xlu0 %v398, 96
      %v3093 = vpop.permute.xlu0 %3092
      %3094 = vrot.lane.b32.xlu0 %v391, 96
      %v3095 = vpop.permute.xlu0 %3094
      %3096 = vrot.lane.b32.xlu0 %v399, 96
      %v3097 = vpop.permute.xlu0 %3096
      %3098 = vrot.lane.b32.xlu0 %v392, 96
      %v3099 = vpop.permute.xlu0 %3098
      %3100 = vrot.lane.b32.xlu0 %v400, 96
      %v3101 = vpop.permute.xlu0 %3100
      %vm3102 = vcmp.lt.s32.totalorder %v422, 96
      %v3103 = vsel %vm3102, %v3099, %v3101
      %v3104 = vsel %vm3102, %v3097, %v3099
      %v3105 = vsel %vm3102, %v3095, %v3097
      %v3106 = vsel %vm3102, %v3093, %v3095
      %v3107 = vsel %vm3102, %v3091, %v3093
      %v3108 = vsel %vm3102, %v3089, %v3091
      %v3109 = vsel %vm3102, %v3087, %v3089
      %v3110 = vsel %vm3102, %v3101, %v3087
      %s3111 = scalar_lea.vmem %s2, 56
      %v3112 = vld [vmem:[%s3111] sm:$0xff]
      %v3114 = vlaneseq
      %v3115 = vshrl.u32 %v3114, 7
      %v3116 = vsub.s32 0, %v3115
      %v3117 = vrot.slane %v3112, %v3116
      %v3118 = vlaneseq
      %v3119 = vshrl.u32 %v3118, 7
      %v3120 = vsub.s32 1, %v3119
      %v3121 = vrot.slane %v3112, %v3120
      %v3122 = vlaneseq
      %v3123 = vshrl.u32 %v3122, 7
      %v3124 = vsub.s32 2, %v3123
      %v3125 = vrot.slane %v3112, %v3124
      %v3126 = vlaneseq
      %v3127 = vshrl.u32 %v3126, 7
      %v3128 = vsub.s32 3, %v3127
      %v3129 = vrot.slane %v3112, %v3128
      %v3130 = vlaneseq
      %v3131 = vshrl.u32 %v3130, 7
      %v3132 = vsub.s32 4, %v3131
      %v3133 = vrot.slane %v3112, %v3132
      %v3134 = vlaneseq
      %v3135 = vshrl.u32 %v3134, 7
      %v3136 = vsub.s32 5, %v3135
      %v3137 = vrot.slane %v3112, %v3136
      %v3138 = vlaneseq
      %v3139 = vshrl.u32 %v3138, 7
      %v3140 = vsub.s32 6, %v3139
      %v3141 = vrot.slane %v3112, %v3140
      %v3142 = vlaneseq
      %v3143 = vshrl.u32 %v3142, 7
      %v3144 = vsub.s32 7, %v3143
      %v3145 = vrot.slane %v3112, %v3144
      %v3154 = vmul.f32 %v3109, %v3117
      %v3155 = vmul.f32 %v3108, %v3121
      %v3156 = vmul.f32 %v3107, %v3125
      %v3157 = vmul.f32 %v3106, %v3129
      %v3158 = vmul.f32 %v3105, %v3133
      %v3159 = vmul.f32 %v3104, %v3137
      %v3160 = vmul.f32 %v3103, %v3141
      %v3161 = vmul.f32 %v3110, %v3145
      %s3162 = scalar_lea.vmem %s3, 28
      %v3163 = vld [vmem:[%s3162] sm:$0xf]
      %v3165 = vsel %vm561, %v3163, 0
      %v3168 = vsel %vm565, %v3154, 0
      %v3171 = vsel %vm565, %v3155, 0
      %v3174 = vsel %vm565, %v3156, 0
      %v3177 = vsel %vm565, %v3157, 0
      %v3180 = vsel %vm565, %v3158, 0
      %v3183 = vsel %vm565, %v3159, 0
      %v3186 = vsel %vm565, %v3160, 0
      %v3189 = vsel %vm565, %v3161, 0
      %3191 = vmatprep.subr.mxu0 %v3171
      %3192 = vmatpush1.msra.mxu0 %v3168
      %3193 = vmatprep.subr.mxu0 0.0
      %3194 = vmatpush1.msra.mxu0 0.0
      %3195 = vmatprep.subr.mxu0 0.0
      %3196 = vmatpush1.msra.mxu0 0.0
      %3197 = vmatprep.subr.mxu0 0.0
      %3198 = vmatpush1.msra.mxu0 0.0
      %3199 = vmatprep.subr.mxu0 0.0
      %3200 = vmatpush1.msra.mxu0 0.0
      %3201 = vmatprep.subr.mxu0 0.0
      %3202 = vmatpush1.msra.mxu0 0.0
      %3203 = vmatprep.subr.mxu0 0.0
      %3204 = vmatpush1.msra.mxu0 0.0
      %3205 = vmatprep.subr.mxu0 0.0
      %3206 = vmatpush1.msra.mxu0 0.0
      %3207 = vmatprep.subr.mxu0 0.0
      %3208 = vmatpush1.msra.mxu0 0.0
      %3209 = vmatprep.subr.mxu0 0.0
      %3210 = vmatpush1.msra.mxu0 0.0
      %3211 = vmatprep.subr.mxu0 0.0
      %3212 = vmatpush1.msra.mxu0 0.0
      %3213 = vmatprep.subr.mxu0 0.0
      %3214 = vmatpush1.msra.mxu0 0.0
      %3215 = vmatprep.subr.mxu0 0.0
      %3216 = vmatpush1.msra.mxu0 0.0
      %3217 = vmatprep.subr.mxu0 0.0
      %3218 = vmatpush1.msra.mxu0 0.0
      %3219 = vmatprep.subr.mxu0 0.0
      %3220 = vmatpush1.msra.mxu0 0.0
      %3221 = vmatprep.subr.mxu0 0.0
      %3222 = vmatpush1.msra.mxu0 0.0
      %3223 = vmatprep.subr.mxu0 0.0
      %3224 = vmatpush1.msra.mxu0 0.0
      %3225 = vmatprep.subr.mxu0 0.0
      %3226 = vmatpush1.msra.mxu0 0.0
      %3227 = vmatprep.subr.mxu0 0.0
      %3228 = vmatpush1.msra.mxu0 0.0
      %3229 = vmatprep.subr.mxu0 0.0
      %3230 = vmatpush1.msra.mxu0 0.0
      %3231 = vmatprep.subr.mxu0 0.0
      %3232 = vmatpush1.msra.mxu0 0.0
      %3233 = vmatprep.subr.mxu0 0.0
      %3234 = vmatpush1.msra.mxu0 0.0
      %3235 = vmatprep.subr.mxu0 0.0
      %3236 = vmatpush1.msra.mxu0 0.0
      %3237 = vmatprep.subr.mxu0 0.0
      %3238 = vmatpush1.msra.mxu0 0.0
      %3239 = vmatprep.subr.mxu0 0.0
      %3240 = vmatpush1.msra.mxu0 0.0
      %3241 = vmatprep.subr.mxu0 0.0
      %3242 = vmatpush1.msra.mxu0 0.0
      %3243 = vmatprep.subr.mxu0 0.0
      %3244 = vmatpush1.msra.mxu0 0.0
      %3245 = vmatprep.subr.mxu0 0.0
      %3246 = vmatpush1.msra.mxu0 0.0
      %3247 = vmatprep.subr.mxu0 0.0
      %3248 = vmatpush1.msra.mxu0 0.0
      %3249 = vmatprep.subr.mxu0 0.0
      %3250 = vmatpush1.msra.mxu0 0.0
      %3251 = vmatprep.subr.mxu0 0.0
      %3252 = vmatpush1.msra.mxu0 0.0
      %3253 = vmatprep.subr.mxu0 0.0
      %3254 = vmatpush1.msra.mxu0 0.0
      %3255 = vmatprep.mubr.f32.mxu0 0.0
      %3256 = vmatmul.mubr.f32.gmra.mrb[0].mxu0 %v3165
      %v3257 = vpop.f32.mrb[0].mxu0
      %v3258 = vadd.f32 0.0, %v3257
      %v3259 = vpop.f32.mrb[0].mxu0
      %v3260 = vadd.f32 0.0, %v3259
      %3261 = vdwg.mxu0
      %3262 = vmatprep.subr.mxu0 %v3177
      %3263 = vmatpush1.msra.mxu0 %v3174
      %3264 = vmatprep.subr.mxu0 0.0
      %3265 = vmatpush1.msra.mxu0 0.0
      %3266 = vmatprep.subr.mxu0 0.0
      %3267 = vmatpush1.msra.mxu0 0.0
      %3268 = vmatprep.subr.mxu0 0.0
      %3269 = vmatpush1.msra.mxu0 0.0
      %3270 = vmatprep.subr.mxu0 0.0
      %3271 = vmatpush1.msra.mxu0 0.0
      %3272 = vmatprep.subr.mxu0 0.0
      %3273 = vmatpush1.msra.mxu0 0.0
      %3274 = vmatprep.subr.mxu0 0.0
      %3275 = vmatpush1.msra.mxu0 0.0
      %3276 = vmatprep.subr.mxu0 0.0
      %3277 = vmatpush1.msra.mxu0 0.0
      %3278 = vmatprep.subr.mxu0 0.0
      %3279 = vmatpush1.msra.mxu0 0.0
      %3280 = vmatprep.subr.mxu0 0.0
      %3281 = vmatpush1.msra.mxu0 0.0
      %3282 = vmatprep.subr.mxu0 0.0
      %3283 = vmatpush1.msra.mxu0 0.0
      %3284 = vmatprep.subr.mxu0 0.0
      %3285 = vmatpush1.msra.mxu0 0.0
      %3286 = vmatprep.subr.mxu0 0.0
      %3287 = vmatpush1.msra.mxu0 0.0
      %3288 = vmatprep.subr.mxu0 0.0
      %3289 = vmatpush1.msra.mxu0 0.0
      %3290 = vmatprep.subr.mxu0 0.0
      %3291 = vmatpush1.msra.mxu0 0.0
      %3292 = vmatprep.subr.mxu0 0.0
      %3293 = vmatpush1.msra.mxu0 0.0
      %3294 = vmatprep.subr.mxu0 0.0
      %3295 = vmatpush1.msra.mxu0 0.0
      %3296 = vmatprep.subr.mxu0 0.0
      %3297 = vmatpush1.msra.mxu0 0.0
      %3298 = vmatprep.subr.mxu0 0.0
      %3299 = vmatpush1.msra.mxu0 0.0
      %3300 = vmatprep.subr.mxu0 0.0
      %3301 = vmatpush1.msra.mxu0 0.0
      %3302 = vmatprep.subr.mxu0 0.0
      %3303 = vmatpush1.msra.mxu0 0.0
      %3304 = vmatprep.subr.mxu0 0.0
      %3305 = vmatpush1.msra.mxu0 0.0
      %3306 = vmatprep.subr.mxu0 0.0
      %3307 = vmatpush1.msra.mxu0 0.0
      %3308 = vmatprep.subr.mxu0 0.0
      %3309 = vmatpush1.msra.mxu0 0.0
      %3310 = vmatprep.subr.mxu0 0.0
      %3311 = vmatpush1.msra.mxu0 0.0
      %3312 = vmatprep.subr.mxu0 0.0
      %3313 = vmatpush1.msra.mxu0 0.0
      %3314 = vmatprep.subr.mxu0 0.0
      %3315 = vmatpush1.msra.mxu0 0.0
      %3316 = vmatprep.subr.mxu0 0.0
      %3317 = vmatpush1.msra.mxu0 0.0
      %3318 = vmatprep.subr.mxu0 0.0
      %3319 = vmatpush1.msra.mxu0 0.0
      %3320 = vmatprep.subr.mxu0 0.0
      %3321 = vmatpush1.msra.mxu0 0.0
      %3322 = vmatprep.subr.mxu0 0.0
      %3323 = vmatpush1.msra.mxu0 0.0
      %3324 = vmatprep.subr.mxu0 0.0
      %3325 = vmatpush1.msra.mxu0 0.0
      %3326 = vmatprep.mubr.f32.mxu0 0.0
      %3327 = vmatmul.mubr.f32.gmra.mrb[0].mxu0 %v3165
      %v3328 = vpop.f32.mrb[0].mxu0
      %v3329 = vadd.f32 0.0, %v3328
      %v3330 = vpop.f32.mrb[0].mxu0
      %v3331 = vadd.f32 0.0, %v3330
      %3332 = vdwg.mxu0
      %3333 = vmatprep.subr.mxu0 %v3183
      %3334 = vmatpush1.msra.mxu0 %v3180
      %3335 = vmatprep.subr.mxu0 0.0
      %3336 = vmatpush1.msra.mxu0 0.0
      %3337 = vmatprep.subr.mxu0 0.0
      %3338 = vmatpush1.msra.mxu0 0.0
      %3339 = vmatprep.subr.mxu0 0.0
      %3340 = vmatpush1.msra.mxu0 0.0
      %3341 = vmatprep.subr.mxu0 0.0
      %3342 = vmatpush1.msra.mxu0 0.0
      %3343 = vmatprep.subr.mxu0 0.0
      %3344 = vmatpush1.msra.mxu0 0.0
      %3345 = vmatprep.subr.mxu0 0.0
      %3346 = vmatpush1.msra.mxu0 0.0
      %3347 = vmatprep.subr.mxu0 0.0
      %3348 = vmatpush1.msra.mxu0 0.0
      %3349 = vmatprep.subr.mxu0 0.0
      %3350 = vmatpush1.msra.mxu0 0.0
      %3351 = vmatprep.subr.mxu0 0.0
      %3352 = vmatpush1.msra.mxu0 0.0
      %3353 = vmatprep.subr.mxu0 0.0
      %3354 = vmatpush1.msra.mxu0 0.0
      %3355 = vmatprep.subr.mxu0 0.0
      %3356 = vmatpush1.msra.mxu0 0.0
      %3357 = vmatprep.subr.mxu0 0.0
      %3358 = vmatpush1.msra.mxu0 0.0
      %3359 = vmatprep.subr.mxu0 0.0
      %3360 = vmatpush1.msra.mxu0 0.0
      %3361 = vmatprep.subr.mxu0 0.0
      %3362 = vmatpush1.msra.mxu0 0.0
      %3363 = vmatprep.subr.mxu0 0.0
      %3364 = vmatpush1.msra.mxu0 0.0
      %3365 = vmatprep.subr.mxu0 0.0
      %3366 = vmatpush1.msra.mxu0 0.0
      %3367 = vmatprep.subr.mxu0 0.0
      %3368 = vmatpush1.msra.mxu0 0.0
      %3369 = vmatprep.subr.mxu0 0.0
      %3370 = vmatpush1.msra.mxu0 0.0
      %3371 = vmatprep.subr.mxu0 0.0
      %3372 = vmatpush1.msra.mxu0 0.0
      %3373 = vmatprep.subr.mxu0 0.0
      %3374 = vmatpush1.msra.mxu0 0.0
      %3375 = vmatprep.subr.mxu0 0.0
      %3376 = vmatpush1.msra.mxu0 0.0
      %3377 = vmatprep.subr.mxu0 0.0
      %3378 = vmatpush1.msra.mxu0 0.0
      %3379 = vmatprep.subr.mxu0 0.0
      %3380 = vmatpush1.msra.mxu0 0.0
      %3381 = vmatprep.subr.mxu0 0.0
      %3382 = vmatpush1.msra.mxu0 0.0
      %3383 = vmatprep.subr.mxu0 0.0
      %3384 = vmatpush1.msra.mxu0 0.0
      %3385 = vmatprep.subr.mxu0 0.0
      %3386 = vmatpush1.msra.mxu0 0.0
      %3387 = vmatprep.subr.mxu0 0.0
      %3388 = vmatpush1.msra.mxu0 0.0
      %3389 = vmatprep.subr.mxu0 0.0
      %3390 = vmatpush1.msra.mxu0 0.0
      %3391 = vmatprep.subr.mxu0 0.0
      %3392 = vmatpush1.msra.mxu0 0.0
      %3393 = vmatprep.subr.mxu0 0.0
      %3394 = vmatpush1.msra.mxu0 0.0
      %3395 = vmatprep.subr.mxu0 0.0
      %3396 = vmatpush1.msra.mxu0 0.0
      %3397 = vmatprep.mubr.f32.mxu0 0.0
      %3398 = vmatmul.mubr.f32.gmra.mrb[0].mxu0 %v3165
      %v3399 = vpop.f32.mrb[0].mxu0
      %v3400 = vadd.f32 0.0, %v3399
      %v3401 = vpop.f32.mrb[0].mxu0
      %v3402 = vadd.f32 0.0, %v3401
      %3403 = vdwg.mxu0
      %3404 = vmatprep.subr.mxu0 %v3189
      %3405 = vmatpush1.msra.mxu0 %v3186
      %3406 = vmatprep.subr.mxu0 0.0
      %3407 = vmatpush1.msra.mxu0 0.0
      %3408 = vmatprep.subr.mxu0 0.0
      %3409 = vmatpush1.msra.mxu0 0.0
      %3410 = vmatprep.subr.mxu0 0.0
      %3411 = vmatpush1.msra.mxu0 0.0
      %3412 = vmatprep.subr.mxu0 0.0
      %3413 = vmatpush1.msra.mxu0 0.0
      %3414 = vmatprep.subr.mxu0 0.0
      %3415 = vmatpush1.msra.mxu0 0.0
      %3416 = vmatprep.subr.mxu0 0.0
      %3417 = vmatpush1.msra.mxu0 0.0
      %3418 = vmatprep.subr.mxu0 0.0
      %3419 = vmatpush1.msra.mxu0 0.0
      %3420 = vmatprep.subr.mxu0 0.0
      %3421 = vmatpush1.msra.mxu0 0.0
      %3422 = vmatprep.subr.mxu0 0.0
      %3423 = vmatpush1.msra.mxu0 0.0
      %3424 = vmatprep.subr.mxu0 0.0
      %3425 = vmatpush1.msra.mxu0 0.0
      %3426 = vmatprep.subr.mxu0 0.0
      %3427 = vmatpush1.msra.mxu0 0.0
      %3428 = vmatprep.subr.mxu0 0.0
      %3429 = vmatpush1.msra.mxu0 0.0
      %3430 = vmatprep.subr.mxu0 0.0
      %3431 = vmatpush1.msra.mxu0 0.0
      %3432 = vmatprep.subr.mxu0 0.0
      %3433 = vmatpush1.msra.mxu0 0.0
      %3434 = vmatprep.subr.mxu0 0.0
      %3435 = vmatpush1.msra.mxu0 0.0
      %3436 = vmatprep.subr.mxu0 0.0
      %3437 = vmatpush1.msra.mxu0 0.0
      %3438 = vmatprep.subr.mxu0 0.0
      %3439 = vmatpush1.msra.mxu0 0.0
      %3440 = vmatprep.subr.mxu0 0.0
      %3441 = vmatpush1.msra.mxu0 0.0
      %3442 = vmatprep.subr.mxu0 0.0
      %3443 = vmatpush1.msra.mxu0 0.0
      %3444 = vmatprep.subr.mxu0 0.0
      %3445 = vmatpush1.msra.mxu0 0.0
      %3446 = vmatprep.subr.mxu0 0.0
      %3447 = vmatpush1.msra.mxu0 0.0
      %3448 = vmatprep.subr.mxu0 0.0
      %3449 = vmatpush1.msra.mxu0 0.0
      %3450 = vmatprep.subr.mxu0 0.0
      %3451 = vmatpush1.msra.mxu0 0.0
      %3452 = vmatprep.subr.mxu0 0.0
      %3453 = vmatpush1.msra.mxu0 0.0
      %3454 = vmatprep.subr.mxu0 0.0
      %3455 = vmatpush1.msra.mxu0 0.0
      %3456 = vmatprep.subr.mxu0 0.0
      %3457 = vmatpush1.msra.mxu0 0.0
      %3458 = vmatprep.subr.mxu0 0.0
      %3459 = vmatpush1.msra.mxu0 0.0
      %3460 = vmatprep.subr.mxu0 0.0
      %3461 = vmatpush1.msra.mxu0 0.0
      %3462 = vmatprep.subr.mxu0 0.0
      %3463 = vmatpush1.msra.mxu0 0.0
      %3464 = vmatprep.subr.mxu0 0.0
      %3465 = vmatpush1.msra.mxu0 0.0
      %3466 = vmatprep.subr.mxu0 0.0
      %3467 = vmatpush1.msra.mxu0 0.0
      %3468 = vmatprep.mubr.f32.mxu0 0.0
      %3469 = vmatmul.mubr.f32.gmra.mrb[0].mxu0 %v3165
      %v3470 = vpop.f32.mrb[0].mxu0
      %v3471 = vadd.f32 0.0, %v3470
      %v3472 = vpop.f32.mrb[0].mxu0
      %v3473 = vadd.f32 0.0, %v3472
      %3474 = vdwg.mxu0
      %v3475 = vadd.f32 %v3078, %v3258
      %v3476 = vadd.f32 %v3079, %v3260
      %v3477 = vadd.f32 %v3080, %v3329
      %v3478 = vadd.f32 %v3081, %v3331
      %v3479 = vadd.f32 %v3082, %v3400
      %v3480 = vadd.f32 %v3083, %v3402
      %v3481 = vadd.f32 %v3084, %v3471
      %v3482 = vadd.f32 %v3085, %v3473
      %3483 = vrot.lane.b32.xlu0 %v389, 95
      %v3484 = vpop.permute.xlu0 %3483
      %3485 = vrot.lane.b32.xlu0 %v397, 95
      %v3486 = vpop.permute.xlu0 %3485
      %3487 = vrot.lane.b32.xlu0 %v390, 95
      %v3488 = vpop.permute.xlu0 %3487
      %3489 = vrot.lane.b32.xlu0 %v398, 95
      %v3490 = vpop.permute.xlu0 %3489
      %3491 = vrot.lane.b32.xlu0 %v391, 95
      %v3492 = vpop.permute.xlu0 %3491
      %3493 = vrot.lane.b32.xlu0 %v399, 95
      %v3494 = vpop.permute.xlu0 %3493
      %3495 = vrot.lane.b32.xlu0 %v392, 95
      %v3496 = vpop.permute.xlu0 %3495
      %3497 = vrot.lane.b32.xlu0 %v400, 95
      %v3498 = vpop.permute.xlu0 %3497
      %vm3499 = vcmp.lt.s32.totalorder %v422, 95
      %v3500 = vsel %vm3499, %v3496, %v3498
      %v3501 = vsel %vm3499, %v3494, %v3496
      %v3502 = vsel %vm3499, %v3492, %v3494
      %v3503 = vsel %vm3499, %v3490, %v3492
      %v3504 = vsel %vm3499, %v3488, %v3490
      %v3505 = vsel %vm3499, %v3486, %v3488
      %v3506 = vsel %vm3499, %v3484, %v3486
      %v3507 = vsel %vm3499, %v3498, %v3484
      %s3508 = scalar_lea.vmem %s2, 64
      %v3509 = vld [vmem:[%s3508] sm:$0xff]
      %v3511 = vlaneseq
      %v3512 = vshrl.u32 %v3511, 7
      %v3513 = vsub.s32 0, %v3512
      %v3514 = vrot.slane %v3509, %v3513
      %v3515 = vlaneseq
      %v3516 = vshrl.u32 %v3515, 7
      %v3517 = vsub.s32 1, %v3516
      %v3518 = vrot.slane %v3509, %v3517
      %v3519 = vlaneseq
      %v3520 = vshrl.u32 %v3519, 7
      %v3521 = vsub.s32 2, %v3520
      %v3522 = vrot.slane %v3509, %v3521
      %v3523 = vlaneseq
      %v3524 = vshrl.u32 %v3523, 7
      %v3525 = vsub.s32 3, %v3524
      %v3526 = vrot.slane %v3509, %v3525
      %v3527 = vlaneseq
      %v3528 = vshrl.u32 %v3527, 7
      %v3529 = vsub.s32 4, %v3528
      %v3530 = vrot.slane %v3509, %v3529
      %v3531 = vlaneseq
      %v3532 = vshrl.u32 %v3531, 7
      %v3533 = vsub.s32 5, %v3532
      %v3534 = vrot.slane %v3509, %v3533
      %v3535 = vlaneseq
      %v3536 = vshrl.u32 %v3535, 7
      %v3537 = vsub.s32 6, %v3536
      %v3538 = vrot.slane %v3509, %v3537
      %v3539 = vlaneseq
      %v3540 = vshrl.u32 %v3539, 7
      %v3541 = vsub.s32 7, %v3540
      %v3542 = vrot.slane %v3509, %v3541
      %v3551 = vmul.f32 %v3506, %v3514
      %v3552 = vmul.f32 %v3505, %v3518
      %v3553 = vmul.f32 %v3504, %v3522
      %v3554 = vmul.f32 %v3503, %v3526
      %v3555 = vmul.f32 %v3502, %v3530
      %v3556 = vmul.f32 %v3501, %v3534
      %v3557 = vmul.f32 %v3500, %v3538
      %v3558 = vmul.f32 %v3507, %v3542
      %s3559 = scalar_lea.vmem %s3, 32
      %v3560 = vld [vmem:[%s3559] sm:$0xf]
      %v3562 = vsel %vm561, %v3560, 0
      %v3565 = vsel %vm565, %v3551, 0
      %v3568 = vsel %vm565, %v3552, 0
      %v3571 = vsel %vm565, %v3553, 0
      %v3574 = vsel %vm565, %v3554, 0
      %v3577 = vsel %vm565, %v3555, 0
      %v3580 = vsel %vm565, %v3556, 0
      %v3583 = vsel %vm565, %v3557, 0
      %v3586 = vsel %vm565, %v3558, 0
      %3588 = vmatprep.subr.mxu0 %v3568
      %3589 = vmatpush1.msra.mxu0 %v3565
      %3590 = vmatprep.subr.mxu0 0.0
      %3591 = vmatpush1.msra.mxu0 0.0
      %3592 = vmatprep.subr.mxu0 0.0
      %3593 = vmatpush1.msra.mxu0 0.0
      %3594 = vmatprep.subr.mxu0 0.0
      %3595 = vmatpush1.msra.mxu0 0.0
      %3596 = vmatprep.subr.mxu0 0.0
      %3597 = vmatpush1.msra.mxu0 0.0
      %3598 = vmatprep.subr.mxu0 0.0
      %3599 = vmatpush1.msra.mxu0 0.0
      %3600 = vmatprep.subr.mxu0 0.0
      %3601 = vmatpush1.msra.mxu0 0.0
      %3602 = vmatprep.subr.mxu0 0.0
      %3603 = vmatpush1.msra.mxu0 0.0
      %3604 = vmatprep.subr.mxu0 0.0
      %3605 = vmatpush1.msra.mxu0 0.0
      %3606 = vmatprep.subr.mxu0 0.0
      %3607 = vmatpush1.msra.mxu0 0.0
      %3608 = vmatprep.subr.mxu0 0.0
      %3609 = vmatpush1.msra.mxu0 0.0
      %3610 = vmatprep.subr.mxu0 0.0
      %3611 = vmatpush1.msra.mxu0 0.0
      %3612 = vmatprep.subr.mxu0 0.0
      %3613 = vmatpush1.msra.mxu0 0.0
      %3614 = vmatprep.subr.mxu0 0.0
      %3615 = vmatpush1.msra.mxu0 0.0
      %3616 = vmatprep.subr.mxu0 0.0
      %3617 = vmatpush1.msra.mxu0 0.0
      %3618 = vmatprep.subr.mxu0 0.0
      %3619 = vmatpush1.msra.mxu0 0.0
      %3620 = vmatprep.subr.mxu0 0.0
      %3621 = vmatpush1.msra.mxu0 0.0
      %3622 = vmatprep.subr.mxu0 0.0
      %3623 = vmatpush1.msra.mxu0 0.0
      %3624 = vmatprep.subr.mxu0 0.0
      %3625 = vmatpush1.msra.mxu0 0.0
      %3626 = vmatprep.subr.mxu0 0.0
      %3627 = vmatpush1.msra.mxu0 0.0
      %3628 = vmatprep.subr.mxu0 0.0
      %3629 = vmatpush1.msra.mxu0 0.0
      %3630 = vmatprep.subr.mxu0 0.0
      %3631 = vmatpush1.msra.mxu0 0.0
      %3632 = vmatprep.subr.mxu0 0.0
      %3633 = vmatpush1.msra.mxu0 0.0
      %3634 = vmatprep.subr.mxu0 0.0
      %3635 = vmatpush1.msra.mxu0 0.0
      %3636 = vmatprep.subr.mxu0 0.0
      %3637 = vmatpush1.msra.mxu0 0.0
      %3638 = vmatprep.subr.mxu0 0.0
      %3639 = vmatpush1.msra.mxu0 0.0
      %3640 = vmatprep.subr.mxu0 0.0
      %3641 = vmatpush1.msra.mxu0 0.0
      %3642 = vmatprep.subr.mxu0 0.0
      %3643 = vmatpush1.msra.mxu0 0.0
      %3644 = vmatprep.subr.mxu0 0.0
      %3645 = vmatpush1.msra.mxu0 0.0
      %3646 = vmatprep.subr.mxu0 0.0
      %3647 = vmatpush1.msra.mxu0 0.0
      %3648 = vmatprep.subr.mxu0 0.0
      %3649 = vmatpush1.msra.mxu0 0.0
      %3650 = vmatprep.subr.mxu0 0.0
      %3651 = vmatpush1.msra.mxu0 0.0
      %3652 = vmatprep.mubr.f32.mxu0 0.0
      %3653 = vmatmul.mubr.f32.gmra.mrb[0].mxu0 %v3562
      %v3654 = vpop.f32.mrb[0].mxu0
      %v3655 = vadd.f32 0.0, %v3654
      %v3656 = vpop.f32.mrb[0].mxu0
      %v3657 = vadd.f32 0.0, %v3656
      %3658 = vdwg.mxu0
      %3659 = vmatprep.subr.mxu0 %v3574
      %3660 = vmatpush1.msra.mxu0 %v3571
      %3661 = vmatprep.subr.mxu0 0.0
      %3662 = vmatpush1.msra.mxu0 0.0
      %3663 = vmatprep.subr.mxu0 0.0
      %3664 = vmatpush1.msra.mxu0 0.0
      %3665 = vmatprep.subr.mxu0 0.0
      %3666 = vmatpush1.msra.mxu0 0.0
      %3667 = vmatprep.subr.mxu0 0.0
      %3668 = vmatpush1.msra.mxu0 0.0
      %3669 = vmatprep.subr.mxu0 0.0
      %3670 = vmatpush1.msra.mxu0 0.0
      %3671 = vmatprep.subr.mxu0 0.0
      %3672 = vmatpush1.msra.mxu0 0.0
      %3673 = vmatprep.subr.mxu0 0.0
      %3674 = vmatpush1.msra.mxu0 0.0
      %3675 = vmatprep.subr.mxu0 0.0
      %3676 = vmatpush1.msra.mxu0 0.0
      %3677 = vmatprep.subr.mxu0 0.0
      %3678 = vmatpush1.msra.mxu0 0.0
      %3679 = vmatprep.subr.mxu0 0.0
      %3680 = vmatpush1.msra.mxu0 0.0
      %3681 = vmatprep.subr.mxu0 0.0
      %3682 = vmatpush1.msra.mxu0 0.0
      %3683 = vmatprep.subr.mxu0 0.0
      %3684 = vmatpush1.msra.mxu0 0.0
      %3685 = vmatprep.subr.mxu0 0.0
      %3686 = vmatpush1.msra.mxu0 0.0
      %3687 = vmatprep.subr.mxu0 0.0
      %3688 = vmatpush1.msra.mxu0 0.0
      %3689 = vmatprep.subr.mxu0 0.0
      %3690 = vmatpush1.msra.mxu0 0.0
      %3691 = vmatprep.subr.mxu0 0.0
      %3692 = vmatpush1.msra.mxu0 0.0
      %3693 = vmatprep.subr.mxu0 0.0
      %3694 = vmatpush1.msra.mxu0 0.0
      %3695 = vmatprep.subr.mxu0 0.0
      %3696 = vmatpush1.msra.mxu0 0.0
      %3697 = vmatprep.subr.mxu0 0.0
      %3698 = vmatpush1.msra.mxu0 0.0
      %3699 = vmatprep.subr.mxu0 0.0
      %3700 = vmatpush1.msra.mxu0 0.0
      %3701 = vmatprep.subr.mxu0 0.0
      %3702 = vmatpush1.msra.mxu0 0.0
      %3703 = vmatprep.subr.mxu0 0.0
      %3704 = vmatpush1.msra.mxu0 0.0
      %3705 = vmatprep.subr.mxu0 0.0
      %3706 = vmatpush1.msra.mxu0 0.0
      %3707 = vmatprep.subr.mxu0 0.0
      %3708 = vmatpush1.msra.mxu0 0.0
      %3709 = vmatprep.subr.mxu0 0.0
      %3710 = vmatpush1.msra.mxu0 0.0
      %3711 = vmatprep.subr.mxu0 0.0
      %3712 = vmatpush1.msra.mxu0 0.0
      %3713 = vmatprep.subr.mxu0 0.0
      %3714 = vmatpush1.msra.mxu0 0.0
      %3715 = vmatprep.subr.mxu0 0.0
      %3716 = vmatpush1.msra.mxu0 0.0
      %3717 = vmatprep.subr.mxu0 0.0
      %3718 = vmatpush1.msra.mxu0 0.0
      %3719 = vmatprep.subr.mxu0 0.0
      %3720 = vmatpush1.msra.mxu0 0.0
      %3721 = vmatprep.subr.mxu0 0.0
      %3722 = vmatpush1.msra.mxu0 0.0
      %3723 = vmatprep.mubr.f32.mxu0 0.0
      %3724 = vmatmul.mubr.f32.gmra.mrb[0].mxu0 %v3562
      %v3725 = vpop.f32.mrb[0].mxu0
      %v3726 = vadd.f32 0.0, %v3725
      %v3727 = vpop.f32.mrb[0].mxu0
      %v3728 = vadd.f32 0.0, %v3727
      %3729 = vdwg.mxu0
      %3730 = vmatprep.subr.mxu0 %v3580
      %3731 = vmatpush1.msra.mxu0 %v3577
      %3732 = vmatprep.subr.mxu0 0.0
      %3733 = vmatpush1.msra.mxu0 0.0
      %3734 = vmatprep.subr.mxu0 0.0
      %3735 = vmatpush1.msra.mxu0 0.0
      %3736 = vmatprep.subr.mxu0 0.0
      %3737 = vmatpush1.msra.mxu0 0.0
      %3738 = vmatprep.subr.mxu0 0.0
      %3739 = vmatpush1.msra.mxu0 0.0
      %3740 = vmatprep.subr.mxu0 0.0
      %3741 = vmatpush1.msra.mxu0 0.0
      %3742 = vmatprep.subr.mxu0 0.0
      %3743 = vmatpush1.msra.mxu0 0.0
      %3744 = vmatprep.subr.mxu0 0.0
      %3745 = vmatpush1.msra.mxu0 0.0
      %3746 = vmatprep.subr.mxu0 0.0
      %3747 = vmatpush1.msra.mxu0 0.0
      %3748 = vmatprep.subr.mxu0 0.0
      %3749 = vmatpush1.msra.mxu0 0.0
      %3750 = vmatprep.subr.mxu0 0.0
      %3751 = vmatpush1.msra.mxu0 0.0
      %3752 = vmatprep.subr.mxu0 0.0
      %3753 = vmatpush1.msra.mxu0 0.0
      %3754 = vmatprep.subr.mxu0 0.0
      %3755 = vmatpush1.msra.mxu0 0.0
      %3756 = vmatprep.subr.mxu0 0.0
      %3757 = vmatpush1.msra.mxu0 0.0
      %3758 = vmatprep.subr.mxu0 0.0
      %3759 = vmatpush1.msra.mxu0 0.0
      %3760 = vmatprep.subr.mxu0 0.0
      %3761 = vmatpush1.msra.mxu0 0.0
      %3762 = vmatprep.subr.mxu0 0.0
      %3763 = vmatpush1.msra.mxu0 0.0
      %3764 = vmatprep.subr.mxu0 0.0
      %3765 = vmatpush1.msra.mxu0 0.0
      %3766 = vmatprep.subr.mxu0 0.0
      %3767 = vmatpush1.msra.mxu0 0.0
      %3768 = vmatprep.subr.mxu0 0.0
      %3769 = vmatpush1.msra.mxu0 0.0
      %3770 = vmatprep.subr.mxu0 0.0
      %3771 = vmatpush1.msra.mxu0 0.0
      %3772 = vmatprep.subr.mxu0 0.0
      %3773 = vmatpush1.msra.mxu0 0.0
      %3774 = vmatprep.subr.mxu0 0.0
      %3775 = vmatpush1.msra.mxu0 0.0
      %3776 = vmatprep.subr.mxu0 0.0
      %3777 = vmatpush1.msra.mxu0 0.0
      %3778 = vmatprep.subr.mxu0 0.0
      %3779 = vmatpush1.msra.mxu0 0.0
      %3780 = vmatprep.subr.mxu0 0.0
      %3781 = vmatpush1.msra.mxu0 0.0
      %3782 = vmatprep.subr.mxu0 0.0
      %3783 = vmatpush1.msra.mxu0 0.0
      %3784 = vmatprep.subr.mxu0 0.0
      %3785 = vmatpush1.msra.mxu0 0.0
      %3786 = vmatprep.subr.mxu0 0.0
      %3787 = vmatpush1.msra.mxu0 0.0
      %3788 = vmatprep.subr.mxu0 0.0
      %3789 = vmatpush1.msra.mxu0 0.0
      %3790 = vmatprep.subr.mxu0 0.0
      %3791 = vmatpush1.msra.mxu0 0.0
      %3792 = vmatprep.subr.mxu0 0.0
      %3793 = vmatpush1.msra.mxu0 0.0
      %3794 = vmatprep.mubr.f32.mxu0 0.0
      %3795 = vmatmul.mubr.f32.gmra.mrb[0].mxu0 %v3562
      %v3796 = vpop.f32.mrb[0].mxu0
      %v3797 = vadd.f32 0.0, %v3796
      %v3798 = vpop.f32.mrb[0].mxu0
      %v3799 = vadd.f32 0.0, %v3798
      %3800 = vdwg.mxu0
      %3801 = vmatprep.subr.mxu0 %v3586
      %3802 = vmatpush1.msra.mxu0 %v3583
      %3803 = vmatprep.subr.mxu0 0.0
      %3804 = vmatpush1.msra.mxu0 0.0
      %3805 = vmatprep.subr.mxu0 0.0
      %3806 = vmatpush1.msra.mxu0 0.0
      %3807 = vmatprep.subr.mxu0 0.0
      %3808 = vmatpush1.msra.mxu0 0.0
      %3809 = vmatprep.subr.mxu0 0.0
      %3810 = vmatpush1.msra.mxu0 0.0
      %3811 = vmatprep.subr.mxu0 0.0
      %3812 = vmatpush1.msra.mxu0 0.0
      %3813 = vmatprep.subr.mxu0 0.0
      %3814 = vmatpush1.msra.mxu0 0.0
      %3815 = vmatprep.subr.mxu0 0.0
      %3816 = vmatpush1.msra.mxu0 0.0
      %3817 = vmatprep.subr.mxu0 0.0
      %3818 = vmatpush1.msra.mxu0 0.0
      %3819 = vmatprep.subr.mxu0 0.0
      %3820 = vmatpush1.msra.mxu0 0.0
      %3821 = vmatprep.subr.mxu0 0.0
      %3822 = vmatpush1.msra.mxu0 0.0
      %3823 = vmatprep.subr.mxu0 0.0
      %3824 = vmatpush1.msra.mxu0 0.0
      %3825 = vmatprep.subr.mxu0 0.0
      %3826 = vmatpush1.msra.mxu0 0.0
      %3827 = vmatprep.subr.mxu0 0.0
      %3828 = vmatpush1.msra.mxu0 0.0
      %3829 = vmatprep.subr.mxu0 0.0
      %3830 = vmatpush1.msra.mxu0 0.0
      %3831 = vmatprep.subr.mxu0 0.0
      %3832 = vmatpush1.msra.mxu0 0.0
      %3833 = vmatprep.subr.mxu0 0.0
      %3834 = vmatpush1.msra.mxu0 0.0
      %3835 = vmatprep.subr.mxu0 0.0
      %3836 = vmatpush1.msra.mxu0 0.0
      %3837 = vmatprep.subr.mxu0 0.0
      %3838 = vmatpush1.msra.mxu0 0.0
      %3839 = vmatprep.subr.mxu0 0.0
      %3840 = vmatpush1.msra.mxu0 0.0
      %3841 = vmatprep.subr.mxu0 0.0
      %3842 = vmatpush1.msra.mxu0 0.0
      %3843 = vmatprep.subr.mxu0 0.0
      %3844 = vmatpush1.msra.mxu0 0.0
      %3845 = vmatprep.subr.mxu0 0.0
      %3846 = vmatpush1.msra.mxu0 0.0
      %3847 = vmatprep.subr.mxu0 0.0
      %3848 = vmatpush1.msra.mxu0 0.0
      %3849 = vmatprep.subr.mxu0 0.0
      %3850 = vmatpush1.msra.mxu0 0.0
      %3851 = vmatprep.subr.mxu0 0.0
      %3852 = vmatpush1.msra.mxu0 0.0
      %3853 = vmatprep.subr.mxu0 0.0
      %3854 = vmatpush1.msra.mxu0 0.0
      %3855 = vmatprep.subr.mxu0 0.0
      %3856 = vmatpush1.msra.mxu0 0.0
      %3857 = vmatprep.subr.mxu0 0.0
      %3858 = vmatpush1.msra.mxu0 0.0
      %3859 = vmatprep.subr.mxu0 0.0
      %3860 = vmatpush1.msra.mxu0 0.0
      %3861 = vmatprep.subr.mxu0 0.0
      %3862 = vmatpush1.msra.mxu0 0.0
      %3863 = vmatprep.subr.mxu0 0.0
      %3864 = vmatpush1.msra.mxu0 0.0
      %3865 = vmatprep.mubr.f32.mxu0 0.0
      %3866 = vmatmul.mubr.f32.gmra.mrb[0].mxu0 %v3562
      %v3867 = vpop.f32.mrb[0].mxu0
      %v3868 = vadd.f32 0.0, %v3867
      %v3869 = vpop.f32.mrb[0].mxu0
      %v3870 = vadd.f32 0.0, %v3869
      %3871 = vdwg.mxu0
      %v3872 = vadd.f32 %v3475, %v3655
      %v3873 = vadd.f32 %v3476, %v3657
      %v3874 = vadd.f32 %v3477, %v3726
      %v3875 = vadd.f32 %v3478, %v3728
      %v3876 = vadd.f32 %v3479, %v3797
      %v3877 = vadd.f32 %v3480, %v3799
      %v3878 = vadd.f32 %v3481, %v3868
      %v3879 = vadd.f32 %v3482, %v3870
      %v3880 = vld [vmem:[%s4] sm:$0xf]
      %3882 = vset.pattern.permute.xlu0 0
      %3883 = vperm.xlu0 %3882, %v3880
      %v3884 = vpop.permute.xlu0 %3883
      %v3886 = vadd.f32 %v3872, %v3884
      %v3887 = vadd.f32 %v3873, %v3884
      %v3888 = vadd.f32 %v3874, %v3884
      %v3889 = vadd.f32 %v3875, %v3884
      %v3890 = vadd.f32 %v3876, %v3884
      %v3891 = vadd.f32 %v3877, %v3884
      %v3892 = vadd.f32 %v3878, %v3884
      %v3893 = vadd.f32 %v3879, %v3884
      %v3894 = vmul.f32 %v3886, %v3886
      %v3895 = vmul.f32 %v3887, %v3887
      %v3896 = vmul.f32 %v3888, %v3888
      %v3897 = vmul.f32 %v3889, %v3889
      %v3898 = vmul.f32 %v3890, %v3890
      %v3899 = vmul.f32 %v3891, %v3891
      %v3900 = vmul.f32 %v3892, %v3892
      %v3901 = vmul.f32 %v3893, %v3893
      %v3902 = vsel %vm565, %v3894, 0.0
      %v3903 = vrot.slane %v3902, 4
      %v3904 = vadd.f32 %v3902, %v3903
      %v3905 = vrot.slane %v3904, 2
      %v3906 = vadd.f32 %v3904, %v3905
      %v3907 = vrot.slane %v3906, 1
      %v3908 = vadd.f32 %v3906, %v3907
      %v3909 = vsel %vm565, %v3895, 0.0
      %v3910 = vrot.slane %v3909, 4
      %v3911 = vadd.f32 %v3909, %v3910
      %v3912 = vrot.slane %v3911, 2
      %v3913 = vadd.f32 %v3911, %v3912
      %v3914 = vrot.slane %v3913, 1
      %v3915 = vadd.f32 %v3913, %v3914
      %v3916 = vsel %vm565, %v3896, 0.0
      %v3917 = vrot.slane %v3916, 4
      %v3918 = vadd.f32 %v3916, %v3917
      %v3919 = vrot.slane %v3918, 2
      %v3920 = vadd.f32 %v3918, %v3919
      %v3921 = vrot.slane %v3920, 1
      %v3922 = vadd.f32 %v3920, %v3921
      %v3923 = vsel %vm565, %v3897, 0.0
      %v3924 = vrot.slane %v3923, 4
      %v3925 = vadd.f32 %v3923, %v3924
      %v3926 = vrot.slane %v3925, 2
      %v3927 = vadd.f32 %v3925, %v3926
      %v3928 = vrot.slane %v3927, 1
      %v3929 = vadd.f32 %v3927, %v3928
      %v3930 = vsel %vm565, %v3898, 0.0
      %v3931 = vrot.slane %v3930, 4
      %v3932 = vadd.f32 %v3930, %v3931
      %v3933 = vrot.slane %v3932, 2
      %v3934 = vadd.f32 %v3932, %v3933
      %v3935 = vrot.slane %v3934, 1
      %v3936 = vadd.f32 %v3934, %v3935
      %v3937 = vsel %vm565, %v3899, 0.0
      %v3938 = vrot.slane %v3937, 4
      %v3939 = vadd.f32 %v3937, %v3938
      %v3940 = vrot.slane %v3939, 2
      %v3941 = vadd.f32 %v3939, %v3940
      %v3942 = vrot.slane %v3941, 1
      %v3943 = vadd.f32 %v3941, %v3942
      %v3944 = vsel %vm565, %v3900, 0.0
      %v3945 = vrot.slane %v3944, 4
      %v3946 = vadd.f32 %v3944, %v3945
      %v3947 = vrot.slane %v3946, 2
      %v3948 = vadd.f32 %v3946, %v3947
      %v3949 = vrot.slane %v3948, 1
      %v3950 = vadd.f32 %v3948, %v3949
      %v3951 = vsel %vm565, %v3901, 0.0
      %v3952 = vrot.slane %v3951, 4
      %v3953 = vadd.f32 %v3951, %v3952
      %v3954 = vrot.slane %v3953, 2
      %v3955 = vadd.f32 %v3953, %v3954
      %v3956 = vrot.slane %v3955, 1
      %v3957 = vadd.f32 %v3955, %v3956
      %v3958 = vrsqrt.pop %v3908
      %v3959 = vmul.f32 %v3908, %v3958
      %vm3960 = vcmp.eq.f32.partialorder %v3908, inf
      %v3961 = vsel %vm3960, %v3908, %v3959
      %vm3962 = vcmp.eq.f32.partialorder %v3908, 0.0
      %v3963 = vand.u32 %v3908, 2147483648
      %v3964 = vsel %vm3962, %v3963, %v3961
      %v3965 = vrsqrt.pop %v3915
      %v3966 = vmul.f32 %v3915, %v3965
      %vm3967 = vcmp.eq.f32.partialorder %v3915, inf
      %v3968 = vsel %vm3967, %v3915, %v3966
      %vm3969 = vcmp.eq.f32.partialorder %v3915, 0.0
      %v3970 = vand.u32 %v3915, 2147483648
      %v3971 = vsel %vm3969, %v3970, %v3968
      %v3972 = vrsqrt.pop %v3922
      %v3973 = vmul.f32 %v3922, %v3972
      %vm3974 = vcmp.eq.f32.partialorder %v3922, inf
      %v3975 = vsel %vm3974, %v3922, %v3973
      %vm3976 = vcmp.eq.f32.partialorder %v3922, 0.0
      %v3977 = vand.u32 %v3922, 2147483648
      %v3978 = vsel %vm3976, %v3977, %v3975
      %v3979 = vrsqrt.pop %v3929
      %v3980 = vmul.f32 %v3929, %v3979
      %vm3981 = vcmp.eq.f32.partialorder %v3929, inf
      %v3982 = vsel %vm3981, %v3929, %v3980
      %vm3983 = vcmp.eq.f32.partialorder %v3929, 0.0
      %v3984 = vand.u32 %v3929, 2147483648
      %v3985 = vsel %vm3983, %v3984, %v3982
      %v3986 = vrsqrt.pop %v3936
      %v3987 = vmul.f32 %v3936, %v3986
      %vm3988 = vcmp.eq.f32.partialorder %v3936, inf
      %v3989 = vsel %vm3988, %v3936, %v3987
      %vm3990 = vcmp.eq.f32.partialorder %v3936, 0.0
      %v3991 = vand.u32 %v3936, 2147483648
      %v3992 = vsel %vm3990, %v3991, %v3989
      %v3993 = vrsqrt.pop %v3943
      %v3994 = vmul.f32 %v3943, %v3993
      %vm3995 = vcmp.eq.f32.partialorder %v3943, inf
      %v3996 = vsel %vm3995, %v3943, %v3994
      %vm3997 = vcmp.eq.f32.partialorder %v3943, 0.0
      %v3998 = vand.u32 %v3943, 2147483648
      %v3999 = vsel %vm3997, %v3998, %v3996
      %v4000 = vrsqrt.pop %v3950
      %v4001 = vmul.f32 %v3950, %v4000
      %vm4002 = vcmp.eq.f32.partialorder %v3950, inf
      %v4003 = vsel %vm4002, %v3950, %v4001
      %vm4004 = vcmp.eq.f32.partialorder %v3950, 0.0
      %v4005 = vand.u32 %v3950, 2147483648
      %v4006 = vsel %vm4004, %v4005, %v4003
      %v4007 = vrsqrt.pop %v3957
      %v4008 = vmul.f32 %v3957, %v4007
      %vm4009 = vcmp.eq.f32.partialorder %v3957, inf
      %v4010 = vsel %vm4009, %v3957, %v4008
      %vm4011 = vcmp.eq.f32.partialorder %v3957, 0.0
      %v4012 = vand.u32 %v3957, 2147483648
      %v4013 = vsel %vm4011, %v4012, %v4010
      %v4014 = vadd.f32 %v3964, 1e-08
      %v4015 = vadd.f32 %v3971, 1e-08
      %v4016 = vadd.f32 %v3978, 1e-08
      %v4017 = vadd.f32 %v3985, 1e-08
      %v4018 = vadd.f32 %v3992, 1e-08
      %v4019 = vadd.f32 %v3999, 1e-08
      %v4020 = vadd.f32 %v4006, 1e-08
      %v4021 = vadd.f32 %v4013, 1e-08
      %v4022 = vrcp.pop %v4014
      %v4023 = vrcp.pop %v4015
      %v4024 = vrcp.pop %v4016
      %v4025 = vrcp.pop %v4017
      %v4026 = vrcp.pop %v4018
      %v4027 = vrcp.pop %v4019
      %v4028 = vrcp.pop %v4020
      %v4029 = vrcp.pop %v4021
      %v4030 = vmul.f32 %v3886, %v4022
      %v4031 = vmul.f32 %v3887, %v4023
      %v4032 = vmul.f32 %v3888, %v4024
      %v4033 = vmul.f32 %v3889, %v4025
      %v4034 = vmul.f32 %v3890, %v4026
      %v4035 = vmul.f32 %v3891, %v4027
      %v4036 = vmul.f32 %v3892, %v4028
      %v4037 = vmul.f32 %v3893, %v4029
      %v4038 = vmul.f32 %v4030, 0.2
      %v4039 = vmul.f32 %v4031, 0.2
      %v4040 = vmul.f32 %v4032, 0.2
      %v4041 = vmul.f32 %v4033, 0.2
      %v4042 = vmul.f32 %v4034, 0.2
      %v4043 = vmul.f32 %v4035, 0.2
      %v4044 = vmul.f32 %v4036, 0.2
      %v4045 = vmul.f32 %v4037, 0.2
      %v4046 = vmax.f32 %v4030, %v4038
      %v4047 = vmax.f32 %v4031, %v4039
      %v4048 = vmax.f32 %v4032, %v4040
      %v4049 = vmax.f32 %v4033, %v4041
      %v4050 = vmax.f32 %v4034, %v4042
      %v4051 = vmax.f32 %v4035, %v4043
      %v4052 = vmax.f32 %v4036, %v4044
      %v4053 = vmax.f32 %v4037, %v4045
      %4054 = vrot.lane.b32.xlu0 %v4046, 33
      %v4055 = vpop.permute.xlu0 %4054
      %4056 = vrot.lane.b32.xlu0 %v4047, 33
      %v4057 = vpop.permute.xlu0 %4056
      %4058 = vrot.lane.b32.xlu0 %v4048, 33
      %v4059 = vpop.permute.xlu0 %4058
      %4060 = vrot.lane.b32.xlu0 %v4049, 33
      %v4061 = vpop.permute.xlu0 %4060
      %4062 = vrot.lane.b32.xlu0 %v4050, 33
      %v4063 = vpop.permute.xlu0 %4062
      %4064 = vrot.lane.b32.xlu0 %v4051, 33
      %v4065 = vpop.permute.xlu0 %4064
      %4066 = vrot.lane.b32.xlu0 %v4052, 33
      %v4067 = vpop.permute.xlu0 %4066
      %4068 = vrot.lane.b32.xlu0 %v4053, 33
      %v4069 = vpop.permute.xlu0 %4068
      %v4070 = vsel %vm423, %v4067, %v4069
      %v4071 = vsel %vm423, %v4065, %v4067
      %v4072 = vsel %vm423, %v4063, %v4065
      %v4073 = vsel %vm423, %v4061, %v4063
      %v4074 = vsel %vm423, %v4059, %v4061
      %v4075 = vsel %vm423, %v4057, %v4059
      %v4076 = vsel %vm423, %v4055, %v4057
      %v4077 = vsel %vm423, %v4069, %v4055
      %v4078 = vmul.f32 %v4077, %v437
      %v4079 = vmul.f32 %v4076, %v441
      %v4080 = vmul.f32 %v4075, %v445
      %v4081 = vmul.f32 %v4074, %v449
      %v4082 = vmul.f32 %v4073, %v453
      %v4083 = vmul.f32 %v4072, %v457
      %v4084 = vmul.f32 %v4071, %v461
      %v4085 = vmul.f32 %v4070, %v465
      %v4086 = vld [vmem:[%s5] sm:$0xff]
      %4087 = vrot.lane.b32.xlu0 %v4046, 32
      %v4088 = vpop.permute.xlu0 %4087
      %4089 = vrot.lane.b32.xlu0 %v4047, 32
      %v4090 = vpop.permute.xlu0 %4089
      %4091 = vrot.lane.b32.xlu0 %v4048, 32
      %v4092 = vpop.permute.xlu0 %4091
      %4093 = vrot.lane.b32.xlu0 %v4049, 32
      %v4094 = vpop.permute.xlu0 %4093
      %4095 = vrot.lane.b32.xlu0 %v4050, 32
      %v4096 = vpop.permute.xlu0 %4095
      %4097 = vrot.lane.b32.xlu0 %v4051, 32
      %v4098 = vpop.permute.xlu0 %4097
      %4099 = vrot.lane.b32.xlu0 %v4052, 32
      %v4100 = vpop.permute.xlu0 %4099
      %4101 = vrot.lane.b32.xlu0 %v4053, 32
      %v4102 = vpop.permute.xlu0 %4101
      %v4103 = vsel %vm499, %v4100, %v4102
      %v4104 = vsel %vm499, %v4098, %v4100
      %v4105 = vsel %vm499, %v4096, %v4098
      %v4106 = vsel %vm499, %v4094, %v4096
      %v4107 = vsel %vm499, %v4092, %v4094
      %v4108 = vsel %vm499, %v4090, %v4092
      %v4109 = vsel %vm499, %v4088, %v4090
      %v4110 = vsel %vm499, %v4102, %v4088
      %v4111 = vmul.f32 %v4110, %v514
      %v4112 = vmul.f32 %v4109, %v518
      %v4113 = vmul.f32 %v4108, %v522
      %v4114 = vmul.f32 %v4107, %v526
      %v4115 = vmul.f32 %v4106, %v530
      %v4116 = vmul.f32 %v4105, %v534
      %v4117 = vmul.f32 %v4104, %v538
      %v4118 = vmul.f32 %v4103, %v542
      %s4119 = scalar_lea.vmem %s5, 8
      %v4120 = vld [vmem:[%s4119] sm:$0xff]
      %v4122 = vsel %vm561, %v4120, 0
      %v4125 = vsel %vm565, %v4111, 0
      %v4128 = vsel %vm565, %v4112, 0
      %v4131 = vsel %vm565, %v4113, 0
      %v4134 = vsel %vm565, %v4114, 0
      %v4137 = vsel %vm565, %v4115, 0
      %v4140 = vsel %vm565, %v4116, 0
      %v4143 = vsel %vm565, %v4117, 0
      %v4146 = vsel %vm565, %v4118, 0
      %4148 = vmatprep.subr.mxu0 %v4128
      %4149 = vmatpush1.msra.mxu0 %v4125
      %4150 = vmatprep.subr.mxu0 0.0
      %4151 = vmatpush1.msra.mxu0 0.0
      %4152 = vmatprep.subr.mxu0 0.0
      %4153 = vmatpush1.msra.mxu0 0.0
      %4154 = vmatprep.subr.mxu0 0.0
      %4155 = vmatpush1.msra.mxu0 0.0
      %4156 = vmatprep.subr.mxu0 0.0
      %4157 = vmatpush1.msra.mxu0 0.0
      %4158 = vmatprep.subr.mxu0 0.0
      %4159 = vmatpush1.msra.mxu0 0.0
      %4160 = vmatprep.subr.mxu0 0.0
      %4161 = vmatpush1.msra.mxu0 0.0
      %4162 = vmatprep.subr.mxu0 0.0
      %4163 = vmatpush1.msra.mxu0 0.0
      %4164 = vmatprep.subr.mxu0 0.0
      %4165 = vmatpush1.msra.mxu0 0.0
      %4166 = vmatprep.subr.mxu0 0.0
      %4167 = vmatpush1.msra.mxu0 0.0
      %4168 = vmatprep.subr.mxu0 0.0
      %4169 = vmatpush1.msra.mxu0 0.0
      %4170 = vmatprep.subr.mxu0 0.0
      %4171 = vmatpush1.msra.mxu0 0.0
      %4172 = vmatprep.subr.mxu0 0.0
      %4173 = vmatpush1.msra.mxu0 0.0
      %4174 = vmatprep.subr.mxu0 0.0
      %4175 = vmatpush1.msra.mxu0 0.0
      %4176 = vmatprep.subr.mxu0 0.0
      %4177 = vmatpush1.msra.mxu0 0.0
      %4178 = vmatprep.subr.mxu0 0.0
      %4179 = vmatpush1.msra.mxu0 0.0
      %4180 = vmatprep.subr.mxu0 0.0
      %4181 = vmatpush1.msra.mxu0 0.0
      %4182 = vmatprep.subr.mxu0 0.0
      %4183 = vmatpush1.msra.mxu0 0.0
      %4184 = vmatprep.subr.mxu0 0.0
      %4185 = vmatpush1.msra.mxu0 0.0
      %4186 = vmatprep.subr.mxu0 0.0
      %4187 = vmatpush1.msra.mxu0 0.0
      %4188 = vmatprep.subr.mxu0 0.0
      %4189 = vmatpush1.msra.mxu0 0.0
      %4190 = vmatprep.subr.mxu0 0.0
      %4191 = vmatpush1.msra.mxu0 0.0
      %4192 = vmatprep.subr.mxu0 0.0
      %4193 = vmatpush1.msra.mxu0 0.0
      %4194 = vmatprep.subr.mxu0 0.0
      %4195 = vmatpush1.msra.mxu0 0.0
      %4196 = vmatprep.subr.mxu0 0.0
      %4197 = vmatpush1.msra.mxu0 0.0
      %4198 = vmatprep.subr.mxu0 0.0
      %4199 = vmatpush1.msra.mxu0 0.0
      %4200 = vmatprep.subr.mxu0 0.0
      %4201 = vmatpush1.msra.mxu0 0.0
      %4202 = vmatprep.subr.mxu0 0.0
      %4203 = vmatpush1.msra.mxu0 0.0
      %4204 = vmatprep.subr.mxu0 0.0
      %4205 = vmatpush1.msra.mxu0 0.0
      %4206 = vmatprep.subr.mxu0 0.0
      %4207 = vmatpush1.msra.mxu0 0.0
      %4208 = vmatprep.subr.mxu0 0.0
      %4209 = vmatpush1.msra.mxu0 0.0
      %4210 = vmatprep.subr.mxu0 0.0
      %4211 = vmatpush1.msra.mxu0 0.0
      %4212 = vmatprep.mubr.f32.mxu0 0.0
      %4213 = vmatmul.mubr.f32.gmra.mrb[0].mxu0 %v4122
      %v4214 = vpop.f32.mrb[0].mxu0
      %v4215 = vadd.f32 0.0, %v4214
      %v4216 = vpop.f32.mrb[0].mxu0
      %v4217 = vadd.f32 0.0, %v4216
      %4218 = vdwg.mxu0
      %4219 = vmatprep.subr.mxu0 %v4134
      %4220 = vmatpush1.msra.mxu0 %v4131
      %4221 = vmatprep.subr.mxu0 0.0
      %4222 = vmatpush1.msra.mxu0 0.0
      %4223 = vmatprep.subr.mxu0 0.0
      %4224 = vmatpush1.msra.mxu0 0.0
      %4225 = vmatprep.subr.mxu0 0.0
      %4226 = vmatpush1.msra.mxu0 0.0
      %4227 = vmatprep.subr.mxu0 0.0
      %4228 = vmatpush1.msra.mxu0 0.0
      %4229 = vmatprep.subr.mxu0 0.0
      %4230 = vmatpush1.msra.mxu0 0.0
      %4231 = vmatprep.subr.mxu0 0.0
      %4232 = vmatpush1.msra.mxu0 0.0
      %4233 = vmatprep.subr.mxu0 0.0
      %4234 = vmatpush1.msra.mxu0 0.0
      %4235 = vmatprep.subr.mxu0 0.0
      %4236 = vmatpush1.msra.mxu0 0.0
      %4237 = vmatprep.subr.mxu0 0.0
      %4238 = vmatpush1.msra.mxu0 0.0
      %4239 = vmatprep.subr.mxu0 0.0
      %4240 = vmatpush1.msra.mxu0 0.0
      %4241 = vmatprep.subr.mxu0 0.0
      %4242 = vmatpush1.msra.mxu0 0.0
      %4243 = vmatprep.subr.mxu0 0.0
      %4244 = vmatpush1.msra.mxu0 0.0
      %4245 = vmatprep.subr.mxu0 0.0
      %4246 = vmatpush1.msra.mxu0 0.0
      %4247 = vmatprep.subr.mxu0 0.0
      %4248 = vmatpush1.msra.mxu0 0.0
      %4249 = vmatprep.subr.mxu0 0.0
      %4250 = vmatpush1.msra.mxu0 0.0
      %4251 = vmatprep.subr.mxu0 0.0
      %4252 = vmatpush1.msra.mxu0 0.0
      %4253 = vmatprep.subr.mxu0 0.0
      %4254 = vmatpush1.msra.mxu0 0.0
      %4255 = vmatprep.subr.mxu0 0.0
      %4256 = vmatpush1.msra.mxu0 0.0
      %4257 = vmatprep.subr.mxu0 0.0
      %4258 = vmatpush1.msra.mxu0 0.0
      %4259 = vmatprep.subr.mxu0 0.0
      %4260 = vmatpush1.msra.mxu0 0.0
      %4261 = vmatprep.subr.mxu0 0.0
      %4262 = vmatpush1.msra.mxu0 0.0
      %4263 = vmatprep.subr.mxu0 0.0
      %4264 = vmatpush1.msra.mxu0 0.0
      %4265 = vmatprep.subr.mxu0 0.0
      %4266 = vmatpush1.msra.mxu0 0.0
      %4267 = vmatprep.subr.mxu0 0.0
      %4268 = vmatpush1.msra.mxu0 0.0
      %4269 = vmatprep.subr.mxu0 0.0
      %4270 = vmatpush1.msra.mxu0 0.0
      %4271 = vmatprep.subr.mxu0 0.0
      %4272 = vmatpush1.msra.mxu0 0.0
      %4273 = vmatprep.subr.mxu0 0.0
      %4274 = vmatpush1.msra.mxu0 0.0
      %4275 = vmatprep.subr.mxu0 0.0
      %4276 = vmatpush1.msra.mxu0 0.0
      %4277 = vmatprep.subr.mxu0 0.0
      %4278 = vmatpush1.msra.mxu0 0.0
      %4279 = vmatprep.subr.mxu0 0.0
      %4280 = vmatpush1.msra.mxu0 0.0
      %4281 = vmatprep.subr.mxu0 0.0
      %4282 = vmatpush1.msra.mxu0 0.0
      %4283 = vmatprep.mubr.f32.mxu0 0.0
      %4284 = vmatmul.mubr.f32.gmra.mrb[0].mxu0 %v4122
      %v4285 = vpop.f32.mrb[0].mxu0
      %v4286 = vadd.f32 0.0, %v4285
      %v4287 = vpop.f32.mrb[0].mxu0
      %v4288 = vadd.f32 0.0, %v4287
      %4289 = vdwg.mxu0
      %4290 = vmatprep.subr.mxu0 %v4140
      %4291 = vmatpush1.msra.mxu0 %v4137
      %4292 = vmatprep.subr.mxu0 0.0
      %4293 = vmatpush1.msra.mxu0 0.0
      %4294 = vmatprep.subr.mxu0 0.0
      %4295 = vmatpush1.msra.mxu0 0.0
      %4296 = vmatprep.subr.mxu0 0.0
      %4297 = vmatpush1.msra.mxu0 0.0
      %4298 = vmatprep.subr.mxu0 0.0
      %4299 = vmatpush1.msra.mxu0 0.0
      %4300 = vmatprep.subr.mxu0 0.0
      %4301 = vmatpush1.msra.mxu0 0.0
      %4302 = vmatprep.subr.mxu0 0.0
      %4303 = vmatpush1.msra.mxu0 0.0
      %4304 = vmatprep.subr.mxu0 0.0
      %4305 = vmatpush1.msra.mxu0 0.0
      %4306 = vmatprep.subr.mxu0 0.0
      %4307 = vmatpush1.msra.mxu0 0.0
      %4308 = vmatprep.subr.mxu0 0.0
      %4309 = vmatpush1.msra.mxu0 0.0
      %4310 = vmatprep.subr.mxu0 0.0
      %4311 = vmatpush1.msra.mxu0 0.0
      %4312 = vmatprep.subr.mxu0 0.0
      %4313 = vmatpush1.msra.mxu0 0.0
      %4314 = vmatprep.subr.mxu0 0.0
      %4315 = vmatpush1.msra.mxu0 0.0
      %4316 = vmatprep.subr.mxu0 0.0
      %4317 = vmatpush1.msra.mxu0 0.0
      %4318 = vmatprep.subr.mxu0 0.0
      %4319 = vmatpush1.msra.mxu0 0.0
      %4320 = vmatprep.subr.mxu0 0.0
      %4321 = vmatpush1.msra.mxu0 0.0
      %4322 = vmatprep.subr.mxu0 0.0
      %4323 = vmatpush1.msra.mxu0 0.0
      %4324 = vmatprep.subr.mxu0 0.0
      %4325 = vmatpush1.msra.mxu0 0.0
      %4326 = vmatprep.subr.mxu0 0.0
      %4327 = vmatpush1.msra.mxu0 0.0
      %4328 = vmatprep.subr.mxu0 0.0
      %4329 = vmatpush1.msra.mxu0 0.0
      %4330 = vmatprep.subr.mxu0 0.0
      %4331 = vmatpush1.msra.mxu0 0.0
      %4332 = vmatprep.subr.mxu0 0.0
      %4333 = vmatpush1.msra.mxu0 0.0
      %4334 = vmatprep.subr.mxu0 0.0
      %4335 = vmatpush1.msra.mxu0 0.0
      %4336 = vmatprep.subr.mxu0 0.0
      %4337 = vmatpush1.msra.mxu0 0.0
      %4338 = vmatprep.subr.mxu0 0.0
      %4339 = vmatpush1.msra.mxu0 0.0
      %4340 = vmatprep.subr.mxu0 0.0
      %4341 = vmatpush1.msra.mxu0 0.0
      %4342 = vmatprep.subr.mxu0 0.0
      %4343 = vmatpush1.msra.mxu0 0.0
      %4344 = vmatprep.subr.mxu0 0.0
      %4345 = vmatpush1.msra.mxu0 0.0
      %4346 = vmatprep.subr.mxu0 0.0
      %4347 = vmatpush1.msra.mxu0 0.0
      %4348 = vmatprep.subr.mxu0 0.0
      %4349 = vmatpush1.msra.mxu0 0.0
      %4350 = vmatprep.subr.mxu0 0.0
      %4351 = vmatpush1.msra.mxu0 0.0
      %4352 = vmatprep.subr.mxu0 0.0
      %4353 = vmatpush1.msra.mxu0 0.0
      %4354 = vmatprep.mubr.f32.mxu0 0.0
      %4355 = vmatmul.mubr.f32.gmra.mrb[0].mxu0 %v4122
      %v4356 = vpop.f32.mrb[0].mxu0
      %v4357 = vadd.f32 0.0, %v4356
      %v4358 = vpop.f32.mrb[0].mxu0
      %v4359 = vadd.f32 0.0, %v4358
      %4360 = vdwg.mxu0
      %4361 = vmatprep.subr.mxu0 %v4146
      %4362 = vmatpush1.msra.mxu0 %v4143
      %4363 = vmatprep.subr.mxu0 0.0
      %4364 = vmatpush1.msra.mxu0 0.0
      %4365 = vmatprep.subr.mxu0 0.0
      %4366 = vmatpush1.msra.mxu0 0.0
      %4367 = vmatprep.subr.mxu0 0.0
      %4368 = vmatpush1.msra.mxu0 0.0
      %4369 = vmatprep.subr.mxu0 0.0
      %4370 = vmatpush1.msra.mxu0 0.0
      %4371 = vmatprep.subr.mxu0 0.0
      %4372 = vmatpush1.msra.mxu0 0.0
      %4373 = vmatprep.subr.mxu0 0.0
      %4374 = vmatpush1.msra.mxu0 0.0
      %4375 = vmatprep.subr.mxu0 0.0
      %4376 = vmatpush1.msra.mxu0 0.0
      %4377 = vmatprep.subr.mxu0 0.0
      %4378 = vmatpush1.msra.mxu0 0.0
      %4379 = vmatprep.subr.mxu0 0.0
      %4380 = vmatpush1.msra.mxu0 0.0
      %4381 = vmatprep.subr.mxu0 0.0
      %4382 = vmatpush1.msra.mxu0 0.0
      %4383 = vmatprep.subr.mxu0 0.0
      %4384 = vmatpush1.msra.mxu0 0.0
      %4385 = vmatprep.subr.mxu0 0.0
      %4386 = vmatpush1.msra.mxu0 0.0
      %4387 = vmatprep.subr.mxu0 0.0
      %4388 = vmatpush1.msra.mxu0 0.0
      %4389 = vmatprep.subr.mxu0 0.0
      %4390 = vmatpush1.msra.mxu0 0.0
      %4391 = vmatprep.subr.mxu0 0.0
      %4392 = vmatpush1.msra.mxu0 0.0
      %4393 = vmatprep.subr.mxu0 0.0
      %4394 = vmatpush1.msra.mxu0 0.0
      %4395 = vmatprep.subr.mxu0 0.0
      %4396 = vmatpush1.msra.mxu0 0.0
      %4397 = vmatprep.subr.mxu0 0.0
      %4398 = vmatpush1.msra.mxu0 0.0
      %4399 = vmatprep.subr.mxu0 0.0
      %4400 = vmatpush1.msra.mxu0 0.0
      %4401 = vmatprep.subr.mxu0 0.0
      %4402 = vmatpush1.msra.mxu0 0.0
      %4403 = vmatprep.subr.mxu0 0.0
      %4404 = vmatpush1.msra.mxu0 0.0
      %4405 = vmatprep.subr.mxu0 0.0
      %4406 = vmatpush1.msra.mxu0 0.0
      %4407 = vmatprep.subr.mxu0 0.0
      %4408 = vmatpush1.msra.mxu0 0.0
      %4409 = vmatprep.subr.mxu0 0.0
      %4410 = vmatpush1.msra.mxu0 0.0
      %4411 = vmatprep.subr.mxu0 0.0
      %4412 = vmatpush1.msra.mxu0 0.0
      %4413 = vmatprep.subr.mxu0 0.0
      %4414 = vmatpush1.msra.mxu0 0.0
      %4415 = vmatprep.subr.mxu0 0.0
      %4416 = vmatpush1.msra.mxu0 0.0
      %4417 = vmatprep.subr.mxu0 0.0
      %4418 = vmatpush1.msra.mxu0 0.0
      %4419 = vmatprep.subr.mxu0 0.0
      %4420 = vmatpush1.msra.mxu0 0.0
      %4421 = vmatprep.subr.mxu0 0.0
      %4422 = vmatpush1.msra.mxu0 0.0
      %4423 = vmatprep.subr.mxu0 0.0
      %4424 = vmatpush1.msra.mxu0 0.0
      %4425 = vmatprep.mubr.f32.mxu0 0.0
      %4426 = vmatmul.mubr.f32.gmra.mrb[0].mxu0 %v4122
      %v4427 = vpop.f32.mrb[0].mxu0
      %v4428 = vadd.f32 0.0, %v4427
      %v4429 = vpop.f32.mrb[0].mxu0
      %v4430 = vadd.f32 0.0, %v4429
      %4431 = vdwg.mxu0
      %v4433 = vsel %vm561, %v4086, 0
      %v4436 = vsel %vm565, %v4078, 0
      %v4439 = vsel %vm565, %v4079, 0
      %v4442 = vsel %vm565, %v4080, 0
      %v4445 = vsel %vm565, %v4081, 0
      %v4448 = vsel %vm565, %v4082, 0
      %v4451 = vsel %vm565, %v4083, 0
      %v4454 = vsel %vm565, %v4084, 0
      %v4457 = vsel %vm565, %v4085, 0
      %4459 = vmatprep.subr.mxu0 %v4439
      %4460 = vmatpush1.msra.mxu0 %v4436
      %4461 = vmatprep.subr.mxu0 0.0
      %4462 = vmatpush1.msra.mxu0 0.0
      %4463 = vmatprep.subr.mxu0 0.0
      %4464 = vmatpush1.msra.mxu0 0.0
      %4465 = vmatprep.subr.mxu0 0.0
      %4466 = vmatpush1.msra.mxu0 0.0
      %4467 = vmatprep.subr.mxu0 0.0
      %4468 = vmatpush1.msra.mxu0 0.0
      %4469 = vmatprep.subr.mxu0 0.0
      %4470 = vmatpush1.msra.mxu0 0.0
      %4471 = vmatprep.subr.mxu0 0.0
      %4472 = vmatpush1.msra.mxu0 0.0
      %4473 = vmatprep.subr.mxu0 0.0
      %4474 = vmatpush1.msra.mxu0 0.0
      %4475 = vmatprep.subr.mxu0 0.0
      %4476 = vmatpush1.msra.mxu0 0.0
      %4477 = vmatprep.subr.mxu0 0.0
      %4478 = vmatpush1.msra.mxu0 0.0
      %4479 = vmatprep.subr.mxu0 0.0
      %4480 = vmatpush1.msra.mxu0 0.0
      %4481 = vmatprep.subr.mxu0 0.0
      %4482 = vmatpush1.msra.mxu0 0.0
      %4483 = vmatprep.subr.mxu0 0.0
      %4484 = vmatpush1.msra.mxu0 0.0
      %4485 = vmatprep.subr.mxu0 0.0
      %4486 = vmatpush1.msra.mxu0 0.0
      %4487 = vmatprep.subr.mxu0 0.0
      %4488 = vmatpush1.msra.mxu0 0.0
      %4489 = vmatprep.subr.mxu0 0.0
      %4490 = vmatpush1.msra.mxu0 0.0
      %4491 = vmatprep.subr.mxu0 0.0
      %4492 = vmatpush1.msra.mxu0 0.0
      %4493 = vmatprep.subr.mxu0 0.0
      %4494 = vmatpush1.msra.mxu0 0.0
      %4495 = vmatprep.subr.mxu0 0.0
      %4496 = vmatpush1.msra.mxu0 0.0
      %4497 = vmatprep.subr.mxu0 0.0
      %4498 = vmatpush1.msra.mxu0 0.0
      %4499 = vmatprep.subr.mxu0 0.0
      %4500 = vmatpush1.msra.mxu0 0.0
      %4501 = vmatprep.subr.mxu0 0.0
      %4502 = vmatpush1.msra.mxu0 0.0
      %4503 = vmatprep.subr.mxu0 0.0
      %4504 = vmatpush1.msra.mxu0 0.0
      %4505 = vmatprep.subr.mxu0 0.0
      %4506 = vmatpush1.msra.mxu0 0.0
      %4507 = vmatprep.subr.mxu0 0.0
      %4508 = vmatpush1.msra.mxu0 0.0
      %4509 = vmatprep.subr.mxu0 0.0
      %4510 = vmatpush1.msra.mxu0 0.0
      %4511 = vmatprep.subr.mxu0 0.0
      %4512 = vmatpush1.msra.mxu0 0.0
      %4513 = vmatprep.subr.mxu0 0.0
      %4514 = vmatpush1.msra.mxu0 0.0
      %4515 = vmatprep.subr.mxu0 0.0
      %4516 = vmatpush1.msra.mxu0 0.0
      %4517 = vmatprep.subr.mxu0 0.0
      %4518 = vmatpush1.msra.mxu0 0.0
      %4519 = vmatprep.subr.mxu0 0.0
      %4520 = vmatpush1.msra.mxu0 0.0
      %4521 = vmatprep.subr.mxu0 0.0
      %4522 = vmatpush1.msra.mxu0 0.0
      %4523 = vmatprep.mubr.f32.mxu0 0.0
      %4524 = vmatmul.mubr.f32.gmra.mrb[0].mxu0 %v4433
      %v4525 = vpop.f32.mrb[0].mxu0
      %v4526 = vadd.f32 %v4215, %v4525
      %v4527 = vpop.f32.mrb[0].mxu0
      %v4528 = vadd.f32 %v4217, %v4527
      %4529 = vdwg.mxu0
      %4530 = vmatprep.subr.mxu0 %v4445
      %4531 = vmatpush1.msra.mxu0 %v4442
      %4532 = vmatprep.subr.mxu0 0.0
      %4533 = vmatpush1.msra.mxu0 0.0
      %4534 = vmatprep.subr.mxu0 0.0
      %4535 = vmatpush1.msra.mxu0 0.0
      %4536 = vmatprep.subr.mxu0 0.0
      %4537 = vmatpush1.msra.mxu0 0.0
      %4538 = vmatprep.subr.mxu0 0.0
      %4539 = vmatpush1.msra.mxu0 0.0
      %4540 = vmatprep.subr.mxu0 0.0
      %4541 = vmatpush1.msra.mxu0 0.0
      %4542 = vmatprep.subr.mxu0 0.0
      %4543 = vmatpush1.msra.mxu0 0.0
      %4544 = vmatprep.subr.mxu0 0.0
      %4545 = vmatpush1.msra.mxu0 0.0
      %4546 = vmatprep.subr.mxu0 0.0
      %4547 = vmatpush1.msra.mxu0 0.0
      %4548 = vmatprep.subr.mxu0 0.0
      %4549 = vmatpush1.msra.mxu0 0.0
      %4550 = vmatprep.subr.mxu0 0.0
      %4551 = vmatpush1.msra.mxu0 0.0
      %4552 = vmatprep.subr.mxu0 0.0
      %4553 = vmatpush1.msra.mxu0 0.0
      %4554 = vmatprep.subr.mxu0 0.0
      %4555 = vmatpush1.msra.mxu0 0.0
      %4556 = vmatprep.subr.mxu0 0.0
      %4557 = vmatpush1.msra.mxu0 0.0
      %4558 = vmatprep.subr.mxu0 0.0
      %4559 = vmatpush1.msra.mxu0 0.0
      %4560 = vmatprep.subr.mxu0 0.0
      %4561 = vmatpush1.msra.mxu0 0.0
      %4562 = vmatprep.subr.mxu0 0.0
      %4563 = vmatpush1.msra.mxu0 0.0
      %4564 = vmatprep.subr.mxu0 0.0
      %4565 = vmatpush1.msra.mxu0 0.0
      %4566 = vmatprep.subr.mxu0 0.0
      %4567 = vmatpush1.msra.mxu0 0.0
      %4568 = vmatprep.subr.mxu0 0.0
      %4569 = vmatpush1.msra.mxu0 0.0
      %4570 = vmatprep.subr.mxu0 0.0
      %4571 = vmatpush1.msra.mxu0 0.0
      %4572 = vmatprep.subr.mxu0 0.0
      %4573 = vmatpush1.msra.mxu0 0.0
      %4574 = vmatprep.subr.mxu0 0.0
      %4575 = vmatpush1.msra.mxu0 0.0
      %4576 = vmatprep.subr.mxu0 0.0
      %4577 = vmatpush1.msra.mxu0 0.0
      %4578 = vmatprep.subr.mxu0 0.0
      %4579 = vmatpush1.msra.mxu0 0.0
      %4580 = vmatprep.subr.mxu0 0.0
      %4581 = vmatpush1.msra.mxu0 0.0
      %4582 = vmatprep.subr.mxu0 0.0
      %4583 = vmatpush1.msra.mxu0 0.0
      %4584 = vmatprep.subr.mxu0 0.0
      %4585 = vmatpush1.msra.mxu0 0.0
      %4586 = vmatprep.subr.mxu0 0.0
      %4587 = vmatpush1.msra.mxu0 0.0
      %4588 = vmatprep.subr.mxu0 0.0
      %4589 = vmatpush1.msra.mxu0 0.0
      %4590 = vmatprep.subr.mxu0 0.0
      %4591 = vmatpush1.msra.mxu0 0.0
      %4592 = vmatprep.subr.mxu0 0.0
      %4593 = vmatpush1.msra.mxu0 0.0
      %4594 = vmatprep.mubr.f32.mxu0 0.0
      %4595 = vmatmul.mubr.f32.gmra.mrb[0].mxu0 %v4433
      %v4596 = vpop.f32.mrb[0].mxu0
      %v4597 = vadd.f32 %v4286, %v4596
      %v4598 = vpop.f32.mrb[0].mxu0
      %v4599 = vadd.f32 %v4288, %v4598
      %4600 = vdwg.mxu0
      %4601 = vmatprep.subr.mxu0 %v4451
      %4602 = vmatpush1.msra.mxu0 %v4448
      %4603 = vmatprep.subr.mxu0 0.0
      %4604 = vmatpush1.msra.mxu0 0.0
      %4605 = vmatprep.subr.mxu0 0.0
      %4606 = vmatpush1.msra.mxu0 0.0
      %4607 = vmatprep.subr.mxu0 0.0
      %4608 = vmatpush1.msra.mxu0 0.0
      %4609 = vmatprep.subr.mxu0 0.0
      %4610 = vmatpush1.msra.mxu0 0.0
      %4611 = vmatprep.subr.mxu0 0.0
      %4612 = vmatpush1.msra.mxu0 0.0
      %4613 = vmatprep.subr.mxu0 0.0
      %4614 = vmatpush1.msra.mxu0 0.0
      %4615 = vmatprep.subr.mxu0 0.0
      %4616 = vmatpush1.msra.mxu0 0.0
      %4617 = vmatprep.subr.mxu0 0.0
      %4618 = vmatpush1.msra.mxu0 0.0
      %4619 = vmatprep.subr.mxu0 0.0
      %4620 = vmatpush1.msra.mxu0 0.0
      %4621 = vmatprep.subr.mxu0 0.0
      %4622 = vmatpush1.msra.mxu0 0.0
      %4623 = vmatprep.subr.mxu0 0.0
      %4624 = vmatpush1.msra.mxu0 0.0
      %4625 = vmatprep.subr.mxu0 0.0
      %4626 = vmatpush1.msra.mxu0 0.0
      %4627 = vmatprep.subr.mxu0 0.0
      %4628 = vmatpush1.msra.mxu0 0.0
      %4629 = vmatprep.subr.mxu0 0.0
      %4630 = vmatpush1.msra.mxu0 0.0
      %4631 = vmatprep.subr.mxu0 0.0
      %4632 = vmatpush1.msra.mxu0 0.0
      %4633 = vmatprep.subr.mxu0 0.0
      %4634 = vmatpush1.msra.mxu0 0.0
      %4635 = vmatprep.subr.mxu0 0.0
      %4636 = vmatpush1.msra.mxu0 0.0
      %4637 = vmatprep.subr.mxu0 0.0
      %4638 = vmatpush1.msra.mxu0 0.0
      %4639 = vmatprep.subr.mxu0 0.0
      %4640 = vmatpush1.msra.mxu0 0.0
      %4641 = vmatprep.subr.mxu0 0.0
      %4642 = vmatpush1.msra.mxu0 0.0
      %4643 = vmatprep.subr.mxu0 0.0
      %4644 = vmatpush1.msra.mxu0 0.0
      %4645 = vmatprep.subr.mxu0 0.0
      %4646 = vmatpush1.msra.mxu0 0.0
      %4647 = vmatprep.subr.mxu0 0.0
      %4648 = vmatpush1.msra.mxu0 0.0
      %4649 = vmatprep.subr.mxu0 0.0
      %4650 = vmatpush1.msra.mxu0 0.0
      %4651 = vmatprep.subr.mxu0 0.0
      %4652 = vmatpush1.msra.mxu0 0.0
      %4653 = vmatprep.subr.mxu0 0.0
      %4654 = vmatpush1.msra.mxu0 0.0
      %4655 = vmatprep.subr.mxu0 0.0
      %4656 = vmatpush1.msra.mxu0 0.0
      %4657 = vmatprep.subr.mxu0 0.0
      %4658 = vmatpush1.msra.mxu0 0.0
      %4659 = vmatprep.subr.mxu0 0.0
      %4660 = vmatpush1.msra.mxu0 0.0
      %4661 = vmatprep.subr.mxu0 0.0
      %4662 = vmatpush1.msra.mxu0 0.0
      %4663 = vmatprep.subr.mxu0 0.0
      %4664 = vmatpush1.msra.mxu0 0.0
      %4665 = vmatprep.mubr.f32.mxu0 0.0
      %4666 = vmatmul.mubr.f32.gmra.mrb[0].mxu0 %v4433
      %v4667 = vpop.f32.mrb[0].mxu0
      %v4668 = vadd.f32 %v4357, %v4667
      %v4669 = vpop.f32.mrb[0].mxu0
      %v4670 = vadd.f32 %v4359, %v4669
      %4671 = vdwg.mxu0
      %4672 = vmatprep.subr.mxu0 %v4457
      %4673 = vmatpush1.msra.mxu0 %v4454
      %4674 = vmatprep.subr.mxu0 0.0
      %4675 = vmatpush1.msra.mxu0 0.0
      %4676 = vmatprep.subr.mxu0 0.0
      %4677 = vmatpush1.msra.mxu0 0.0
      %4678 = vmatprep.subr.mxu0 0.0
      %4679 = vmatpush1.msra.mxu0 0.0
      %4680 = vmatprep.subr.mxu0 0.0
      %4681 = vmatpush1.msra.mxu0 0.0
      %4682 = vmatprep.subr.mxu0 0.0
      %4683 = vmatpush1.msra.mxu0 0.0
      %4684 = vmatprep.subr.mxu0 0.0
      %4685 = vmatpush1.msra.mxu0 0.0
      %4686 = vmatprep.subr.mxu0 0.0
      %4687 = vmatpush1.msra.mxu0 0.0
      %4688 = vmatprep.subr.mxu0 0.0
      %4689 = vmatpush1.msra.mxu0 0.0
      %4690 = vmatprep.subr.mxu0 0.0
      %4691 = vmatpush1.msra.mxu0 0.0
      %4692 = vmatprep.subr.mxu0 0.0
      %4693 = vmatpush1.msra.mxu0 0.0
      %4694 = vmatprep.subr.mxu0 0.0
      %4695 = vmatpush1.msra.mxu0 0.0
      %4696 = vmatprep.subr.mxu0 0.0
      %4697 = vmatpush1.msra.mxu0 0.0
      %4698 = vmatprep.subr.mxu0 0.0
      %4699 = vmatpush1.msra.mxu0 0.0
      %4700 = vmatprep.subr.mxu0 0.0
      %4701 = vmatpush1.msra.mxu0 0.0
      %4702 = vmatprep.subr.mxu0 0.0
      %4703 = vmatpush1.msra.mxu0 0.0
      %4704 = vmatprep.subr.mxu0 0.0
      %4705 = vmatpush1.msra.mxu0 0.0
      %4706 = vmatprep.subr.mxu0 0.0
      %4707 = vmatpush1.msra.mxu0 0.0
      %4708 = vmatprep.subr.mxu0 0.0
      %4709 = vmatpush1.msra.mxu0 0.0
      %4710 = vmatprep.subr.mxu0 0.0
      %4711 = vmatpush1.msra.mxu0 0.0
      %4712 = vmatprep.subr.mxu0 0.0
      %4713 = vmatpush1.msra.mxu0 0.0
      %4714 = vmatprep.subr.mxu0 0.0
      %4715 = vmatpush1.msra.mxu0 0.0
      %4716 = vmatprep.subr.mxu0 0.0
      %4717 = vmatpush1.msra.mxu0 0.0
      %4718 = vmatprep.subr.mxu0 0.0
      %4719 = vmatpush1.msra.mxu0 0.0
      %4720 = vmatprep.subr.mxu0 0.0
      %4721 = vmatpush1.msra.mxu0 0.0
      %4722 = vmatprep.subr.mxu0 0.0
      %4723 = vmatpush1.msra.mxu0 0.0
      %4724 = vmatprep.subr.mxu0 0.0
      %4725 = vmatpush1.msra.mxu0 0.0
      %4726 = vmatprep.subr.mxu0 0.0
      %4727 = vmatpush1.msra.mxu0 0.0
      %4728 = vmatprep.subr.mxu0 0.0
      %4729 = vmatpush1.msra.mxu0 0.0
      %4730 = vmatprep.subr.mxu0 0.0
      %4731 = vmatpush1.msra.mxu0 0.0
      %4732 = vmatprep.subr.mxu0 0.0
      %4733 = vmatpush1.msra.mxu0 0.0
      %4734 = vmatprep.subr.mxu0 0.0
      %4735 = vmatpush1.msra.mxu0 0.0
      %4736 = vmatprep.mubr.f32.mxu0 0.0
      %4737 = vmatmul.mubr.f32.gmra.mrb[0].mxu0 %v4433
      %v4738 = vpop.f32.mrb[0].mxu0
      %v4739 = vadd.f32 %v4428, %v4738
      %v4740 = vpop.f32.mrb[0].mxu0
      %v4741 = vadd.f32 %v4430, %v4740
      %4742 = vdwg.mxu0
      %4743 = vrot.lane.b32.xlu0 %v4046, 31
      %v4744 = vpop.permute.xlu0 %4743
      %4745 = vrot.lane.b32.xlu0 %v4047, 31
      %v4746 = vpop.permute.xlu0 %4745
      %4747 = vrot.lane.b32.xlu0 %v4048, 31
      %v4748 = vpop.permute.xlu0 %4747
      %4749 = vrot.lane.b32.xlu0 %v4049, 31
      %v4750 = vpop.permute.xlu0 %4749
      %4751 = vrot.lane.b32.xlu0 %v4050, 31
      %v4752 = vpop.permute.xlu0 %4751
      %4753 = vrot.lane.b32.xlu0 %v4051, 31
      %v4754 = vpop.permute.xlu0 %4753
      %4755 = vrot.lane.b32.xlu0 %v4052, 31
      %v4756 = vpop.permute.xlu0 %4755
      %4757 = vrot.lane.b32.xlu0 %v4053, 31
      %v4758 = vpop.permute.xlu0 %4757
      %v4759 = vsel %vm1201, %v4756, %v4758
      %v4760 = vsel %vm1201, %v4754, %v4756
      %v4761 = vsel %vm1201, %v4752, %v4754
      %v4762 = vsel %vm1201, %v4750, %v4752
      %v4763 = vsel %vm1201, %v4748, %v4750
      %v4764 = vsel %vm1201, %v4746, %v4748
      %v4765 = vsel %vm1201, %v4744, %v4746
      %v4766 = vsel %vm1201, %v4758, %v4744
      %v4767 = vmul.f32 %v4766, %v1216
      %v4768 = vmul.f32 %v4765, %v1220
      %v4769 = vmul.f32 %v4764, %v1224
      %v4770 = vmul.f32 %v4763, %v1228
      %v4771 = vmul.f32 %v4762, %v1232
      %v4772 = vmul.f32 %v4761, %v1236
      %v4773 = vmul.f32 %v4760, %v1240
      %v4774 = vmul.f32 %v4759, %v1244
      %s4775 = scalar_lea.vmem %s5, 16
      %v4776 = vld [vmem:[%s4775] sm:$0xff]
      %v4778 = vsel %vm561, %v4776, 0
      %v4781 = vsel %vm565, %v4767, 0
      %v4784 = vsel %vm565, %v4768, 0
      %v4787 = vsel %vm565, %v4769, 0
      %v4790 = vsel %vm565, %v4770, 0
      %v4793 = vsel %vm565, %v4771, 0
      %v4796 = vsel %vm565, %v4772, 0
      %v4799 = vsel %vm565, %v4773, 0
      %v4802 = vsel %vm565, %v4774, 0
      %4804 = vmatprep.subr.mxu0 %v4784
      %4805 = vmatpush1.msra.mxu0 %v4781
      %4806 = vmatprep.subr.mxu0 0.0
      %4807 = vmatpush1.msra.mxu0 0.0
      %4808 = vmatprep.subr.mxu0 0.0
      %4809 = vmatpush1.msra.mxu0 0.0
      %4810 = vmatprep.subr.mxu0 0.0
      %4811 = vmatpush1.msra.mxu0 0.0
      %4812 = vmatprep.subr.mxu0 0.0
      %4813 = vmatpush1.msra.mxu0 0.0
      %4814 = vmatprep.subr.mxu0 0.0
      %4815 = vmatpush1.msra.mxu0 0.0
      %4816 = vmatprep.subr.mxu0 0.0
      %4817 = vmatpush1.msra.mxu0 0.0
      %4818 = vmatprep.subr.mxu0 0.0
      %4819 = vmatpush1.msra.mxu0 0.0
      %4820 = vmatprep.subr.mxu0 0.0
      %4821 = vmatpush1.msra.mxu0 0.0
      %4822 = vmatprep.subr.mxu0 0.0
      %4823 = vmatpush1.msra.mxu0 0.0
      %4824 = vmatprep.subr.mxu0 0.0
      %4825 = vmatpush1.msra.mxu0 0.0
      %4826 = vmatprep.subr.mxu0 0.0
      %4827 = vmatpush1.msra.mxu0 0.0
      %4828 = vmatprep.subr.mxu0 0.0
      %4829 = vmatpush1.msra.mxu0 0.0
      %4830 = vmatprep.subr.mxu0 0.0
      %4831 = vmatpush1.msra.mxu0 0.0
      %4832 = vmatprep.subr.mxu0 0.0
      %4833 = vmatpush1.msra.mxu0 0.0
      %4834 = vmatprep.subr.mxu0 0.0
      %4835 = vmatpush1.msra.mxu0 0.0
      %4836 = vmatprep.subr.mxu0 0.0
      %4837 = vmatpush1.msra.mxu0 0.0
      %4838 = vmatprep.subr.mxu0 0.0
      %4839 = vmatpush1.msra.mxu0 0.0
      %4840 = vmatprep.subr.mxu0 0.0
      %4841 = vmatpush1.msra.mxu0 0.0
      %4842 = vmatprep.subr.mxu0 0.0
      %4843 = vmatpush1.msra.mxu0 0.0
      %4844 = vmatprep.subr.mxu0 0.0
      %4845 = vmatpush1.msra.mxu0 0.0
      %4846 = vmatprep.subr.mxu0 0.0
      %4847 = vmatpush1.msra.mxu0 0.0
      %4848 = vmatprep.subr.mxu0 0.0
      %4849 = vmatpush1.msra.mxu0 0.0
      %4850 = vmatprep.subr.mxu0 0.0
      %4851 = vmatpush1.msra.mxu0 0.0
      %4852 = vmatprep.subr.mxu0 0.0
      %4853 = vmatpush1.msra.mxu0 0.0
      %4854 = vmatprep.subr.mxu0 0.0
      %4855 = vmatpush1.msra.mxu0 0.0
      %4856 = vmatprep.subr.mxu0 0.0
      %4857 = vmatpush1.msra.mxu0 0.0
      %4858 = vmatprep.subr.mxu0 0.0
      %4859 = vmatpush1.msra.mxu0 0.0
      %4860 = vmatprep.subr.mxu0 0.0
      %4861 = vmatpush1.msra.mxu0 0.0
      %4862 = vmatprep.subr.mxu0 0.0
      %4863 = vmatpush1.msra.mxu0 0.0
      %4864 = vmatprep.subr.mxu0 0.0
      %4865 = vmatpush1.msra.mxu0 0.0
      %4866 = vmatprep.subr.mxu0 0.0
      %4867 = vmatpush1.msra.mxu0 0.0
      %4868 = vmatprep.mubr.f32.mxu0 0.0
      %4869 = vmatmul.mubr.f32.gmra.mrb[0].mxu0 %v4778
      %v4870 = vpop.f32.mrb[0].mxu0
      %v4871 = vadd.f32 0.0, %v4870
      %v4872 = vpop.f32.mrb[0].mxu0
      %v4873 = vadd.f32 0.0, %v4872
      %4874 = vdwg.mxu0
      %4875 = vmatprep.subr.mxu0 %v4790
      %4876 = vmatpush1.msra.mxu0 %v4787
      %4877 = vmatprep.subr.mxu0 0.0
      %4878 = vmatpush1.msra.mxu0 0.0
      %4879 = vmatprep.subr.mxu0 0.0
      %4880 = vmatpush1.msra.mxu0 0.0
      %4881 = vmatprep.subr.mxu0 0.0
      %4882 = vmatpush1.msra.mxu0 0.0
      %4883 = vmatprep.subr.mxu0 0.0
      %4884 = vmatpush1.msra.mxu0 0.0
      %4885 = vmatprep.subr.mxu0 0.0
      %4886 = vmatpush1.msra.mxu0 0.0
      %4887 = vmatprep.subr.mxu0 0.0
      %4888 = vmatpush1.msra.mxu0 0.0
      %4889 = vmatprep.subr.mxu0 0.0
      %4890 = vmatpush1.msra.mxu0 0.0
      %4891 = vmatprep.subr.mxu0 0.0
      %4892 = vmatpush1.msra.mxu0 0.0
      %4893 = vmatprep.subr.mxu0 0.0
      %4894 = vmatpush1.msra.mxu0 0.0
      %4895 = vmatprep.subr.mxu0 0.0
      %4896 = vmatpush1.msra.mxu0 0.0
      %4897 = vmatprep.subr.mxu0 0.0
      %4898 = vmatpush1.msra.mxu0 0.0
      %4899 = vmatprep.subr.mxu0 0.0
      %4900 = vmatpush1.msra.mxu0 0.0
      %4901 = vmatprep.subr.mxu0 0.0
      %4902 = vmatpush1.msra.mxu0 0.0
      %4903 = vmatprep.subr.mxu0 0.0
      %4904 = vmatpush1.msra.mxu0 0.0
      %4905 = vmatprep.subr.mxu0 0.0
      %4906 = vmatpush1.msra.mxu0 0.0
      %4907 = vmatprep.subr.mxu0 0.0
      %4908 = vmatpush1.msra.mxu0 0.0
      %4909 = vmatprep.subr.mxu0 0.0
      %4910 = vmatpush1.msra.mxu0 0.0
      %4911 = vmatprep.subr.mxu0 0.0
      %4912 = vmatpush1.msra.mxu0 0.0
      %4913 = vmatprep.subr.mxu0 0.0
      %4914 = vmatpush1.msra.mxu0 0.0
      %4915 = vmatprep.subr.mxu0 0.0
      %4916 = vmatpush1.msra.mxu0 0.0
      %4917 = vmatprep.subr.mxu0 0.0
      %4918 = vmatpush1.msra.mxu0 0.0
      %4919 = vmatprep.subr.mxu0 0.0
      %4920 = vmatpush1.msra.mxu0 0.0
      %4921 = vmatprep.subr.mxu0 0.0
      %4922 = vmatpush1.msra.mxu0 0.0
      %4923 = vmatprep.subr.mxu0 0.0
      %4924 = vmatpush1.msra.mxu0 0.0
      %4925 = vmatprep.subr.mxu0 0.0
      %4926 = vmatpush1.msra.mxu0 0.0
      %4927 = vmatprep.subr.mxu0 0.0
      %4928 = vmatpush1.msra.mxu0 0.0
      %4929 = vmatprep.subr.mxu0 0.0
      %4930 = vmatpush1.msra.mxu0 0.0
      %4931 = vmatprep.subr.mxu0 0.0
      %4932 = vmatpush1.msra.mxu0 0.0
      %4933 = vmatprep.subr.mxu0 0.0
      %4934 = vmatpush1.msra.mxu0 0.0
      %4935 = vmatprep.subr.mxu0 0.0
      %4936 = vmatpush1.msra.mxu0 0.0
      %4937 = vmatprep.subr.mxu0 0.0
      %4938 = vmatpush1.msra.mxu0 0.0
      %4939 = vmatprep.mubr.f32.mxu0 0.0
      %4940 = vmatmul.mubr.f32.gmra.mrb[0].mxu0 %v4778
      %v4941 = vpop.f32.mrb[0].mxu0
      %v4942 = vadd.f32 0.0, %v4941
      %v4943 = vpop.f32.mrb[0].mxu0
      %v4944 = vadd.f32 0.0, %v4943
      %4945 = vdwg.mxu0
      %4946 = vmatprep.subr.mxu0 %v4796
      %4947 = vmatpush1.msra.mxu0 %v4793
      %4948 = vmatprep.subr.mxu0 0.0
      %4949 = vmatpush1.msra.mxu0 0.0
      %4950 = vmatprep.subr.mxu0 0.0
      %4951 = vmatpush1.msra.mxu0 0.0
      %4952 = vmatprep.subr.mxu0 0.0
      %4953 = vmatpush1.msra.mxu0 0.0
      %4954 = vmatprep.subr.mxu0 0.0
      %4955 = vmatpush1.msra.mxu0 0.0
      %4956 = vmatprep.subr.mxu0 0.0
      %4957 = vmatpush1.msra.mxu0 0.0
      %4958 = vmatprep.subr.mxu0 0.0
      %4959 = vmatpush1.msra.mxu0 0.0
      %4960 = vmatprep.subr.mxu0 0.0
      %4961 = vmatpush1.msra.mxu0 0.0
      %4962 = vmatprep.subr.mxu0 0.0
      %4963 = vmatpush1.msra.mxu0 0.0
      %4964 = vmatprep.subr.mxu0 0.0
      %4965 = vmatpush1.msra.mxu0 0.0
      %4966 = vmatprep.subr.mxu0 0.0
      %4967 = vmatpush1.msra.mxu0 0.0
      %4968 = vmatprep.subr.mxu0 0.0
      %4969 = vmatpush1.msra.mxu0 0.0
      %4970 = vmatprep.subr.mxu0 0.0
      %4971 = vmatpush1.msra.mxu0 0.0
      %4972 = vmatprep.subr.mxu0 0.0
      %4973 = vmatpush1.msra.mxu0 0.0
      %4974 = vmatprep.subr.mxu0 0.0
      %4975 = vmatpush1.msra.mxu0 0.0
      %4976 = vmatprep.subr.mxu0 0.0
      %4977 = vmatpush1.msra.mxu0 0.0
      %4978 = vmatprep.subr.mxu0 0.0
      %4979 = vmatpush1.msra.mxu0 0.0
      %4980 = vmatprep.subr.mxu0 0.0
      %4981 = vmatpush1.msra.mxu0 0.0
      %4982 = vmatprep.subr.mxu0 0.0
      %4983 = vmatpush1.msra.mxu0 0.0
      %4984 = vmatprep.subr.mxu0 0.0
      %4985 = vmatpush1.msra.mxu0 0.0
      %4986 = vmatprep.subr.mxu0 0.0
      %4987 = vmatpush1.msra.mxu0 0.0
      %4988 = vmatprep.subr.mxu0 0.0
      %4989 = vmatpush1.msra.mxu0 0.0
      %4990 = vmatprep.subr.mxu0 0.0
      %4991 = vmatpush1.msra.mxu0 0.0
      %4992 = vmatprep.subr.mxu0 0.0
      %4993 = vmatpush1.msra.mxu0 0.0
      %4994 = vmatprep.subr.mxu0 0.0
      %4995 = vmatpush1.msra.mxu0 0.0
      %4996 = vmatprep.subr.mxu0 0.0
      %4997 = vmatpush1.msra.mxu0 0.0
      %4998 = vmatprep.subr.mxu0 0.0
      %4999 = vmatpush1.msra.mxu0 0.0
      %5000 = vmatprep.subr.mxu0 0.0
      %5001 = vmatpush1.msra.mxu0 0.0
      %5002 = vmatprep.subr.mxu0 0.0
      %5003 = vmatpush1.msra.mxu0 0.0
      %5004 = vmatprep.subr.mxu0 0.0
      %5005 = vmatpush1.msra.mxu0 0.0
      %5006 = vmatprep.subr.mxu0 0.0
      %5007 = vmatpush1.msra.mxu0 0.0
      %5008 = vmatprep.subr.mxu0 0.0
      %5009 = vmatpush1.msra.mxu0 0.0
      %5010 = vmatprep.mubr.f32.mxu0 0.0
      %5011 = vmatmul.mubr.f32.gmra.mrb[0].mxu0 %v4778
      %v5012 = vpop.f32.mrb[0].mxu0
      %v5013 = vadd.f32 0.0, %v5012
      %v5014 = vpop.f32.mrb[0].mxu0
      %v5015 = vadd.f32 0.0, %v5014
      %5016 = vdwg.mxu0
      %5017 = vmatprep.subr.mxu0 %v4802
      %5018 = vmatpush1.msra.mxu0 %v4799
      %5019 = vmatprep.subr.mxu0 0.0
      %5020 = vmatpush1.msra.mxu0 0.0
      %5021 = vmatprep.subr.mxu0 0.0
      %5022 = vmatpush1.msra.mxu0 0.0
      %5023 = vmatprep.subr.mxu0 0.0
      %5024 = vmatpush1.msra.mxu0 0.0
      %5025 = vmatprep.subr.mxu0 0.0
      %5026 = vmatpush1.msra.mxu0 0.0
      %5027 = vmatprep.subr.mxu0 0.0
      %5028 = vmatpush1.msra.mxu0 0.0
      %5029 = vmatprep.subr.mxu0 0.0
      %5030 = vmatpush1.msra.mxu0 0.0
      %5031 = vmatprep.subr.mxu0 0.0
      %5032 = vmatpush1.msra.mxu0 0.0
      %5033 = vmatprep.subr.mxu0 0.0
      %5034 = vmatpush1.msra.mxu0 0.0
      %5035 = vmatprep.subr.mxu0 0.0
      %5036 = vmatpush1.msra.mxu0 0.0
      %5037 = vmatprep.subr.mxu0 0.0
      %5038 = vmatpush1.msra.mxu0 0.0
      %5039 = vmatprep.subr.mxu0 0.0
      %5040 = vmatpush1.msra.mxu0 0.0
      %5041 = vmatprep.subr.mxu0 0.0
      %5042 = vmatpush1.msra.mxu0 0.0
      %5043 = vmatprep.subr.mxu0 0.0
      %5044 = vmatpush1.msra.mxu0 0.0
      %5045 = vmatprep.subr.mxu0 0.0
      %5046 = vmatpush1.msra.mxu0 0.0
      %5047 = vmatprep.subr.mxu0 0.0
      %5048 = vmatpush1.msra.mxu0 0.0
      %5049 = vmatprep.subr.mxu0 0.0
      %5050 = vmatpush1.msra.mxu0 0.0
      %5051 = vmatprep.subr.mxu0 0.0
      %5052 = vmatpush1.msra.mxu0 0.0
      %5053 = vmatprep.subr.mxu0 0.0
      %5054 = vmatpush1.msra.mxu0 0.0
      %5055 = vmatprep.subr.mxu0 0.0
      %5056 = vmatpush1.msra.mxu0 0.0
      %5057 = vmatprep.subr.mxu0 0.0
      %5058 = vmatpush1.msra.mxu0 0.0
      %5059 = vmatprep.subr.mxu0 0.0
      %5060 = vmatpush1.msra.mxu0 0.0
      %5061 = vmatprep.subr.mxu0 0.0
      %5062 = vmatpush1.msra.mxu0 0.0
      %5063 = vmatprep.subr.mxu0 0.0
      %5064 = vmatpush1.msra.mxu0 0.0
      %5065 = vmatprep.subr.mxu0 0.0
      %5066 = vmatpush1.msra.mxu0 0.0
      %5067 = vmatprep.subr.mxu0 0.0
      %5068 = vmatpush1.msra.mxu0 0.0
      %5069 = vmatprep.subr.mxu0 0.0
      %5070 = vmatpush1.msra.mxu0 0.0
      %5071 = vmatprep.subr.mxu0 0.0
      %5072 = vmatpush1.msra.mxu0 0.0
      %5073 = vmatprep.subr.mxu0 0.0
      %5074 = vmatpush1.msra.mxu0 0.0
      %5075 = vmatprep.subr.mxu0 0.0
      %5076 = vmatpush1.msra.mxu0 0.0
      %5077 = vmatprep.subr.mxu0 0.0
      %5078 = vmatpush1.msra.mxu0 0.0
      %5079 = vmatprep.subr.mxu0 0.0
      %5080 = vmatpush1.msra.mxu0 0.0
      %5081 = vmatprep.mubr.f32.mxu0 0.0
      %5082 = vmatmul.mubr.f32.gmra.mrb[0].mxu0 %v4778
      %v5083 = vpop.f32.mrb[0].mxu0
      %v5084 = vadd.f32 0.0, %v5083
      %v5085 = vpop.f32.mrb[0].mxu0
      %v5086 = vadd.f32 0.0, %v5085
      %5087 = vdwg.mxu0
      %v5088 = vadd.f32 %v4526, %v4871
      %v5089 = vadd.f32 %v4528, %v4873
      %v5090 = vadd.f32 %v4597, %v4942
      %v5091 = vadd.f32 %v4599, %v4944
      %v5092 = vadd.f32 %v4668, %v5013
      %v5093 = vadd.f32 %v4670, %v5015
      %v5094 = vadd.f32 %v4739, %v5084
      %v5095 = vadd.f32 %v4741, %v5086
      %5096 = vrot.lane.b32.xlu0 %v4046, 1
      %v5097 = vpop.permute.xlu0 %5096
      %5098 = vrot.lane.b32.xlu0 %v4047, 1
      %v5099 = vpop.permute.xlu0 %5098
      %5100 = vrot.lane.b32.xlu0 %v4048, 1
      %v5101 = vpop.permute.xlu0 %5100
      %5102 = vrot.lane.b32.xlu0 %v4049, 1
      %v5103 = vpop.permute.xlu0 %5102
      %5104 = vrot.lane.b32.xlu0 %v4050, 1
      %v5105 = vpop.permute.xlu0 %5104
      %5106 = vrot.lane.b32.xlu0 %v4051, 1
      %v5107 = vpop.permute.xlu0 %5106
      %5108 = vrot.lane.b32.xlu0 %v4052, 1
      %v5109 = vpop.permute.xlu0 %5108
      %5110 = vrot.lane.b32.xlu0 %v4053, 1
      %v5111 = vpop.permute.xlu0 %5110
      %v5112 = vsel %vm1598, %v5109, %v5111
      %v5113 = vsel %vm1598, %v5107, %v5109
      %v5114 = vsel %vm1598, %v5105, %v5107
      %v5115 = vsel %vm1598, %v5103, %v5105
      %v5116 = vsel %vm1598, %v5101, %v5103
      %v5117 = vsel %vm1598, %v5099, %v5101
      %v5118 = vsel %vm1598, %v5097, %v5099
      %v5119 = vsel %vm1598, %v5111, %v5097
      %v5120 = vmul.f32 %v5119, %v1613
      %v5121 = vmul.f32 %v5118, %v1617
      %v5122 = vmul.f32 %v5117, %v1621
      %v5123 = vmul.f32 %v5116, %v1625
      %v5124 = vmul.f32 %v5115, %v1629
      %v5125 = vmul.f32 %v5114, %v1633
      %v5126 = vmul.f32 %v5113, %v1637
      %v5127 = vmul.f32 %v5112, %v1641
      %s5128 = scalar_lea.vmem %s5, 24
      %v5129 = vld [vmem:[%s5128] sm:$0xff]
      %v5131 = vsel %vm561, %v5129, 0
      %v5134 = vsel %vm565, %v5120, 0
      %v5137 = vsel %vm565, %v5121, 0
      %v5140 = vsel %vm565, %v5122, 0
      %v5143 = vsel %vm565, %v5123, 0
      %v5146 = vsel %vm565, %v5124, 0
      %v5149 = vsel %vm565, %v5125, 0
      %v5152 = vsel %vm565, %v5126, 0
      %v5155 = vsel %vm565, %v5127, 0
      %5157 = vmatprep.subr.mxu0 %v5137
      %5158 = vmatpush1.msra.mxu0 %v5134
      %5159 = vmatprep.subr.mxu0 0.0
      %5160 = vmatpush1.msra.mxu0 0.0
      %5161 = vmatprep.subr.mxu0 0.0
      %5162 = vmatpush1.msra.mxu0 0.0
      %5163 = vmatprep.subr.mxu0 0.0
      %5164 = vmatpush1.msra.mxu0 0.0
      %5165 = vmatprep.subr.mxu0 0.0
      %5166 = vmatpush1.msra.mxu0 0.0
      %5167 = vmatprep.subr.mxu0 0.0
      %5168 = vmatpush1.msra.mxu0 0.0
      %5169 = vmatprep.subr.mxu0 0.0
      %5170 = vmatpush1.msra.mxu0 0.0
      %5171 = vmatprep.subr.mxu0 0.0
      %5172 = vmatpush1.msra.mxu0 0.0
      %5173 = vmatprep.subr.mxu0 0.0
      %5174 = vmatpush1.msra.mxu0 0.0
      %5175 = vmatprep.subr.mxu0 0.0
      %5176 = vmatpush1.msra.mxu0 0.0
      %5177 = vmatprep.subr.mxu0 0.0
      %5178 = vmatpush1.msra.mxu0 0.0
      %5179 = vmatprep.subr.mxu0 0.0
      %5180 = vmatpush1.msra.mxu0 0.0
      %5181 = vmatprep.subr.mxu0 0.0
      %5182 = vmatpush1.msra.mxu0 0.0
      %5183 = vmatprep.subr.mxu0 0.0
      %5184 = vmatpush1.msra.mxu0 0.0
      %5185 = vmatprep.subr.mxu0 0.0
      %5186 = vmatpush1.msra.mxu0 0.0
      %5187 = vmatprep.subr.mxu0 0.0
      %5188 = vmatpush1.msra.mxu0 0.0
      %5189 = vmatprep.subr.mxu0 0.0
      %5190 = vmatpush1.msra.mxu0 0.0
      %5191 = vmatprep.subr.mxu0 0.0
      %5192 = vmatpush1.msra.mxu0 0.0
      %5193 = vmatprep.subr.mxu0 0.0
      %5194 = vmatpush1.msra.mxu0 0.0
      %5195 = vmatprep.subr.mxu0 0.0
      %5196 = vmatpush1.msra.mxu0 0.0
      %5197 = vmatprep.subr.mxu0 0.0
      %5198 = vmatpush1.msra.mxu0 0.0
      %5199 = vmatprep.subr.mxu0 0.0
      %5200 = vmatpush1.msra.mxu0 0.0
      %5201 = vmatprep.subr.mxu0 0.0
      %5202 = vmatpush1.msra.mxu0 0.0
      %5203 = vmatprep.subr.mxu0 0.0
      %5204 = vmatpush1.msra.mxu0 0.0
      %5205 = vmatprep.subr.mxu0 0.0
      %5206 = vmatpush1.msra.mxu0 0.0
      %5207 = vmatprep.subr.mxu0 0.0
      %5208 = vmatpush1.msra.mxu0 0.0
      %5209 = vmatprep.subr.mxu0 0.0
      %5210 = vmatpush1.msra.mxu0 0.0
      %5211 = vmatprep.subr.mxu0 0.0
      %5212 = vmatpush1.msra.mxu0 0.0
      %5213 = vmatprep.subr.mxu0 0.0
      %5214 = vmatpush1.msra.mxu0 0.0
      %5215 = vmatprep.subr.mxu0 0.0
      %5216 = vmatpush1.msra.mxu0 0.0
      %5217 = vmatprep.subr.mxu0 0.0
      %5218 = vmatpush1.msra.mxu0 0.0
      %5219 = vmatprep.subr.mxu0 0.0
      %5220 = vmatpush1.msra.mxu0 0.0
      %5221 = vmatprep.mubr.f32.mxu0 0.0
      %5222 = vmatmul.mubr.f32.gmra.mrb[0].mxu0 %v5131
      %v5223 = vpop.f32.mrb[0].mxu0
      %v5224 = vadd.f32 0.0, %v5223
      %v5225 = vpop.f32.mrb[0].mxu0
      %v5226 = vadd.f32 0.0, %v5225
      %5227 = vdwg.mxu0
      %5228 = vmatprep.subr.mxu0 %v5143
      %5229 = vmatpush1.msra.mxu0 %v5140
      %5230 = vmatprep.subr.mxu0 0.0
      %5231 = vmatpush1.msra.mxu0 0.0
      %5232 = vmatprep.subr.mxu0 0.0
      %5233 = vmatpush1.msra.mxu0 0.0
      %5234 = vmatprep.subr.mxu0 0.0
      %5235 = vmatpush1.msra.mxu0 0.0
      %5236 = vmatprep.subr.mxu0 0.0
      %5237 = vmatpush1.msra.mxu0 0.0
      %5238 = vmatprep.subr.mxu0 0.0
      %5239 = vmatpush1.msra.mxu0 0.0
      %5240 = vmatprep.subr.mxu0 0.0
      %5241 = vmatpush1.msra.mxu0 0.0
      %5242 = vmatprep.subr.mxu0 0.0
      %5243 = vmatpush1.msra.mxu0 0.0
      %5244 = vmatprep.subr.mxu0 0.0
      %5245 = vmatpush1.msra.mxu0 0.0
      %5246 = vmatprep.subr.mxu0 0.0
      %5247 = vmatpush1.msra.mxu0 0.0
      %5248 = vmatprep.subr.mxu0 0.0
      %5249 = vmatpush1.msra.mxu0 0.0
      %5250 = vmatprep.subr.mxu0 0.0
      %5251 = vmatpush1.msra.mxu0 0.0
      %5252 = vmatprep.subr.mxu0 0.0
      %5253 = vmatpush1.msra.mxu0 0.0
      %5254 = vmatprep.subr.mxu0 0.0
      %5255 = vmatpush1.msra.mxu0 0.0
      %5256 = vmatprep.subr.mxu0 0.0
      %5257 = vmatpush1.msra.mxu0 0.0
      %5258 = vmatprep.subr.mxu0 0.0
      %5259 = vmatpush1.msra.mxu0 0.0
      %5260 = vmatprep.subr.mxu0 0.0
      %5261 = vmatpush1.msra.mxu0 0.0
      %5262 = vmatprep.subr.mxu0 0.0
      %5263 = vmatpush1.msra.mxu0 0.0
      %5264 = vmatprep.subr.mxu0 0.0
      %5265 = vmatpush1.msra.mxu0 0.0
      %5266 = vmatprep.subr.mxu0 0.0
      %5267 = vmatpush1.msra.mxu0 0.0
      %5268 = vmatprep.subr.mxu0 0.0
      %5269 = vmatpush1.msra.mxu0 0.0
      %5270 = vmatprep.subr.mxu0 0.0
      %5271 = vmatpush1.msra.mxu0 0.0
      %5272 = vmatprep.subr.mxu0 0.0
      %5273 = vmatpush1.msra.mxu0 0.0
      %5274 = vmatprep.subr.mxu0 0.0
      %5275 = vmatpush1.msra.mxu0 0.0
      %5276 = vmatprep.subr.mxu0 0.0
      %5277 = vmatpush1.msra.mxu0 0.0
      %5278 = vmatprep.subr.mxu0 0.0
      %5279 = vmatpush1.msra.mxu0 0.0
      %5280 = vmatprep.subr.mxu0 0.0
      %5281 = vmatpush1.msra.mxu0 0.0
      %5282 = vmatprep.subr.mxu0 0.0
      %5283 = vmatpush1.msra.mxu0 0.0
      %5284 = vmatprep.subr.mxu0 0.0
      %5285 = vmatpush1.msra.mxu0 0.0
      %5286 = vmatprep.subr.mxu0 0.0
      %5287 = vmatpush1.msra.mxu0 0.0
      %5288 = vmatprep.subr.mxu0 0.0
      %5289 = vmatpush1.msra.mxu0 0.0
      %5290 = vmatprep.subr.mxu0 0.0
      %5291 = vmatpush1.msra.mxu0 0.0
      %5292 = vmatprep.mubr.f32.mxu0 0.0
      %5293 = vmatmul.mubr.f32.gmra.mrb[0].mxu0 %v5131
      %v5294 = vpop.f32.mrb[0].mxu0
      %v5295 = vadd.f32 0.0, %v5294
      %v5296 = vpop.f32.mrb[0].mxu0
      %v5297 = vadd.f32 0.0, %v5296
      %5298 = vdwg.mxu0
      %5299 = vmatprep.subr.mxu0 %v5149
      %5300 = vmatpush1.msra.mxu0 %v5146
      %5301 = vmatprep.subr.mxu0 0.0
      %5302 = vmatpush1.msra.mxu0 0.0
      %5303 = vmatprep.subr.mxu0 0.0
      %5304 = vmatpush1.msra.mxu0 0.0
      %5305 = vmatprep.subr.mxu0 0.0
      %5306 = vmatpush1.msra.mxu0 0.0
      %5307 = vmatprep.subr.mxu0 0.0
      %5308 = vmatpush1.msra.mxu0 0.0
      %5309 = vmatprep.subr.mxu0 0.0
      %5310 = vmatpush1.msra.mxu0 0.0
      %5311 = vmatprep.subr.mxu0 0.0
      %5312 = vmatpush1.msra.mxu0 0.0
      %5313 = vmatprep.subr.mxu0 0.0
      %5314 = vmatpush1.msra.mxu0 0.0
      %5315 = vmatprep.subr.mxu0 0.0
      %5316 = vmatpush1.msra.mxu0 0.0
      %5317 = vmatprep.subr.mxu0 0.0
      %5318 = vmatpush1.msra.mxu0 0.0
      %5319 = vmatprep.subr.mxu0 0.0
      %5320 = vmatpush1.msra.mxu0 0.0
      %5321 = vmatprep.subr.mxu0 0.0
      %5322 = vmatpush1.msra.mxu0 0.0
      %5323 = vmatprep.subr.mxu0 0.0
      %5324 = vmatpush1.msra.mxu0 0.0
      %5325 = vmatprep.subr.mxu0 0.0
      %5326 = vmatpush1.msra.mxu0 0.0
      %5327 = vmatprep.subr.mxu0 0.0
      %5328 = vmatpush1.msra.mxu0 0.0
      %5329 = vmatprep.subr.mxu0 0.0
      %5330 = vmatpush1.msra.mxu0 0.0
      %5331 = vmatprep.subr.mxu0 0.0
      %5332 = vmatpush1.msra.mxu0 0.0
      %5333 = vmatprep.subr.mxu0 0.0
      %5334 = vmatpush1.msra.mxu0 0.0
      %5335 = vmatprep.subr.mxu0 0.0
      %5336 = vmatpush1.msra.mxu0 0.0
      %5337 = vmatprep.subr.mxu0 0.0
      %5338 = vmatpush1.msra.mxu0 0.0
      %5339 = vmatprep.subr.mxu0 0.0
      %5340 = vmatpush1.msra.mxu0 0.0
      %5341 = vmatprep.subr.mxu0 0.0
      %5342 = vmatpush1.msra.mxu0 0.0
      %5343 = vmatprep.subr.mxu0 0.0
      %5344 = vmatpush1.msra.mxu0 0.0
      %5345 = vmatprep.subr.mxu0 0.0
      %5346 = vmatpush1.msra.mxu0 0.0
      %5347 = vmatprep.subr.mxu0 0.0
      %5348 = vmatpush1.msra.mxu0 0.0
      %5349 = vmatprep.subr.mxu0 0.0
      %5350 = vmatpush1.msra.mxu0 0.0
      %5351 = vmatprep.subr.mxu0 0.0
      %5352 = vmatpush1.msra.mxu0 0.0
      %5353 = vmatprep.subr.mxu0 0.0
      %5354 = vmatpush1.msra.mxu0 0.0
      %5355 = vmatprep.subr.mxu0 0.0
      %5356 = vmatpush1.msra.mxu0 0.0
      %5357 = vmatprep.subr.mxu0 0.0
      %5358 = vmatpush1.msra.mxu0 0.0
      %5359 = vmatprep.subr.mxu0 0.0
      %5360 = vmatpush1.msra.mxu0 0.0
      %5361 = vmatprep.subr.mxu0 0.0
      %5362 = vmatpush1.msra.mxu0 0.0
      %5363 = vmatprep.mubr.f32.mxu0 0.0
      %5364 = vmatmul.mubr.f32.gmra.mrb[0].mxu0 %v5131
      %v5365 = vpop.f32.mrb[0].mxu0
      %v5366 = vadd.f32 0.0, %v5365
      %v5367 = vpop.f32.mrb[0].mxu0
      %v5368 = vadd.f32 0.0, %v5367
      %5369 = vdwg.mxu0
      %5370 = vmatprep.subr.mxu0 %v5155
      %5371 = vmatpush1.msra.mxu0 %v5152
      %5372 = vmatprep.subr.mxu0 0.0
      %5373 = vmatpush1.msra.mxu0 0.0
      %5374 = vmatprep.subr.mxu0 0.0
      %5375 = vmatpush1.msra.mxu0 0.0
      %5376 = vmatprep.subr.mxu0 0.0
      %5377 = vmatpush1.msra.mxu0 0.0
      %5378 = vmatprep.subr.mxu0 0.0
      %5379 = vmatpush1.msra.mxu0 0.0
      %5380 = vmatprep.subr.mxu0 0.0
      %5381 = vmatpush1.msra.mxu0 0.0
      %5382 = vmatprep.subr.mxu0 0.0
      %5383 = vmatpush1.msra.mxu0 0.0
      %5384 = vmatprep.subr.mxu0 0.0
      %5385 = vmatpush1.msra.mxu0 0.0
      %5386 = vmatprep.subr.mxu0 0.0
      %5387 = vmatpush1.msra.mxu0 0.0
      %5388 = vmatprep.subr.mxu0 0.0
      %5389 = vmatpush1.msra.mxu0 0.0
      %5390 = vmatprep.subr.mxu0 0.0
      %5391 = vmatpush1.msra.mxu0 0.0
      %5392 = vmatprep.subr.mxu0 0.0
      %5393 = vmatpush1.msra.mxu0 0.0
      %5394 = vmatprep.subr.mxu0 0.0
      %5395 = vmatpush1.msra.mxu0 0.0
      %5396 = vmatprep.subr.mxu0 0.0
      %5397 = vmatpush1.msra.mxu0 0.0
      %5398 = vmatprep.subr.mxu0 0.0
      %5399 = vmatpush1.msra.mxu0 0.0
      %5400 = vmatprep.subr.mxu0 0.0
      %5401 = vmatpush1.msra.mxu0 0.0
      %5402 = vmatprep.subr.mxu0 0.0
      %5403 = vmatpush1.msra.mxu0 0.0
      %5404 = vmatprep.subr.mxu0 0.0
      %5405 = vmatpush1.msra.mxu0 0.0
      %5406 = vmatprep.subr.mxu0 0.0
      %5407 = vmatpush1.msra.mxu0 0.0
      %5408 = vmatprep.subr.mxu0 0.0
      %5409 = vmatpush1.msra.mxu0 0.0
      %5410 = vmatprep.subr.mxu0 0.0
      %5411 = vmatpush1.msra.mxu0 0.0
      %5412 = vmatprep.subr.mxu0 0.0
      %5413 = vmatpush1.msra.mxu0 0.0
      %5414 = vmatprep.subr.mxu0 0.0
      %5415 = vmatpush1.msra.mxu0 0.0
      %5416 = vmatprep.subr.mxu0 0.0
      %5417 = vmatpush1.msra.mxu0 0.0
      %5418 = vmatprep.subr.mxu0 0.0
      %5419 = vmatpush1.msra.mxu0 0.0
      %5420 = vmatprep.subr.mxu0 0.0
      %5421 = vmatpush1.msra.mxu0 0.0
      %5422 = vmatprep.subr.mxu0 0.0
      %5423 = vmatpush1.msra.mxu0 0.0
      %5424 = vmatprep.subr.mxu0 0.0
      %5425 = vmatpush1.msra.mxu0 0.0
      %5426 = vmatprep.subr.mxu0 0.0
      %5427 = vmatpush1.msra.mxu0 0.0
      %5428 = vmatprep.subr.mxu0 0.0
      %5429 = vmatpush1.msra.mxu0 0.0
      %5430 = vmatprep.subr.mxu0 0.0
      %5431 = vmatpush1.msra.mxu0 0.0
      %5432 = vmatprep.subr.mxu0 0.0
      %5433 = vmatpush1.msra.mxu0 0.0
      %5434 = vmatprep.mubr.f32.mxu0 0.0
      %5435 = vmatmul.mubr.f32.gmra.mrb[0].mxu0 %v5131
      %v5436 = vpop.f32.mrb[0].mxu0
      %v5437 = vadd.f32 0.0, %v5436
      %v5438 = vpop.f32.mrb[0].mxu0
      %v5439 = vadd.f32 0.0, %v5438
      %5440 = vdwg.mxu0
      %v5441 = vadd.f32 %v5088, %v5224
      %v5442 = vadd.f32 %v5089, %v5226
      %v5443 = vadd.f32 %v5090, %v5295
      %v5444 = vadd.f32 %v5091, %v5297
      %v5445 = vadd.f32 %v5092, %v5366
      %v5446 = vadd.f32 %v5093, %v5368
      %v5447 = vadd.f32 %v5094, %v5437
      %v5448 = vadd.f32 %v5095, %v5439
      %s5449 = scalar_lea.vmem %s5, 32
      %v5450 = vld [vmem:[%s5449] sm:$0xff]
      %v5452 = vsel %vm561, %v5450, 0
      %v5455 = vsel %vm565, %v4046, 0
      %v5458 = vsel %vm565, %v4047, 0
      %v5461 = vsel %vm565, %v4048, 0
      %v5464 = vsel %vm565, %v4049, 0
      %v5467 = vsel %vm565, %v4050, 0
      %v5470 = vsel %vm565, %v4051, 0
      %v5473 = vsel %vm565, %v4052, 0
      %v5476 = vsel %vm565, %v4053, 0
      %5478 = vmatprep.subr.mxu0 %v5458
      %5479 = vmatpush1.msra.mxu0 %v5455
      %5480 = vmatprep.subr.mxu0 0.0
      %5481 = vmatpush1.msra.mxu0 0.0
      %5482 = vmatprep.subr.mxu0 0.0
      %5483 = vmatpush1.msra.mxu0 0.0
      %5484 = vmatprep.subr.mxu0 0.0
      %5485 = vmatpush1.msra.mxu0 0.0
      %5486 = vmatprep.subr.mxu0 0.0
      %5487 = vmatpush1.msra.mxu0 0.0
      %5488 = vmatprep.subr.mxu0 0.0
      %5489 = vmatpush1.msra.mxu0 0.0
      %5490 = vmatprep.subr.mxu0 0.0
      %5491 = vmatpush1.msra.mxu0 0.0
      %5492 = vmatprep.subr.mxu0 0.0
      %5493 = vmatpush1.msra.mxu0 0.0
      %5494 = vmatprep.subr.mxu0 0.0
      %5495 = vmatpush1.msra.mxu0 0.0
      %5496 = vmatprep.subr.mxu0 0.0
      %5497 = vmatpush1.msra.mxu0 0.0
      %5498 = vmatprep.subr.mxu0 0.0
      %5499 = vmatpush1.msra.mxu0 0.0
      %5500 = vmatprep.subr.mxu0 0.0
      %5501 = vmatpush1.msra.mxu0 0.0
      %5502 = vmatprep.subr.mxu0 0.0
      %5503 = vmatpush1.msra.mxu0 0.0
      %5504 = vmatprep.subr.mxu0 0.0
      %5505 = vmatpush1.msra.mxu0 0.0
      %5506 = vmatprep.subr.mxu0 0.0
      %5507 = vmatpush1.msra.mxu0 0.0
      %5508 = vmatprep.subr.mxu0 0.0
      %5509 = vmatpush1.msra.mxu0 0.0
      %5510 = vmatprep.subr.mxu0 0.0
      %5511 = vmatpush1.msra.mxu0 0.0
      %5512 = vmatprep.subr.mxu0 0.0
      %5513 = vmatpush1.msra.mxu0 0.0
      %5514 = vmatprep.subr.mxu0 0.0
      %5515 = vmatpush1.msra.mxu0 0.0
      %5516 = vmatprep.subr.mxu0 0.0
      %5517 = vmatpush1.msra.mxu0 0.0
      %5518 = vmatprep.subr.mxu0 0.0
      %5519 = vmatpush1.msra.mxu0 0.0
      %5520 = vmatprep.subr.mxu0 0.0
      %5521 = vmatpush1.msra.mxu0 0.0
      %5522 = vmatprep.subr.mxu0 0.0
      %5523 = vmatpush1.msra.mxu0 0.0
      %5524 = vmatprep.subr.mxu0 0.0
      %5525 = vmatpush1.msra.mxu0 0.0
      %5526 = vmatprep.subr.mxu0 0.0
      %5527 = vmatpush1.msra.mxu0 0.0
      %5528 = vmatprep.subr.mxu0 0.0
      %5529 = vmatpush1.msra.mxu0 0.0
      %5530 = vmatprep.subr.mxu0 0.0
      %5531 = vmatpush1.msra.mxu0 0.0
      %5532 = vmatprep.subr.mxu0 0.0
      %5533 = vmatpush1.msra.mxu0 0.0
      %5534 = vmatprep.subr.mxu0 0.0
      %5535 = vmatpush1.msra.mxu0 0.0
      %5536 = vmatprep.subr.mxu0 0.0
      %5537 = vmatpush1.msra.mxu0 0.0
      %5538 = vmatprep.subr.mxu0 0.0
      %5539 = vmatpush1.msra.mxu0 0.0
      %5540 = vmatprep.subr.mxu0 0.0
      %5541 = vmatpush1.msra.mxu0 0.0
      %5542 = vmatprep.mubr.f32.mxu0 0.0
      %5543 = vmatmul.mubr.f32.gmra.mrb[0].mxu0 %v5452
      %v5544 = vpop.f32.mrb[0].mxu0
      %v5545 = vadd.f32 0.0, %v5544
      %v5546 = vpop.f32.mrb[0].mxu0
      %v5547 = vadd.f32 0.0, %v5546
      %5548 = vdwg.mxu0
      %5549 = vmatprep.subr.mxu0 %v5464
      %5550 = vmatpush1.msra.mxu0 %v5461
      %5551 = vmatprep.subr.mxu0 0.0
      %5552 = vmatpush1.msra.mxu0 0.0
      %5553 = vmatprep.subr.mxu0 0.0
      %5554 = vmatpush1.msra.mxu0 0.0
      %5555 = vmatprep.subr.mxu0 0.0
      %5556 = vmatpush1.msra.mxu0 0.0
      %5557 = vmatprep.subr.mxu0 0.0
      %5558 = vmatpush1.msra.mxu0 0.0
      %5559 = vmatprep.subr.mxu0 0.0
      %5560 = vmatpush1.msra.mxu0 0.0
      %5561 = vmatprep.subr.mxu0 0.0
      %5562 = vmatpush1.msra.mxu0 0.0
      %5563 = vmatprep.subr.mxu0 0.0
      %5564 = vmatpush1.msra.mxu0 0.0
      %5565 = vmatprep.subr.mxu0 0.0
      %5566 = vmatpush1.msra.mxu0 0.0
      %5567 = vmatprep.subr.mxu0 0.0
      %5568 = vmatpush1.msra.mxu0 0.0
      %5569 = vmatprep.subr.mxu0 0.0
      %5570 = vmatpush1.msra.mxu0 0.0
      %5571 = vmatprep.subr.mxu0 0.0
      %5572 = vmatpush1.msra.mxu0 0.0
      %5573 = vmatprep.subr.mxu0 0.0
      %5574 = vmatpush1.msra.mxu0 0.0
      %5575 = vmatprep.subr.mxu0 0.0
      %5576 = vmatpush1.msra.mxu0 0.0
      %5577 = vmatprep.subr.mxu0 0.0
      %5578 = vmatpush1.msra.mxu0 0.0
      %5579 = vmatprep.subr.mxu0 0.0
      %5580 = vmatpush1.msra.mxu0 0.0
      %5581 = vmatprep.subr.mxu0 0.0
      %5582 = vmatpush1.msra.mxu0 0.0
      %5583 = vmatprep.subr.mxu0 0.0
      %5584 = vmatpush1.msra.mxu0 0.0
      %5585 = vmatprep.subr.mxu0 0.0
      %5586 = vmatpush1.msra.mxu0 0.0
      %5587 = vmatprep.subr.mxu0 0.0
      %5588 = vmatpush1.msra.mxu0 0.0
      %5589 = vmatprep.subr.mxu0 0.0
      %5590 = vmatpush1.msra.mxu0 0.0
      %5591 = vmatprep.subr.mxu0 0.0
      %5592 = vmatpush1.msra.mxu0 0.0
      %5593 = vmatprep.subr.mxu0 0.0
      %5594 = vmatpush1.msra.mxu0 0.0
      %5595 = vmatprep.subr.mxu0 0.0
      %5596 = vmatpush1.msra.mxu0 0.0
      %5597 = vmatprep.subr.mxu0 0.0
      %5598 = vmatpush1.msra.mxu0 0.0
      %5599 = vmatprep.subr.mxu0 0.0
      %5600 = vmatpush1.msra.mxu0 0.0
      %5601 = vmatprep.subr.mxu0 0.0
      %5602 = vmatpush1.msra.mxu0 0.0
      %5603 = vmatprep.subr.mxu0 0.0
      %5604 = vmatpush1.msra.mxu0 0.0
      %5605 = vmatprep.subr.mxu0 0.0
      %5606 = vmatpush1.msra.mxu0 0.0
      %5607 = vmatprep.subr.mxu0 0.0
      %5608 = vmatpush1.msra.mxu0 0.0
      %5609 = vmatprep.subr.mxu0 0.0
      %5610 = vmatpush1.msra.mxu0 0.0
      %5611 = vmatprep.subr.mxu0 0.0
      %5612 = vmatpush1.msra.mxu0 0.0
      %5613 = vmatprep.mubr.f32.mxu0 0.0
      %5614 = vmatmul.mubr.f32.gmra.mrb[0].mxu0 %v5452
      %v5615 = vpop.f32.mrb[0].mxu0
      %v5616 = vadd.f32 0.0, %v5615
      %v5617 = vpop.f32.mrb[0].mxu0
      %v5618 = vadd.f32 0.0, %v5617
      %5619 = vdwg.mxu0
      %5620 = vmatprep.subr.mxu0 %v5470
      %5621 = vmatpush1.msra.mxu0 %v5467
      %5622 = vmatprep.subr.mxu0 0.0
      %5623 = vmatpush1.msra.mxu0 0.0
      %5624 = vmatprep.subr.mxu0 0.0
      %5625 = vmatpush1.msra.mxu0 0.0
      %5626 = vmatprep.subr.mxu0 0.0
      %5627 = vmatpush1.msra.mxu0 0.0
      %5628 = vmatprep.subr.mxu0 0.0
      %5629 = vmatpush1.msra.mxu0 0.0
      %5630 = vmatprep.subr.mxu0 0.0
      %5631 = vmatpush1.msra.mxu0 0.0
      %5632 = vmatprep.subr.mxu0 0.0
      %5633 = vmatpush1.msra.mxu0 0.0
      %5634 = vmatprep.subr.mxu0 0.0
      %5635 = vmatpush1.msra.mxu0 0.0
      %5636 = vmatprep.subr.mxu0 0.0
      %5637 = vmatpush1.msra.mxu0 0.0
      %5638 = vmatprep.subr.mxu0 0.0
      %5639 = vmatpush1.msra.mxu0 0.0
      %5640 = vmatprep.subr.mxu0 0.0
      %5641 = vmatpush1.msra.mxu0 0.0
      %5642 = vmatprep.subr.mxu0 0.0
      %5643 = vmatpush1.msra.mxu0 0.0
      %5644 = vmatprep.subr.mxu0 0.0
      %5645 = vmatpush1.msra.mxu0 0.0
      %5646 = vmatprep.subr.mxu0 0.0
      %5647 = vmatpush1.msra.mxu0 0.0
      %5648 = vmatprep.subr.mxu0 0.0
      %5649 = vmatpush1.msra.mxu0 0.0
      %5650 = vmatprep.subr.mxu0 0.0
      %5651 = vmatpush1.msra.mxu0 0.0
      %5652 = vmatprep.subr.mxu0 0.0
      %5653 = vmatpush1.msra.mxu0 0.0
      %5654 = vmatprep.subr.mxu0 0.0
      %5655 = vmatpush1.msra.mxu0 0.0
      %5656 = vmatprep.subr.mxu0 0.0
      %5657 = vmatpush1.msra.mxu0 0.0
      %5658 = vmatprep.subr.mxu0 0.0
      %5659 = vmatpush1.msra.mxu0 0.0
      %5660 = vmatprep.subr.mxu0 0.0
      %5661 = vmatpush1.msra.mxu0 0.0
      %5662 = vmatprep.subr.mxu0 0.0
      %5663 = vmatpush1.msra.mxu0 0.0
      %5664 = vmatprep.subr.mxu0 0.0
      %5665 = vmatpush1.msra.mxu0 0.0
      %5666 = vmatprep.subr.mxu0 0.0
      %5667 = vmatpush1.msra.mxu0 0.0
      %5668 = vmatprep.subr.mxu0 0.0
      %5669 = vmatpush1.msra.mxu0 0.0
      %5670 = vmatprep.subr.mxu0 0.0
      %5671 = vmatpush1.msra.mxu0 0.0
      %5672 = vmatprep.subr.mxu0 0.0
      %5673 = vmatpush1.msra.mxu0 0.0
      %5674 = vmatprep.subr.mxu0 0.0
      %5675 = vmatpush1.msra.mxu0 0.0
      %5676 = vmatprep.subr.mxu0 0.0
      %5677 = vmatpush1.msra.mxu0 0.0
      %5678 = vmatprep.subr.mxu0 0.0
      %5679 = vmatpush1.msra.mxu0 0.0
      %5680 = vmatprep.subr.mxu0 0.0
      %5681 = vmatpush1.msra.mxu0 0.0
      %5682 = vmatprep.subr.mxu0 0.0
      %5683 = vmatpush1.msra.mxu0 0.0
      %5684 = vmatprep.mubr.f32.mxu0 0.0
      %5685 = vmatmul.mubr.f32.gmra.mrb[0].mxu0 %v5452
      %v5686 = vpop.f32.mrb[0].mxu0
      %v5687 = vadd.f32 0.0, %v5686
      %v5688 = vpop.f32.mrb[0].mxu0
      %v5689 = vadd.f32 0.0, %v5688
      %5690 = vdwg.mxu0
      %5691 = vmatprep.subr.mxu0 %v5476
      %5692 = vmatpush1.msra.mxu0 %v5473
      %5693 = vmatprep.subr.mxu0 0.0
      %5694 = vmatpush1.msra.mxu0 0.0
      %5695 = vmatprep.subr.mxu0 0.0
      %5696 = vmatpush1.msra.mxu0 0.0
      %5697 = vmatprep.subr.mxu0 0.0
      %5698 = vmatpush1.msra.mxu0 0.0
      %5699 = vmatprep.subr.mxu0 0.0
      %5700 = vmatpush1.msra.mxu0 0.0
      %5701 = vmatprep.subr.mxu0 0.0
      %5702 = vmatpush1.msra.mxu0 0.0
      %5703 = vmatprep.subr.mxu0 0.0
      %5704 = vmatpush1.msra.mxu0 0.0
      %5705 = vmatprep.subr.mxu0 0.0
      %5706 = vmatpush1.msra.mxu0 0.0
      %5707 = vmatprep.subr.mxu0 0.0
      %5708 = vmatpush1.msra.mxu0 0.0
      %5709 = vmatprep.subr.mxu0 0.0
      %5710 = vmatpush1.msra.mxu0 0.0
      %5711 = vmatprep.subr.mxu0 0.0
      %5712 = vmatpush1.msra.mxu0 0.0
      %5713 = vmatprep.subr.mxu0 0.0
      %5714 = vmatpush1.msra.mxu0 0.0
      %5715 = vmatprep.subr.mxu0 0.0
      %5716 = vmatpush1.msra.mxu0 0.0
      %5717 = vmatprep.subr.mxu0 0.0
      %5718 = vmatpush1.msra.mxu0 0.0
      %5719 = vmatprep.subr.mxu0 0.0
      %5720 = vmatpush1.msra.mxu0 0.0
      %5721 = vmatprep.subr.mxu0 0.0
      %5722 = vmatpush1.msra.mxu0 0.0
      %5723 = vmatprep.subr.mxu0 0.0
      %5724 = vmatpush1.msra.mxu0 0.0
      %5725 = vmatprep.subr.mxu0 0.0
      %5726 = vmatpush1.msra.mxu0 0.0
      %5727 = vmatprep.subr.mxu0 0.0
      %5728 = vmatpush1.msra.mxu0 0.0
      %5729 = vmatprep.subr.mxu0 0.0
      %5730 = vmatpush1.msra.mxu0 0.0
      %5731 = vmatprep.subr.mxu0 0.0
      %5732 = vmatpush1.msra.mxu0 0.0
      %5733 = vmatprep.subr.mxu0 0.0
      %5734 = vmatpush1.msra.mxu0 0.0
      %5735 = vmatprep.subr.mxu0 0.0
      %5736 = vmatpush1.msra.mxu0 0.0
      %5737 = vmatprep.subr.mxu0 0.0
      %5738 = vmatpush1.msra.mxu0 0.0
      %5739 = vmatprep.subr.mxu0 0.0
      %5740 = vmatpush1.msra.mxu0 0.0
      %5741 = vmatprep.subr.mxu0 0.0
      %5742 = vmatpush1.msra.mxu0 0.0
      %5743 = vmatprep.subr.mxu0 0.0
      %5744 = vmatpush1.msra.mxu0 0.0
      %5745 = vmatprep.subr.mxu0 0.0
      %5746 = vmatpush1.msra.mxu0 0.0
      %5747 = vmatprep.subr.mxu0 0.0
      %5748 = vmatpush1.msra.mxu0 0.0
      %5749 = vmatprep.subr.mxu0 0.0
      %5750 = vmatpush1.msra.mxu0 0.0
      %5751 = vmatprep.subr.mxu0 0.0
      %5752 = vmatpush1.msra.mxu0 0.0
      %5753 = vmatprep.subr.mxu0 0.0
      %5754 = vmatpush1.msra.mxu0 0.0
      %5755 = vmatprep.mubr.f32.mxu0 0.0
      %5756 = vmatmul.mubr.f32.gmra.mrb[0].mxu0 %v5452
      %v5757 = vpop.f32.mrb[0].mxu0
      %v5758 = vadd.f32 0.0, %v5757
      %v5759 = vpop.f32.mrb[0].mxu0
      %v5760 = vadd.f32 0.0, %v5759
      %5761 = vdwg.mxu0
      %v5762 = vadd.f32 %v5441, %v5545
      %v5763 = vadd.f32 %v5442, %v5547
      %v5764 = vadd.f32 %v5443, %v5616
      %v5765 = vadd.f32 %v5444, %v5618
      %v5766 = vadd.f32 %v5445, %v5687
      %v5767 = vadd.f32 %v5446, %v5689
      %v5768 = vadd.f32 %v5447, %v5758
      %v5769 = vadd.f32 %v5448, %v5760
      %5770 = vrot.lane.b32.xlu0 %v4046, 127
      %v5771 = vpop.permute.xlu0 %5770
      %5772 = vrot.lane.b32.xlu0 %v4047, 127
      %v5773 = vpop.permute.xlu0 %5772
      %5774 = vrot.lane.b32.xlu0 %v4048, 127
      %v5775 = vpop.permute.xlu0 %5774
      %5776 = vrot.lane.b32.xlu0 %v4049, 127
      %v5777 = vpop.permute.xlu0 %5776
      %5778 = vrot.lane.b32.xlu0 %v4050, 127
      %v5779 = vpop.permute.xlu0 %5778
      %5780 = vrot.lane.b32.xlu0 %v4051, 127
      %v5781 = vpop.permute.xlu0 %5780
      %5782 = vrot.lane.b32.xlu0 %v4052, 127
      %v5783 = vpop.permute.xlu0 %5782
      %5784 = vrot.lane.b32.xlu0 %v4053, 127
      %v5785 = vpop.permute.xlu0 %5784
      %v5786 = vsel %vm2308, %v5783, %v5785
      %v5787 = vsel %vm2308, %v5781, %v5783
      %v5788 = vsel %vm2308, %v5779, %v5781
      %v5789 = vsel %vm2308, %v5777, %v5779
      %v5790 = vsel %vm2308, %v5775, %v5777
      %v5791 = vsel %vm2308, %v5773, %v5775
      %v5792 = vsel %vm2308, %v5771, %v5773
      %v5793 = vsel %vm2308, %v5785, %v5771
      %v5794 = vmul.f32 %v5792, %v2323
      %v5795 = vmul.f32 %v5791, %v2327
      %v5796 = vmul.f32 %v5790, %v2331
      %v5797 = vmul.f32 %v5789, %v2335
      %v5798 = vmul.f32 %v5788, %v2339
      %v5799 = vmul.f32 %v5787, %v2343
      %v5800 = vmul.f32 %v5786, %v2347
      %v5801 = vmul.f32 %v5793, %v2351
      %s5802 = scalar_lea.vmem %s5, 40
      %v5803 = vld [vmem:[%s5802] sm:$0xff]
      %v5805 = vsel %vm561, %v5803, 0
      %v5808 = vsel %vm565, %v5794, 0
      %v5811 = vsel %vm565, %v5795, 0
      %v5814 = vsel %vm565, %v5796, 0
      %v5817 = vsel %vm565, %v5797, 0
      %v5820 = vsel %vm565, %v5798, 0
      %v5823 = vsel %vm565, %v5799, 0
      %v5826 = vsel %vm565, %v5800, 0
      %v5829 = vsel %vm565, %v5801, 0
      %5831 = vmatprep.subr.mxu0 %v5811
      %5832 = vmatpush1.msra.mxu0 %v5808
      %5833 = vmatprep.subr.mxu0 0.0
      %5834 = vmatpush1.msra.mxu0 0.0
      %5835 = vmatprep.subr.mxu0 0.0
      %5836 = vmatpush1.msra.mxu0 0.0
      %5837 = vmatprep.subr.mxu0 0.0
      %5838 = vmatpush1.msra.mxu0 0.0
      %5839 = vmatprep.subr.mxu0 0.0
      %5840 = vmatpush1.msra.mxu0 0.0
      %5841 = vmatprep.subr.mxu0 0.0
      %5842 = vmatpush1.msra.mxu0 0.0
      %5843 = vmatprep.subr.mxu0 0.0
      %5844 = vmatpush1.msra.mxu0 0.0
      %5845 = vmatprep.subr.mxu0 0.0
      %5846 = vmatpush1.msra.mxu0 0.0
      %5847 = vmatprep.subr.mxu0 0.0
      %5848 = vmatpush1.msra.mxu0 0.0
      %5849 = vmatprep.subr.mxu0 0.0
      %5850 = vmatpush1.msra.mxu0 0.0
      %5851 = vmatprep.subr.mxu0 0.0
      %5852 = vmatpush1.msra.mxu0 0.0
      %5853 = vmatprep.subr.mxu0 0.0
      %5854 = vmatpush1.msra.mxu0 0.0
      %5855 = vmatprep.subr.mxu0 0.0
      %5856 = vmatpush1.msra.mxu0 0.0
      %5857 = vmatprep.subr.mxu0 0.0
      %5858 = vmatpush1.msra.mxu0 0.0
      %5859 = vmatprep.subr.mxu0 0.0
      %5860 = vmatpush1.msra.mxu0 0.0
      %5861 = vmatprep.subr.mxu0 0.0
      %5862 = vmatpush1.msra.mxu0 0.0
      %5863 = vmatprep.subr.mxu0 0.0
      %5864 = vmatpush1.msra.mxu0 0.0
      %5865 = vmatprep.subr.mxu0 0.0
      %5866 = vmatpush1.msra.mxu0 0.0
      %5867 = vmatprep.subr.mxu0 0.0
      %5868 = vmatpush1.msra.mxu0 0.0
      %5869 = vmatprep.subr.mxu0 0.0
      %5870 = vmatpush1.msra.mxu0 0.0
      %5871 = vmatprep.subr.mxu0 0.0
      %5872 = vmatpush1.msra.mxu0 0.0
      %5873 = vmatprep.subr.mxu0 0.0
      %5874 = vmatpush1.msra.mxu0 0.0
      %5875 = vmatprep.subr.mxu0 0.0
      %5876 = vmatpush1.msra.mxu0 0.0
      %5877 = vmatprep.subr.mxu0 0.0
      %5878 = vmatpush1.msra.mxu0 0.0
      %5879 = vmatprep.subr.mxu0 0.0
      %5880 = vmatpush1.msra.mxu0 0.0
      %5881 = vmatprep.subr.mxu0 0.0
      %5882 = vmatpush1.msra.mxu0 0.0
      %5883 = vmatprep.subr.mxu0 0.0
      %5884 = vmatpush1.msra.mxu0 0.0
      %5885 = vmatprep.subr.mxu0 0.0
      %5886 = vmatpush1.msra.mxu0 0.0
      %5887 = vmatprep.subr.mxu0 0.0
      %5888 = vmatpush1.msra.mxu0 0.0
      %5889 = vmatprep.subr.mxu0 0.0
      %5890 = vmatpush1.msra.mxu0 0.0
      %5891 = vmatprep.subr.mxu0 0.0
      %5892 = vmatpush1.msra.mxu0 0.0
      %5893 = vmatprep.subr.mxu0 0.0
      %5894 = vmatpush1.msra.mxu0 0.0
      %5895 = vmatprep.mubr.f32.mxu0 0.0
      %5896 = vmatmul.mubr.f32.gmra.mrb[0].mxu0 %v5805
      %v5897 = vpop.f32.mrb[0].mxu0
      %v5898 = vadd.f32 0.0, %v5897
      %v5899 = vpop.f32.mrb[0].mxu0
      %v5900 = vadd.f32 0.0, %v5899
      %5901 = vdwg.mxu0
      %5902 = vmatprep.subr.mxu0 %v5817
      %5903 = vmatpush1.msra.mxu0 %v5814
      %5904 = vmatprep.subr.mxu0 0.0
      %5905 = vmatpush1.msra.mxu0 0.0
      %5906 = vmatprep.subr.mxu0 0.0
      %5907 = vmatpush1.msra.mxu0 0.0
      %5908 = vmatprep.subr.mxu0 0.0
      %5909 = vmatpush1.msra.mxu0 0.0
      %5910 = vmatprep.subr.mxu0 0.0
      %5911 = vmatpush1.msra.mxu0 0.0
      %5912 = vmatprep.subr.mxu0 0.0
      %5913 = vmatpush1.msra.mxu0 0.0
      %5914 = vmatprep.subr.mxu0 0.0
      %5915 = vmatpush1.msra.mxu0 0.0
      %5916 = vmatprep.subr.mxu0 0.0
      %5917 = vmatpush1.msra.mxu0 0.0
      %5918 = vmatprep.subr.mxu0 0.0
      %5919 = vmatpush1.msra.mxu0 0.0
      %5920 = vmatprep.subr.mxu0 0.0
      %5921 = vmatpush1.msra.mxu0 0.0
      %5922 = vmatprep.subr.mxu0 0.0
      %5923 = vmatpush1.msra.mxu0 0.0
      %5924 = vmatprep.subr.mxu0 0.0
      %5925 = vmatpush1.msra.mxu0 0.0
      %5926 = vmatprep.subr.mxu0 0.0
      %5927 = vmatpush1.msra.mxu0 0.0
      %5928 = vmatprep.subr.mxu0 0.0
      %5929 = vmatpush1.msra.mxu0 0.0
      %5930 = vmatprep.subr.mxu0 0.0
      %5931 = vmatpush1.msra.mxu0 0.0
      %5932 = vmatprep.subr.mxu0 0.0
      %5933 = vmatpush1.msra.mxu0 0.0
      %5934 = vmatprep.subr.mxu0 0.0
      %5935 = vmatpush1.msra.mxu0 0.0
      %5936 = vmatprep.subr.mxu0 0.0
      %5937 = vmatpush1.msra.mxu0 0.0
      %5938 = vmatprep.subr.mxu0 0.0
      %5939 = vmatpush1.msra.mxu0 0.0
      %5940 = vmatprep.subr.mxu0 0.0
      %5941 = vmatpush1.msra.mxu0 0.0
      %5942 = vmatprep.subr.mxu0 0.0
      %5943 = vmatpush1.msra.mxu0 0.0
      %5944 = vmatprep.subr.mxu0 0.0
      %5945 = vmatpush1.msra.mxu0 0.0
      %5946 = vmatprep.subr.mxu0 0.0
      %5947 = vmatpush1.msra.mxu0 0.0
      %5948 = vmatprep.subr.mxu0 0.0
      %5949 = vmatpush1.msra.mxu0 0.0
      %5950 = vmatprep.subr.mxu0 0.0
      %5951 = vmatpush1.msra.mxu0 0.0
      %5952 = vmatprep.subr.mxu0 0.0
      %5953 = vmatpush1.msra.mxu0 0.0
      %5954 = vmatprep.subr.mxu0 0.0
      %5955 = vmatpush1.msra.mxu0 0.0
      %5956 = vmatprep.subr.mxu0 0.0
      %5957 = vmatpush1.msra.mxu0 0.0
      %5958 = vmatprep.subr.mxu0 0.0
      %5959 = vmatpush1.msra.mxu0 0.0
      %5960 = vmatprep.subr.mxu0 0.0
      %5961 = vmatpush1.msra.mxu0 0.0
      %5962 = vmatprep.subr.mxu0 0.0
      %5963 = vmatpush1.msra.mxu0 0.0
      %5964 = vmatprep.subr.mxu0 0.0
      %5965 = vmatpush1.msra.mxu0 0.0
      %5966 = vmatprep.mubr.f32.mxu0 0.0
      %5967 = vmatmul.mubr.f32.gmra.mrb[0].mxu0 %v5805
      %v5968 = vpop.f32.mrb[0].mxu0
      %v5969 = vadd.f32 0.0, %v5968
      %v5970 = vpop.f32.mrb[0].mxu0
      %v5971 = vadd.f32 0.0, %v5970
      %5972 = vdwg.mxu0
      %5973 = vmatprep.subr.mxu0 %v5823
      %5974 = vmatpush1.msra.mxu0 %v5820
      %5975 = vmatprep.subr.mxu0 0.0
      %5976 = vmatpush1.msra.mxu0 0.0
      %5977 = vmatprep.subr.mxu0 0.0
      %5978 = vmatpush1.msra.mxu0 0.0
      %5979 = vmatprep.subr.mxu0 0.0
      %5980 = vmatpush1.msra.mxu0 0.0
      %5981 = vmatprep.subr.mxu0 0.0
      %5982 = vmatpush1.msra.mxu0 0.0
      %5983 = vmatprep.subr.mxu0 0.0
      %5984 = vmatpush1.msra.mxu0 0.0
      %5985 = vmatprep.subr.mxu0 0.0
      %5986 = vmatpush1.msra.mxu0 0.0
      %5987 = vmatprep.subr.mxu0 0.0
      %5988 = vmatpush1.msra.mxu0 0.0
      %5989 = vmatprep.subr.mxu0 0.0
      %5990 = vmatpush1.msra.mxu0 0.0
      %5991 = vmatprep.subr.mxu0 0.0
      %5992 = vmatpush1.msra.mxu0 0.0
      %5993 = vmatprep.subr.mxu0 0.0
      %5994 = vmatpush1.msra.mxu0 0.0
      %5995 = vmatprep.subr.mxu0 0.0
      %5996 = vmatpush1.msra.mxu0 0.0
      %5997 = vmatprep.subr.mxu0 0.0
      %5998 = vmatpush1.msra.mxu0 0.0
      %5999 = vmatprep.subr.mxu0 0.0
      %6000 = vmatpush1.msra.mxu0 0.0
      %6001 = vmatprep.subr.mxu0 0.0
      %6002 = vmatpush1.msra.mxu0 0.0
      %6003 = vmatprep.subr.mxu0 0.0
      %6004 = vmatpush1.msra.mxu0 0.0
      %6005 = vmatprep.subr.mxu0 0.0
      %6006 = vmatpush1.msra.mxu0 0.0
      %6007 = vmatprep.subr.mxu0 0.0
      %6008 = vmatpush1.msra.mxu0 0.0
      %6009 = vmatprep.subr.mxu0 0.0
      %6010 = vmatpush1.msra.mxu0 0.0
      %6011 = vmatprep.subr.mxu0 0.0
      %6012 = vmatpush1.msra.mxu0 0.0
      %6013 = vmatprep.subr.mxu0 0.0
      %6014 = vmatpush1.msra.mxu0 0.0
      %6015 = vmatprep.subr.mxu0 0.0
      %6016 = vmatpush1.msra.mxu0 0.0
      %6017 = vmatprep.subr.mxu0 0.0
      %6018 = vmatpush1.msra.mxu0 0.0
      %6019 = vmatprep.subr.mxu0 0.0
      %6020 = vmatpush1.msra.mxu0 0.0
      %6021 = vmatprep.subr.mxu0 0.0
      %6022 = vmatpush1.msra.mxu0 0.0
      %6023 = vmatprep.subr.mxu0 0.0
      %6024 = vmatpush1.msra.mxu0 0.0
      %6025 = vmatprep.subr.mxu0 0.0
      %6026 = vmatpush1.msra.mxu0 0.0
      %6027 = vmatprep.subr.mxu0 0.0
      %6028 = vmatpush1.msra.mxu0 0.0
      %6029 = vmatprep.subr.mxu0 0.0
      %6030 = vmatpush1.msra.mxu0 0.0
      %6031 = vmatprep.subr.mxu0 0.0
      %6032 = vmatpush1.msra.mxu0 0.0
      %6033 = vmatprep.subr.mxu0 0.0
      %6034 = vmatpush1.msra.mxu0 0.0
      %6035 = vmatprep.subr.mxu0 0.0
      %6036 = vmatpush1.msra.mxu0 0.0
      %6037 = vmatprep.mubr.f32.mxu0 0.0
      %6038 = vmatmul.mubr.f32.gmra.mrb[0].mxu0 %v5805
      %v6039 = vpop.f32.mrb[0].mxu0
      %v6040 = vadd.f32 0.0, %v6039
      %v6041 = vpop.f32.mrb[0].mxu0
      %v6042 = vadd.f32 0.0, %v6041
      %6043 = vdwg.mxu0
      %6044 = vmatprep.subr.mxu0 %v5829
      %6045 = vmatpush1.msra.mxu0 %v5826
      %6046 = vmatprep.subr.mxu0 0.0
      %6047 = vmatpush1.msra.mxu0 0.0
      %6048 = vmatprep.subr.mxu0 0.0
      %6049 = vmatpush1.msra.mxu0 0.0
      %6050 = vmatprep.subr.mxu0 0.0
      %6051 = vmatpush1.msra.mxu0 0.0
      %6052 = vmatprep.subr.mxu0 0.0
      %6053 = vmatpush1.msra.mxu0 0.0
      %6054 = vmatprep.subr.mxu0 0.0
      %6055 = vmatpush1.msra.mxu0 0.0
      %6056 = vmatprep.subr.mxu0 0.0
      %6057 = vmatpush1.msra.mxu0 0.0
      %6058 = vmatprep.subr.mxu0 0.0
      %6059 = vmatpush1.msra.mxu0 0.0
      %6060 = vmatprep.subr.mxu0 0.0
      %6061 = vmatpush1.msra.mxu0 0.0
      %6062 = vmatprep.subr.mxu0 0.0
      %6063 = vmatpush1.msra.mxu0 0.0
      %6064 = vmatprep.subr.mxu0 0.0
      %6065 = vmatpush1.msra.mxu0 0.0
      %6066 = vmatprep.subr.mxu0 0.0
      %6067 = vmatpush1.msra.mxu0 0.0
      %6068 = vmatprep.subr.mxu0 0.0
      %6069 = vmatpush1.msra.mxu0 0.0
      %6070 = vmatprep.subr.mxu0 0.0
      %6071 = vmatpush1.msra.mxu0 0.0
      %6072 = vmatprep.subr.mxu0 0.0
      %6073 = vmatpush1.msra.mxu0 0.0
      %6074 = vmatprep.subr.mxu0 0.0
      %6075 = vmatpush1.msra.mxu0 0.0
      %6076 = vmatprep.subr.mxu0 0.0
      %6077 = vmatpush1.msra.mxu0 0.0
      %6078 = vmatprep.subr.mxu0 0.0
      %6079 = vmatpush1.msra.mxu0 0.0
      %6080 = vmatprep.subr.mxu0 0.0
      %6081 = vmatpush1.msra.mxu0 0.0
      %6082 = vmatprep.subr.mxu0 0.0
      %6083 = vmatpush1.msra.mxu0 0.0
      %6084 = vmatprep.subr.mxu0 0.0
      %6085 = vmatpush1.msra.mxu0 0.0
      %6086 = vmatprep.subr.mxu0 0.0
      %6087 = vmatpush1.msra.mxu0 0.0
      %6088 = vmatprep.subr.mxu0 0.0
      %6089 = vmatpush1.msra.mxu0 0.0
      %6090 = vmatprep.subr.mxu0 0.0
      %6091 = vmatpush1.msra.mxu0 0.0
      %6092 = vmatprep.subr.mxu0 0.0
      %6093 = vmatpush1.msra.mxu0 0.0
      %6094 = vmatprep.subr.mxu0 0.0
      %6095 = vmatpush1.msra.mxu0 0.0
      %6096 = vmatprep.subr.mxu0 0.0
      %6097 = vmatpush1.msra.mxu0 0.0
      %6098 = vmatprep.subr.mxu0 0.0
      %6099 = vmatpush1.msra.mxu0 0.0
      %6100 = vmatprep.subr.mxu0 0.0
      %6101 = vmatpush1.msra.mxu0 0.0
      %6102 = vmatprep.subr.mxu0 0.0
      %6103 = vmatpush1.msra.mxu0 0.0
      %6104 = vmatprep.subr.mxu0 0.0
      %6105 = vmatpush1.msra.mxu0 0.0
      %6106 = vmatprep.subr.mxu0 0.0
      %6107 = vmatpush1.msra.mxu0 0.0
      %6108 = vmatprep.mubr.f32.mxu0 0.0
      %6109 = vmatmul.mubr.f32.gmra.mrb[0].mxu0 %v5805
      %v6110 = vpop.f32.mrb[0].mxu0
      %v6111 = vadd.f32 0.0, %v6110
      %v6112 = vpop.f32.mrb[0].mxu0
      %v6113 = vadd.f32 0.0, %v6112
      %6114 = vdwg.mxu0
      %v6115 = vadd.f32 %v5762, %v5898
      %v6116 = vadd.f32 %v5763, %v5900
      %v6117 = vadd.f32 %v5764, %v5969
      %v6118 = vadd.f32 %v5765, %v5971
      %v6119 = vadd.f32 %v5766, %v6040
      %v6120 = vadd.f32 %v5767, %v6042
      %v6121 = vadd.f32 %v5768, %v6111
      %v6122 = vadd.f32 %v5769, %v6113
      %6123 = vrot.lane.b32.xlu0 %v4046, 97
      %v6124 = vpop.permute.xlu0 %6123
      %6125 = vrot.lane.b32.xlu0 %v4047, 97
      %v6126 = vpop.permute.xlu0 %6125
      %6127 = vrot.lane.b32.xlu0 %v4048, 97
      %v6128 = vpop.permute.xlu0 %6127
      %6129 = vrot.lane.b32.xlu0 %v4049, 97
      %v6130 = vpop.permute.xlu0 %6129
      %6131 = vrot.lane.b32.xlu0 %v4050, 97
      %v6132 = vpop.permute.xlu0 %6131
      %6133 = vrot.lane.b32.xlu0 %v4051, 97
      %v6134 = vpop.permute.xlu0 %6133
      %6135 = vrot.lane.b32.xlu0 %v4052, 97
      %v6136 = vpop.permute.xlu0 %6135
      %6137 = vrot.lane.b32.xlu0 %v4053, 97
      %v6138 = vpop.permute.xlu0 %6137
      %v6139 = vsel %vm2705, %v6136, %v6138
      %v6140 = vsel %vm2705, %v6134, %v6136
      %v6141 = vsel %vm2705, %v6132, %v6134
      %v6142 = vsel %vm2705, %v6130, %v6132
      %v6143 = vsel %vm2705, %v6128, %v6130
      %v6144 = vsel %vm2705, %v6126, %v6128
      %v6145 = vsel %vm2705, %v6124, %v6126
      %v6146 = vsel %vm2705, %v6138, %v6124
      %v6147 = vmul.f32 %v6145, %v2720
      %v6148 = vmul.f32 %v6144, %v2724
      %v6149 = vmul.f32 %v6143, %v2728
      %v6150 = vmul.f32 %v6142, %v2732
      %v6151 = vmul.f32 %v6141, %v2736
      %v6152 = vmul.f32 %v6140, %v2740
      %v6153 = vmul.f32 %v6139, %v2744
      %v6154 = vmul.f32 %v6146, %v2748
      %s6155 = scalar_lea.vmem %s5, 48
      %v6156 = vld [vmem:[%s6155] sm:$0xff]
      %v6158 = vsel %vm561, %v6156, 0
      %v6161 = vsel %vm565, %v6147, 0
      %v6164 = vsel %vm565, %v6148, 0
      %v6167 = vsel %vm565, %v6149, 0
      %v6170 = vsel %vm565, %v6150, 0
      %v6173 = vsel %vm565, %v6151, 0
      %v6176 = vsel %vm565, %v6152, 0
      %v6179 = vsel %vm565, %v6153, 0
      %v6182 = vsel %vm565, %v6154, 0
      %6184 = vmatprep.subr.mxu0 %v6164
      %6185 = vmatpush1.msra.mxu0 %v6161
      %6186 = vmatprep.subr.mxu0 0.0
      %6187 = vmatpush1.msra.mxu0 0.0
      %6188 = vmatprep.subr.mxu0 0.0
      %6189 = vmatpush1.msra.mxu0 0.0
      %6190 = vmatprep.subr.mxu0 0.0
      %6191 = vmatpush1.msra.mxu0 0.0
      %6192 = vmatprep.subr.mxu0 0.0
      %6193 = vmatpush1.msra.mxu0 0.0
      %6194 = vmatprep.subr.mxu0 0.0
      %6195 = vmatpush1.msra.mxu0 0.0
      %6196 = vmatprep.subr.mxu0 0.0
      %6197 = vmatpush1.msra.mxu0 0.0
      %6198 = vmatprep.subr.mxu0 0.0
      %6199 = vmatpush1.msra.mxu0 0.0
      %6200 = vmatprep.subr.mxu0 0.0
      %6201 = vmatpush1.msra.mxu0 0.0
      %6202 = vmatprep.subr.mxu0 0.0
      %6203 = vmatpush1.msra.mxu0 0.0
      %6204 = vmatprep.subr.mxu0 0.0
      %6205 = vmatpush1.msra.mxu0 0.0
      %6206 = vmatprep.subr.mxu0 0.0
      %6207 = vmatpush1.msra.mxu0 0.0
      %6208 = vmatprep.subr.mxu0 0.0
      %6209 = vmatpush1.msra.mxu0 0.0
      %6210 = vmatprep.subr.mxu0 0.0
      %6211 = vmatpush1.msra.mxu0 0.0
      %6212 = vmatprep.subr.mxu0 0.0
      %6213 = vmatpush1.msra.mxu0 0.0
      %6214 = vmatprep.subr.mxu0 0.0
      %6215 = vmatpush1.msra.mxu0 0.0
      %6216 = vmatprep.subr.mxu0 0.0
      %6217 = vmatpush1.msra.mxu0 0.0
      %6218 = vmatprep.subr.mxu0 0.0
      %6219 = vmatpush1.msra.mxu0 0.0
      %6220 = vmatprep.subr.mxu0 0.0
      %6221 = vmatpush1.msra.mxu0 0.0
      %6222 = vmatprep.subr.mxu0 0.0
      %6223 = vmatpush1.msra.mxu0 0.0
      %6224 = vmatprep.subr.mxu0 0.0
      %6225 = vmatpush1.msra.mxu0 0.0
      %6226 = vmatprep.subr.mxu0 0.0
      %6227 = vmatpush1.msra.mxu0 0.0
      %6228 = vmatprep.subr.mxu0 0.0
      %6229 = vmatpush1.msra.mxu0 0.0
      %6230 = vmatprep.subr.mxu0 0.0
      %6231 = vmatpush1.msra.mxu0 0.0
      %6232 = vmatprep.subr.mxu0 0.0
      %6233 = vmatpush1.msra.mxu0 0.0
      %6234 = vmatprep.subr.mxu0 0.0
      %6235 = vmatpush1.msra.mxu0 0.0
      %6236 = vmatprep.subr.mxu0 0.0
      %6237 = vmatpush1.msra.mxu0 0.0
      %6238 = vmatprep.subr.mxu0 0.0
      %6239 = vmatpush1.msra.mxu0 0.0
      %6240 = vmatprep.subr.mxu0 0.0
      %6241 = vmatpush1.msra.mxu0 0.0
      %6242 = vmatprep.subr.mxu0 0.0
      %6243 = vmatpush1.msra.mxu0 0.0
      %6244 = vmatprep.subr.mxu0 0.0
      %6245 = vmatpush1.msra.mxu0 0.0
      %6246 = vmatprep.subr.mxu0 0.0
      %6247 = vmatpush1.msra.mxu0 0.0
      %6248 = vmatprep.mubr.f32.mxu0 0.0
      %6249 = vmatmul.mubr.f32.gmra.mrb[0].mxu0 %v6158
      %v6250 = vpop.f32.mrb[0].mxu0
      %v6251 = vadd.f32 0.0, %v6250
      %v6252 = vpop.f32.mrb[0].mxu0
      %v6253 = vadd.f32 0.0, %v6252
      %6254 = vdwg.mxu0
      %6255 = vmatprep.subr.mxu0 %v6170
      %6256 = vmatpush1.msra.mxu0 %v6167
      %6257 = vmatprep.subr.mxu0 0.0
      %6258 = vmatpush1.msra.mxu0 0.0
      %6259 = vmatprep.subr.mxu0 0.0
      %6260 = vmatpush1.msra.mxu0 0.0
      %6261 = vmatprep.subr.mxu0 0.0
      %6262 = vmatpush1.msra.mxu0 0.0
      %6263 = vmatprep.subr.mxu0 0.0
      %6264 = vmatpush1.msra.mxu0 0.0
      %6265 = vmatprep.subr.mxu0 0.0
      %6266 = vmatpush1.msra.mxu0 0.0
      %6267 = vmatprep.subr.mxu0 0.0
      %6268 = vmatpush1.msra.mxu0 0.0
      %6269 = vmatprep.subr.mxu0 0.0
      %6270 = vmatpush1.msra.mxu0 0.0
      %6271 = vmatprep.subr.mxu0 0.0
      %6272 = vmatpush1.msra.mxu0 0.0
      %6273 = vmatprep.subr.mxu0 0.0
      %6274 = vmatpush1.msra.mxu0 0.0
      %6275 = vmatprep.subr.mxu0 0.0
      %6276 = vmatpush1.msra.mxu0 0.0
      %6277 = vmatprep.subr.mxu0 0.0
      %6278 = vmatpush1.msra.mxu0 0.0
      %6279 = vmatprep.subr.mxu0 0.0
      %6280 = vmatpush1.msra.mxu0 0.0
      %6281 = vmatprep.subr.mxu0 0.0
      %6282 = vmatpush1.msra.mxu0 0.0
      %6283 = vmatprep.subr.mxu0 0.0
      %6284 = vmatpush1.msra.mxu0 0.0
      %6285 = vmatprep.subr.mxu0 0.0
      %6286 = vmatpush1.msra.mxu0 0.0
      %6287 = vmatprep.subr.mxu0 0.0
      %6288 = vmatpush1.msra.mxu0 0.0
      %6289 = vmatprep.subr.mxu0 0.0
      %6290 = vmatpush1.msra.mxu0 0.0
      %6291 = vmatprep.subr.mxu0 0.0
      %6292 = vmatpush1.msra.mxu0 0.0
      %6293 = vmatprep.subr.mxu0 0.0
      %6294 = vmatpush1.msra.mxu0 0.0
      %6295 = vmatprep.subr.mxu0 0.0
      %6296 = vmatpush1.msra.mxu0 0.0
      %6297 = vmatprep.subr.mxu0 0.0
      %6298 = vmatpush1.msra.mxu0 0.0
      %6299 = vmatprep.subr.mxu0 0.0
      %6300 = vmatpush1.msra.mxu0 0.0
      %6301 = vmatprep.subr.mxu0 0.0
      %6302 = vmatpush1.msra.mxu0 0.0
      %6303 = vmatprep.subr.mxu0 0.0
      %6304 = vmatpush1.msra.mxu0 0.0
      %6305 = vmatprep.subr.mxu0 0.0
      %6306 = vmatpush1.msra.mxu0 0.0
      %6307 = vmatprep.subr.mxu0 0.0
      %6308 = vmatpush1.msra.mxu0 0.0
      %6309 = vmatprep.subr.mxu0 0.0
      %6310 = vmatpush1.msra.mxu0 0.0
      %6311 = vmatprep.subr.mxu0 0.0
      %6312 = vmatpush1.msra.mxu0 0.0
      %6313 = vmatprep.subr.mxu0 0.0
      %6314 = vmatpush1.msra.mxu0 0.0
      %6315 = vmatprep.subr.mxu0 0.0
      %6316 = vmatpush1.msra.mxu0 0.0
      %6317 = vmatprep.subr.mxu0 0.0
      %6318 = vmatpush1.msra.mxu0 0.0
      %6319 = vmatprep.mubr.f32.mxu0 0.0
      %6320 = vmatmul.mubr.f32.gmra.mrb[0].mxu0 %v6158
      %v6321 = vpop.f32.mrb[0].mxu0
      %v6322 = vadd.f32 0.0, %v6321
      %v6323 = vpop.f32.mrb[0].mxu0
      %v6324 = vadd.f32 0.0, %v6323
      %6325 = vdwg.mxu0
      %6326 = vmatprep.subr.mxu0 %v6176
      %6327 = vmatpush1.msra.mxu0 %v6173
      %6328 = vmatprep.subr.mxu0 0.0
      %6329 = vmatpush1.msra.mxu0 0.0
      %6330 = vmatprep.subr.mxu0 0.0
      %6331 = vmatpush1.msra.mxu0 0.0
      %6332 = vmatprep.subr.mxu0 0.0
      %6333 = vmatpush1.msra.mxu0 0.0
      %6334 = vmatprep.subr.mxu0 0.0
      %6335 = vmatpush1.msra.mxu0 0.0
      %6336 = vmatprep.subr.mxu0 0.0
      %6337 = vmatpush1.msra.mxu0 0.0
      %6338 = vmatprep.subr.mxu0 0.0
      %6339 = vmatpush1.msra.mxu0 0.0
      %6340 = vmatprep.subr.mxu0 0.0
      %6341 = vmatpush1.msra.mxu0 0.0
      %6342 = vmatprep.subr.mxu0 0.0
      %6343 = vmatpush1.msra.mxu0 0.0
      %6344 = vmatprep.subr.mxu0 0.0
      %6345 = vmatpush1.msra.mxu0 0.0
      %6346 = vmatprep.subr.mxu0 0.0
      %6347 = vmatpush1.msra.mxu0 0.0
      %6348 = vmatprep.subr.mxu0 0.0
      %6349 = vmatpush1.msra.mxu0 0.0
      %6350 = vmatprep.subr.mxu0 0.0
      %6351 = vmatpush1.msra.mxu0 0.0
      %6352 = vmatprep.subr.mxu0 0.0
      %6353 = vmatpush1.msra.mxu0 0.0
      %6354 = vmatprep.subr.mxu0 0.0
      %6355 = vmatpush1.msra.mxu0 0.0
      %6356 = vmatprep.subr.mxu0 0.0
      %6357 = vmatpush1.msra.mxu0 0.0
      %6358 = vmatprep.subr.mxu0 0.0
      %6359 = vmatpush1.msra.mxu0 0.0
      %6360 = vmatprep.subr.mxu0 0.0
      %6361 = vmatpush1.msra.mxu0 0.0
      %6362 = vmatprep.subr.mxu0 0.0
      %6363 = vmatpush1.msra.mxu0 0.0
      %6364 = vmatprep.subr.mxu0 0.0
      %6365 = vmatpush1.msra.mxu0 0.0
      %6366 = vmatprep.subr.mxu0 0.0
      %6367 = vmatpush1.msra.mxu0 0.0
      %6368 = vmatprep.subr.mxu0 0.0
      %6369 = vmatpush1.msra.mxu0 0.0
      %6370 = vmatprep.subr.mxu0 0.0
      %6371 = vmatpush1.msra.mxu0 0.0
      %6372 = vmatprep.subr.mxu0 0.0
      %6373 = vmatpush1.msra.mxu0 0.0
      %6374 = vmatprep.subr.mxu0 0.0
      %6375 = vmatpush1.msra.mxu0 0.0
      %6376 = vmatprep.subr.mxu0 0.0
      %6377 = vmatpush1.msra.mxu0 0.0
      %6378 = vmatprep.subr.mxu0 0.0
      %6379 = vmatpush1.msra.mxu0 0.0
      %6380 = vmatprep.subr.mxu0 0.0
      %6381 = vmatpush1.msra.mxu0 0.0
      %6382 = vmatprep.subr.mxu0 0.0
      %6383 = vmatpush1.msra.mxu0 0.0
      %6384 = vmatprep.subr.mxu0 0.0
      %6385 = vmatpush1.msra.mxu0 0.0
      %6386 = vmatprep.subr.mxu0 0.0
      %6387 = vmatpush1.msra.mxu0 0.0
      %6388 = vmatprep.subr.mxu0 0.0
      %6389 = vmatpush1.msra.mxu0 0.0
      %6390 = vmatprep.mubr.f32.mxu0 0.0
      %6391 = vmatmul.mubr.f32.gmra.mrb[0].mxu0 %v6158
      %v6392 = vpop.f32.mrb[0].mxu0
      %v6393 = vadd.f32 0.0, %v6392
      %v6394 = vpop.f32.mrb[0].mxu0
      %v6395 = vadd.f32 0.0, %v6394
      %6396 = vdwg.mxu0
      %6397 = vmatprep.subr.mxu0 %v6182
      %6398 = vmatpush1.msra.mxu0 %v6179
      %6399 = vmatprep.subr.mxu0 0.0
      %6400 = vmatpush1.msra.mxu0 0.0
      %6401 = vmatprep.subr.mxu0 0.0
      %6402 = vmatpush1.msra.mxu0 0.0
      %6403 = vmatprep.subr.mxu0 0.0
      %6404 = vmatpush1.msra.mxu0 0.0
      %6405 = vmatprep.subr.mxu0 0.0
      %6406 = vmatpush1.msra.mxu0 0.0
      %6407 = vmatprep.subr.mxu0 0.0
      %6408 = vmatpush1.msra.mxu0 0.0
      %6409 = vmatprep.subr.mxu0 0.0
      %6410 = vmatpush1.msra.mxu0 0.0
      %6411 = vmatprep.subr.mxu0 0.0
      %6412 = vmatpush1.msra.mxu0 0.0
      %6413 = vmatprep.subr.mxu0 0.0
      %6414 = vmatpush1.msra.mxu0 0.0
      %6415 = vmatprep.subr.mxu0 0.0
      %6416 = vmatpush1.msra.mxu0 0.0
      %6417 = vmatprep.subr.mxu0 0.0
      %6418 = vmatpush1.msra.mxu0 0.0
      %6419 = vmatprep.subr.mxu0 0.0
      %6420 = vmatpush1.msra.mxu0 0.0
      %6421 = vmatprep.subr.mxu0 0.0
      %6422 = vmatpush1.msra.mxu0 0.0
      %6423 = vmatprep.subr.mxu0 0.0
      %6424 = vmatpush1.msra.mxu0 0.0
      %6425 = vmatprep.subr.mxu0 0.0
      %6426 = vmatpush1.msra.mxu0 0.0
      %6427 = vmatprep.subr.mxu0 0.0
      %6428 = vmatpush1.msra.mxu0 0.0
      %6429 = vmatprep.subr.mxu0 0.0
      %6430 = vmatpush1.msra.mxu0 0.0
      %6431 = vmatprep.subr.mxu0 0.0
      %6432 = vmatpush1.msra.mxu0 0.0
      %6433 = vmatprep.subr.mxu0 0.0
      %6434 = vmatpush1.msra.mxu0 0.0
      %6435 = vmatprep.subr.mxu0 0.0
      %6436 = vmatpush1.msra.mxu0 0.0
      %6437 = vmatprep.subr.mxu0 0.0
      %6438 = vmatpush1.msra.mxu0 0.0
      %6439 = vmatprep.subr.mxu0 0.0
      %6440 = vmatpush1.msra.mxu0 0.0
      %6441 = vmatprep.subr.mxu0 0.0
      %6442 = vmatpush1.msra.mxu0 0.0
      %6443 = vmatprep.subr.mxu0 0.0
      %6444 = vmatpush1.msra.mxu0 0.0
      %6445 = vmatprep.subr.mxu0 0.0
      %6446 = vmatpush1.msra.mxu0 0.0
      %6447 = vmatprep.subr.mxu0 0.0
      %6448 = vmatpush1.msra.mxu0 0.0
      %6449 = vmatprep.subr.mxu0 0.0
      %6450 = vmatpush1.msra.mxu0 0.0
      %6451 = vmatprep.subr.mxu0 0.0
      %6452 = vmatpush1.msra.mxu0 0.0
      %6453 = vmatprep.subr.mxu0 0.0
      %6454 = vmatpush1.msra.mxu0 0.0
      %6455 = vmatprep.subr.mxu0 0.0
      %6456 = vmatpush1.msra.mxu0 0.0
      %6457 = vmatprep.subr.mxu0 0.0
      %6458 = vmatpush1.msra.mxu0 0.0
      %6459 = vmatprep.subr.mxu0 0.0
      %6460 = vmatpush1.msra.mxu0 0.0
      %6461 = vmatprep.mubr.f32.mxu0 0.0
      %6462 = vmatmul.mubr.f32.gmra.mrb[0].mxu0 %v6158
      %v6463 = vpop.f32.mrb[0].mxu0
      %v6464 = vadd.f32 0.0, %v6463
      %v6465 = vpop.f32.mrb[0].mxu0
      %v6466 = vadd.f32 0.0, %v6465
      %6467 = vdwg.mxu0
      %v6468 = vadd.f32 %v6115, %v6251
      %v6469 = vadd.f32 %v6116, %v6253
      %v6470 = vadd.f32 %v6117, %v6322
      %v6471 = vadd.f32 %v6118, %v6324
      %v6472 = vadd.f32 %v6119, %v6393
      %v6473 = vadd.f32 %v6120, %v6395
      %v6474 = vadd.f32 %v6121, %v6464
      %v6475 = vadd.f32 %v6122, %v6466
      %6476 = vrot.lane.b32.xlu0 %v4046, 96
      %v6477 = vpop.permute.xlu0 %6476
      %6478 = vrot.lane.b32.xlu0 %v4047, 96
      %v6479 = vpop.permute.xlu0 %6478
      %6480 = vrot.lane.b32.xlu0 %v4048, 96
      %v6481 = vpop.permute.xlu0 %6480
      %6482 = vrot.lane.b32.xlu0 %v4049, 96
      %v6483 = vpop.permute.xlu0 %6482
      %6484 = vrot.lane.b32.xlu0 %v4050, 96
      %v6485 = vpop.permute.xlu0 %6484
      %6486 = vrot.lane.b32.xlu0 %v4051, 96
      %v6487 = vpop.permute.xlu0 %6486
      %6488 = vrot.lane.b32.xlu0 %v4052, 96
      %v6489 = vpop.permute.xlu0 %6488
      %6490 = vrot.lane.b32.xlu0 %v4053, 96
      %v6491 = vpop.permute.xlu0 %6490
      %v6492 = vsel %vm3102, %v6489, %v6491
      %v6493 = vsel %vm3102, %v6487, %v6489
      %v6494 = vsel %vm3102, %v6485, %v6487
      %v6495 = vsel %vm3102, %v6483, %v6485
      %v6496 = vsel %vm3102, %v6481, %v6483
      %v6497 = vsel %vm3102, %v6479, %v6481
      %v6498 = vsel %vm3102, %v6477, %v6479
      %v6499 = vsel %vm3102, %v6491, %v6477
      %v6500 = vmul.f32 %v6498, %v3117
      %v6501 = vmul.f32 %v6497, %v3121
      %v6502 = vmul.f32 %v6496, %v3125
      %v6503 = vmul.f32 %v6495, %v3129
      %v6504 = vmul.f32 %v6494, %v3133
      %v6505 = vmul.f32 %v6493, %v3137
      %v6506 = vmul.f32 %v6492, %v3141
      %v6507 = vmul.f32 %v6499, %v3145
      %s6508 = scalar_lea.vmem %s5, 56
      %v6509 = vld [vmem:[%s6508] sm:$0xff]
      %v6511 = vsel %vm561, %v6509, 0
      %v6514 = vsel %vm565, %v6500, 0
      %v6517 = vsel %vm565, %v6501, 0
      %v6520 = vsel %vm565, %v6502, 0
      %v6523 = vsel %vm565, %v6503, 0
      %v6526 = vsel %vm565, %v6504, 0
      %v6529 = vsel %vm565, %v6505, 0
      %v6532 = vsel %vm565, %v6506, 0
      %v6535 = vsel %vm565, %v6507, 0
      %6537 = vmatprep.subr.mxu0 %v6517
      %6538 = vmatpush1.msra.mxu0 %v6514
      %6539 = vmatprep.subr.mxu0 0.0
      %6540 = vmatpush1.msra.mxu0 0.0
      %6541 = vmatprep.subr.mxu0 0.0
      %6542 = vmatpush1.msra.mxu0 0.0
      %6543 = vmatprep.subr.mxu0 0.0
      %6544 = vmatpush1.msra.mxu0 0.0
      %6545 = vmatprep.subr.mxu0 0.0
      %6546 = vmatpush1.msra.mxu0 0.0
      %6547 = vmatprep.subr.mxu0 0.0
      %6548 = vmatpush1.msra.mxu0 0.0
      %6549 = vmatprep.subr.mxu0 0.0
      %6550 = vmatpush1.msra.mxu0 0.0
      %6551 = vmatprep.subr.mxu0 0.0
      %6552 = vmatpush1.msra.mxu0 0.0
      %6553 = vmatprep.subr.mxu0 0.0
      %6554 = vmatpush1.msra.mxu0 0.0
      %6555 = vmatprep.subr.mxu0 0.0
      %6556 = vmatpush1.msra.mxu0 0.0
      %6557 = vmatprep.subr.mxu0 0.0
      %6558 = vmatpush1.msra.mxu0 0.0
      %6559 = vmatprep.subr.mxu0 0.0
      %6560 = vmatpush1.msra.mxu0 0.0
      %6561 = vmatprep.subr.mxu0 0.0
      %6562 = vmatpush1.msra.mxu0 0.0
      %6563 = vmatprep.subr.mxu0 0.0
      %6564 = vmatpush1.msra.mxu0 0.0
      %6565 = vmatprep.subr.mxu0 0.0
      %6566 = vmatpush1.msra.mxu0 0.0
      %6567 = vmatprep.subr.mxu0 0.0
      %6568 = vmatpush1.msra.mxu0 0.0
      %6569 = vmatprep.subr.mxu0 0.0
      %6570 = vmatpush1.msra.mxu0 0.0
      %6571 = vmatprep.subr.mxu0 0.0
      %6572 = vmatpush1.msra.mxu0 0.0
      %6573 = vmatprep.subr.mxu0 0.0
      %6574 = vmatpush1.msra.mxu0 0.0
      %6575 = vmatprep.subr.mxu0 0.0
      %6576 = vmatpush1.msra.mxu0 0.0
      %6577 = vmatprep.subr.mxu0 0.0
      %6578 = vmatpush1.msra.mxu0 0.0
      %6579 = vmatprep.subr.mxu0 0.0
      %6580 = vmatpush1.msra.mxu0 0.0
      %6581 = vmatprep.subr.mxu0 0.0
      %6582 = vmatpush1.msra.mxu0 0.0
      %6583 = vmatprep.subr.mxu0 0.0
      %6584 = vmatpush1.msra.mxu0 0.0
      %6585 = vmatprep.subr.mxu0 0.0
      %6586 = vmatpush1.msra.mxu0 0.0
      %6587 = vmatprep.subr.mxu0 0.0
      %6588 = vmatpush1.msra.mxu0 0.0
      %6589 = vmatprep.subr.mxu0 0.0
      %6590 = vmatpush1.msra.mxu0 0.0
      %6591 = vmatprep.subr.mxu0 0.0
      %6592 = vmatpush1.msra.mxu0 0.0
      %6593 = vmatprep.subr.mxu0 0.0
      %6594 = vmatpush1.msra.mxu0 0.0
      %6595 = vmatprep.subr.mxu0 0.0
      %6596 = vmatpush1.msra.mxu0 0.0
      %6597 = vmatprep.subr.mxu0 0.0
      %6598 = vmatpush1.msra.mxu0 0.0
      %6599 = vmatprep.subr.mxu0 0.0
      %6600 = vmatpush1.msra.mxu0 0.0
      %6601 = vmatprep.mubr.f32.mxu0 0.0
      %6602 = vmatmul.mubr.f32.gmra.mrb[0].mxu0 %v6511
      %v6603 = vpop.f32.mrb[0].mxu0
      %v6604 = vadd.f32 0.0, %v6603
      %v6605 = vpop.f32.mrb[0].mxu0
      %v6606 = vadd.f32 0.0, %v6605
      %6607 = vdwg.mxu0
      %6608 = vmatprep.subr.mxu0 %v6523
      %6609 = vmatpush1.msra.mxu0 %v6520
      %6610 = vmatprep.subr.mxu0 0.0
      %6611 = vmatpush1.msra.mxu0 0.0
      %6612 = vmatprep.subr.mxu0 0.0
      %6613 = vmatpush1.msra.mxu0 0.0
      %6614 = vmatprep.subr.mxu0 0.0
      %6615 = vmatpush1.msra.mxu0 0.0
      %6616 = vmatprep.subr.mxu0 0.0
      %6617 = vmatpush1.msra.mxu0 0.0
      %6618 = vmatprep.subr.mxu0 0.0
      %6619 = vmatpush1.msra.mxu0 0.0
      %6620 = vmatprep.subr.mxu0 0.0
      %6621 = vmatpush1.msra.mxu0 0.0
      %6622 = vmatprep.subr.mxu0 0.0
      %6623 = vmatpush1.msra.mxu0 0.0
      %6624 = vmatprep.subr.mxu0 0.0
      %6625 = vmatpush1.msra.mxu0 0.0
      %6626 = vmatprep.subr.mxu0 0.0
      %6627 = vmatpush1.msra.mxu0 0.0
      %6628 = vmatprep.subr.mxu0 0.0
      %6629 = vmatpush1.msra.mxu0 0.0
      %6630 = vmatprep.subr.mxu0 0.0
      %6631 = vmatpush1.msra.mxu0 0.0
      %6632 = vmatprep.subr.mxu0 0.0
      %6633 = vmatpush1.msra.mxu0 0.0
      %6634 = vmatprep.subr.mxu0 0.0
      %6635 = vmatpush1.msra.mxu0 0.0
      %6636 = vmatprep.subr.mxu0 0.0
      %6637 = vmatpush1.msra.mxu0 0.0
      %6638 = vmatprep.subr.mxu0 0.0
      %6639 = vmatpush1.msra.mxu0 0.0
      %6640 = vmatprep.subr.mxu0 0.0
      %6641 = vmatpush1.msra.mxu0 0.0
      %6642 = vmatprep.subr.mxu0 0.0
      %6643 = vmatpush1.msra.mxu0 0.0
      %6644 = vmatprep.subr.mxu0 0.0
      %6645 = vmatpush1.msra.mxu0 0.0
      %6646 = vmatprep.subr.mxu0 0.0
      %6647 = vmatpush1.msra.mxu0 0.0
      %6648 = vmatprep.subr.mxu0 0.0
      %6649 = vmatpush1.msra.mxu0 0.0
      %6650 = vmatprep.subr.mxu0 0.0
      %6651 = vmatpush1.msra.mxu0 0.0
      %6652 = vmatprep.subr.mxu0 0.0
      %6653 = vmatpush1.msra.mxu0 0.0
      %6654 = vmatprep.subr.mxu0 0.0
      %6655 = vmatpush1.msra.mxu0 0.0
      %6656 = vmatprep.subr.mxu0 0.0
      %6657 = vmatpush1.msra.mxu0 0.0
      %6658 = vmatprep.subr.mxu0 0.0
      %6659 = vmatpush1.msra.mxu0 0.0
      %6660 = vmatprep.subr.mxu0 0.0
      %6661 = vmatpush1.msra.mxu0 0.0
      %6662 = vmatprep.subr.mxu0 0.0
      %6663 = vmatpush1.msra.mxu0 0.0
      %6664 = vmatprep.subr.mxu0 0.0
      %6665 = vmatpush1.msra.mxu0 0.0
      %6666 = vmatprep.subr.mxu0 0.0
      %6667 = vmatpush1.msra.mxu0 0.0
      %6668 = vmatprep.subr.mxu0 0.0
      %6669 = vmatpush1.msra.mxu0 0.0
      %6670 = vmatprep.subr.mxu0 0.0
      %6671 = vmatpush1.msra.mxu0 0.0
      %6672 = vmatprep.mubr.f32.mxu0 0.0
      %6673 = vmatmul.mubr.f32.gmra.mrb[0].mxu0 %v6511
      %v6674 = vpop.f32.mrb[0].mxu0
      %v6675 = vadd.f32 0.0, %v6674
      %v6676 = vpop.f32.mrb[0].mxu0
      %v6677 = vadd.f32 0.0, %v6676
      %6678 = vdwg.mxu0
      %6679 = vmatprep.subr.mxu0 %v6529
      %6680 = vmatpush1.msra.mxu0 %v6526
      %6681 = vmatprep.subr.mxu0 0.0
      %6682 = vmatpush1.msra.mxu0 0.0
      %6683 = vmatprep.subr.mxu0 0.0
      %6684 = vmatpush1.msra.mxu0 0.0
      %6685 = vmatprep.subr.mxu0 0.0
      %6686 = vmatpush1.msra.mxu0 0.0
      %6687 = vmatprep.subr.mxu0 0.0
      %6688 = vmatpush1.msra.mxu0 0.0
      %6689 = vmatprep.subr.mxu0 0.0
      %6690 = vmatpush1.msra.mxu0 0.0
      %6691 = vmatprep.subr.mxu0 0.0
      %6692 = vmatpush1.msra.mxu0 0.0
      %6693 = vmatprep.subr.mxu0 0.0
      %6694 = vmatpush1.msra.mxu0 0.0
      %6695 = vmatprep.subr.mxu0 0.0
      %6696 = vmatpush1.msra.mxu0 0.0
      %6697 = vmatprep.subr.mxu0 0.0
      %6698 = vmatpush1.msra.mxu0 0.0
      %6699 = vmatprep.subr.mxu0 0.0
      %6700 = vmatpush1.msra.mxu0 0.0
      %6701 = vmatprep.subr.mxu0 0.0
      %6702 = vmatpush1.msra.mxu0 0.0
      %6703 = vmatprep.subr.mxu0 0.0
      %6704 = vmatpush1.msra.mxu0 0.0
      %6705 = vmatprep.subr.mxu0 0.0
      %6706 = vmatpush1.msra.mxu0 0.0
      %6707 = vmatprep.subr.mxu0 0.0
      %6708 = vmatpush1.msra.mxu0 0.0
      %6709 = vmatprep.subr.mxu0 0.0
      %6710 = vmatpush1.msra.mxu0 0.0
      %6711 = vmatprep.subr.mxu0 0.0
      %6712 = vmatpush1.msra.mxu0 0.0
      %6713 = vmatprep.subr.mxu0 0.0
      %6714 = vmatpush1.msra.mxu0 0.0
      %6715 = vmatprep.subr.mxu0 0.0
      %6716 = vmatpush1.msra.mxu0 0.0
      %6717 = vmatprep.subr.mxu0 0.0
      %6718 = vmatpush1.msra.mxu0 0.0
      %6719 = vmatprep.subr.mxu0 0.0
      %6720 = vmatpush1.msra.mxu0 0.0
      %6721 = vmatprep.subr.mxu0 0.0
      %6722 = vmatpush1.msra.mxu0 0.0
      %6723 = vmatprep.subr.mxu0 0.0
      %6724 = vmatpush1.msra.mxu0 0.0
      %6725 = vmatprep.subr.mxu0 0.0
      %6726 = vmatpush1.msra.mxu0 0.0
      %6727 = vmatprep.subr.mxu0 0.0
      %6728 = vmatpush1.msra.mxu0 0.0
      %6729 = vmatprep.subr.mxu0 0.0
      %6730 = vmatpush1.msra.mxu0 0.0
      %6731 = vmatprep.subr.mxu0 0.0
      %6732 = vmatpush1.msra.mxu0 0.0
      %6733 = vmatprep.subr.mxu0 0.0
      %6734 = vmatpush1.msra.mxu0 0.0
      %6735 = vmatprep.subr.mxu0 0.0
      %6736 = vmatpush1.msra.mxu0 0.0
      %6737 = vmatprep.subr.mxu0 0.0
      %6738 = vmatpush1.msra.mxu0 0.0
      %6739 = vmatprep.subr.mxu0 0.0
      %6740 = vmatpush1.msra.mxu0 0.0
      %6741 = vmatprep.subr.mxu0 0.0
      %6742 = vmatpush1.msra.mxu0 0.0
      %6743 = vmatprep.mubr.f32.mxu0 0.0
      %6744 = vmatmul.mubr.f32.gmra.mrb[0].mxu0 %v6511
      %v6745 = vpop.f32.mrb[0].mxu0
      %v6746 = vadd.f32 0.0, %v6745
      %v6747 = vpop.f32.mrb[0].mxu0
      %v6748 = vadd.f32 0.0, %v6747
      %6749 = vdwg.mxu0
      %6750 = vmatprep.subr.mxu0 %v6535
      %6751 = vmatpush1.msra.mxu0 %v6532
      %6752 = vmatprep.subr.mxu0 0.0
      %6753 = vmatpush1.msra.mxu0 0.0
      %6754 = vmatprep.subr.mxu0 0.0
      %6755 = vmatpush1.msra.mxu0 0.0
      %6756 = vmatprep.subr.mxu0 0.0
      %6757 = vmatpush1.msra.mxu0 0.0
      %6758 = vmatprep.subr.mxu0 0.0
      %6759 = vmatpush1.msra.mxu0 0.0
      %6760 = vmatprep.subr.mxu0 0.0
      %6761 = vmatpush1.msra.mxu0 0.0
      %6762 = vmatprep.subr.mxu0 0.0
      %6763 = vmatpush1.msra.mxu0 0.0
      %6764 = vmatprep.subr.mxu0 0.0
      %6765 = vmatpush1.msra.mxu0 0.0
      %6766 = vmatprep.subr.mxu0 0.0
      %6767 = vmatpush1.msra.mxu0 0.0
      %6768 = vmatprep.subr.mxu0 0.0
      %6769 = vmatpush1.msra.mxu0 0.0
      %6770 = vmatprep.subr.mxu0 0.0
      %6771 = vmatpush1.msra.mxu0 0.0
      %6772 = vmatprep.subr.mxu0 0.0
      %6773 = vmatpush1.msra.mxu0 0.0
      %6774 = vmatprep.subr.mxu0 0.0
      %6775 = vmatpush1.msra.mxu0 0.0
      %6776 = vmatprep.subr.mxu0 0.0
      %6777 = vmatpush1.msra.mxu0 0.0
      %6778 = vmatprep.subr.mxu0 0.0
      %6779 = vmatpush1.msra.mxu0 0.0
      %6780 = vmatprep.subr.mxu0 0.0
      %6781 = vmatpush1.msra.mxu0 0.0
      %6782 = vmatprep.subr.mxu0 0.0
      %6783 = vmatpush1.msra.mxu0 0.0
      %6784 = vmatprep.subr.mxu0 0.0
      %6785 = vmatpush1.msra.mxu0 0.0
      %6786 = vmatprep.subr.mxu0 0.0
      %6787 = vmatpush1.msra.mxu0 0.0
      %6788 = vmatprep.subr.mxu0 0.0
      %6789 = vmatpush1.msra.mxu0 0.0
      %6790 = vmatprep.subr.mxu0 0.0
      %6791 = vmatpush1.msra.mxu0 0.0
      %6792 = vmatprep.subr.mxu0 0.0
      %6793 = vmatpush1.msra.mxu0 0.0
      %6794 = vmatprep.subr.mxu0 0.0
      %6795 = vmatpush1.msra.mxu0 0.0
      %6796 = vmatprep.subr.mxu0 0.0
      %6797 = vmatpush1.msra.mxu0 0.0
      %6798 = vmatprep.subr.mxu0 0.0
      %6799 = vmatpush1.msra.mxu0 0.0
      %6800 = vmatprep.subr.mxu0 0.0
      %6801 = vmatpush1.msra.mxu0 0.0
      %6802 = vmatprep.subr.mxu0 0.0
      %6803 = vmatpush1.msra.mxu0 0.0
      %6804 = vmatprep.subr.mxu0 0.0
      %6805 = vmatpush1.msra.mxu0 0.0
      %6806 = vmatprep.subr.mxu0 0.0
      %6807 = vmatpush1.msra.mxu0 0.0
      %6808 = vmatprep.subr.mxu0 0.0
      %6809 = vmatpush1.msra.mxu0 0.0
      %6810 = vmatprep.subr.mxu0 0.0
      %6811 = vmatpush1.msra.mxu0 0.0
      %6812 = vmatprep.subr.mxu0 0.0
      %6813 = vmatpush1.msra.mxu0 0.0
      %6814 = vmatprep.mubr.f32.mxu0 0.0
      %6815 = vmatmul.mubr.f32.gmra.mrb[0].mxu0 %v6511
      %v6816 = vpop.f32.mrb[0].mxu0
      %v6817 = vadd.f32 0.0, %v6816
      %v6818 = vpop.f32.mrb[0].mxu0
      %v6819 = vadd.f32 0.0, %v6818
      %6820 = vdwg.mxu0
      %v6821 = vadd.f32 %v6468, %v6604
      %v6822 = vadd.f32 %v6469, %v6606
      %v6823 = vadd.f32 %v6470, %v6675
      %v6824 = vadd.f32 %v6471, %v6677
      %v6825 = vadd.f32 %v6472, %v6746
      %v6826 = vadd.f32 %v6473, %v6748
      %v6827 = vadd.f32 %v6474, %v6817
      %v6828 = vadd.f32 %v6475, %v6819
      %6829 = vrot.lane.b32.xlu0 %v4046, 95
      %v6830 = vpop.permute.xlu0 %6829
      %6831 = vrot.lane.b32.xlu0 %v4047, 95
      %v6832 = vpop.permute.xlu0 %6831
      %6833 = vrot.lane.b32.xlu0 %v4048, 95
      %v6834 = vpop.permute.xlu0 %6833
      %6835 = vrot.lane.b32.xlu0 %v4049, 95
      %v6836 = vpop.permute.xlu0 %6835
      %6837 = vrot.lane.b32.xlu0 %v4050, 95
      %v6838 = vpop.permute.xlu0 %6837
      %6839 = vrot.lane.b32.xlu0 %v4051, 95
      %v6840 = vpop.permute.xlu0 %6839
      %6841 = vrot.lane.b32.xlu0 %v4052, 95
      %v6842 = vpop.permute.xlu0 %6841
      %6843 = vrot.lane.b32.xlu0 %v4053, 95
      %v6844 = vpop.permute.xlu0 %6843
      %v6845 = vsel %vm3499, %v6842, %v6844
      %v6846 = vsel %vm3499, %v6840, %v6842
      %v6847 = vsel %vm3499, %v6838, %v6840
      %v6848 = vsel %vm3499, %v6836, %v6838
      %v6849 = vsel %vm3499, %v6834, %v6836
      %v6850 = vsel %vm3499, %v6832, %v6834
      %v6851 = vsel %vm3499, %v6830, %v6832
      %v6852 = vsel %vm3499, %v6844, %v6830
      %v6853 = vmul.f32 %v6851, %v3514
      %v6854 = vmul.f32 %v6850, %v3518
      %v6855 = vmul.f32 %v6849, %v3522
      %v6856 = vmul.f32 %v6848, %v3526
      %v6857 = vmul.f32 %v6847, %v3530
      %v6858 = vmul.f32 %v6846, %v3534
      %v6859 = vmul.f32 %v6845, %v3538
      %v6860 = vmul.f32 %v6852, %v3542
      %s6861 = scalar_lea.vmem %s5, 64
      %v6862 = vld [vmem:[%s6861] sm:$0xff]
      %v6864 = vsel %vm561, %v6862, 0
      %v6867 = vsel %vm565, %v6853, 0
      %v6870 = vsel %vm565, %v6854, 0
      %v6873 = vsel %vm565, %v6855, 0
      %v6876 = vsel %vm565, %v6856, 0
      %v6879 = vsel %vm565, %v6857, 0
      %v6882 = vsel %vm565, %v6858, 0
      %v6885 = vsel %vm565, %v6859, 0
      %v6888 = vsel %vm565, %v6860, 0
      %6890 = vmatprep.subr.mxu0 %v6870
      %6891 = vmatpush1.msra.mxu0 %v6867
      %6892 = vmatprep.subr.mxu0 0.0
      %6893 = vmatpush1.msra.mxu0 0.0
      %6894 = vmatprep.subr.mxu0 0.0
      %6895 = vmatpush1.msra.mxu0 0.0
      %6896 = vmatprep.subr.mxu0 0.0
      %6897 = vmatpush1.msra.mxu0 0.0
      %6898 = vmatprep.subr.mxu0 0.0
      %6899 = vmatpush1.msra.mxu0 0.0
      %6900 = vmatprep.subr.mxu0 0.0
      %6901 = vmatpush1.msra.mxu0 0.0
      %6902 = vmatprep.subr.mxu0 0.0
      %6903 = vmatpush1.msra.mxu0 0.0
      %6904 = vmatprep.subr.mxu0 0.0
      %6905 = vmatpush1.msra.mxu0 0.0
      %6906 = vmatprep.subr.mxu0 0.0
      %6907 = vmatpush1.msra.mxu0 0.0
      %6908 = vmatprep.subr.mxu0 0.0
      %6909 = vmatpush1.msra.mxu0 0.0
      %6910 = vmatprep.subr.mxu0 0.0
      %6911 = vmatpush1.msra.mxu0 0.0
      %6912 = vmatprep.subr.mxu0 0.0
      %6913 = vmatpush1.msra.mxu0 0.0
      %6914 = vmatprep.subr.mxu0 0.0
      %6915 = vmatpush1.msra.mxu0 0.0
      %6916 = vmatprep.subr.mxu0 0.0
      %6917 = vmatpush1.msra.mxu0 0.0
      %6918 = vmatprep.subr.mxu0 0.0
      %6919 = vmatpush1.msra.mxu0 0.0
      %6920 = vmatprep.subr.mxu0 0.0
      %6921 = vmatpush1.msra.mxu0 0.0
      %6922 = vmatprep.subr.mxu0 0.0
      %6923 = vmatpush1.msra.mxu0 0.0
      %6924 = vmatprep.subr.mxu0 0.0
      %6925 = vmatpush1.msra.mxu0 0.0
      %6926 = vmatprep.subr.mxu0 0.0
      %6927 = vmatpush1.msra.mxu0 0.0
      %6928 = vmatprep.subr.mxu0 0.0
      %6929 = vmatpush1.msra.mxu0 0.0
      %6930 = vmatprep.subr.mxu0 0.0
      %6931 = vmatpush1.msra.mxu0 0.0
      %6932 = vmatprep.subr.mxu0 0.0
      %6933 = vmatpush1.msra.mxu0 0.0
      %6934 = vmatprep.subr.mxu0 0.0
      %6935 = vmatpush1.msra.mxu0 0.0
      %6936 = vmatprep.subr.mxu0 0.0
      %6937 = vmatpush1.msra.mxu0 0.0
      %6938 = vmatprep.subr.mxu0 0.0
      %6939 = vmatpush1.msra.mxu0 0.0
      %6940 = vmatprep.subr.mxu0 0.0
      %6941 = vmatpush1.msra.mxu0 0.0
      %6942 = vmatprep.subr.mxu0 0.0
      %6943 = vmatpush1.msra.mxu0 0.0
      %6944 = vmatprep.subr.mxu0 0.0
      %6945 = vmatpush1.msra.mxu0 0.0
      %6946 = vmatprep.subr.mxu0 0.0
      %6947 = vmatpush1.msra.mxu0 0.0
      %6948 = vmatprep.subr.mxu0 0.0
      %6949 = vmatpush1.msra.mxu0 0.0
      %6950 = vmatprep.subr.mxu0 0.0
      %6951 = vmatpush1.msra.mxu0 0.0
      %6952 = vmatprep.subr.mxu0 0.0
      %6953 = vmatpush1.msra.mxu0 0.0
      %6954 = vmatprep.mubr.f32.mxu0 0.0
      %6955 = vmatmul.mubr.f32.gmra.mrb[0].mxu0 %v6864
      %v6956 = vpop.f32.mrb[0].mxu0
      %v6957 = vadd.f32 0.0, %v6956
      %v6958 = vpop.f32.mrb[0].mxu0
      %v6959 = vadd.f32 0.0, %v6958
      %6960 = vdwg.mxu0
      %6961 = vmatprep.subr.mxu0 %v6876
      %6962 = vmatpush1.msra.mxu0 %v6873
      %6963 = vmatprep.subr.mxu0 0.0
      %6964 = vmatpush1.msra.mxu0 0.0
      %6965 = vmatprep.subr.mxu0 0.0
      %6966 = vmatpush1.msra.mxu0 0.0
      %6967 = vmatprep.subr.mxu0 0.0
      %6968 = vmatpush1.msra.mxu0 0.0
      %6969 = vmatprep.subr.mxu0 0.0
      %6970 = vmatpush1.msra.mxu0 0.0
      %6971 = vmatprep.subr.mxu0 0.0
      %6972 = vmatpush1.msra.mxu0 0.0
      %6973 = vmatprep.subr.mxu0 0.0
      %6974 = vmatpush1.msra.mxu0 0.0
      %6975 = vmatprep.subr.mxu0 0.0
      %6976 = vmatpush1.msra.mxu0 0.0
      %6977 = vmatprep.subr.mxu0 0.0
      %6978 = vmatpush1.msra.mxu0 0.0
      %6979 = vmatprep.subr.mxu0 0.0
      %6980 = vmatpush1.msra.mxu0 0.0
      %6981 = vmatprep.subr.mxu0 0.0
      %6982 = vmatpush1.msra.mxu0 0.0
      %6983 = vmatprep.subr.mxu0 0.0
      %6984 = vmatpush1.msra.mxu0 0.0
      %6985 = vmatprep.subr.mxu0 0.0
      %6986 = vmatpush1.msra.mxu0 0.0
      %6987 = vmatprep.subr.mxu0 0.0
      %6988 = vmatpush1.msra.mxu0 0.0
      %6989 = vmatprep.subr.mxu0 0.0
      %6990 = vmatpush1.msra.mxu0 0.0
      %6991 = vmatprep.subr.mxu0 0.0
      %6992 = vmatpush1.msra.mxu0 0.0
      %6993 = vmatprep.subr.mxu0 0.0
      %6994 = vmatpush1.msra.mxu0 0.0
      %6995 = vmatprep.subr.mxu0 0.0
      %6996 = vmatpush1.msra.mxu0 0.0
      %6997 = vmatprep.subr.mxu0 0.0
      %6998 = vmatpush1.msra.mxu0 0.0
      %6999 = vmatprep.subr.mxu0 0.0
      %7000 = vmatpush1.msra.mxu0 0.0
      %7001 = vmatprep.subr.mxu0 0.0
      %7002 = vmatpush1.msra.mxu0 0.0
      %7003 = vmatprep.subr.mxu0 0.0
      %7004 = vmatpush1.msra.mxu0 0.0
      %7005 = vmatprep.subr.mxu0 0.0
      %7006 = vmatpush1.msra.mxu0 0.0
      %7007 = vmatprep.subr.mxu0 0.0
      %7008 = vmatpush1.msra.mxu0 0.0
      %7009 = vmatprep.subr.mxu0 0.0
      %7010 = vmatpush1.msra.mxu0 0.0
      %7011 = vmatprep.subr.mxu0 0.0
      %7012 = vmatpush1.msra.mxu0 0.0
      %7013 = vmatprep.subr.mxu0 0.0
      %7014 = vmatpush1.msra.mxu0 0.0
      %7015 = vmatprep.subr.mxu0 0.0
      %7016 = vmatpush1.msra.mxu0 0.0
      %7017 = vmatprep.subr.mxu0 0.0
      %7018 = vmatpush1.msra.mxu0 0.0
      %7019 = vmatprep.subr.mxu0 0.0
      %7020 = vmatpush1.msra.mxu0 0.0
      %7021 = vmatprep.subr.mxu0 0.0
      %7022 = vmatpush1.msra.mxu0 0.0
      %7023 = vmatprep.subr.mxu0 0.0
      %7024 = vmatpush1.msra.mxu0 0.0
      %7025 = vmatprep.mubr.f32.mxu0 0.0
      %7026 = vmatmul.mubr.f32.gmra.mrb[0].mxu0 %v6864
      %v7027 = vpop.f32.mrb[0].mxu0
      %v7028 = vadd.f32 0.0, %v7027
      %v7029 = vpop.f32.mrb[0].mxu0
      %v7030 = vadd.f32 0.0, %v7029
      %7031 = vdwg.mxu0
      %7032 = vmatprep.subr.mxu0 %v6882
      %7033 = vmatpush1.msra.mxu0 %v6879
      %7034 = vmatprep.subr.mxu0 0.0
      %7035 = vmatpush1.msra.mxu0 0.0
      %7036 = vmatprep.subr.mxu0 0.0
      %7037 = vmatpush1.msra.mxu0 0.0
      %7038 = vmatprep.subr.mxu0 0.0
      %7039 = vmatpush1.msra.mxu0 0.0
      %7040 = vmatprep.subr.mxu0 0.0
      %7041 = vmatpush1.msra.mxu0 0.0
      %7042 = vmatprep.subr.mxu0 0.0
      %7043 = vmatpush1.msra.mxu0 0.0
      %7044 = vmatprep.subr.mxu0 0.0
      %7045 = vmatpush1.msra.mxu0 0.0
      %7046 = vmatprep.subr.mxu0 0.0
      %7047 = vmatpush1.msra.mxu0 0.0
      %7048 = vmatprep.subr.mxu0 0.0
      %7049 = vmatpush1.msra.mxu0 0.0
      %7050 = vmatprep.subr.mxu0 0.0
      %7051 = vmatpush1.msra.mxu0 0.0
      %7052 = vmatprep.subr.mxu0 0.0
      %7053 = vmatpush1.msra.mxu0 0.0
      %7054 = vmatprep.subr.mxu0 0.0
      %7055 = vmatpush1.msra.mxu0 0.0
      %7056 = vmatprep.subr.mxu0 0.0
      %7057 = vmatpush1.msra.mxu0 0.0
      %7058 = vmatprep.subr.mxu0 0.0
      %7059 = vmatpush1.msra.mxu0 0.0
      %7060 = vmatprep.subr.mxu0 0.0
      %7061 = vmatpush1.msra.mxu0 0.0
      %7062 = vmatprep.subr.mxu0 0.0
      %7063 = vmatpush1.msra.mxu0 0.0
      %7064 = vmatprep.subr.mxu0 0.0
      %7065 = vmatpush1.msra.mxu0 0.0
      %7066 = vmatprep.subr.mxu0 0.0
      %7067 = vmatpush1.msra.mxu0 0.0
      %7068 = vmatprep.subr.mxu0 0.0
      %7069 = vmatpush1.msra.mxu0 0.0
      %7070 = vmatprep.subr.mxu0 0.0
      %7071 = vmatpush1.msra.mxu0 0.0
      %7072 = vmatprep.subr.mxu0 0.0
      %7073 = vmatpush1.msra.mxu0 0.0
      %7074 = vmatprep.subr.mxu0 0.0
      %7075 = vmatpush1.msra.mxu0 0.0
      %7076 = vmatprep.subr.mxu0 0.0
      %7077 = vmatpush1.msra.mxu0 0.0
      %7078 = vmatprep.subr.mxu0 0.0
      %7079 = vmatpush1.msra.mxu0 0.0
      %7080 = vmatprep.subr.mxu0 0.0
      %7081 = vmatpush1.msra.mxu0 0.0
      %7082 = vmatprep.subr.mxu0 0.0
      %7083 = vmatpush1.msra.mxu0 0.0
      %7084 = vmatprep.subr.mxu0 0.0
      %7085 = vmatpush1.msra.mxu0 0.0
      %7086 = vmatprep.subr.mxu0 0.0
      %7087 = vmatpush1.msra.mxu0 0.0
      %7088 = vmatprep.subr.mxu0 0.0
      %7089 = vmatpush1.msra.mxu0 0.0
      %7090 = vmatprep.subr.mxu0 0.0
      %7091 = vmatpush1.msra.mxu0 0.0
      %7092 = vmatprep.subr.mxu0 0.0
      %7093 = vmatpush1.msra.mxu0 0.0
      %7094 = vmatprep.subr.mxu0 0.0
      %7095 = vmatpush1.msra.mxu0 0.0
      %7096 = vmatprep.mubr.f32.mxu0 0.0
      %7097 = vmatmul.mubr.f32.gmra.mrb[0].mxu0 %v6864
      %v7098 = vpop.f32.mrb[0].mxu0
      %v7099 = vadd.f32 0.0, %v7098
      %v7100 = vpop.f32.mrb[0].mxu0
      %v7101 = vadd.f32 0.0, %v7100
      %7102 = vdwg.mxu0
      %7103 = vmatprep.subr.mxu0 %v6888
      %7104 = vmatpush1.msra.mxu0 %v6885
      %7105 = vmatprep.subr.mxu0 0.0
      %7106 = vmatpush1.msra.mxu0 0.0
      %7107 = vmatprep.subr.mxu0 0.0
      %7108 = vmatpush1.msra.mxu0 0.0
      %7109 = vmatprep.subr.mxu0 0.0
      %7110 = vmatpush1.msra.mxu0 0.0
      %7111 = vmatprep.subr.mxu0 0.0
      %7112 = vmatpush1.msra.mxu0 0.0
      %7113 = vmatprep.subr.mxu0 0.0
      %7114 = vmatpush1.msra.mxu0 0.0
      %7115 = vmatprep.subr.mxu0 0.0
      %7116 = vmatpush1.msra.mxu0 0.0
      %7117 = vmatprep.subr.mxu0 0.0
      %7118 = vmatpush1.msra.mxu0 0.0
      %7119 = vmatprep.subr.mxu0 0.0
      %7120 = vmatpush1.msra.mxu0 0.0
      %7121 = vmatprep.subr.mxu0 0.0
      %7122 = vmatpush1.msra.mxu0 0.0
      %7123 = vmatprep.subr.mxu0 0.0
      %7124 = vmatpush1.msra.mxu0 0.0
      %7125 = vmatprep.subr.mxu0 0.0
      %7126 = vmatpush1.msra.mxu0 0.0
      %7127 = vmatprep.subr.mxu0 0.0
      %7128 = vmatpush1.msra.mxu0 0.0
      %7129 = vmatprep.subr.mxu0 0.0
      %7130 = vmatpush1.msra.mxu0 0.0
      %7131 = vmatprep.subr.mxu0 0.0
      %7132 = vmatpush1.msra.mxu0 0.0
      %7133 = vmatprep.subr.mxu0 0.0
      %7134 = vmatpush1.msra.mxu0 0.0
      %7135 = vmatprep.subr.mxu0 0.0
      %7136 = vmatpush1.msra.mxu0 0.0
      %7137 = vmatprep.subr.mxu0 0.0
      %7138 = vmatpush1.msra.mxu0 0.0
      %7139 = vmatprep.subr.mxu0 0.0
      %7140 = vmatpush1.msra.mxu0 0.0
      %7141 = vmatprep.subr.mxu0 0.0
      %7142 = vmatpush1.msra.mxu0 0.0
      %7143 = vmatprep.subr.mxu0 0.0
      %7144 = vmatpush1.msra.mxu0 0.0
      %7145 = vmatprep.subr.mxu0 0.0
      %7146 = vmatpush1.msra.mxu0 0.0
      %7147 = vmatprep.subr.mxu0 0.0
      %7148 = vmatpush1.msra.mxu0 0.0
      %7149 = vmatprep.subr.mxu0 0.0
      %7150 = vmatpush1.msra.mxu0 0.0
      %7151 = vmatprep.subr.mxu0 0.0
      %7152 = vmatpush1.msra.mxu0 0.0
      %7153 = vmatprep.subr.mxu0 0.0
      %7154 = vmatpush1.msra.mxu0 0.0
      %7155 = vmatprep.subr.mxu0 0.0
      %7156 = vmatpush1.msra.mxu0 0.0
      %7157 = vmatprep.subr.mxu0 0.0
      %7158 = vmatpush1.msra.mxu0 0.0
      %7159 = vmatprep.subr.mxu0 0.0
      %7160 = vmatpush1.msra.mxu0 0.0
      %7161 = vmatprep.subr.mxu0 0.0
      %7162 = vmatpush1.msra.mxu0 0.0
      %7163 = vmatprep.subr.mxu0 0.0
      %7164 = vmatpush1.msra.mxu0 0.0
      %7165 = vmatprep.subr.mxu0 0.0
      %7166 = vmatpush1.msra.mxu0 0.0
      %7167 = vmatprep.mubr.f32.mxu0 0.0
      %7168 = vmatmul.mubr.f32.gmra.mrb[0].mxu0 %v6864
      %v7169 = vpop.f32.mrb[0].mxu0
      %v7170 = vadd.f32 0.0, %v7169
      %v7171 = vpop.f32.mrb[0].mxu0
      %v7172 = vadd.f32 0.0, %v7171
      %7173 = vdwg.mxu0
      %v7174 = vadd.f32 %v6821, %v6957
      %v7175 = vadd.f32 %v6822, %v6959
      %v7176 = vadd.f32 %v6823, %v7028
      %v7177 = vadd.f32 %v6824, %v7030
      %v7178 = vadd.f32 %v6825, %v7099
      %v7179 = vadd.f32 %v6826, %v7101
      %v7180 = vadd.f32 %v6827, %v7170
      %v7181 = vadd.f32 %v6828, %v7172
      %v7182 = vld [vmem:[%s6] sm:$0xff]
      %7184 = vset.pattern.permute.xlu0 0
      %7185 = vperm.xlu0 %7184, %v7182
      %v7186 = vpop.permute.xlu0 %7185
      %v7188 = vadd.f32 %v7174, %v7186
      %v7189 = vadd.f32 %v7175, %v7186
      %v7190 = vadd.f32 %v7176, %v7186
      %v7191 = vadd.f32 %v7177, %v7186
      %v7192 = vadd.f32 %v7178, %v7186
      %v7193 = vadd.f32 %v7179, %v7186
      %v7194 = vadd.f32 %v7180, %v7186
      %v7195 = vadd.f32 %v7181, %v7186
      %v7196 = vmul.f32 %v7188, %v7188
      %v7197 = vmul.f32 %v7189, %v7189
      %v7198 = vmul.f32 %v7190, %v7190
      %v7199 = vmul.f32 %v7191, %v7191
      %v7200 = vmul.f32 %v7192, %v7192
      %v7201 = vmul.f32 %v7193, %v7193
      %v7202 = vmul.f32 %v7194, %v7194
      %v7203 = vmul.f32 %v7195, %v7195
      %v7204 = vrot.slane %v7196, 4
      %v7205 = vadd.f32 %v7196, %v7204
      %v7206 = vrot.slane %v7205, 2
      %v7207 = vadd.f32 %v7205, %v7206
      %v7208 = vrot.slane %v7207, 1
      %v7209 = vadd.f32 %v7207, %v7208
      %v7210 = vrot.slane %v7197, 4
      %v7211 = vadd.f32 %v7197, %v7210
      %v7212 = vrot.slane %v7211, 2
      %v7213 = vadd.f32 %v7211, %v7212
      %v7214 = vrot.slane %v7213, 1
      %v7215 = vadd.f32 %v7213, %v7214
      %v7216 = vrot.slane %v7198, 4
      %v7217 = vadd.f32 %v7198, %v7216
      %v7218 = vrot.slane %v7217, 2
      %v7219 = vadd.f32 %v7217, %v7218
      %v7220 = vrot.slane %v7219, 1
      %v7221 = vadd.f32 %v7219, %v7220
      %v7222 = vrot.slane %v7199, 4
      %v7223 = vadd.f32 %v7199, %v7222
      %v7224 = vrot.slane %v7223, 2
      %v7225 = vadd.f32 %v7223, %v7224
      %v7226 = vrot.slane %v7225, 1
      %v7227 = vadd.f32 %v7225, %v7226
      %v7228 = vrot.slane %v7200, 4
      %v7229 = vadd.f32 %v7200, %v7228
      %v7230 = vrot.slane %v7229, 2
      %v7231 = vadd.f32 %v7229, %v7230
      %v7232 = vrot.slane %v7231, 1
      %v7233 = vadd.f32 %v7231, %v7232
      %v7234 = vrot.slane %v7201, 4
      %v7235 = vadd.f32 %v7201, %v7234
      %v7236 = vrot.slane %v7235, 2
      %v7237 = vadd.f32 %v7235, %v7236
      %v7238 = vrot.slane %v7237, 1
      %v7239 = vadd.f32 %v7237, %v7238
      %v7240 = vrot.slane %v7202, 4
      %v7241 = vadd.f32 %v7202, %v7240
      %v7242 = vrot.slane %v7241, 2
      %v7243 = vadd.f32 %v7241, %v7242
      %v7244 = vrot.slane %v7243, 1
      %v7245 = vadd.f32 %v7243, %v7244
      %v7246 = vrot.slane %v7203, 4
      %v7247 = vadd.f32 %v7203, %v7246
      %v7248 = vrot.slane %v7247, 2
      %v7249 = vadd.f32 %v7247, %v7248
      %v7250 = vrot.slane %v7249, 1
      %v7251 = vadd.f32 %v7249, %v7250
      %v7252 = vrsqrt.pop %v7209
      %v7253 = vmul.f32 %v7209, %v7252
      %vm7254 = vcmp.eq.f32.partialorder %v7209, inf
      %v7255 = vsel %vm7254, %v7209, %v7253
      %vm7256 = vcmp.eq.f32.partialorder %v7209, 0.0
      %v7257 = vand.u32 %v7209, 2147483648
      %v7258 = vsel %vm7256, %v7257, %v7255
      %v7259 = vrsqrt.pop %v7215
      %v7260 = vmul.f32 %v7215, %v7259
      %vm7261 = vcmp.eq.f32.partialorder %v7215, inf
      %v7262 = vsel %vm7261, %v7215, %v7260
      %vm7263 = vcmp.eq.f32.partialorder %v7215, 0.0
      %v7264 = vand.u32 %v7215, 2147483648
      %v7265 = vsel %vm7263, %v7264, %v7262
      %v7266 = vrsqrt.pop %v7221
      %v7267 = vmul.f32 %v7221, %v7266
      %vm7268 = vcmp.eq.f32.partialorder %v7221, inf
      %v7269 = vsel %vm7268, %v7221, %v7267
      %vm7270 = vcmp.eq.f32.partialorder %v7221, 0.0
      %v7271 = vand.u32 %v7221, 2147483648
      %v7272 = vsel %vm7270, %v7271, %v7269
      %v7273 = vrsqrt.pop %v7227
      %v7274 = vmul.f32 %v7227, %v7273
      %vm7275 = vcmp.eq.f32.partialorder %v7227, inf
      %v7276 = vsel %vm7275, %v7227, %v7274
      %vm7277 = vcmp.eq.f32.partialorder %v7227, 0.0
      %v7278 = vand.u32 %v7227, 2147483648
      %v7279 = vsel %vm7277, %v7278, %v7276
      %v7280 = vrsqrt.pop %v7233
      %v7281 = vmul.f32 %v7233, %v7280
      %vm7282 = vcmp.eq.f32.partialorder %v7233, inf
      %v7283 = vsel %vm7282, %v7233, %v7281
      %vm7284 = vcmp.eq.f32.partialorder %v7233, 0.0
      %v7285 = vand.u32 %v7233, 2147483648
      %v7286 = vsel %vm7284, %v7285, %v7283
      %v7287 = vrsqrt.pop %v7239
      %v7288 = vmul.f32 %v7239, %v7287
      %vm7289 = vcmp.eq.f32.partialorder %v7239, inf
      %v7290 = vsel %vm7289, %v7239, %v7288
      %vm7291 = vcmp.eq.f32.partialorder %v7239, 0.0
      %v7292 = vand.u32 %v7239, 2147483648
      %v7293 = vsel %vm7291, %v7292, %v7290
      %v7294 = vrsqrt.pop %v7245
      %v7295 = vmul.f32 %v7245, %v7294
      %vm7296 = vcmp.eq.f32.partialorder %v7245, inf
      %v7297 = vsel %vm7296, %v7245, %v7295
      %vm7298 = vcmp.eq.f32.partialorder %v7245, 0.0
      %v7299 = vand.u32 %v7245, 2147483648
      %v7300 = vsel %vm7298, %v7299, %v7297
      %v7301 = vrsqrt.pop %v7251
      %v7302 = vmul.f32 %v7251, %v7301
      %vm7303 = vcmp.eq.f32.partialorder %v7251, inf
      %v7304 = vsel %vm7303, %v7251, %v7302
      %vm7305 = vcmp.eq.f32.partialorder %v7251, 0.0
      %v7306 = vand.u32 %v7251, 2147483648
      %v7307 = vsel %vm7305, %v7306, %v7304
      %v7308 = vadd.f32 %v7258, 1e-08
      %v7309 = vadd.f32 %v7265, 1e-08
      %v7310 = vadd.f32 %v7272, 1e-08
      %v7311 = vadd.f32 %v7279, 1e-08
      %v7312 = vadd.f32 %v7286, 1e-08
      %v7313 = vadd.f32 %v7293, 1e-08
      %v7314 = vadd.f32 %v7300, 1e-08
      %v7315 = vadd.f32 %v7307, 1e-08
      %v7316 = vrcp.pop %v7308
      %v7317 = vrcp.pop %v7309
      %v7318 = vrcp.pop %v7310
      %v7319 = vrcp.pop %v7311
      %v7320 = vrcp.pop %v7312
      %v7321 = vrcp.pop %v7313
      %v7322 = vrcp.pop %v7314
      %v7323 = vrcp.pop %v7315
      %v7324 = vmul.f32 %v7188, %v7316
      %v7325 = vmul.f32 %v7189, %v7317
      %v7326 = vmul.f32 %v7190, %v7318
      %v7327 = vmul.f32 %v7191, %v7319
      %v7328 = vmul.f32 %v7192, %v7320
      %v7329 = vmul.f32 %v7193, %v7321
      %v7330 = vmul.f32 %v7194, %v7322
      %v7331 = vmul.f32 %v7195, %v7323
      %v7332 = vmul.f32 %v7324, 0.2
      %v7333 = vmul.f32 %v7325, 0.2
      %v7334 = vmul.f32 %v7326, 0.2
      %v7335 = vmul.f32 %v7327, 0.2
      %v7336 = vmul.f32 %v7328, 0.2
      %v7337 = vmul.f32 %v7329, 0.2
      %v7338 = vmul.f32 %v7330, 0.2
      %v7339 = vmul.f32 %v7331, 0.2
      %v7340 = vmax.f32 %v7324, %v7332
      %v7341 = vmax.f32 %v7325, %v7333
      %v7342 = vmax.f32 %v7326, %v7334
      %v7343 = vmax.f32 %v7327, %v7335
      %v7344 = vmax.f32 %v7328, %v7336
      %v7345 = vmax.f32 %v7329, %v7337
      %v7346 = vmax.f32 %v7330, %v7338
      %v7347 = vmax.f32 %v7331, %v7339
      %s7348 = ssub.f32 1.0, %s388
      %v7349 = vld [vmem:[%s7] sm:$0x7]
      %v7350 = vstv %s7348
      %v7351 = vmul.f32 %v7350, %v7349
      %v7352 = vld [vmem:[%s9] sm:$0x7]
      %v7353 = vstv %s388
      %v7354 = vmul.f32 %v7353, %v7352
      %v7355 = vld [vmem:[%s8] sm:$0x7]
      %v7356 = vmul.f32 %v7350, %v7355
      %v7357 = vld [vmem:[%s10] sm:$0x7]
      %v7358 = vmul.f32 %v7353, %v7357
      %v7359 = vadd.f32 %v7356, %v7358
      %vm7360 = vcmask 64512
      %v7362 = vsel %vm7360, %v7354, 0
      %7364 = vmatprep.subr.mxu0 %v7341
      %7365 = vmatpush1.msra.mxu0 %v7340
      %7366 = vmatprep.subr.mxu0 0.0
      %7367 = vmatpush1.msra.mxu0 0.0
      %7368 = vmatprep.subr.mxu0 0.0
      %7369 = vmatpush1.msra.mxu0 0.0
      %7370 = vmatprep.subr.mxu0 0.0
      %7371 = vmatpush1.msra.mxu0 0.0
      %7372 = vmatprep.subr.mxu0 0.0
      %7373 = vmatpush1.msra.mxu0 0.0
      %7374 = vmatprep.subr.mxu0 0.0
      %7375 = vmatpush1.msra.mxu0 0.0
      %7376 = vmatprep.subr.mxu0 0.0
      %7377 = vmatpush1.msra.mxu0 0.0
      %7378 = vmatprep.subr.mxu0 0.0
      %7379 = vmatpush1.msra.mxu0 0.0
      %7380 = vmatprep.subr.mxu0 0.0
      %7381 = vmatpush1.msra.mxu0 0.0
      %7382 = vmatprep.subr.mxu0 0.0
      %7383 = vmatpush1.msra.mxu0 0.0
      %7384 = vmatprep.subr.mxu0 0.0
      %7385 = vmatpush1.msra.mxu0 0.0
      %7386 = vmatprep.subr.mxu0 0.0
      %7387 = vmatpush1.msra.mxu0 0.0
      %7388 = vmatprep.subr.mxu0 0.0
      %7389 = vmatpush1.msra.mxu0 0.0
      %7390 = vmatprep.subr.mxu0 0.0
      %7391 = vmatpush1.msra.mxu0 0.0
      %7392 = vmatprep.subr.mxu0 0.0
      %7393 = vmatpush1.msra.mxu0 0.0
      %7394 = vmatprep.subr.mxu0 0.0
      %7395 = vmatpush1.msra.mxu0 0.0
      %7396 = vmatprep.subr.mxu0 0.0
      %7397 = vmatpush1.msra.mxu0 0.0
      %7398 = vmatprep.subr.mxu0 0.0
      %7399 = vmatpush1.msra.mxu0 0.0
      %7400 = vmatprep.subr.mxu0 0.0
      %7401 = vmatpush1.msra.mxu0 0.0
      %7402 = vmatprep.subr.mxu0 0.0
      %7403 = vmatpush1.msra.mxu0 0.0
      %7404 = vmatprep.subr.mxu0 0.0
      %7405 = vmatpush1.msra.mxu0 0.0
      %7406 = vmatprep.subr.mxu0 0.0
      %7407 = vmatpush1.msra.mxu0 0.0
      %7408 = vmatprep.subr.mxu0 0.0
      %7409 = vmatpush1.msra.mxu0 0.0
      %7410 = vmatprep.subr.mxu0 0.0
      %7411 = vmatpush1.msra.mxu0 0.0
      %7412 = vmatprep.subr.mxu0 0.0
      %7413 = vmatpush1.msra.mxu0 0.0
      %7414 = vmatprep.subr.mxu0 0.0
      %7415 = vmatpush1.msra.mxu0 0.0
      %7416 = vmatprep.subr.mxu0 0.0
      %7417 = vmatpush1.msra.mxu0 0.0
      %7418 = vmatprep.subr.mxu0 0.0
      %7419 = vmatpush1.msra.mxu0 0.0
      %7420 = vmatprep.subr.mxu0 0.0
      %7421 = vmatpush1.msra.mxu0 0.0
      %7422 = vmatprep.subr.mxu0 0.0
      %7423 = vmatpush1.msra.mxu0 0.0
      %7424 = vmatprep.subr.mxu0 0.0
      %7425 = vmatpush1.msra.mxu0 0.0
      %7426 = vmatprep.subr.mxu0 0.0
      %7427 = vmatpush1.msra.mxu0 0.0
      %7428 = vmatprep.mubr.f32.mxu0 0.0
      %7429 = vmatmul.mubr.f32.gmra.mrb[0].mxu0 %v7362
      %v7430 = vpop.f32.mrb[0].mxu0
      %v7431 = vadd.f32 0.0, %v7430
      %v7432 = vpop.f32.mrb[0].mxu0
      %v7433 = vadd.f32 0.0, %v7432
      %7434 = vdwg.mxu0
      %7435 = vmatprep.subr.mxu0 %v7343
      %7436 = vmatpush1.msra.mxu0 %v7342
      %7437 = vmatprep.subr.mxu0 0.0
      %7438 = vmatpush1.msra.mxu0 0.0
      %7439 = vmatprep.subr.mxu0 0.0
      %7440 = vmatpush1.msra.mxu0 0.0
      %7441 = vmatprep.subr.mxu0 0.0
      %7442 = vmatpush1.msra.mxu0 0.0
      %7443 = vmatprep.subr.mxu0 0.0
      %7444 = vmatpush1.msra.mxu0 0.0
      %7445 = vmatprep.subr.mxu0 0.0
      %7446 = vmatpush1.msra.mxu0 0.0
      %7447 = vmatprep.subr.mxu0 0.0
      %7448 = vmatpush1.msra.mxu0 0.0
      %7449 = vmatprep.subr.mxu0 0.0
      %7450 = vmatpush1.msra.mxu0 0.0
      %7451 = vmatprep.subr.mxu0 0.0
      %7452 = vmatpush1.msra.mxu0 0.0
      %7453 = vmatprep.subr.mxu0 0.0
      %7454 = vmatpush1.msra.mxu0 0.0
      %7455 = vmatprep.subr.mxu0 0.0
      %7456 = vmatpush1.msra.mxu0 0.0
      %7457 = vmatprep.subr.mxu0 0.0
      %7458 = vmatpush1.msra.mxu0 0.0
      %7459 = vmatprep.subr.mxu0 0.0
      %7460 = vmatpush1.msra.mxu0 0.0
      %7461 = vmatprep.subr.mxu0 0.0
      %7462 = vmatpush1.msra.mxu0 0.0
      %7463 = vmatprep.subr.mxu0 0.0
      %7464 = vmatpush1.msra.mxu0 0.0
      %7465 = vmatprep.subr.mxu0 0.0
      %7466 = vmatpush1.msra.mxu0 0.0
      %7467 = vmatprep.subr.mxu0 0.0
      %7468 = vmatpush1.msra.mxu0 0.0
      %7469 = vmatprep.subr.mxu0 0.0
      %7470 = vmatpush1.msra.mxu0 0.0
      %7471 = vmatprep.subr.mxu0 0.0
      %7472 = vmatpush1.msra.mxu0 0.0
      %7473 = vmatprep.subr.mxu0 0.0
      %7474 = vmatpush1.msra.mxu0 0.0
      %7475 = vmatprep.subr.mxu0 0.0
      %7476 = vmatpush1.msra.mxu0 0.0
      %7477 = vmatprep.subr.mxu0 0.0
      %7478 = vmatpush1.msra.mxu0 0.0
      %7479 = vmatprep.subr.mxu0 0.0
      %7480 = vmatpush1.msra.mxu0 0.0
      %7481 = vmatprep.subr.mxu0 0.0
      %7482 = vmatpush1.msra.mxu0 0.0
      %7483 = vmatprep.subr.mxu0 0.0
      %7484 = vmatpush1.msra.mxu0 0.0
      %7485 = vmatprep.subr.mxu0 0.0
      %7486 = vmatpush1.msra.mxu0 0.0
      %7487 = vmatprep.subr.mxu0 0.0
      %7488 = vmatpush1.msra.mxu0 0.0
      %7489 = vmatprep.subr.mxu0 0.0
      %7490 = vmatpush1.msra.mxu0 0.0
      %7491 = vmatprep.subr.mxu0 0.0
      %7492 = vmatpush1.msra.mxu0 0.0
      %7493 = vmatprep.subr.mxu0 0.0
      %7494 = vmatpush1.msra.mxu0 0.0
      %7495 = vmatprep.subr.mxu0 0.0
      %7496 = vmatpush1.msra.mxu0 0.0
      %7497 = vmatprep.subr.mxu0 0.0
      %7498 = vmatpush1.msra.mxu0 0.0
      %7499 = vmatprep.mubr.f32.mxu0 0.0
      %7500 = vmatmul.mubr.f32.gmra.mrb[0].mxu0 %v7362
      %v7501 = vpop.f32.mrb[0].mxu0
      %v7502 = vadd.f32 0.0, %v7501
      %v7503 = vpop.f32.mrb[0].mxu0
      %v7504 = vadd.f32 0.0, %v7503
      %7505 = vdwg.mxu0
      %7506 = vmatprep.subr.mxu0 %v7345
      %7507 = vmatpush1.msra.mxu0 %v7344
      %7508 = vmatprep.subr.mxu0 0.0
      %7509 = vmatpush1.msra.mxu0 0.0
      %7510 = vmatprep.subr.mxu0 0.0
      %7511 = vmatpush1.msra.mxu0 0.0
      %7512 = vmatprep.subr.mxu0 0.0
      %7513 = vmatpush1.msra.mxu0 0.0
      %7514 = vmatprep.subr.mxu0 0.0
      %7515 = vmatpush1.msra.mxu0 0.0
      %7516 = vmatprep.subr.mxu0 0.0
      %7517 = vmatpush1.msra.mxu0 0.0
      %7518 = vmatprep.subr.mxu0 0.0
      %7519 = vmatpush1.msra.mxu0 0.0
      %7520 = vmatprep.subr.mxu0 0.0
      %7521 = vmatpush1.msra.mxu0 0.0
      %7522 = vmatprep.subr.mxu0 0.0
      %7523 = vmatpush1.msra.mxu0 0.0
      %7524 = vmatprep.subr.mxu0 0.0
      %7525 = vmatpush1.msra.mxu0 0.0
      %7526 = vmatprep.subr.mxu0 0.0
      %7527 = vmatpush1.msra.mxu0 0.0
      %7528 = vmatprep.subr.mxu0 0.0
      %7529 = vmatpush1.msra.mxu0 0.0
      %7530 = vmatprep.subr.mxu0 0.0
      %7531 = vmatpush1.msra.mxu0 0.0
      %7532 = vmatprep.subr.mxu0 0.0
      %7533 = vmatpush1.msra.mxu0 0.0
      %7534 = vmatprep.subr.mxu0 0.0
      %7535 = vmatpush1.msra.mxu0 0.0
      %7536 = vmatprep.subr.mxu0 0.0
      %7537 = vmatpush1.msra.mxu0 0.0
      %7538 = vmatprep.subr.mxu0 0.0
      %7539 = vmatpush1.msra.mxu0 0.0
      %7540 = vmatprep.subr.mxu0 0.0
      %7541 = vmatpush1.msra.mxu0 0.0
      %7542 = vmatprep.subr.mxu0 0.0
      %7543 = vmatpush1.msra.mxu0 0.0
      %7544 = vmatprep.subr.mxu0 0.0
      %7545 = vmatpush1.msra.mxu0 0.0
      %7546 = vmatprep.subr.mxu0 0.0
      %7547 = vmatpush1.msra.mxu0 0.0
      %7548 = vmatprep.subr.mxu0 0.0
      %7549 = vmatpush1.msra.mxu0 0.0
      %7550 = vmatprep.subr.mxu0 0.0
      %7551 = vmatpush1.msra.mxu0 0.0
      %7552 = vmatprep.subr.mxu0 0.0
      %7553 = vmatpush1.msra.mxu0 0.0
      %7554 = vmatprep.subr.mxu0 0.0
      %7555 = vmatpush1.msra.mxu0 0.0
      %7556 = vmatprep.subr.mxu0 0.0
      %7557 = vmatpush1.msra.mxu0 0.0
      %7558 = vmatprep.subr.mxu0 0.0
      %7559 = vmatpush1.msra.mxu0 0.0
      %7560 = vmatprep.subr.mxu0 0.0
      %7561 = vmatpush1.msra.mxu0 0.0
      %7562 = vmatprep.subr.mxu0 0.0
      %7563 = vmatpush1.msra.mxu0 0.0
      %7564 = vmatprep.subr.mxu0 0.0
      %7565 = vmatpush1.msra.mxu0 0.0
      %7566 = vmatprep.subr.mxu0 0.0
      %7567 = vmatpush1.msra.mxu0 0.0
      %7568 = vmatprep.subr.mxu0 0.0
      %7569 = vmatpush1.msra.mxu0 0.0
      %7570 = vmatprep.mubr.f32.mxu0 0.0
      %7571 = vmatmul.mubr.f32.gmra.mrb[0].mxu0 %v7362
      %v7572 = vpop.f32.mrb[0].mxu0
      %v7573 = vadd.f32 0.0, %v7572
      %v7574 = vpop.f32.mrb[0].mxu0
      %v7575 = vadd.f32 0.0, %v7574
      %7576 = vdwg.mxu0
      %7577 = vmatprep.subr.mxu0 %v7347
      %7578 = vmatpush1.msra.mxu0 %v7346
      %7579 = vmatprep.subr.mxu0 0.0
      %7580 = vmatpush1.msra.mxu0 0.0
      %7581 = vmatprep.subr.mxu0 0.0
      %7582 = vmatpush1.msra.mxu0 0.0
      %7583 = vmatprep.subr.mxu0 0.0
      %7584 = vmatpush1.msra.mxu0 0.0
      %7585 = vmatprep.subr.mxu0 0.0
      %7586 = vmatpush1.msra.mxu0 0.0
      %7587 = vmatprep.subr.mxu0 0.0
      %7588 = vmatpush1.msra.mxu0 0.0
      %7589 = vmatprep.subr.mxu0 0.0
      %7590 = vmatpush1.msra.mxu0 0.0
      %7591 = vmatprep.subr.mxu0 0.0
      %7592 = vmatpush1.msra.mxu0 0.0
      %7593 = vmatprep.subr.mxu0 0.0
      %7594 = vmatpush1.msra.mxu0 0.0
      %7595 = vmatprep.subr.mxu0 0.0
      %7596 = vmatpush1.msra.mxu0 0.0
      %7597 = vmatprep.subr.mxu0 0.0
      %7598 = vmatpush1.msra.mxu0 0.0
      %7599 = vmatprep.subr.mxu0 0.0
      %7600 = vmatpush1.msra.mxu0 0.0
      %7601 = vmatprep.subr.mxu0 0.0
      %7602 = vmatpush1.msra.mxu0 0.0
      %7603 = vmatprep.subr.mxu0 0.0
      %7604 = vmatpush1.msra.mxu0 0.0
      %7605 = vmatprep.subr.mxu0 0.0
      %7606 = vmatpush1.msra.mxu0 0.0
      %7607 = vmatprep.subr.mxu0 0.0
      %7608 = vmatpush1.msra.mxu0 0.0
      %7609 = vmatprep.subr.mxu0 0.0
      %7610 = vmatpush1.msra.mxu0 0.0
      %7611 = vmatprep.subr.mxu0 0.0
      %7612 = vmatpush1.msra.mxu0 0.0
      %7613 = vmatprep.subr.mxu0 0.0
      %7614 = vmatpush1.msra.mxu0 0.0
      %7615 = vmatprep.subr.mxu0 0.0
      %7616 = vmatpush1.msra.mxu0 0.0
      %7617 = vmatprep.subr.mxu0 0.0
      %7618 = vmatpush1.msra.mxu0 0.0
      %7619 = vmatprep.subr.mxu0 0.0
      %7620 = vmatpush1.msra.mxu0 0.0
      %7621 = vmatprep.subr.mxu0 0.0
      %7622 = vmatpush1.msra.mxu0 0.0
      %7623 = vmatprep.subr.mxu0 0.0
      %7624 = vmatpush1.msra.mxu0 0.0
      %7625 = vmatprep.subr.mxu0 0.0
      %7626 = vmatpush1.msra.mxu0 0.0
      %7627 = vmatprep.subr.mxu0 0.0
      %7628 = vmatpush1.msra.mxu0 0.0
      %7629 = vmatprep.subr.mxu0 0.0
      %7630 = vmatpush1.msra.mxu0 0.0
      %7631 = vmatprep.subr.mxu0 0.0
      %7632 = vmatpush1.msra.mxu0 0.0
      %7633 = vmatprep.subr.mxu0 0.0
      %7634 = vmatpush1.msra.mxu0 0.0
      %7635 = vmatprep.subr.mxu0 0.0
      %7636 = vmatpush1.msra.mxu0 0.0
      %7637 = vmatprep.subr.mxu0 0.0
      %7638 = vmatpush1.msra.mxu0 0.0
      %7639 = vmatprep.subr.mxu0 0.0
      %7640 = vmatpush1.msra.mxu0 0.0
      %7641 = vmatprep.mubr.f32.mxu0 0.0
      %7642 = vmatmul.mubr.f32.gmra.mrb[0].mxu0 %v7362
      %v7643 = vpop.f32.mrb[0].mxu0
      %v7644 = vadd.f32 0.0, %v7643
      %v7645 = vpop.f32.mrb[0].mxu0
      %v7646 = vadd.f32 0.0, %v7645
      %7647 = vdwg.mxu0
      %v7649 = vsel %vm561, %v7351, 0
      %7651 = vmatprep.subr.mxu0 %v1986
      %7652 = vmatpush1.msra.mxu0 %v1984
      %7653 = vmatprep.subr.mxu0 0.0
      %7654 = vmatpush1.msra.mxu0 0.0
      %7655 = vmatprep.subr.mxu0 0.0
      %7656 = vmatpush1.msra.mxu0 0.0
      %7657 = vmatprep.subr.mxu0 0.0
      %7658 = vmatpush1.msra.mxu0 0.0
      %7659 = vmatprep.subr.mxu0 0.0
      %7660 = vmatpush1.msra.mxu0 0.0
      %7661 = vmatprep.subr.mxu0 0.0
      %7662 = vmatpush1.msra.mxu0 0.0
      %7663 = vmatprep.subr.mxu0 0.0
      %7664 = vmatpush1.msra.mxu0 0.0
      %7665 = vmatprep.subr.mxu0 0.0
      %7666 = vmatpush1.msra.mxu0 0.0
      %7667 = vmatprep.subr.mxu0 0.0
      %7668 = vmatpush1.msra.mxu0 0.0
      %7669 = vmatprep.subr.mxu0 0.0
      %7670 = vmatpush1.msra.mxu0 0.0
      %7671 = vmatprep.subr.mxu0 0.0
      %7672 = vmatpush1.msra.mxu0 0.0
      %7673 = vmatprep.subr.mxu0 0.0
      %7674 = vmatpush1.msra.mxu0 0.0
      %7675 = vmatprep.subr.mxu0 0.0
      %7676 = vmatpush1.msra.mxu0 0.0
      %7677 = vmatprep.subr.mxu0 0.0
      %7678 = vmatpush1.msra.mxu0 0.0
      %7679 = vmatprep.subr.mxu0 0.0
      %7680 = vmatpush1.msra.mxu0 0.0
      %7681 = vmatprep.subr.mxu0 0.0
      %7682 = vmatpush1.msra.mxu0 0.0
      %7683 = vmatprep.subr.mxu0 0.0
      %7684 = vmatpush1.msra.mxu0 0.0
      %7685 = vmatprep.subr.mxu0 0.0
      %7686 = vmatpush1.msra.mxu0 0.0
      %7687 = vmatprep.subr.mxu0 0.0
      %7688 = vmatpush1.msra.mxu0 0.0
      %7689 = vmatprep.subr.mxu0 0.0
      %7690 = vmatpush1.msra.mxu0 0.0
      %7691 = vmatprep.subr.mxu0 0.0
      %7692 = vmatpush1.msra.mxu0 0.0
      %7693 = vmatprep.subr.mxu0 0.0
      %7694 = vmatpush1.msra.mxu0 0.0
      %7695 = vmatprep.subr.mxu0 0.0
      %7696 = vmatpush1.msra.mxu0 0.0
      %7697 = vmatprep.subr.mxu0 0.0
      %7698 = vmatpush1.msra.mxu0 0.0
      %7699 = vmatprep.subr.mxu0 0.0
      %7700 = vmatpush1.msra.mxu0 0.0
      %7701 = vmatprep.subr.mxu0 0.0
      %7702 = vmatpush1.msra.mxu0 0.0
      %7703 = vmatprep.subr.mxu0 0.0
      %7704 = vmatpush1.msra.mxu0 0.0
      %7705 = vmatprep.subr.mxu0 0.0
      %7706 = vmatpush1.msra.mxu0 0.0
      %7707 = vmatprep.subr.mxu0 0.0
      %7708 = vmatpush1.msra.mxu0 0.0
      %7709 = vmatprep.subr.mxu0 0.0
      %7710 = vmatpush1.msra.mxu0 0.0
      %7711 = vmatprep.subr.mxu0 0.0
      %7712 = vmatpush1.msra.mxu0 0.0
      %7713 = vmatprep.subr.mxu0 0.0
      %7714 = vmatpush1.msra.mxu0 0.0
      %7715 = vmatprep.mubr.f32.mxu0 0.0
      %7716 = vmatmul.mubr.f32.gmra.mrb[0].mxu0 %v7649
      %v7717 = vpop.f32.mrb[0].mxu0
      %v7718 = vadd.f32 %v7431, %v7717
      %v7719 = vpop.f32.mrb[0].mxu0
      %v7720 = vadd.f32 %v7433, %v7719
      %7721 = vdwg.mxu0
      %7722 = vmatprep.subr.mxu0 %v1990
      %7723 = vmatpush1.msra.mxu0 %v1988
      %7724 = vmatprep.subr.mxu0 0.0
      %7725 = vmatpush1.msra.mxu0 0.0
      %7726 = vmatprep.subr.mxu0 0.0
      %7727 = vmatpush1.msra.mxu0 0.0
      %7728 = vmatprep.subr.mxu0 0.0
      %7729 = vmatpush1.msra.mxu0 0.0
      %7730 = vmatprep.subr.mxu0 0.0
      %7731 = vmatpush1.msra.mxu0 0.0
      %7732 = vmatprep.subr.mxu0 0.0
      %7733 = vmatpush1.msra.mxu0 0.0
      %7734 = vmatprep.subr.mxu0 0.0
      %7735 = vmatpush1.msra.mxu0 0.0
      %7736 = vmatprep.subr.mxu0 0.0
      %7737 = vmatpush1.msra.mxu0 0.0
      %7738 = vmatprep.subr.mxu0 0.0
      %7739 = vmatpush1.msra.mxu0 0.0
      %7740 = vmatprep.subr.mxu0 0.0
      %7741 = vmatpush1.msra.mxu0 0.0
      %7742 = vmatprep.subr.mxu0 0.0
      %7743 = vmatpush1.msra.mxu0 0.0
      %7744 = vmatprep.subr.mxu0 0.0
      %7745 = vmatpush1.msra.mxu0 0.0
      %7746 = vmatprep.subr.mxu0 0.0
      %7747 = vmatpush1.msra.mxu0 0.0
      %7748 = vmatprep.subr.mxu0 0.0
      %7749 = vmatpush1.msra.mxu0 0.0
      %7750 = vmatprep.subr.mxu0 0.0
      %7751 = vmatpush1.msra.mxu0 0.0
      %7752 = vmatprep.subr.mxu0 0.0
      %7753 = vmatpush1.msra.mxu0 0.0
      %7754 = vmatprep.subr.mxu0 0.0
      %7755 = vmatpush1.msra.mxu0 0.0
      %7756 = vmatprep.subr.mxu0 0.0
      %7757 = vmatpush1.msra.mxu0 0.0
      %7758 = vmatprep.subr.mxu0 0.0
      %7759 = vmatpush1.msra.mxu0 0.0
      %7760 = vmatprep.subr.mxu0 0.0
      %7761 = vmatpush1.msra.mxu0 0.0
      %7762 = vmatprep.subr.mxu0 0.0
      %7763 = vmatpush1.msra.mxu0 0.0
      %7764 = vmatprep.subr.mxu0 0.0
      %7765 = vmatpush1.msra.mxu0 0.0
      %7766 = vmatprep.subr.mxu0 0.0
      %7767 = vmatpush1.msra.mxu0 0.0
      %7768 = vmatprep.subr.mxu0 0.0
      %7769 = vmatpush1.msra.mxu0 0.0
      %7770 = vmatprep.subr.mxu0 0.0
      %7771 = vmatpush1.msra.mxu0 0.0
      %7772 = vmatprep.subr.mxu0 0.0
      %7773 = vmatpush1.msra.mxu0 0.0
      %7774 = vmatprep.subr.mxu0 0.0
      %7775 = vmatpush1.msra.mxu0 0.0
      %7776 = vmatprep.subr.mxu0 0.0
      %7777 = vmatpush1.msra.mxu0 0.0
      %7778 = vmatprep.subr.mxu0 0.0
      %7779 = vmatpush1.msra.mxu0 0.0
      %7780 = vmatprep.subr.mxu0 0.0
      %7781 = vmatpush1.msra.mxu0 0.0
      %7782 = vmatprep.subr.mxu0 0.0
      %7783 = vmatpush1.msra.mxu0 0.0
      %7784 = vmatprep.subr.mxu0 0.0
      %7785 = vmatpush1.msra.mxu0 0.0
      %7786 = vmatprep.mubr.f32.mxu0 0.0
      %7787 = vmatmul.mubr.f32.gmra.mrb[0].mxu0 %v7649
      %v7788 = vpop.f32.mrb[0].mxu0
      %v7789 = vadd.f32 %v7502, %v7788
      %v7790 = vpop.f32.mrb[0].mxu0
      %v7791 = vadd.f32 %v7504, %v7790
      %7792 = vdwg.mxu0
      %7793 = vmatprep.subr.mxu0 %v1994
      %7794 = vmatpush1.msra.mxu0 %v1992
      %7795 = vmatprep.subr.mxu0 0.0
      %7796 = vmatpush1.msra.mxu0 0.0
      %7797 = vmatprep.subr.mxu0 0.0
      %7798 = vmatpush1.msra.mxu0 0.0
      %7799 = vmatprep.subr.mxu0 0.0
      %7800 = vmatpush1.msra.mxu0 0.0
      %7801 = vmatprep.subr.mxu0 0.0
      %7802 = vmatpush1.msra.mxu0 0.0
      %7803 = vmatprep.subr.mxu0 0.0
      %7804 = vmatpush1.msra.mxu0 0.0
      %7805 = vmatprep.subr.mxu0 0.0
      %7806 = vmatpush1.msra.mxu0 0.0
      %7807 = vmatprep.subr.mxu0 0.0
      %7808 = vmatpush1.msra.mxu0 0.0
      %7809 = vmatprep.subr.mxu0 0.0
      %7810 = vmatpush1.msra.mxu0 0.0
      %7811 = vmatprep.subr.mxu0 0.0
      %7812 = vmatpush1.msra.mxu0 0.0
      %7813 = vmatprep.subr.mxu0 0.0
      %7814 = vmatpush1.msra.mxu0 0.0
      %7815 = vmatprep.subr.mxu0 0.0
      %7816 = vmatpush1.msra.mxu0 0.0
      %7817 = vmatprep.subr.mxu0 0.0
      %7818 = vmatpush1.msra.mxu0 0.0
      %7819 = vmatprep.subr.mxu0 0.0
      %7820 = vmatpush1.msra.mxu0 0.0
      %7821 = vmatprep.subr.mxu0 0.0
      %7822 = vmatpush1.msra.mxu0 0.0
      %7823 = vmatprep.subr.mxu0 0.0
      %7824 = vmatpush1.msra.mxu0 0.0
      %7825 = vmatprep.subr.mxu0 0.0
      %7826 = vmatpush1.msra.mxu0 0.0
      %7827 = vmatprep.subr.mxu0 0.0
      %7828 = vmatpush1.msra.mxu0 0.0
      %7829 = vmatprep.subr.mxu0 0.0
      %7830 = vmatpush1.msra.mxu0 0.0
      %7831 = vmatprep.subr.mxu0 0.0
      %7832 = vmatpush1.msra.mxu0 0.0
      %7833 = vmatprep.subr.mxu0 0.0
      %7834 = vmatpush1.msra.mxu0 0.0
      %7835 = vmatprep.subr.mxu0 0.0
      %7836 = vmatpush1.msra.mxu0 0.0
      %7837 = vmatprep.subr.mxu0 0.0
      %7838 = vmatpush1.msra.mxu0 0.0
      %7839 = vmatprep.subr.mxu0 0.0
      %7840 = vmatpush1.msra.mxu0 0.0
      %7841 = vmatprep.subr.mxu0 0.0
      %7842 = vmatpush1.msra.mxu0 0.0
      %7843 = vmatprep.subr.mxu0 0.0
      %7844 = vmatpush1.msra.mxu0 0.0
      %7845 = vmatprep.subr.mxu0 0.0
      %7846 = vmatpush1.msra.mxu0 0.0
      %7847 = vmatprep.subr.mxu0 0.0
      %7848 = vmatpush1.msra.mxu0 0.0
      %7849 = vmatprep.subr.mxu0 0.0
      %7850 = vmatpush1.msra.mxu0 0.0
      %7851 = vmatprep.subr.mxu0 0.0
      %7852 = vmatpush1.msra.mxu0 0.0
      %7853 = vmatprep.subr.mxu0 0.0
      %7854 = vmatpush1.msra.mxu0 0.0
      %7855 = vmatprep.subr.mxu0 0.0
      %7856 = vmatpush1.msra.mxu0 0.0
      %7857 = vmatprep.mubr.f32.mxu0 0.0
      %7858 = vmatmul.mubr.f32.gmra.mrb[0].mxu0 %v7649
      %v7859 = vpop.f32.mrb[0].mxu0
      %v7860 = vadd.f32 %v7573, %v7859
      %v7861 = vpop.f32.mrb[0].mxu0
      %v7862 = vadd.f32 %v7575, %v7861
      %7863 = vdwg.mxu0
      %7864 = vmatprep.subr.mxu0 %v1998
      %7865 = vmatpush1.msra.mxu0 %v1996
      %7866 = vmatprep.subr.mxu0 0.0
      %7867 = vmatpush1.msra.mxu0 0.0
      %7868 = vmatprep.subr.mxu0 0.0
      %7869 = vmatpush1.msra.mxu0 0.0
      %7870 = vmatprep.subr.mxu0 0.0
      %7871 = vmatpush1.msra.mxu0 0.0
      %7872 = vmatprep.subr.mxu0 0.0
      %7873 = vmatpush1.msra.mxu0 0.0
      %7874 = vmatprep.subr.mxu0 0.0
      %7875 = vmatpush1.msra.mxu0 0.0
      %7876 = vmatprep.subr.mxu0 0.0
      %7877 = vmatpush1.msra.mxu0 0.0
      %7878 = vmatprep.subr.mxu0 0.0
      %7879 = vmatpush1.msra.mxu0 0.0
      %7880 = vmatprep.subr.mxu0 0.0
      %7881 = vmatpush1.msra.mxu0 0.0
      %7882 = vmatprep.subr.mxu0 0.0
      %7883 = vmatpush1.msra.mxu0 0.0
      %7884 = vmatprep.subr.mxu0 0.0
      %7885 = vmatpush1.msra.mxu0 0.0
      %7886 = vmatprep.subr.mxu0 0.0
      %7887 = vmatpush1.msra.mxu0 0.0
      %7888 = vmatprep.subr.mxu0 0.0
      %7889 = vmatpush1.msra.mxu0 0.0
      %7890 = vmatprep.subr.mxu0 0.0
      %7891 = vmatpush1.msra.mxu0 0.0
      %7892 = vmatprep.subr.mxu0 0.0
      %7893 = vmatpush1.msra.mxu0 0.0
      %7894 = vmatprep.subr.mxu0 0.0
      %7895 = vmatpush1.msra.mxu0 0.0
      %7896 = vmatprep.subr.mxu0 0.0
      %7897 = vmatpush1.msra.mxu0 0.0
      %7898 = vmatprep.subr.mxu0 0.0
      %7899 = vmatpush1.msra.mxu0 0.0
      %7900 = vmatprep.subr.mxu0 0.0
      %7901 = vmatpush1.msra.mxu0 0.0
      %7902 = vmatprep.subr.mxu0 0.0
      %7903 = vmatpush1.msra.mxu0 0.0
      %7904 = vmatprep.subr.mxu0 0.0
      %7905 = vmatpush1.msra.mxu0 0.0
      %7906 = vmatprep.subr.mxu0 0.0
      %7907 = vmatpush1.msra.mxu0 0.0
      %7908 = vmatprep.subr.mxu0 0.0
      %7909 = vmatpush1.msra.mxu0 0.0
      %7910 = vmatprep.subr.mxu0 0.0
      %7911 = vmatpush1.msra.mxu0 0.0
      %7912 = vmatprep.subr.mxu0 0.0
      %7913 = vmatpush1.msra.mxu0 0.0
      %7914 = vmatprep.subr.mxu0 0.0
      %7915 = vmatpush1.msra.mxu0 0.0
      %7916 = vmatprep.subr.mxu0 0.0
      %7917 = vmatpush1.msra.mxu0 0.0
      %7918 = vmatprep.subr.mxu0 0.0
      %7919 = vmatpush1.msra.mxu0 0.0
      %7920 = vmatprep.subr.mxu0 0.0
      %7921 = vmatpush1.msra.mxu0 0.0
      %7922 = vmatprep.subr.mxu0 0.0
      %7923 = vmatpush1.msra.mxu0 0.0
      %7924 = vmatprep.subr.mxu0 0.0
      %7925 = vmatpush1.msra.mxu0 0.0
      %7926 = vmatprep.subr.mxu0 0.0
      %7927 = vmatpush1.msra.mxu0 0.0
      %7928 = vmatprep.mubr.f32.mxu0 0.0
      %7929 = vmatmul.mubr.f32.gmra.mrb[0].mxu0 %v7649
      %v7930 = vpop.f32.mrb[0].mxu0
      %v7931 = vadd.f32 %v7644, %v7930
      %v7932 = vpop.f32.mrb[0].mxu0
      %v7933 = vadd.f32 %v7646, %v7932
      %7934 = vdwg.mxu0
      %7936 = vset.pattern.permute.xlu0 0
      %7937 = vperm.xlu0 %7936, %v7359
      %v7938 = vpop.permute.xlu0 %7937
      %v7940 = vadd.f32 %v7718, %v7938
      %v7941 = vadd.f32 %v7720, %v7938
      %v7942 = vadd.f32 %v7789, %v7938
      %v7943 = vadd.f32 %v7791, %v7938
      %v7944 = vadd.f32 %v7860, %v7938
      %v7945 = vadd.f32 %v7862, %v7938
      %v7946 = vadd.f32 %v7931, %v7938
      %v7947 = vadd.f32 %v7933, %v7938
      %v7956 = vcombine.low %v7940, %v7941
      %v7957 = vcombine.low %v7942, %v7943
      %v7958 = vcombine.low %v7944, %v7945
      %v7959 = vcombine.low %v7946, %v7947
      %7964 = vst [vmem:[%s387] sm:$0x77] %v7956
      %7965 = vst [vmem:[%s387 + $0x8] sm:$0x77] %v7957
      %7966 = vst [vmem:[%s387 + $0x10] sm:$0x77] %v7958
      %7967 = vst [vmem:[%s387 + $0x18] sm:$0x77] %v7959
      %p7968 = scmp.lt.s32.totalorder %s23, 1
      %s7969 = scalar_select %p7968, %s23, 1
      %s7970 = smul.addr %s7969, 8
      %s7971 = smul.addr %s7970, 4
      %s7972 = scalar_lea.vmem %s11, %s7971
      // Predicated region
      $region65: #{lerp_forward.1} parent=63 // pred_check
        %p7973 = pneg %p277
      $region66: #{lerp_forward.1} parent=63 // pred_check_branch
        %7975 = sbr.rel (%p7973) target = $region68
      $region67: #{lerp_forward.1} parent=63 // pred_region
        _
      $region68: #{lerp_forward.1} parent=63 // pred_fallthru
        _
    $region64: #{lerp_forward.1} parent=5 // pred_fallthru
      _
    %p7976 = scmp.le.s32.totalorder 2, %s18
    // Predicated region
    $region69: #{lerp_forward.1} parent=5 // pred_check
      %p7977 = pneg %p7976
    $region70: #{lerp_forward.1} parent=5 // pred_check_branch
      %7979 = sbr.rel (%p7977) target = $region72
    $region71: #{lerp_forward.1} parent=5 // pred_region
      %s7980 = ssub.s32 %s18, 2
      // Predicated region
      $region73: #{lerp_forward.1} parent=71 // pred_check
        %p7981 = pneg %p283
      $region74: #{lerp_forward.1} parent=71 // pred_check_branch
        %7983 = sbr.rel (%p7981) target = $region76
      $region75: #{lerp_forward.1} parent=71 // pred_region
        %p7984 = scmp.lt.s32.totalorder %s24, 1
        %s7985 = scalar_select %p7984, %s24, 1
        %s7986 = smul.addr %s7985, 8
        %s7987 = smul.addr %s7986, 4
        %s7988 = scalar_lea.vmem %s11, %s7987
      $region76: #{lerp_forward.1} parent=71 // pred_fallthru
        _
    $region72: #{lerp_forward.1} parent=5 // pred_fallthru
      _
  $region6: #{lerp_forward.1} parent=0 // loop_footer
    %s22 = sadd.s32 1, %s18
  $region7: #{lerp_forward.1} parent=0 // loop_footer_branch
    %17 = sbr.rel target = $region3
  $region8: #{lerp_forward.1} parent=0 // loop_exit
    _

</llo_original>
